<compile_context>
chip_gen: v5e
topology: v5e:2x2
jax: 0.10.0
libtpu: 0.0.40
codegen_flags: <defaults>
</compile_context>

<pallas_src>
import functools
import math

import jax
import jax.numpy as jnp
from jax import lax
from jax.experimental import pallas as pl
from jax.experimental.pallas import tpu as pltpu


def _round_up(x, m):
    return ((x + m - 1) // m) * m


def _vmem_limit(request_bytes):
    """Clamp an explicit scoped-VMEM request to the chip's capacity."""
    try:
        cap = pltpu.get_tpu_info().vmem_capacity_bytes
    except Exception:            # unknown chip — fall back to compiler default
        return None
    return int(min(request_bytes, (cap * 3) // 4))


# ----------------------------------------------------------------------------
# Pallas kernel 1: RPN head (3x3 conv + ReLU fused with the two 1x1 convs)
# ----------------------------------------------------------------------------
def rpn_head_kernel(x_hbm, w3_ref, b3_ref, wf_ref, bf_ref, out_ref,
                    xbuf, sem, *, taps, tile_rows, slab_rows, n_tiles):
    # x_hbm: (required, Cp) bf16 zero-padded feature, flattened over
    # (padded-row, padded-col), resident in HBM.  Each grid step DMAs its
    # halo'd window [i*tile, i*tile + slab) into the double-buffered xbuf.
    i = pl.program_id(0)
    cp = w3_ref.shape[1]

    def start_fetch(step, slot):
        pltpu.make_async_copy(
            x_hbm.at[pl.ds(step * tile_rows, slab_rows), :],
            xbuf.at[slot], sem.at[slot]).start()

    @pl.when(i == 0)
    def _prime():
        start_fetch(0, 0)

    slot = lax.rem(i, 2)
    # wait for the current slab (descriptor shape must match the started copy)
    pltpu.make_async_copy(
        x_hbm.at[pl.ds(0, slab_rows), :], xbuf.at[slot], sem.at[slot]).wait()

    @pl.when(i + 1 < n_tiles)
    def _prefetch():
        start_fetch(i + 1, 1 - slot)

    xs = xbuf.at[slot]                     # (slab, Cp) bf16 view of current slab
    # 3x3 conv as 9 accumulated MXU matmuls over row-shifted slices (f32 acc):
    # tap (dy, dx) of flat output position p is slab row p + dy*Wp + dx.
    hidden = jnp.dot(xs[pl.ds(taps[0], tile_rows), :],
                     w3_ref[pl.ds(0, cp), :],
                     preferred_element_type=jnp.float32)
    for t in range(1, 9):
        hidden = hidden + jnp.dot(xs[pl.ds(taps[t], tile_rows), :],
                                  w3_ref[pl.ds(t * cp, cp), :],
                                  preferred_element_type=jnp.float32)
    hidden = jnp.maximum(hidden + b3_ref[...], 0.0)        # bias + ReLU in f32
    out = jnp.dot(hidden.astype(wf_ref.dtype), wf_ref[...],
                  preferred_element_type=jnp.float32)
    out_ref[...] = (out + bf_ref[...]).astype(out_ref.dtype)   # lane-dense bf16


def rpn_head_pallas(x_hwc, w3, b3, wc, bc, wb, bb):
    """x_hwc: (H, W, C). Returns objectness (H*W*A,) f32 and deltas (H*W*A, 4) f32."""
    H, W, C = x_hwc.shape
    A = wc.shape[1]
    Hp, Wp = H + 2, W + 2
    HW = H * W

    # pad channels to a lane-dense multiple of 128 (MXU density for small C)
    Cp = max(128, _round_up(C, 128))

    # fused 1x1 head weight (cls ++ bbox), lane-padded to a multiple of 128
    n_out = 5 * A
    n_pad = max(128, _round_up(n_out, 128))
    wf = jnp.zeros((Cp, n_pad), jnp.float32)
    wf = wf.at[:C, :A].set(wc).at[:C, A:n_out].set(wb)
    bf = jnp.zeros((1, n_pad), jnp.float32)
    bf = bf.at[:, :A].set(bc).at[:, A:n_out].set(bb)
    # 3x3 conv weight in tap-major (9*Cp, Cp) contraction layout
    w3p = jnp.zeros((9, Cp, Cp), jnp.float32).at[:, :C, :C].set(w3)
    w3f = w3p.reshape(9 * Cp, Cp)
    b3p = jnp.zeros((1, Cp), jnp.float32).at[:, :C].set(b3)

    # bf16 first, then zero-pad spatially / in channels and flatten over
    # (padded-row, padded-col) — one pass, no slab duplication in HBM.
    xb = jnp.pad(x_hwc.astype(jnp.bfloat16), ((1, 1), (1, 1), (0, Cp - C)))
    xflat = xb.reshape(Hp * Wp, Cp)

    total = H * Wp                        # rows computed (x >= W columns are garbage)
    halo = 2 * Wp + 2                     # largest tap offset
    tile = min(2048, _round_up(-(-total // 2), 16))   # >= 2 tiles when possible
    n_tiles = -(-total // tile)
    total_p = n_tiles * tile
    slab = _round_up(tile + halo, 16)
    required = (n_tiles - 1) * tile + slab            # >= Hp*Wp by construction
    xflat = jnp.concatenate(
        [xflat, jnp.zeros((required - Hp * Wp, Cp), xflat.dtype)], axis=0)

    taps = tuple(dy * Wp + dx for dy in range(3) for dx in range(3))
    kern = functools.partial(rpn_head_kernel, taps=taps, tile_rows=tile,
                             slab_rows=slab, n_tiles=n_tiles)

    full = lambda shape: pl.BlockSpec(shape, lambda i: (0,) * len(shape))
    out = pl.pallas_call(
        kern,
        out_shape=jax.ShapeDtypeStruct((total_p, n_pad), jnp.bfloat16),
        grid=(n_tiles,),
        in_specs=[pl.BlockSpec(memory_space=pl.ANY),      # feature stays in HBM
                  full((9 * Cp, Cp)), full((1, Cp)),
                  full((Cp, n_pad)), full((1, n_pad))],
        out_specs=pl.BlockSpec((tile, n_pad), lambda i: (i, 0)),
        scratch_shapes=[pltpu.VMEM((2, slab, Cp), jnp.bfloat16),
                        pltpu.SemaphoreType.DMA((2,))],
        compiler_params=pltpu.CompilerParams(
            # sequential: the manual DMA chain primes at step 0 and prefetches
            # step i+1 from step i, so grid steps must run in order on one core.
            dimension_semantics=("arbitrary",),
            vmem_limit_bytes=_vmem_limit(48 * 1024 * 1024)),
    )(xflat, w3f.astype(jnp.bfloat16), b3p, wf.astype(jnp.bfloat16), bf)

    # drop padded-width garbage columns, row padding and lane padding
    # TODO(synk): fold this trim into the kernel by gridding over image rows.
    out = out[:total].reshape(H, Wp, n_pad)[:, :W, :].reshape(HW, n_pad)
    obj = out[:, :A].astype(jnp.float32).reshape(-1)
    delta = out[:, A:n_out].astype(jnp.float32).reshape(-1, 4)
    return obj, delta


# ----------------------------------------------------------------------------
# Pallas kernel 2: box decode + clip + min-size filter -> packed (8, K) output
# ----------------------------------------------------------------------------
def decode_clip_kernel(delta_ref, anchor_ref, score_ref, out_ref, *,
                       reg_weights, bbox_xform_clip, img_h, img_w, min_size):
    d = delta_ref[...]    # (4, K)
    a = anchor_ref[...]   # (4, K)
    s = score_ref[...]    # (1, K)  (already sorted descending; pad = -inf)

    wx, wy, ww, wh = reg_weights
    dx = d[0:1, :] / wx
    dy = d[1:2, :] / wy
    dw = jnp.minimum(d[2:3, :] / ww, bbox_xform_clip)
    dh = jnp.minimum(d[3:4, :] / wh, bbox_xform_clip)

    width = a[2:3, :] - a[0:1, :]
    height = a[3:4, :] - a[1:2, :]
    ctr_x = a[0:1, :] + 0.5 * width
    ctr_y = a[1:2, :] + 0.5 * height

    pred_ctr_x = dx * width + ctr_x
    pred_ctr_y = dy * height + ctr_y
    pred_w = jnp.exp(dw) * width
    pred_h = jnp.exp(dh) * height

    xmin = jnp.clip(pred_ctr_x - 0.5 * pred_w, 0.0, img_w)
    ymin = jnp.clip(pred_ctr_y - 0.5 * pred_h, 0.0, img_h)
    xmax = jnp.clip(pred_ctr_x + 0.5 * pred_w, 0.0, img_w)
    ymax = jnp.clip(pred_ctr_y + 0.5 * pred_h, 0.0, img_h)

    valid = (((xmax - xmin) >= min_size) & ((ymax - ymin) >= min_size)
             & (s > -jnp.inf))
    area = (xmax - xmin) * (ymax - ymin)
    out_ref[...] = jnp.concatenate(
        [xmin, ymin, xmax, ymax, valid.astype(jnp.float32), area,
         jnp.zeros((2, xmin.shape[1]), jnp.float32)], axis=0)


def decode_clip_pallas(delta_t, anchor_t, score, *, reg_weights, img_shape,
                       min_size):
    """delta_t/anchor_t: (4, K); score: (1, K). Returns packed (8, K) boxes/valid/area."""
    K = delta_t.shape[1]
    kern = functools.partial(
        decode_clip_kernel,
        reg_weights=tuple(float(w) for w in reg_weights),
        bbox_xform_clip=float(math.log(1000.0 / 16)),
        img_h=float(img_shape[0]), img_w=float(img_shape[1]),
        min_size=float(min_size))
    full = lambda shape: pl.BlockSpec(shape, lambda i: (0,) * len(shape))
    return pl.pallas_call(
        kern,
        out_shape=jax.ShapeDtypeStruct((8, K), jnp.float32),
        grid=(1,),
        in_specs=[full((4, K)), full((4, K)), full((1, K))],
        out_specs=full((8, K)),
        compiler_params=pltpu.CompilerParams(
            dimension_semantics=("arbitrary",),
            vmem_limit_bytes=_vmem_limit(32 * 1024 * 1024)),
    )(delta_t, anchor_t, score)


# ----------------------------------------------------------------------------
# Pallas kernel 3: greedy NMS suppression (on-the-fly IoU rows, no KxK scratch,
#                  unrolled suppression loop with early exit)
# ----------------------------------------------------------------------------
def nms_kernel(box_ref, scal_ref, keep_ref, cnt_ref, *,
               nms_thresh, k, chunk, max_keep):
    # box_ref : (8, K) VMEM  rows 0-3 = x1,y1,x2,y2; 4 = valid; 5 = area
    # scal_ref: (5*K,) SMEM  [x1 | y1 | x2 | y2 | area] for per-box scalar reads
    b = box_ref[...]
    x1r, y1r = b[0:1, :], b[1:2, :]
    x2r, y2r = b[2:3, :], b[3:4, :]
    valid = b[4:5, :]
    area_r = b[5:6, :]
    lane = lax.broadcasted_iota(jnp.int32, (1, k), 1)

    keep_ref[...] = valid
    cnt_ref[...] = jnp.zeros((1, 1), jnp.float32)

    def suppress_one(idx, keep):
        x1i = scal_ref[idx]
        y1i = scal_ref[k + idx]
        x2i = scal_ref[2 * k + idx]
        y2i = scal_ref[3 * k + idx]
        ai = scal_ref[4 * k + idx]
        # is box idx itself still kept?  (single cross-lane extract, used vectorially)
        ki = jnp.sum(jnp.where(lane == idx, keep, 0.0), axis=1, keepdims=True)
        iw = jnp.maximum(jnp.minimum(x2i, x2r) - jnp.maximum(x1i, x1r), 0.0)
        ih = jnp.maximum(jnp.minimum(y2i, y2r) - jnp.maximum(y1i, y1r), 0.0)
        inter = iw * ih
        iou = inter / jnp.maximum(ai + area_r - inter, 1e-8)
        supp = (iou > nms_thresh) & (lane > idx) & (ki > 0.0)
        return jnp.where(supp, 0.0, keep)

    def chunk_body(ci, carry):
        # early exit: once max_keep boxes among the processed prefix are kept,
        # later (lower-scored) boxes cannot enter the final post-NMS set.
        @pl.when(cnt_ref[0, 0] < max_keep)
        def _():
            base = ci * chunk
            keep = keep_ref[...]
            for u in range(chunk):                       # unrolled by `chunk`
                keep = suppress_one(base + u, keep)
            keep_ref[...] = keep
            cnt_ref[...] = jnp.sum(
                jnp.where(lane < base + chunk, keep, 0.0),
                axis=1, keepdims=True)
        return carry

    lax.fori_loop(0, k // chunk, chunk_body, jnp.int32(0))


def nms_pallas(box8, box_scal, *, nms_thresh, max_keep):
    K = box8.shape[1]
    chunk = 8
    assert K % chunk == 0
    kern = functools.partial(nms_kernel, nms_thresh=float(nms_thresh), k=K,
                             chunk=chunk, max_keep=int(max_keep))
    full = lambda shape: pl.BlockSpec(shape, lambda i: (0,) * len(shape))
    return pl.pallas_call(
        kern,
        out_shape=jax.ShapeDtypeStruct((1, K), jnp.float32),
        grid=(1,),
        in_specs=[full((8, K)),
                  pl.BlockSpec(memory_space=pltpu.MemorySpace.SMEM)],
        out_specs=full((1, K)),
        scratch_shapes=[pltpu.VMEM((1, 1), jnp.float32)],
        compiler_params=pltpu.CompilerParams(
            dimension_semantics=("arbitrary",),
            vmem_limit_bytes=_vmem_limit(32 * 1024 * 1024)),
    )(box8, box_scal)


# ----------------------------------------------------------------------------
# Plain-JAX glue: anchor generation, top-k, post-NMS selection
# ----------------------------------------------------------------------------
def make_anchors(sizes, ratios, grid_size, stride):
    sizes = jnp.asarray(sizes, jnp.float32)
    ratios = jnp.asarray(ratios, jnp.float32)
    h_ratios = jnp.sqrt(ratios)
    w_ratios = 1.0 / h_ratios
    hs = (sizes[:, None] * h_ratios[None, :]).reshape(-1)
    ws = (sizes[:, None] * w_ratios[None, :]).reshape(-1)
    cell = jnp.stack([-ws, -hs, ws, hs], axis=1) / 2.0            # (A, 4)
    sx = jnp.arange(grid_size[1], dtype=jnp.float32) * stride[1]
    sy = jnp.arange(grid_size[0], dtype=jnp.float32) * stride[0]
    y, x = jnp.meshgrid(sy, sx, indexing="ij")
    x, y = x.reshape(-1), y.reshape(-1)
    shift = jnp.stack([x, y, x, y], axis=1).reshape(-1, 1, 4)
    return (shift + cell[None, :, :]).reshape(-1, 4)              # (H*W*A, 4)


# ----------------------------------------------------------------------------
# Full RPN forward (inference)
# ----------------------------------------------------------------------------
def rpn_forward(feature_nchw, image_shape, params, cfg):
    assert feature_nchw.shape[0] == 1, "reference RPN implementation is single-image"
    # cast to bf16 first so the CHW->HWC relayout moves half the bytes
    x = jnp.transpose(feature_nchw[0].astype(jnp.bfloat16), (1, 2, 0))
    H, W, _ = x.shape
    A = params["wc"].shape[1]

    # anchors (same ordering as the PyTorch AnchorGenerator: anchor-index fastest)
    stride = (image_shape[0] // H, image_shape[1] // W)
    anchors = make_anchors(cfg["sizes"], cfg["ratios"], (H, W), stride)  # (HWA,4)

    # head (Pallas): conv3x3 + relu fused with the 1x1 cls/bbox convs
    objectness, pred_delta = rpn_head_pallas(x, params["w3"], params["b3"],
                                             params["wc"], params["bc"],
                                             params["wb"], params["bb"])

    # create_proposal: pre-NMS top-k via the hardware-friendly approximate top-k
    # (aggregate_to_topk=True -> results sorted descending, like torch.topk)
    pre_n = min(objectness.shape[0], cfg["pre_nms_top_n"])
    scores, top_idx = lax.approx_max_k(objectness, pre_n, recall_target=0.95,
                                       aggregate_to_topk=True)
    d_sel = pred_delta[top_idx]                     # (K, 4)
    a_sel = anchors[top_idx]                        # (K, 4)

    # pad K to a multiple of 128 so the decode / NMS tensors stay lane-dense
    Kp = _round_up(pre_n, 128)
    pad = Kp - pre_n
    if pad:
        scores = jnp.concatenate([scores, jnp.full((pad,), -jnp.inf, jnp.float32)])
        d_sel = jnp.concatenate([d_sel, jnp.zeros((pad, 4), jnp.float32)])
        a_sel = jnp.concatenate([a_sel, jnp.zeros((pad, 4), jnp.float32)])

    # decode + clip + min-size filter (Pallas): packed (8, Kp) boxes/valid/area
    box8 = decode_clip_pallas(d_sel.T, a_sel.T, scores[None, :],
                              reg_weights=cfg["reg_weights"],
                              img_shape=image_shape, min_size=cfg["min_size"])

    # flattened SMEM copy of the sorted boxes for per-box scalar reads in NMS
    box_scal = jnp.concatenate([box8[0], box8[1], box8[2], box8[3], box8[5]])

    # greedy NMS suppression (Pallas, on-chip loop with early exit)
    keep_row = nms_pallas(box8, box_scal, nms_thresh=cfg["nms_thresh"],
                          max_keep=cfg["post_nms_top_n"])

    # post-NMS top-n selection (cheap XLA scatter).
    # TODO(synk): torchvision.ops.nms returns a variable-length index list;
    #             we return a fixed (post_n, 4) buffer + valid count.
    boxes = box8[:4, :].T                           # (Kp, 4), descending score
    keep = keep_row[0] > 0.5
    post_n = cfg["post_nms_top_n"]
    rank = jnp.cumsum(keep.astype(jnp.int32)) - 1
    sel = keep & (rank < post_n)
    tgt = jnp.where(sel, rank, post_n)              # post_n -> dropped (OOB)
    proposals = jnp.zeros((post_n, 4), jnp.float32).at[tgt].set(boxes, mode="drop")
    num_valid = jnp.minimum(jnp.sum(keep.astype(jnp.int32)), post_n)
    return proposals, num_valid


# ----------------------------------------------------------------------------
# main
# ----------------------------------------------------------------------------
if __name__ == "__main__":
    key = jax.random.PRNGKey(0)
    B, C, H, W = 1, 16, 16, 16
    image_shape = (128, 128)
    sizes, ratios = (16.0,), (0.5, 1.0, 2.0)
    A = len(sizes) * len(ratios)

    ks = jax.random.split(key, 8)
    feature = jax.random.normal(ks[0], (B, C, H, W), jnp.float32)

    params = {
        # 3x3 conv stored as (9, Cin, Cout), tap index k = dy*3 + dx
        "w3": 0.1 * jax.random.normal(ks[1], (9, C, C), jnp.float32),
        "b3": 0.01 * jax.random.normal(ks[2], (1, C), jnp.float32),
        # 1x1 cls conv -> (C, A)
        "wc": 0.1 * jax.random.normal(ks[3], (C, A), jnp.float32),
        "bc": 0.01 * jax.random.normal(ks[4], (1, A), jnp.float32),
        # 1x1 bbox conv -> (C, 4A)
        "wb": 0.1 * jax.random.normal(ks[5], (C, 4 * A), jnp.float32),
        "bb": 0.01 * jax.random.normal(ks[6], (1, 4 * A), jnp.float32),
    }
    cfg = dict(sizes=sizes, ratios=ratios,
               reg_weights=(1.0, 1.0, 1.0, 1.0),
               pre_nms_top_n=256, post_nms_top_n=64,
               nms_thresh=0.7, min_size=1)

    proposals, num_valid = jax.jit(
        functools.partial(rpn_forward, image_shape=image_shape,
                          params=params, cfg=cfg))(feature)
    jax.block_until_ready((proposals, num_valid))

    assert proposals.shape == (cfg["post_nms_top_n"], 4)
    assert bool(jnp.all(jnp.isfinite(proposals)))
    print("KERNEL_OK")
</pallas_src>

<mosaic_0001>
module attributes {stable_mosaic.version = 11 : i64} {
  func.func @rpn_head_kernel(%arg0: i32, %arg1: memref<336x128xbf16, #tpu.memory_space<any>>, %arg2: memref<1152x128xbf16, #tpu.memory_space<vmem>>, %arg3: memref<1x128xf32, #tpu.memory_space<vmem>>, %arg4: memref<128x128xbf16, #tpu.memory_space<vmem>>, %arg5: memref<1x128xf32, #tpu.memory_space<vmem>>, %arg6: memref<144x128xbf16, #tpu.memory_space<vmem>>, %arg7: memref<2x192x128xbf16, #tpu.memory_space<vmem>>, %arg8: memref<2x!tpu.dma_semaphore, #tpu.memory_space<semaphore_mem>>) attributes {dimension_semantics = [#tpu.dimension_semantics<arbitrary>], iteration_bounds = array<i64: 2>, scalar_prefetch = 0 : i64, scratch_operands = 2 : i64, tpu.core_type = #tpu.core_type<tc>, window_params = [{}, {pipeline_mode = #tpu.pipeline_mode<synchronous>, transform_indices = @transform_1, window_bounds = array<i64: 1152, 128>}, {pipeline_mode = #tpu.pipeline_mode<synchronous>, transform_indices = @transform_2, window_bounds = array<i64: 1, 128>}, {pipeline_mode = #tpu.pipeline_mode<synchronous>, transform_indices = @transform_3, window_bounds = array<i64: 128, 128>}, {pipeline_mode = #tpu.pipeline_mode<synchronous>, transform_indices = @transform_4, window_bounds = array<i64: 1, 128>}, {transform_indices = @transform_5, window_bounds = array<i64: 144, 128>}]} {
    %c0_i32 = arith.constant 0 : i32
    %0 = arith.cmpi eq, %arg0, %c0_i32 : i32
    %1 = arith.extui %0 : i1 to i32
    %c0_i32_0 = arith.constant 0 : i32
    %2 = arith.cmpi ne, %1, %c0_i32_0 : i32
    scf.if %2 {
      %c0_i32_62 = arith.constant 0 : i32
      %c0_i32_63 = arith.constant 0 : i32
      %c0_i32_64 = arith.constant 0 : i32
      %c0_i32_65 = arith.constant 0 : i32
      %79 = tpu.memref_slice %arg1[%c0_i32_64, %c0_i32_65] : memref<336x128xbf16, #tpu.memory_space<any>> -> memref<192x128xbf16, #tpu.memory_space<any>>
      %c0_i32_66 = arith.constant 0 : i32
      %c0_i32_67 = arith.constant 0 : i32
      %80 = tpu.memref_slice %arg7[%c0_i32_62, %c0_i32_66, %c0_i32_67] : memref<2x192x128xbf16, #tpu.memory_space<vmem>> -> memref<1x192x128xbf16, #tpu.memory_space<vmem>>
      %81 = tpu.memref_squeeze %80 : memref<1x192x128xbf16, #tpu.memory_space<vmem>> -> memref<192x128xbf16, #tpu.memory_space<vmem>>
      %82 = tpu.memref_slice %arg8[%c0_i32_63] : memref<2x!tpu.dma_semaphore, #tpu.memory_space<semaphore_mem>> -> memref<1x!tpu.dma_semaphore, #tpu.memory_space<semaphore_mem>>
      %83 = tpu.memref_squeeze %82 : memref<1x!tpu.dma_semaphore, #tpu.memory_space<semaphore_mem>> -> memref<!tpu.dma_semaphore, #tpu.memory_space<semaphore_mem>>
      tpu.enqueue_dma source(%79 : memref<192x128xbf16, #tpu.memory_space<any>>) target(%81 : memref<192x128xbf16, #tpu.memory_space<vmem>>) target_semaphore(%83 : memref<!tpu.dma_semaphore, #tpu.memory_space<semaphore_mem>>)
    } else {
    }
    %c2_i32 = arith.constant 2 : i32
    %3 = arith.remsi %arg0, %c2_i32 : i32
    %c0_i32_1 = arith.constant 0 : i32
    %c0_i32_2 = arith.constant 0 : i32
    %4 = tpu.memref_slice %arg1[%c0_i32_1, %c0_i32_2] : memref<336x128xbf16, #tpu.memory_space<any>> -> memref<192x128xbf16, #tpu.memory_space<any>>
    %c0_i32_3 = arith.constant 0 : i32
    %c0_i32_4 = arith.constant 0 : i32
    %5 = tpu.memref_slice %arg7[%3, %c0_i32_3, %c0_i32_4] : memref<2x192x128xbf16, #tpu.memory_space<vmem>> -> memref<1x192x128xbf16, #tpu.memory_space<vmem>>
    %6 = tpu.memref_squeeze %5 : memref<1x192x128xbf16, #tpu.memory_space<vmem>> -> memref<192x128xbf16, #tpu.memory_space<vmem>>
    %7 = tpu.memref_slice %arg8[%3] : memref<2x!tpu.dma_semaphore, #tpu.memory_space<semaphore_mem>> -> memref<1x!tpu.dma_semaphore, #tpu.memory_space<semaphore_mem>>
    %8 = tpu.memref_squeeze %7 : memref<1x!tpu.dma_semaphore, #tpu.memory_space<semaphore_mem>> -> memref<!tpu.dma_semaphore, #tpu.memory_space<semaphore_mem>>
    tpu.wait_dma2 semaphore(%8 : memref<!tpu.dma_semaphore, #tpu.memory_space<semaphore_mem>>) src(%4 : memref<192x128xbf16, #tpu.memory_space<any>>) dst(%6 : memref<192x128xbf16, #tpu.memory_space<vmem>>)
    %c1_i32 = arith.constant 1 : i32
    %9 = arith.addi %arg0, %c1_i32 : i32
    %c2_i32_5 = arith.constant 2 : i32
    %10 = arith.cmpi slt, %9, %c2_i32_5 : i32
    %11 = arith.extui %10 : i1 to i32
    %c0_i32_6 = arith.constant 0 : i32
    %12 = arith.cmpi ne, %11, %c0_i32_6 : i32
    scf.if %12 {
      %c1_i32_62 = arith.constant 1 : i32
      %79 = arith.addi %arg0, %c1_i32_62 : i32
      %c1_i32_63 = arith.constant 1 : i32
      %80 = arith.subi %c1_i32_63, %3 : i32
      %c144_i32 = arith.constant 144 : i32
      %81 = arith.muli %79, %c144_i32 : i32
      %c0_i32_64 = arith.constant 0 : i32
      %82 = tpu.memref_slice %arg1[%81, %c0_i32_64] : memref<336x128xbf16, #tpu.memory_space<any>> -> memref<192x128xbf16, #tpu.memory_space<any>>
      %c0_i32_65 = arith.constant 0 : i32
      %c0_i32_66 = arith.constant 0 : i32
      %83 = tpu.memref_slice %arg7[%80, %c0_i32_65, %c0_i32_66] : memref<2x192x128xbf16, #tpu.memory_space<vmem>> -> memref<1x192x128xbf16, #tpu.memory_space<vmem>>
      %84 = tpu.memref_squeeze %83 : memref<1x192x128xbf16, #tpu.memory_space<vmem>> -> memref<192x128xbf16, #tpu.memory_space<vmem>>
      %85 = tpu.memref_slice %arg8[%80] : memref<2x!tpu.dma_semaphore, #tpu.memory_space<semaphore_mem>> -> memref<1x!tpu.dma_semaphore, #tpu.memory_space<semaphore_mem>>
      %86 = tpu.memref_squeeze %85 : memref<1x!tpu.dma_semaphore, #tpu.memory_space<semaphore_mem>> -> memref<!tpu.dma_semaphore, #tpu.memory_space<semaphore_mem>>
      tpu.enqueue_dma source(%82 : memref<192x128xbf16, #tpu.memory_space<any>>) target(%84 : memref<192x128xbf16, #tpu.memory_space<vmem>>) target_semaphore(%86 : memref<!tpu.dma_semaphore, #tpu.memory_space<semaphore_mem>>)
    } else {
    }
    %c0_i32_7 = arith.constant 0 : i32
    %c0_i32_8 = arith.constant 0 : i32
    %13 = tpu.memref_slice %arg7[%3, %c0_i32_7, %c0_i32_8] : memref<2x192x128xbf16, #tpu.memory_space<vmem>> -> memref<1x192x128xbf16, #tpu.memory_space<vmem>>
    %14 = tpu.memref_squeeze %13 : memref<1x192x128xbf16, #tpu.memory_space<vmem>> -> memref<192x128xbf16, #tpu.memory_space<vmem>>
    %c0 = arith.constant 0 : index
    %c0_9 = arith.constant 0 : index
    %15 = vector.load %14[%c0, %c0_9] : memref<192x128xbf16, #tpu.memory_space<vmem>>, vector<144x128xbf16>
    %c0_10 = arith.constant 0 : index
    %c0_11 = arith.constant 0 : index
    %16 = vector.load %arg2[%c0_10, %c0_11] : memref<1152x128xbf16, #tpu.memory_space<vmem>>, vector<128x128xbf16>
    %cst = arith.constant dense<0.000000e+00> : vector<144x128xf32>
    %17 = tpu.matmul %15, %16, %cst {dimension_numbers = #tpu.dot_dimension_numbers<[1], [0], [0], [1], [0, 0, 1, 1], [], []>} : vector<144x128xbf16>, vector<128x128xbf16>, vector<144x128xf32> -> vector<144x128xf32>
    %c0_i32_12 = arith.constant 0 : i32
    %c0_i32_13 = arith.constant 0 : i32
    %18 = tpu.memref_slice %arg7[%3, %c0_i32_12, %c0_i32_13] : memref<2x192x128xbf16, #tpu.memory_space<vmem>> -> memref<1x192x128xbf16, #tpu.memory_space<vmem>>
    %19 = tpu.memref_squeeze %18 : memref<1x192x128xbf16, #tpu.memory_space<vmem>> -> memref<192x128xbf16, #tpu.memory_space<vmem>>
    %c1 = arith.constant 1 : index
    %c0_14 = arith.constant 0 : index
    %20 = vector.load %19[%c1, %c0_14] : memref<192x128xbf16, #tpu.memory_space<vmem>>, vector<144x128xbf16>
    %c128 = arith.constant 128 : index
    %c0_15 = arith.constant 0 : index
    %21 = vector.load %arg2[%c128, %c0_15] : memref<1152x128xbf16, #tpu.memory_space<vmem>>, vector<128x128xbf16>
    %cst_16 = arith.constant dense<0.000000e+00> : vector<144x128xf32>
    %22 = tpu.matmul %20, %21, %cst_16 {dimension_numbers = #tpu.dot_dimension_numbers<[1], [0], [0], [1], [0, 0, 1, 1], [], []>} : vector<144x128xbf16>, vector<128x128xbf16>, vector<144x128xf32> -> vector<144x128xf32>
    %23 = arith.addf %17, %22 : vector<144x128xf32>
    %c0_i32_17 = arith.constant 0 : i32
    %c0_i32_18 = arith.constant 0 : i32
    %24 = tpu.memref_slice %arg7[%3, %c0_i32_17, %c0_i32_18] : memref<2x192x128xbf16, #tpu.memory_space<vmem>> -> memref<1x192x128xbf16, #tpu.memory_space<vmem>>
    %25 = tpu.memref_squeeze %24 : memref<1x192x128xbf16, #tpu.memory_space<vmem>> -> memref<192x128xbf16, #tpu.memory_space<vmem>>
    %c2 = arith.constant 2 : index
    %c0_19 = arith.constant 0 : index
    %26 = vector.load %25[%c2, %c0_19] : memref<192x128xbf16, #tpu.memory_space<vmem>>, vector<144x128xbf16>
    %c256 = arith.constant 256 : index
    %c0_20 = arith.constant 0 : index
    %27 = vector.load %arg2[%c256, %c0_20] : memref<1152x128xbf16, #tpu.memory_space<vmem>>, vector<128x128xbf16>
    %cst_21 = arith.constant dense<0.000000e+00> : vector<144x128xf32>
    %28 = tpu.matmul %26, %27, %cst_21 {dimension_numbers = #tpu.dot_dimension_numbers<[1], [0], [0], [1], [0, 0, 1, 1], [], []>} : vector<144x128xbf16>, vector<128x128xbf16>, vector<144x128xf32> -> vector<144x128xf32>
    %29 = arith.addf %23, %28 : vector<144x128xf32>
    %c0_i32_22 = arith.constant 0 : i32
    %c0_i32_23 = arith.constant 0 : i32
    %30 = tpu.memref_slice %arg7[%3, %c0_i32_22, %c0_i32_23] : memref<2x192x128xbf16, #tpu.memory_space<vmem>> -> memref<1x192x128xbf16, #tpu.memory_space<vmem>>
    %31 = tpu.memref_squeeze %30 : memref<1x192x128xbf16, #tpu.memory_space<vmem>> -> memref<192x128xbf16, #tpu.memory_space<vmem>>
    %c18 = arith.constant 18 : index
    %c0_24 = arith.constant 0 : index
    %32 = vector.load %31[%c18, %c0_24] : memref<192x128xbf16, #tpu.memory_space<vmem>>, vector<144x128xbf16>
    %c384 = arith.constant 384 : index
    %c0_25 = arith.constant 0 : index
    %33 = vector.load %arg2[%c384, %c0_25] : memref<1152x128xbf16, #tpu.memory_space<vmem>>, vector<128x128xbf16>
    %cst_26 = arith.constant dense<0.000000e+00> : vector<144x128xf32>
    %34 = tpu.matmul %32, %33, %cst_26 {dimension_numbers = #tpu.dot_dimension_numbers<[1], [0], [0], [1], [0, 0, 1, 1], [], []>} : vector<144x128xbf16>, vector<128x128xbf16>, vector<144x128xf32> -> vector<144x128xf32>
    %35 = arith.addf %29, %34 : vector<144x128xf32>
    %c0_i32_27 = arith.constant 0 : i32
    %c0_i32_28 = arith.constant 0 : i32
    %36 = tpu.memref_slice %arg7[%3, %c0_i32_27, %c0_i32_28] : memref<2x192x128xbf16, #tpu.memory_space<vmem>> -> memref<1x192x128xbf16, #tpu.memory_space<vmem>>
    %37 = tpu.memref_squeeze %36 : memref<1x192x128xbf16, #tpu.memory_space<vmem>> -> memref<192x128xbf16, #tpu.memory_space<vmem>>
    %c19 = arith.constant 19 : index
    %c0_29 = arith.constant 0 : index
    %38 = vector.load %37[%c19, %c0_29] : memref<192x128xbf16, #tpu.memory_space<vmem>>, vector<144x128xbf16>
    %c512 = arith.constant 512 : index
    %c0_30 = arith.constant 0 : index
    %39 = vector.load %arg2[%c512, %c0_30] : memref<1152x128xbf16, #tpu.memory_space<vmem>>, vector<128x128xbf16>
    %cst_31 = arith.constant dense<0.000000e+00> : vector<144x128xf32>
    %40 = tpu.matmul %38, %39, %cst_31 {dimension_numbers = #tpu.dot_dimension_numbers<[1], [0], [0], [1], [0, 0, 1, 1], [], []>} : vector<144x128xbf16>, vector<128x128xbf16>, vector<144x128xf32> -> vector<144x128xf32>
    %41 = arith.addf %35, %40 : vector<144x128xf32>
    %c0_i32_32 = arith.constant 0 : i32
    %c0_i32_33 = arith.constant 0 : i32
    %42 = tpu.memref_slice %arg7[%3, %c0_i32_32, %c0_i32_33] : memref<2x192x128xbf16, #tpu.memory_space<vmem>> -> memref<1x192x128xbf16, #tpu.memory_space<vmem>>
    %43 = tpu.memref_squeeze %42 : memref<1x192x128xbf16, #tpu.memory_space<vmem>> -> memref<192x128xbf16, #tpu.memory_space<vmem>>
    %c20 = arith.constant 20 : index
    %c0_34 = arith.constant 0 : index
    %44 = vector.load %43[%c20, %c0_34] : memref<192x128xbf16, #tpu.memory_space<vmem>>, vector<144x128xbf16>
    %c640 = arith.constant 640 : index
    %c0_35 = arith.constant 0 : index
    %45 = vector.load %arg2[%c640, %c0_35] : memref<1152x128xbf16, #tpu.memory_space<vmem>>, vector<128x128xbf16>
    %cst_36 = arith.constant dense<0.000000e+00> : vector<144x128xf32>
    %46 = tpu.matmul %44, %45, %cst_36 {dimension_numbers = #tpu.dot_dimension_numbers<[1], [0], [0], [1], [0, 0, 1, 1], [], []>} : vector<144x128xbf16>, vector<128x128xbf16>, vector<144x128xf32> -> vector<144x128xf32>
    %47 = arith.addf %41, %46 : vector<144x128xf32>
    %c0_i32_37 = arith.constant 0 : i32
    %c0_i32_38 = arith.constant 0 : i32
    %48 = tpu.memref_slice %arg7[%3, %c0_i32_37, %c0_i32_38] : memref<2x192x128xbf16, #tpu.memory_space<vmem>> -> memref<1x192x128xbf16, #tpu.memory_space<vmem>>
    %49 = tpu.memref_squeeze %48 : memref<1x192x128xbf16, #tpu.memory_space<vmem>> -> memref<192x128xbf16, #tpu.memory_space<vmem>>
    %c36 = arith.constant 36 : index
    %c0_39 = arith.constant 0 : index
    %50 = vector.load %49[%c36, %c0_39] : memref<192x128xbf16, #tpu.memory_space<vmem>>, vector<144x128xbf16>
    %c768 = arith.constant 768 : index
    %c0_40 = arith.constant 0 : index
    %51 = vector.load %arg2[%c768, %c0_40] : memref<1152x128xbf16, #tpu.memory_space<vmem>>, vector<128x128xbf16>
    %cst_41 = arith.constant dense<0.000000e+00> : vector<144x128xf32>
    %52 = tpu.matmul %50, %51, %cst_41 {dimension_numbers = #tpu.dot_dimension_numbers<[1], [0], [0], [1], [0, 0, 1, 1], [], []>} : vector<144x128xbf16>, vector<128x128xbf16>, vector<144x128xf32> -> vector<144x128xf32>
    %53 = arith.addf %47, %52 : vector<144x128xf32>
    %c0_i32_42 = arith.constant 0 : i32
    %c0_i32_43 = arith.constant 0 : i32
    %54 = tpu.memref_slice %arg7[%3, %c0_i32_42, %c0_i32_43] : memref<2x192x128xbf16, #tpu.memory_space<vmem>> -> memref<1x192x128xbf16, #tpu.memory_space<vmem>>
    %55 = tpu.memref_squeeze %54 : memref<1x192x128xbf16, #tpu.memory_space<vmem>> -> memref<192x128xbf16, #tpu.memory_space<vmem>>
    %c37 = arith.constant 37 : index
    %c0_44 = arith.constant 0 : index
    %56 = vector.load %55[%c37, %c0_44] : memref<192x128xbf16, #tpu.memory_space<vmem>>, vector<144x128xbf16>
    %c896 = arith.constant 896 : index
    %c0_45 = arith.constant 0 : index
    %57 = vector.load %arg2[%c896, %c0_45] : memref<1152x128xbf16, #tpu.memory_space<vmem>>, vector<128x128xbf16>
    %cst_46 = arith.constant dense<0.000000e+00> : vector<144x128xf32>
    %58 = tpu.matmul %56, %57, %cst_46 {dimension_numbers = #tpu.dot_dimension_numbers<[1], [0], [0], [1], [0, 0, 1, 1], [], []>} : vector<144x128xbf16>, vector<128x128xbf16>, vector<144x128xf32> -> vector<144x128xf32>
    %59 = arith.addf %53, %58 : vector<144x128xf32>
    %c0_i32_47 = arith.constant 0 : i32
    %c0_i32_48 = arith.constant 0 : i32
    %60 = tpu.memref_slice %arg7[%3, %c0_i32_47, %c0_i32_48] : memref<2x192x128xbf16, #tpu.memory_space<vmem>> -> memref<1x192x128xbf16, #tpu.memory_space<vmem>>
    %61 = tpu.memref_squeeze %60 : memref<1x192x128xbf16, #tpu.memory_space<vmem>> -> memref<192x128xbf16, #tpu.memory_space<vmem>>
    %c38 = arith.constant 38 : index
    %c0_49 = arith.constant 0 : index
    %62 = vector.load %61[%c38, %c0_49] : memref<192x128xbf16, #tpu.memory_space<vmem>>, vector<144x128xbf16>
    %c1024 = arith.constant 1024 : index
    %c0_50 = arith.constant 0 : index
    %63 = vector.load %arg2[%c1024, %c0_50] : memref<1152x128xbf16, #tpu.memory_space<vmem>>, vector<128x128xbf16>
    %cst_51 = arith.constant dense<0.000000e+00> : vector<144x128xf32>
    %64 = tpu.matmul %62, %63, %cst_51 {dimension_numbers = #tpu.dot_dimension_numbers<[1], [0], [0], [1], [0, 0, 1, 1], [], []>} : vector<144x128xbf16>, vector<128x128xbf16>, vector<144x128xf32> -> vector<144x128xf32>
    %65 = arith.addf %59, %64 : vector<144x128xf32>
    %c0_52 = arith.constant 0 : index
    %c0_53 = arith.constant 0 : index
    %66 = vector.load %arg3[%c0_52, %c0_53] : memref<1x128xf32, #tpu.memory_space<vmem>>, vector<1x128xf32>
    %67 = vector.broadcast %66 : vector<1x128xf32> to vector<144x128xf32>
    %68 = arith.addf %65, %67 : vector<144x128xf32>
    %cst_54 = arith.constant 0.000000e+00 : f32
    %69 = vector.broadcast %cst_54 : f32 to vector<144x128xf32>
    %70 = arith.maximumf %68, %69 : vector<144x128xf32>
    %71 = arith.truncf %70 : vector<144x128xf32> to vector<144x128xbf16>
    %c0_55 = arith.constant 0 : index
    %c0_56 = arith.constant 0 : index
    %72 = vector.load %arg4[%c0_55, %c0_56] : memref<128x128xbf16, #tpu.memory_space<vmem>>, vector<128x128xbf16>
    %cst_57 = arith.constant dense<0.000000e+00> : vector<144x128xf32>
    %73 = tpu.matmul %71, %72, %cst_57 {dimension_numbers = #tpu.dot_dimension_numbers<[1], [0], [0], [1], [0, 0, 1, 1], [], []>} : vector<144x128xbf16>, vector<128x128xbf16>, vector<144x128xf32> -> vector<144x128xf32>
    %c0_58 = arith.constant 0 : index
    %c0_59 = arith.constant 0 : index
    %74 = vector.load %arg5[%c0_58, %c0_59] : memref<1x128xf32, #tpu.memory_space<vmem>>, vector<1x128xf32>
    %75 = vector.broadcast %74 : vector<1x128xf32> to vector<144x128xf32>
    %76 = arith.addf %73, %75 : vector<144x128xf32>
    %77 = arith.truncf %76 : vector<144x128xf32> to vector<144x128xbf16>
    %c0_60 = arith.constant 0 : index
    %c0_61 = arith.constant 0 : index
    %78 = vector.load %arg6[%c0_60, %c0_61] : memref<144x128xbf16, #tpu.memory_space<vmem>>, vector<144x128xbf16>
    tpu.vector_store %arg6[%c0_60, %c0_61], %77 {strides = array<i32>} : memref<144x128xbf16, #tpu.memory_space<vmem>>, vector<144x128xbf16>,
    return
  }
  func.func @transform_1(%arg0: i32) -> (i32, i32) {
    %c0_i32 = arith.constant 0 : i32
    %c0_i32_0 = arith.constant 0 : i32
    %c0_i32_1 = arith.constant 0 : i32
    return %c0_i32, %c0_i32_0 : i32, i32
  }
  func.func @transform_2(%arg0: i32) -> (i32, i32) {
    %c0_i32 = arith.constant 0 : i32
    %c0_i32_0 = arith.constant 0 : i32
    %c0_i32_1 = arith.constant 0 : i32
    return %c0_i32, %c0_i32_0 : i32, i32
  }
  func.func @transform_3(%arg0: i32) -> (i32, i32) {
    %c0_i32 = arith.constant 0 : i32
    %c0_i32_0 = arith.constant 0 : i32
    %c0_i32_1 = arith.constant 0 : i32
    return %c0_i32, %c0_i32_0 : i32, i32
  }
  func.func @transform_4(%arg0: i32) -> (i32, i32) {
    %c0_i32 = arith.constant 0 : i32
    %c0_i32_0 = arith.constant 0 : i32
    %c0_i32_1 = arith.constant 0 : i32
    return %c0_i32, %c0_i32_0 : i32, i32
  }
  func.func @transform_5(%arg0: i32) -> (i32, i32) {
    %c0_i32 = arith.constant 0 : i32
    %c0_i32_0 = arith.constant 0 : i32
    return %arg0, %c0_i32 : i32, i32
  }
}

module attributes {stable_mosaic.version = 11 : i64} {
  func.func @decode_clip_kernel(%arg0: i32, %arg1: memref<4x256xf32, #tpu.memory_space<vmem>>, %arg2: memref<4x256xf32, #tpu.memory_space<vmem>>, %arg3: memref<1x256xf32, #tpu.memory_space<vmem>>, %arg4: memref<8x256xf32, #tpu.memory_space<vmem>>) attributes {dimension_semantics = [#tpu.dimension_semantics<arbitrary>], iteration_bounds = array<i64: 1>, scalar_prefetch = 0 : i64, scratch_operands = 0 : i64, tpu.core_type = #tpu.core_type<tc>, window_params = [{pipeline_mode = #tpu.pipeline_mode<synchronous>, transform_indices = @transform_0, window_bounds = array<i64: 4, 256>}, {pipeline_mode = #tpu.pipeline_mode<synchronous>, transform_indices = @transform_1, window_bounds = array<i64: 4, 256>}, {pipeline_mode = #tpu.pipeline_mode<synchronous>, transform_indices = @transform_2, window_bounds = array<i64: 1, 256>}, {pipeline_mode = #tpu.pipeline_mode<synchronous>, transform_indices = @transform_3, window_bounds = array<i64: 8, 256>}]} {
    %c0 = arith.constant 0 : index
    %c0_0 = arith.constant 0 : index
    %0 = vector.load %arg1[%c0, %c0_0] : memref<4x256xf32, #tpu.memory_space<vmem>>, vector<4x256xf32>
    %c0_1 = arith.constant 0 : index
    %c0_2 = arith.constant 0 : index
    %1 = vector.load %arg2[%c0_1, %c0_2] : memref<4x256xf32, #tpu.memory_space<vmem>>, vector<4x256xf32>
    %c0_3 = arith.constant 0 : index
    %c0_4 = arith.constant 0 : index
    %2 = vector.load %arg3[%c0_3, %c0_4] : memref<1x256xf32, #tpu.memory_space<vmem>>, vector<1x256xf32>
    %3 = vector.extract_strided_slice %0 {offsets = [0, 0], sizes = [1, 256], strides = [1, 1]} : vector<4x256xf32> to vector<1x256xf32>
    %cst = arith.constant 1.000000e+00 : f32
    %4 = vector.broadcast %cst : f32 to vector<1x256xf32>
    %5 = arith.divf %3, %4 : vector<1x256xf32>
    %6 = vector.extract_strided_slice %0 {offsets = [1, 0], sizes = [1, 256], strides = [1, 1]} : vector<4x256xf32> to vector<1x256xf32>
    %cst_5 = arith.constant 1.000000e+00 : f32
    %7 = vector.broadcast %cst_5 : f32 to vector<1x256xf32>
    %8 = arith.divf %6, %7 : vector<1x256xf32>
    %9 = vector.extract_strided_slice %0 {offsets = [2, 0], sizes = [1, 256], strides = [1, 1]} : vector<4x256xf32> to vector<1x256xf32>
    %cst_6 = arith.constant 1.000000e+00 : f32
    %10 = vector.broadcast %cst_6 : f32 to vector<1x256xf32>
    %11 = arith.divf %9, %10 : vector<1x256xf32>
    %cst_7 = arith.constant 4.13516665 : f32
    %12 = vector.broadcast %cst_7 : f32 to vector<1x256xf32>
    %13 = arith.minimumf %11, %12 : vector<1x256xf32>
    %14 = vector.extract_strided_slice %0 {offsets = [3, 0], sizes = [1, 256], strides = [1, 1]} : vector<4x256xf32> to vector<1x256xf32>
    %cst_8 = arith.constant 1.000000e+00 : f32
    %15 = vector.broadcast %cst_8 : f32 to vector<1x256xf32>
    %16 = arith.divf %14, %15 : vector<1x256xf32>
    %cst_9 = arith.constant 4.13516665 : f32
    %17 = vector.broadcast %cst_9 : f32 to vector<1x256xf32>
    %18 = arith.minimumf %16, %17 : vector<1x256xf32>
    %19 = vector.extract_strided_slice %1 {offsets = [2, 0], sizes = [1, 256], strides = [1, 1]} : vector<4x256xf32> to vector<1x256xf32>
    %20 = vector.extract_strided_slice %1 {offsets = [0, 0], sizes = [1, 256], strides = [1, 1]} : vector<4x256xf32> to vector<1x256xf32>
    %21 = arith.subf %19, %20 : vector<1x256xf32>
    %22 = vector.extract_strided_slice %1 {offsets = [3, 0], sizes = [1, 256], strides = [1, 1]} : vector<4x256xf32> to vector<1x256xf32>
    %23 = vector.extract_strided_slice %1 {offsets = [1, 0], sizes = [1, 256], strides = [1, 1]} : vector<4x256xf32> to vector<1x256xf32>
    %24 = arith.subf %22, %23 : vector<1x256xf32>
    %25 = vector.extract_strided_slice %1 {offsets = [0, 0], sizes = [1, 256], strides = [1, 1]} : vector<4x256xf32> to vector<1x256xf32>
    %cst_10 = arith.constant 5.000000e-01 : f32
    %26 = vector.broadcast %cst_10 : f32 to vector<1x256xf32>
    %27 = arith.mulf %26, %21 : vector<1x256xf32>
    %28 = arith.addf %25, %27 : vector<1x256xf32>
    %29 = vector.extract_strided_slice %1 {offsets = [1, 0], sizes = [1, 256], strides = [1, 1]} : vector<4x256xf32> to vector<1x256xf32>
    %cst_11 = arith.constant 5.000000e-01 : f32
    %30 = vector.broadcast %cst_11 : f32 to vector<1x256xf32>
    %31 = arith.mulf %30, %24 : vector<1x256xf32>
    %32 = arith.addf %29, %31 : vector<1x256xf32>
    %33 = arith.mulf %5, %21 : vector<1x256xf32>
    %34 = arith.addf %33, %28 : vector<1x256xf32>
    %35 = arith.mulf %8, %24 : vector<1x256xf32>
    %36 = arith.addf %35, %32 : vector<1x256xf32>
    %37 = math.exp %13 : vector<1x256xf32>
    %38 = arith.mulf %37, %21 : vector<1x256xf32>
    %39 = math.exp %18 : vector<1x256xf32>
    %40 = arith.mulf %39, %24 : vector<1x256xf32>
    %cst_12 = arith.constant 5.000000e-01 : f32
    %41 = vector.broadcast %cst_12 : f32 to vector<1x256xf32>
    %42 = arith.mulf %41, %38 : vector<1x256xf32>
    %43 = arith.subf %34, %42 : vector<1x256xf32>
    %cst_13 = arith.constant 0.000000e+00 : f32
    %cst_14 = arith.constant 1.280000e+02 : f32
    %44 = vector.broadcast %cst_13 : f32 to vector<1x256xf32>
    %45 = arith.maximumf %44, %43 : vector<1x256xf32>
    %46 = vector.broadcast %cst_14 : f32 to vector<1x256xf32>
    %47 = arith.minimumf %46, %45 : vector<1x256xf32>
    %cst_15 = arith.constant 5.000000e-01 : f32
    %48 = vector.broadcast %cst_15 : f32 to vector<1x256xf32>
    %49 = arith.mulf %48, %40 : vector<1x256xf32>
    %50 = arith.subf %36, %49 : vector<1x256xf32>
    %cst_16 = arith.constant 0.000000e+00 : f32
    %cst_17 = arith.constant 1.280000e+02 : f32
    %51 = vector.broadcast %cst_16 : f32 to vector<1x256xf32>
    %52 = arith.maximumf %51, %50 : vector<1x256xf32>
    %53 = vector.broadcast %cst_17 : f32 to vector<1x256xf32>
    %54 = arith.minimumf %53, %52 : vector<1x256xf32>
    %cst_18 = arith.constant 5.000000e-01 : f32
    %55 = vector.broadcast %cst_18 : f32 to vector<1x256xf32>
    %56 = arith.mulf %55, %38 : vector<1x256xf32>
    %57 = arith.addf %34, %56 : vector<1x256xf32>
    %cst_19 = arith.constant 0.000000e+00 : f32
    %cst_20 = arith.constant 1.280000e+02 : f32
    %58 = vector.broadcast %cst_19 : f32 to vector<1x256xf32>
    %59 = arith.maximumf %58, %57 : vector<1x256xf32>
    %60 = vector.broadcast %cst_20 : f32 to vector<1x256xf32>
    %61 = arith.minimumf %60, %59 : vector<1x256xf32>
    %cst_21 = arith.constant 5.000000e-01 : f32
    %62 = vector.broadcast %cst_21 : f32 to vector<1x256xf32>
    %63 = arith.mulf %62, %40 : vector<1x256xf32>
    %64 = arith.addf %36, %63 : vector<1x256xf32>
    %cst_22 = arith.constant 0.000000e+00 : f32
    %cst_23 = arith.constant 1.280000e+02 : f32
    %65 = vector.broadcast %cst_22 : f32 to vector<1x256xf32>
    %66 = arith.maximumf %65, %64 : vector<1x256xf32>
    %67 = vector.broadcast %cst_23 : f32 to vector<1x256xf32>
    %68 = arith.minimumf %67, %66 : vector<1x256xf32>
    %69 = arith.subf %61, %47 : vector<1x256xf32>
    %cst_24 = arith.constant 1.000000e+00 : f32
    %70 = vector.broadcast %cst_24 : f32 to vector<1x256xf32>
    %71 = arith.cmpf oge, %69, %70 : vector<1x256xf32>
    %72 = arith.subf %68, %54 : vector<1x256xf32>
    %cst_25 = arith.constant 1.000000e+00 : f32
    %73 = vector.broadcast %cst_25 : f32 to vector<1x256xf32>
    %74 = arith.cmpf oge, %72, %73 : vector<1x256xf32>
    %75 = arith.andi %71, %74 : vector<1x256xi1>
    %cst_26 = arith.constant 0xFF800000 : f32
    %76 = vector.broadcast %cst_26 : f32 to vector<1x256xf32>
    %77 = arith.cmpf ogt, %2, %76 : vector<1x256xf32>
    %78 = arith.andi %75, %77 : vector<1x256xi1>
    %79 = arith.subf %61, %47 : vector<1x256xf32>
    %80 = arith.subf %68, %54 : vector<1x256xf32>
    %81 = arith.mulf %79, %80 : vector<1x256xf32>
    %82 = arith.extui %78 : vector<1x256xi1> to vector<1x256xi32>
    %83 = arith.sitofp %82 : vector<1x256xi32> to vector<1x256xf32>
    %cst_27 = arith.constant 0.000000e+00 : f32
    %84 = vector.broadcast %cst_27 : f32 to vector<2x256xf32>
    %85 = tpu.concatenate %47, %54, %61, %68, %83, %81, %84 in 0 : vector<1x256xf32>, vector<1x256xf32>, vector<1x256xf32>, vector<1x256xf32>, vector<1x256xf32>, vector<1x256xf32>, vector<2x256xf32> -> vector<8x256xf32>
    %c0_28 = arith.constant 0 : index
    %c0_29 = arith.constant 0 : index
    %86 = vector.load %arg4[%c0_28, %c0_29] : memref<8x256xf32, #tpu.memory_space<vmem>>, vector<8x256xf32>
    tpu.vector_store %arg4[%c0_28, %c0_29], %85 {strides = array<i32>} : memref<8x256xf32, #tpu.memory_space<vmem>>, vector<8x256xf32>,
    return
  }
  func.func @transform_0(%arg0: i32) -> (i32, i32) {
    %c0_i32 = arith.constant 0 : i32
    %c0_i32_0 = arith.constant 0 : i32
    %c0_i32_1 = arith.constant 0 : i32
    return %c0_i32, %c0_i32_0 : i32, i32
  }
  func.func @transform_1(%arg0: i32) -> (i32, i32) {
    %c0_i32 = arith.constant 0 : i32
    %c0_i32_0 = arith.constant 0 : i32
    %c0_i32_1 = arith.constant 0 : i32
    return %c0_i32, %c0_i32_0 : i32, i32
  }
  func.func @transform_2(%arg0: i32) -> (i32, i32) {
    %c0_i32 = arith.constant 0 : i32
    %c0_i32_0 = arith.constant 0 : i32
    %c0_i32_1 = arith.constant 0 : i32
    return %c0_i32, %c0_i32_0 : i32, i32
  }
  func.func @transform_3(%arg0: i32) -> (i32, i32) {
    %c0_i32 = arith.constant 0 : i32
    %c0_i32_0 = arith.constant 0 : i32
    %c0_i32_1 = arith.constant 0 : i32
    return %c0_i32, %c0_i32_0 : i32, i32
  }
}

module attributes {stable_mosaic.version = 11 : i64} {
  func.func @nms_kernel(%arg0: i32, %arg1: memref<8x256xf32, #tpu.memory_space<vmem>>, %arg2: memref<1280xf32, #tpu.memory_space<smem>>, %arg3: memref<1x256xf32, #tpu.memory_space<vmem>>, %arg4: memref<1x1xf32, #tpu.memory_space<vmem>>) attributes {dimension_semantics = [#tpu.dimension_semantics<arbitrary>], iteration_bounds = array<i64: 1>, scalar_prefetch = 0 : i64, scratch_operands = 1 : i64, tpu.core_type = #tpu.core_type<tc>, window_params = [{pipeline_mode = #tpu.pipeline_mode<synchronous>, transform_indices = @transform_0, window_bounds = array<i64: 8, 256>}, {transform_indices = @transform_1, window_bounds = array<i64: 1280>}, {pipeline_mode = #tpu.pipeline_mode<synchronous>, transform_indices = @transform_2, window_bounds = array<i64: 1, 256>}]} {
    %c0 = arith.constant 0 : index
    %c0_0 = arith.constant 0 : index
    %0 = vector.load %arg1[%c0, %c0_0] : memref<8x256xf32, #tpu.memory_space<vmem>>, vector<8x256xf32>
    %1 = vector.extract_strided_slice %0 {offsets = [0, 0], sizes = [1, 256], strides = [1, 1]} : vector<8x256xf32> to vector<1x256xf32>
    %2 = vector.extract_strided_slice %0 {offsets = [1, 0], sizes = [1, 256], strides = [1, 1]} : vector<8x256xf32> to vector<1x256xf32>
    %3 = vector.extract_strided_slice %0 {offsets = [2, 0], sizes = [1, 256], strides = [1, 1]} : vector<8x256xf32> to vector<1x256xf32>
    %4 = vector.extract_strided_slice %0 {offsets = [3, 0], sizes = [1, 256], strides = [1, 1]} : vector<8x256xf32> to vector<1x256xf32>
    %5 = vector.extract_strided_slice %0 {offsets = [4, 0], sizes = [1, 256], strides = [1, 1]} : vector<8x256xf32> to vector<1x256xf32>
    %6 = vector.extract_strided_slice %0 {offsets = [5, 0], sizes = [1, 256], strides = [1, 1]} : vector<8x256xf32> to vector<1x256xf32>
    %7 = tpu.iota {dimensions = array<i32: 1>} : vector<1x256xi32>
    %c0_1 = arith.constant 0 : index
    %c0_2 = arith.constant 0 : index
    %8 = vector.load %arg3[%c0_1, %c0_2] : memref<1x256xf32, #tpu.memory_space<vmem>>, vector<1x256xf32>
    tpu.vector_store %arg3[%c0_1, %c0_2], %5 {strides = array<i32>} : memref<1x256xf32, #tpu.memory_space<vmem>>, vector<1x256xf32>,
    %cst = arith.constant 0.000000e+00 : f32
    %9 = vector.broadcast %cst : f32 to vector<1x1xf32>
    %c0_3 = arith.constant 0 : index
    %c0_4 = arith.constant 0 : index
    %10 = vector.load %arg4[%c0_3, %c0_4] : memref<1x1xf32, #tpu.memory_space<vmem>>, vector<1x1xf32>
    tpu.vector_store %arg4[%c0_3, %c0_4], %9 {strides = array<i32>} : memref<1x1xf32, #tpu.memory_space<vmem>>, vector<1x1xf32>,
    %c0_i32 = arith.constant 0 : i32
    %c32_i32 = arith.constant 32 : i32
    %11 = arith.addi %c0_i32, %c32_i32 : i32
    %c1_i32 = arith.constant 1 : i32
    scf.for %arg5 = %c0_i32 to %11 step %c1_i32  : i32 {
      %c0_6 = arith.constant 0 : index
      %c0_7 = arith.constant 0 : index
      %12 = vector.load %arg4[%c0_6, %c0_7] : memref<1x1xf32, #tpu.memory_space<vmem>>, vector<1x1xf32>
      %13 = vector.extract %12[0, 0] : f32 from vector<1x1xf32>
      %cst_8 = arith.constant 6.400000e+01 : f32
      %14 = arith.cmpf olt, %13, %cst_8 : f32
      %15 = arith.extui %14 : i1 to i32
      %c0_i32_9 = arith.constant 0 : i32
      %16 = arith.cmpi ne, %15, %c0_i32_9 : i32
      scf.if %16 {
        %c8_i32 = arith.constant 8 : i32
        %17 = arith.muli %arg5, %c8_i32 : i32
        %c0_10 = arith.constant 0 : index
        %c0_11 = arith.constant 0 : index
        %18 = vector.load %arg3[%c0_10, %c0_11] : memref<1x256xf32, #tpu.memory_space<vmem>>, vector<1x256xf32>
        %c0_i32_12 = arith.constant 0 : i32
        %19 = arith.addi %17, %c0_i32_12 : i32
        %20 = arith.index_cast %19 : i32 to index
        %21 = memref.load %arg2[%20] : memref<1280xf32, #tpu.memory_space<smem>>
        %c256_i32 = arith.constant 256 : i32
        %22 = arith.addi %c256_i32, %19 : i32
        %23 = arith.index_cast %22 : i32 to index
        %24 = memref.load %arg2[%23] : memref<1280xf32, #tpu.memory_space<smem>>
        %c512_i32 = arith.constant 512 : i32
        %25 = arith.addi %c512_i32, %19 : i32
        %26 = arith.index_cast %25 : i32 to index
        %27 = memref.load %arg2[%26] : memref<1280xf32, #tpu.memory_space<smem>>
        %c768_i32 = arith.constant 768 : i32
        %28 = arith.addi %c768_i32, %19 : i32
        %29 = arith.index_cast %28 : i32 to index
        %30 = memref.load %arg2[%29] : memref<1280xf32, #tpu.memory_space<smem>>
        %c1024_i32 = arith.constant 1024 : i32
        %31 = arith.addi %c1024_i32, %19 : i32
        %32 = arith.index_cast %31 : i32 to index
        %33 = memref.load %arg2[%32] : memref<1280xf32, #tpu.memory_space<smem>>
        %34 = vector.broadcast %19 : i32 to vector<1x256xi32>
        %35 = arith.cmpi eq, %7, %34 : vector<1x256xi32>
        %cst_13 = arith.constant 0.000000e+00 : f32
        %36 = vector.broadcast %cst_13 : f32 to vector<1x256xf32>
        %37 = arith.select %35, %18, %36 : vector<1x256xi1>, vector<1x256xf32>
        %cst_14 = arith.constant dense<0.000000e+00> : vector<1xf32>
        %38 = vector.multi_reduction <add>, %37, %cst_14 [1] : vector<1x256xf32> to vector<1xf32>
        %39 = vector.shape_cast %38 : vector<1xf32> to vector<1x1xf32>
        %40 = vector.broadcast %27 : f32 to vector<1x256xf32>
        %41 = arith.minimumf %40, %3 : vector<1x256xf32>
        %42 = vector.broadcast %21 : f32 to vector<1x256xf32>
        %43 = arith.maximumf %42, %1 : vector<1x256xf32>
        %44 = arith.subf %41, %43 : vector<1x256xf32>
        %cst_15 = arith.constant 0.000000e+00 : f32
        %45 = vector.broadcast %cst_15 : f32 to vector<1x256xf32>
        %46 = arith.maximumf %44, %45 : vector<1x256xf32>
        %47 = vector.broadcast %30 : f32 to vector<1x256xf32>
        %48 = arith.minimumf %47, %4 : vector<1x256xf32>
        %49 = vector.broadcast %24 : f32 to vector<1x256xf32>
        %50 = arith.maximumf %49, %2 : vector<1x256xf32>
        %51 = arith.subf %48, %50 : vector<1x256xf32>
        %cst_16 = arith.constant 0.000000e+00 : f32
        %52 = vector.broadcast %cst_16 : f32 to vector<1x256xf32>
        %53 = arith.maximumf %51, %52 : vector<1x256xf32>
        %54 = arith.mulf %46, %53 : vector<1x256xf32>
        %55 = vector.broadcast %33 : f32 to vector<1x256xf32>
        %56 = arith.addf %55, %6 : vector<1x256xf32>
        %57 = arith.subf %56, %54 : vector<1x256xf32>
        %cst_17 = arith.constant 9.99999993E-9 : f32
        %58 = vector.broadcast %cst_17 : f32 to vector<1x256xf32>
        %59 = arith.maximumf %57, %58 : vector<1x256xf32>
        %60 = arith.divf %54, %59 : vector<1x256xf32>
        %cst_18 = arith.constant 0.699999988 : f32
        %61 = vector.broadcast %cst_18 : f32 to vector<1x256xf32>
        %62 = arith.cmpf ogt, %60, %61 : vector<1x256xf32>
        %63 = vector.broadcast %19 : i32 to vector<1x256xi32>
        %64 = arith.cmpi sgt, %7, %63 : vector<1x256xi32>
        %65 = arith.andi %62, %64 : vector<1x256xi1>
        %cst_19 = arith.constant 0.000000e+00 : f32
        %66 = vector.broadcast %cst_19 : f32 to vector<1x1xf32>
        %67 = arith.cmpf ogt, %39, %66 : vector<1x1xf32>
        %68 = vector.broadcast %67 : vector<1x1xi1> to vector<1x256xi1>
        %69 = arith.andi %65, %68 : vector<1x256xi1>
        %cst_20 = arith.constant 0.000000e+00 : f32
        %70 = vector.broadcast %cst_20 : f32 to vector<1x256xf32>
        %71 = arith.select %69, %70, %18 : vector<1x256xi1>, vector<1x256xf32>
        %c1_i32_21 = arith.constant 1 : i32
        %72 = arith.addi %17, %c1_i32_21 : i32
        %73 = arith.index_cast %72 : i32 to index
        %74 = memref.load %arg2[%73] : memref<1280xf32, #tpu.memory_space<smem>>
        %c256_i32_22 = arith.constant 256 : i32
        %75 = arith.addi %c256_i32_22, %72 : i32
        %76 = arith.index_cast %75 : i32 to index
        %77 = memref.load %arg2[%76] : memref<1280xf32, #tpu.memory_space<smem>>
        %c512_i32_23 = arith.constant 512 : i32
        %78 = arith.addi %c512_i32_23, %72 : i32
        %79 = arith.index_cast %78 : i32 to index
        %80 = memref.load %arg2[%79] : memref<1280xf32, #tpu.memory_space<smem>>
        %c768_i32_24 = arith.constant 768 : i32
        %81 = arith.addi %c768_i32_24, %72 : i32
        %82 = arith.index_cast %81 : i32 to index
        %83 = memref.load %arg2[%82] : memref<1280xf32, #tpu.memory_space<smem>>
        %c1024_i32_25 = arith.constant 1024 : i32
        %84 = arith.addi %c1024_i32_25, %72 : i32
        %85 = arith.index_cast %84 : i32 to index
        %86 = memref.load %arg2[%85] : memref<1280xf32, #tpu.memory_space<smem>>
        %87 = vector.broadcast %72 : i32 to vector<1x256xi32>
        %88 = arith.cmpi eq, %7, %87 : vector<1x256xi32>
        %cst_26 = arith.constant 0.000000e+00 : f32
        %89 = vector.broadcast %cst_26 : f32 to vector<1x256xf32>
        %90 = arith.select %88, %71, %89 : vector<1x256xi1>, vector<1x256xf32>
        %cst_27 = arith.constant dense<0.000000e+00> : vector<1xf32>
        %91 = vector.multi_reduction <add>, %90, %cst_27 [1] : vector<1x256xf32> to vector<1xf32>
        %92 = vector.shape_cast %91 : vector<1xf32> to vector<1x1xf32>
        %93 = vector.broadcast %80 : f32 to vector<1x256xf32>
        %94 = arith.minimumf %93, %3 : vector<1x256xf32>
        %95 = vector.broadcast %74 : f32 to vector<1x256xf32>
        %96 = arith.maximumf %95, %1 : vector<1x256xf32>
        %97 = arith.subf %94, %96 : vector<1x256xf32>
        %cst_28 = arith.constant 0.000000e+00 : f32
        %98 = vector.broadcast %cst_28 : f32 to vector<1x256xf32>
        %99 = arith.maximumf %97, %98 : vector<1x256xf32>
        %100 = vector.broadcast %83 : f32 to vector<1x256xf32>
        %101 = arith.minimumf %100, %4 : vector<1x256xf32>
        %102 = vector.broadcast %77 : f32 to vector<1x256xf32>
        %103 = arith.maximumf %102, %2 : vector<1x256xf32>
        %104 = arith.subf %101, %103 : vector<1x256xf32>
        %cst_29 = arith.constant 0.000000e+00 : f32
        %105 = vector.broadcast %cst_29 : f32 to vector<1x256xf32>
        %106 = arith.maximumf %104, %105 : vector<1x256xf32>
        %107 = arith.mulf %99, %106 : vector<1x256xf32>
        %108 = vector.broadcast %86 : f32 to vector<1x256xf32>
        %109 = arith.addf %108, %6 : vector<1x256xf32>
        %110 = arith.subf %109, %107 : vector<1x256xf32>
        %cst_30 = arith.constant 9.99999993E-9 : f32
        %111 = vector.broadcast %cst_30 : f32 to vector<1x256xf32>
        %112 = arith.maximumf %110, %111 : vector<1x256xf32>
        %113 = arith.divf %107, %112 : vector<1x256xf32>
        %cst_31 = arith.constant 0.699999988 : f32
        %114 = vector.broadcast %cst_31 : f32 to vector<1x256xf32>
        %115 = arith.cmpf ogt, %113, %114 : vector<1x256xf32>
        %116 = vector.broadcast %72 : i32 to vector<1x256xi32>
        %117 = arith.cmpi sgt, %7, %116 : vector<1x256xi32>
        %118 = arith.andi %115, %117 : vector<1x256xi1>
        %cst_32 = arith.constant 0.000000e+00 : f32
        %119 = vector.broadcast %cst_32 : f32 to vector<1x1xf32>
        %120 = arith.cmpf ogt, %92, %119 : vector<1x1xf32>
        %121 = vector.broadcast %120 : vector<1x1xi1> to vector<1x256xi1>
        %122 = arith.andi %118, %121 : vector<1x256xi1>
        %cst_33 = arith.constant 0.000000e+00 : f32
        %123 = vector.broadcast %cst_33 : f32 to vector<1x256xf32>
        %124 = arith.select %122, %123, %71 : vector<1x256xi1>, vector<1x256xf32>
        %c2_i32 = arith.constant 2 : i32
        %125 = arith.addi %17, %c2_i32 : i32
        %126 = arith.index_cast %125 : i32 to index
        %127 = memref.load %arg2[%126] : memref<1280xf32, #tpu.memory_space<smem>>
        %c256_i32_34 = arith.constant 256 : i32
        %128 = arith.addi %c256_i32_34, %125 : i32
        %129 = arith.index_cast %128 : i32 to index
        %130 = memref.load %arg2[%129] : memref<1280xf32, #tpu.memory_space<smem>>
        %c512_i32_35 = arith.constant 512 : i32
        %131 = arith.addi %c512_i32_35, %125 : i32
        %132 = arith.index_cast %131 : i32 to index
        %133 = memref.load %arg2[%132] : memref<1280xf32, #tpu.memory_space<smem>>
        %c768_i32_36 = arith.constant 768 : i32
        %134 = arith.addi %c768_i32_36, %125 : i32
        %135 = arith.index_cast %134 : i32 to index
        %136 = memref.load %arg2[%135] : memref<1280xf32, #tpu.memory_space<smem>>
        %c1024_i32_37 = arith.constant 1024 : i32
        %137 = arith.addi %c1024_i32_37, %125 : i32
        %138 = arith.index_cast %137 : i32 to index
        %139 = memref.load %arg2[%138] : memref<1280xf32, #tpu.memory_space<smem>>
        %140 = vector.broadcast %125 : i32 to vector<1x256xi32>
        %141 = arith.cmpi eq, %7, %140 : vector<1x256xi32>
        %cst_38 = arith.constant 0.000000e+00 : f32
        %142 = vector.broadcast %cst_38 : f32 to vector<1x256xf32>
        %143 = arith.select %141, %124, %142 : vector<1x256xi1>, vector<1x256xf32>
        %cst_39 = arith.constant dense<0.000000e+00> : vector<1xf32>
        %144 = vector.multi_reduction <add>, %143, %cst_39 [1] : vector<1x256xf32> to vector<1xf32>
        %145 = vector.shape_cast %144 : vector<1xf32> to vector<1x1xf32>
        %146 = vector.broadcast %133 : f32 to vector<1x256xf32>
        %147 = arith.minimumf %146, %3 : vector<1x256xf32>
        %148 = vector.broadcast %127 : f32 to vector<1x256xf32>
        %149 = arith.maximumf %148, %1 : vector<1x256xf32>
        %150 = arith.subf %147, %149 : vector<1x256xf32>
        %cst_40 = arith.constant 0.000000e+00 : f32
        %151 = vector.broadcast %cst_40 : f32 to vector<1x256xf32>
        %152 = arith.maximumf %150, %151 : vector<1x256xf32>
        %153 = vector.broadcast %136 : f32 to vector<1x256xf32>
        %154 = arith.minimumf %153, %4 : vector<1x256xf32>
        %155 = vector.broadcast %130 : f32 to vector<1x256xf32>
        %156 = arith.maximumf %155, %2 : vector<1x256xf32>
        %157 = arith.subf %154, %156 : vector<1x256xf32>
        %cst_41 = arith.constant 0.000000e+00 : f32
        %158 = vector.broadcast %cst_41 : f32 to vector<1x256xf32>
        %159 = arith.maximumf %157, %158 : vector<1x256xf32>
        %160 = arith.mulf %152, %159 : vector<1x256xf32>
        %161 = vector.broadcast %139 : f32 to vector<1x256xf32>
        %162 = arith.addf %161, %6 : vector<1x256xf32>
        %163 = arith.subf %162, %160 : vector<1x256xf32>
        %cst_42 = arith.constant 9.99999993E-9 : f32
        %164 = vector.broadcast %cst_42 : f32 to vector<1x256xf32>
        %165 = arith.maximumf %163, %164 : vector<1x256xf32>
        %166 = arith.divf %160, %165 : vector<1x256xf32>
        %cst_43 = arith.constant 0.699999988 : f32
        %167 = vector.broadcast %cst_43 : f32 to vector<1x256xf32>
        %168 = arith.cmpf ogt, %166, %167 : vector<1x256xf32>
        %169 = vector.broadcast %125 : i32 to vector<1x256xi32>
        %170 = arith.cmpi sgt, %7, %169 : vector<1x256xi32>
        %171 = arith.andi %168, %170 : vector<1x256xi1>
        %cst_44 = arith.constant 0.000000e+00 : f32
        %172 = vector.broadcast %cst_44 : f32 to vector<1x1xf32>
        %173 = arith.cmpf ogt, %145, %172 : vector<1x1xf32>
        %174 = vector.broadcast %173 : vector<1x1xi1> to vector<1x256xi1>
        %175 = arith.andi %171, %174 : vector<1x256xi1>
        %cst_45 = arith.constant 0.000000e+00 : f32
        %176 = vector.broadcast %cst_45 : f32 to vector<1x256xf32>
        %177 = arith.select %175, %176, %124 : vector<1x256xi1>, vector<1x256xf32>
        %c3_i32 = arith.constant 3 : i32
        %178 = arith.addi %17, %c3_i32 : i32
        %179 = arith.index_cast %178 : i32 to index
        %180 = memref.load %arg2[%179] : memref<1280xf32, #tpu.memory_space<smem>>
        %c256_i32_46 = arith.constant 256 : i32
        %181 = arith.addi %c256_i32_46, %178 : i32
        %182 = arith.index_cast %181 : i32 to index
        %183 = memref.load %arg2[%182] : memref<1280xf32, #tpu.memory_space<smem>>
        %c512_i32_47 = arith.constant 512 : i32
        %184 = arith.addi %c512_i32_47, %178 : i32
        %185 = arith.index_cast %184 : i32 to index
        %186 = memref.load %arg2[%185] : memref<1280xf32, #tpu.memory_space<smem>>
        %c768_i32_48 = arith.constant 768 : i32
        %187 = arith.addi %c768_i32_48, %178 : i32
        %188 = arith.index_cast %187 : i32 to index
        %189 = memref.load %arg2[%188] : memref<1280xf32, #tpu.memory_space<smem>>
        %c1024_i32_49 = arith.constant 1024 : i32
        %190 = arith.addi %c1024_i32_49, %178 : i32
        %191 = arith.index_cast %190 : i32 to index
        %192 = memref.load %arg2[%191] : memref<1280xf32, #tpu.memory_space<smem>>
        %193 = vector.broadcast %178 : i32 to vector<1x256xi32>
        %194 = arith.cmpi eq, %7, %193 : vector<1x256xi32>
        %cst_50 = arith.constant 0.000000e+00 : f32
        %195 = vector.broadcast %cst_50 : f32 to vector<1x256xf32>
        %196 = arith.select %194, %177, %195 : vector<1x256xi1>, vector<1x256xf32>
        %cst_51 = arith.constant dense<0.000000e+00> : vector<1xf32>
        %197 = vector.multi_reduction <add>, %196, %cst_51 [1] : vector<1x256xf32> to vector<1xf32>
        %198 = vector.shape_cast %197 : vector<1xf32> to vector<1x1xf32>
        %199 = vector.broadcast %186 : f32 to vector<1x256xf32>
        %200 = arith.minimumf %199, %3 : vector<1x256xf32>
        %201 = vector.broadcast %180 : f32 to vector<1x256xf32>
        %202 = arith.maximumf %201, %1 : vector<1x256xf32>
        %203 = arith.subf %200, %202 : vector<1x256xf32>
        %cst_52 = arith.constant 0.000000e+00 : f32
        %204 = vector.broadcast %cst_52 : f32 to vector<1x256xf32>
        %205 = arith.maximumf %203, %204 : vector<1x256xf32>
        %206 = vector.broadcast %189 : f32 to vector<1x256xf32>
        %207 = arith.minimumf %206, %4 : vector<1x256xf32>
        %208 = vector.broadcast %183 : f32 to vector<1x256xf32>
        %209 = arith.maximumf %208, %2 : vector<1x256xf32>
        %210 = arith.subf %207, %209 : vector<1x256xf32>
        %cst_53 = arith.constant 0.000000e+00 : f32
        %211 = vector.broadcast %cst_53 : f32 to vector<1x256xf32>
        %212 = arith.maximumf %210, %211 : vector<1x256xf32>
        %213 = arith.mulf %205, %212 : vector<1x256xf32>
        %214 = vector.broadcast %192 : f32 to vector<1x256xf32>
        %215 = arith.addf %214, %6 : vector<1x256xf32>
        %216 = arith.subf %215, %213 : vector<1x256xf32>
        %cst_54 = arith.constant 9.99999993E-9 : f32
        %217 = vector.broadcast %cst_54 : f32 to vector<1x256xf32>
        %218 = arith.maximumf %216, %217 : vector<1x256xf32>
        %219 = arith.divf %213, %218 : vector<1x256xf32>
        %cst_55 = arith.constant 0.699999988 : f32
        %220 = vector.broadcast %cst_55 : f32 to vector<1x256xf32>
        %221 = arith.cmpf ogt, %219, %220 : vector<1x256xf32>
        %222 = vector.broadcast %178 : i32 to vector<1x256xi32>
        %223 = arith.cmpi sgt, %7, %222 : vector<1x256xi32>
        %224 = arith.andi %221, %223 : vector<1x256xi1>
        %cst_56 = arith.constant 0.000000e+00 : f32
        %225 = vector.broadcast %cst_56 : f32 to vector<1x1xf32>
        %226 = arith.cmpf ogt, %198, %225 : vector<1x1xf32>
        %227 = vector.broadcast %226 : vector<1x1xi1> to vector<1x256xi1>
        %228 = arith.andi %224, %227 : vector<1x256xi1>
        %cst_57 = arith.constant 0.000000e+00 : f32
        %229 = vector.broadcast %cst_57 : f32 to vector<1x256xf32>
        %230 = arith.select %228, %229, %177 : vector<1x256xi1>, vector<1x256xf32>
        %c4_i32 = arith.constant 4 : i32
        %231 = arith.addi %17, %c4_i32 : i32
        %232 = arith.index_cast %231 : i32 to index
        %233 = memref.load %arg2[%232] : memref<1280xf32, #tpu.memory_space<smem>>
        %c256_i32_58 = arith.constant 256 : i32
        %234 = arith.addi %c256_i32_58, %231 : i32
        %235 = arith.index_cast %234 : i32 to index
        %236 = memref.load %arg2[%235] : memref<1280xf32, #tpu.memory_space<smem>>
        %c512_i32_59 = arith.constant 512 : i32
        %237 = arith.addi %c512_i32_59, %231 : i32
        %238 = arith.index_cast %237 : i32 to index
        %239 = memref.load %arg2[%238] : memref<1280xf32, #tpu.memory_space<smem>>
        %c768_i32_60 = arith.constant 768 : i32
        %240 = arith.addi %c768_i32_60, %231 : i32
        %241 = arith.index_cast %240 : i32 to index
        %242 = memref.load %arg2[%241] : memref<1280xf32, #tpu.memory_space<smem>>
        %c1024_i32_61 = arith.constant 1024 : i32
        %243 = arith.addi %c1024_i32_61, %231 : i32
        %244 = arith.index_cast %243 : i32 to index
        %245 = memref.load %arg2[%244] : memref<1280xf32, #tpu.memory_space<smem>>
        %246 = vector.broadcast %231 : i32 to vector<1x256xi32>
        %247 = arith.cmpi eq, %7, %246 : vector<1x256xi32>
        %cst_62 = arith.constant 0.000000e+00 : f32
        %248 = vector.broadcast %cst_62 : f32 to vector<1x256xf32>
        %249 = arith.select %247, %230, %248 : vector<1x256xi1>, vector<1x256xf32>
        %cst_63 = arith.constant dense<0.000000e+00> : vector<1xf32>
        %250 = vector.multi_reduction <add>, %249, %cst_63 [1] : vector<1x256xf32> to vector<1xf32>
        %251 = vector.shape_cast %250 : vector<1xf32> to vector<1x1xf32>
        %252 = vector.broadcast %239 : f32 to vector<1x256xf32>
        %253 = arith.minimumf %252, %3 : vector<1x256xf32>
        %254 = vector.broadcast %233 : f32 to vector<1x256xf32>
        %255 = arith.maximumf %254, %1 : vector<1x256xf32>
        %256 = arith.subf %253, %255 : vector<1x256xf32>
        %cst_64 = arith.constant 0.000000e+00 : f32
        %257 = vector.broadcast %cst_64 : f32 to vector<1x256xf32>
        %258 = arith.maximumf %256, %257 : vector<1x256xf32>
        %259 = vector.broadcast %242 : f32 to vector<1x256xf32>
        %260 = arith.minimumf %259, %4 : vector<1x256xf32>
        %261 = vector.broadcast %236 : f32 to vector<1x256xf32>
        %262 = arith.maximumf %261, %2 : vector<1x256xf32>
        %263 = arith.subf %260, %262 : vector<1x256xf32>
        %cst_65 = arith.constant 0.000000e+00 : f32
        %264 = vector.broadcast %cst_65 : f32 to vector<1x256xf32>
        %265 = arith.maximumf %263, %264 : vector<1x256xf32>
        %266 = arith.mulf %258, %265 : vector<1x256xf32>
        %267 = vector.broadcast %245 : f32 to vector<1x256xf32>
        %268 = arith.addf %267, %6 : vector<1x256xf32>
        %269 = arith.subf %268, %266 : vector<1x256xf32>
        %cst_66 = arith.constant 9.99999993E-9 : f32
        %270 = vector.broadcast %cst_66 : f32 to vector<1x256xf32>
        %271 = arith.maximumf %269, %270 : vector<1x256xf32>
        %272 = arith.divf %266, %271 : vector<1x256xf32>
        %cst_67 = arith.constant 0.699999988 : f32
        %273 = vector.broadcast %cst_67 : f32 to vector<1x256xf32>
        %274 = arith.cmpf ogt, %272, %273 : vector<1x256xf32>
        %275 = vector.broadcast %231 : i32 to vector<1x256xi32>
        %276 = arith.cmpi sgt, %7, %275 : vector<1x256xi32>
        %277 = arith.andi %274, %276 : vector<1x256xi1>
        %cst_68 = arith.constant 0.000000e+00 : f32
        %278 = vector.broadcast %cst_68 : f32 to vector<1x1xf32>
        %279 = arith.cmpf ogt, %251, %278 : vector<1x1xf32>
        %280 = vector.broadcast %279 : vector<1x1xi1> to vector<1x256xi1>
        %281 = arith.andi %277, %280 : vector<1x256xi1>
        %cst_69 = arith.constant 0.000000e+00 : f32
        %282 = vector.broadcast %cst_69 : f32 to vector<1x256xf32>
        %283 = arith.select %281, %282, %230 : vector<1x256xi1>, vector<1x256xf32>
        %c5_i32 = arith.constant 5 : i32
        %284 = arith.addi %17, %c5_i32 : i32
        %285 = arith.index_cast %284 : i32 to index
        %286 = memref.load %arg2[%285] : memref<1280xf32, #tpu.memory_space<smem>>
        %c256_i32_70 = arith.constant 256 : i32
        %287 = arith.addi %c256_i32_70, %284 : i32
        %288 = arith.index_cast %287 : i32 to index
        %289 = memref.load %arg2[%288] : memref<1280xf32, #tpu.memory_space<smem>>
        %c512_i32_71 = arith.constant 512 : i32
        %290 = arith.addi %c512_i32_71, %284 : i32
        %291 = arith.index_cast %290 : i32 to index
        %292 = memref.load %arg2[%291] : memref<1280xf32, #tpu.memory_space<smem>>
        %c768_i32_72 = arith.constant 768 : i32
        %293 = arith.addi %c768_i32_72, %284 : i32
        %294 = arith.index_cast %293 : i32 to index
        %295 = memref.load %arg2[%294] : memref<1280xf32, #tpu.memory_space<smem>>
        %c1024_i32_73 = arith.constant 1024 : i32
        %296 = arith.addi %c1024_i32_73, %284 : i32
        %297 = arith.index_cast %296 : i32 to index
        %298 = memref.load %arg2[%297] : memref<1280xf32, #tpu.memory_space<smem>>
        %299 = vector.broadcast %284 : i32 to vector<1x256xi32>
        %300 = arith.cmpi eq, %7, %299 : vector<1x256xi32>
        %cst_74 = arith.constant 0.000000e+00 : f32
        %301 = vector.broadcast %cst_74 : f32 to vector<1x256xf32>
        %302 = arith.select %300, %283, %301 : vector<1x256xi1>, vector<1x256xf32>
        %cst_75 = arith.constant dense<0.000000e+00> : vector<1xf32>
        %303 = vector.multi_reduction <add>, %302, %cst_75 [1] : vector<1x256xf32> to vector<1xf32>
        %304 = vector.shape_cast %303 : vector<1xf32> to vector<1x1xf32>
        %305 = vector.broadcast %292 : f32 to vector<1x256xf32>
        %306 = arith.minimumf %305, %3 : vector<1x256xf32>
        %307 = vector.broadcast %286 : f32 to vector<1x256xf32>
        %308 = arith.maximumf %307, %1 : vector<1x256xf32>
        %309 = arith.subf %306, %308 : vector<1x256xf32>
        %cst_76 = arith.constant 0.000000e+00 : f32
        %310 = vector.broadcast %cst_76 : f32 to vector<1x256xf32>
        %311 = arith.maximumf %309, %310 : vector<1x256xf32>
        %312 = vector.broadcast %295 : f32 to vector<1x256xf32>
        %313 = arith.minimumf %312, %4 : vector<1x256xf32>
        %314 = vector.broadcast %289 : f32 to vector<1x256xf32>
        %315 = arith.maximumf %314, %2 : vector<1x256xf32>
        %316 = arith.subf %313, %315 : vector<1x256xf32>
        %cst_77 = arith.constant 0.000000e+00 : f32
        %317 = vector.broadcast %cst_77 : f32 to vector<1x256xf32>
        %318 = arith.maximumf %316, %317 : vector<1x256xf32>
        %319 = arith.mulf %311, %318 : vector<1x256xf32>
        %320 = vector.broadcast %298 : f32 to vector<1x256xf32>
        %321 = arith.addf %320, %6 : vector<1x256xf32>
        %322 = arith.subf %321, %319 : vector<1x256xf32>
        %cst_78 = arith.constant 9.99999993E-9 : f32
        %323 = vector.broadcast %cst_78 : f32 to vector<1x256xf32>
        %324 = arith.maximumf %322, %323 : vector<1x256xf32>
        %325 = arith.divf %319, %324 : vector<1x256xf32>
        %cst_79 = arith.constant 0.699999988 : f32
        %326 = vector.broadcast %cst_79 : f32 to vector<1x256xf32>
        %327 = arith.cmpf ogt, %325, %326 : vector<1x256xf32>
        %328 = vector.broadcast %284 : i32 to vector<1x256xi32>
        %329 = arith.cmpi sgt, %7, %328 : vector<1x256xi32>
        %330 = arith.andi %327, %329 : vector<1x256xi1>
        %cst_80 = arith.constant 0.000000e+00 : f32
        %331 = vector.broadcast %cst_80 : f32 to vector<1x1xf32>
        %332 = arith.cmpf ogt, %304, %331 : vector<1x1xf32>
        %333 = vector.broadcast %332 : vector<1x1xi1> to vector<1x256xi1>
        %334 = arith.andi %330, %333 : vector<1x256xi1>
        %cst_81 = arith.constant 0.000000e+00 : f32
        %335 = vector.broadcast %cst_81 : f32 to vector<1x256xf32>
        %336 = arith.select %334, %335, %283 : vector<1x256xi1>, vector<1x256xf32>
        %c6_i32 = arith.constant 6 : i32
        %337 = arith.addi %17, %c6_i32 : i32
        %338 = arith.index_cast %337 : i32 to index
        %339 = memref.load %arg2[%338] : memref<1280xf32, #tpu.memory_space<smem>>
        %c256_i32_82 = arith.constant 256 : i32
        %340 = arith.addi %c256_i32_82, %337 : i32
        %341 = arith.index_cast %340 : i32 to index
        %342 = memref.load %arg2[%341] : memref<1280xf32, #tpu.memory_space<smem>>
        %c512_i32_83 = arith.constant 512 : i32
        %343 = arith.addi %c512_i32_83, %337 : i32
        %344 = arith.index_cast %343 : i32 to index
        %345 = memref.load %arg2[%344] : memref<1280xf32, #tpu.memory_space<smem>>
        %c768_i32_84 = arith.constant 768 : i32
        %346 = arith.addi %c768_i32_84, %337 : i32
        %347 = arith.index_cast %346 : i32 to index
        %348 = memref.load %arg2[%347] : memref<1280xf32, #tpu.memory_space<smem>>
        %c1024_i32_85 = arith.constant 1024 : i32
        %349 = arith.addi %c1024_i32_85, %337 : i32
        %350 = arith.index_cast %349 : i32 to index
        %351 = memref.load %arg2[%350] : memref<1280xf32, #tpu.memory_space<smem>>
        %352 = vector.broadcast %337 : i32 to vector<1x256xi32>
        %353 = arith.cmpi eq, %7, %352 : vector<1x256xi32>
        %cst_86 = arith.constant 0.000000e+00 : f32
        %354 = vector.broadcast %cst_86 : f32 to vector<1x256xf32>
        %355 = arith.select %353, %336, %354 : vector<1x256xi1>, vector<1x256xf32>
        %cst_87 = arith.constant dense<0.000000e+00> : vector<1xf32>
        %356 = vector.multi_reduction <add>, %355, %cst_87 [1] : vector<1x256xf32> to vector<1xf32>
        %357 = vector.shape_cast %356 : vector<1xf32> to vector<1x1xf32>
        %358 = vector.broadcast %345 : f32 to vector<1x256xf32>
        %359 = arith.minimumf %358, %3 : vector<1x256xf32>
        %360 = vector.broadcast %339 : f32 to vector<1x256xf32>
        %361 = arith.maximumf %360, %1 : vector<1x256xf32>
        %362 = arith.subf %359, %361 : vector<1x256xf32>
        %cst_88 = arith.constant 0.000000e+00 : f32
        %363 = vector.broadcast %cst_88 : f32 to vector<1x256xf32>
        %364 = arith.maximumf %362, %363 : vector<1x256xf32>
        %365 = vector.broadcast %348 : f32 to vector<1x256xf32>
        %366 = arith.minimumf %365, %4 : vector<1x256xf32>
        %367 = vector.broadcast %342 : f32 to vector<1x256xf32>
        %368 = arith.maximumf %367, %2 : vector<1x256xf32>
        %369 = arith.subf %366, %368 : vector<1x256xf32>
        %cst_89 = arith.constant 0.000000e+00 : f32
        %370 = vector.broadcast %cst_89 : f32 to vector<1x256xf32>
        %371 = arith.maximumf %369, %370 : vector<1x256xf32>
        %372 = arith.mulf %364, %371 : vector<1x256xf32>
        %373 = vector.broadcast %351 : f32 to vector<1x256xf32>
        %374 = arith.addf %373, %6 : vector<1x256xf32>
        %375 = arith.subf %374, %372 : vector<1x256xf32>
        %cst_90 = arith.constant 9.99999993E-9 : f32
        %376 = vector.broadcast %cst_90 : f32 to vector<1x256xf32>
        %377 = arith.maximumf %375, %376 : vector<1x256xf32>
        %378 = arith.divf %372, %377 : vector<1x256xf32>
        %cst_91 = arith.constant 0.699999988 : f32
        %379 = vector.broadcast %cst_91 : f32 to vector<1x256xf32>
        %380 = arith.cmpf ogt, %378, %379 : vector<1x256xf32>
        %381 = vector.broadcast %337 : i32 to vector<1x256xi32>
        %382 = arith.cmpi sgt, %7, %381 : vector<1x256xi32>
        %383 = arith.andi %380, %382 : vector<1x256xi1>
        %cst_92 = arith.constant 0.000000e+00 : f32
        %384 = vector.broadcast %cst_92 : f32 to vector<1x1xf32>
        %385 = arith.cmpf ogt, %357, %384 : vector<1x1xf32>
        %386 = vector.broadcast %385 : vector<1x1xi1> to vector<1x256xi1>
        %387 = arith.andi %383, %386 : vector<1x256xi1>
        %cst_93 = arith.constant 0.000000e+00 : f32
        %388 = vector.broadcast %cst_93 : f32 to vector<1x256xf32>
        %389 = arith.select %387, %388, %336 : vector<1x256xi1>, vector<1x256xf32>
        %c7_i32 = arith.constant 7 : i32
        %390 = arith.addi %17, %c7_i32 : i32
        %391 = arith.index_cast %390 : i32 to index
        %392 = memref.load %arg2[%391] : memref<1280xf32, #tpu.memory_space<smem>>
        %c256_i32_94 = arith.constant 256 : i32
        %393 = arith.addi %c256_i32_94, %390 : i32
        %394 = arith.index_cast %393 : i32 to index
        %395 = memref.load %arg2[%394] : memref<1280xf32, #tpu.memory_space<smem>>
        %c512_i32_95 = arith.constant 512 : i32
        %396 = arith.addi %c512_i32_95, %390 : i32
        %397 = arith.index_cast %396 : i32 to index
        %398 = memref.load %arg2[%397] : memref<1280xf32, #tpu.memory_space<smem>>
        %c768_i32_96 = arith.constant 768 : i32
        %399 = arith.addi %c768_i32_96, %390 : i32
        %400 = arith.index_cast %399 : i32 to index
        %401 = memref.load %arg2[%400] : memref<1280xf32, #tpu.memory_space<smem>>
        %c1024_i32_97 = arith.constant 1024 : i32
        %402 = arith.addi %c1024_i32_97, %390 : i32
        %403 = arith.index_cast %402 : i32 to index
        %404 = memref.load %arg2[%403] : memref<1280xf32, #tpu.memory_space<smem>>
        %405 = vector.broadcast %390 : i32 to vector<1x256xi32>
        %406 = arith.cmpi eq, %7, %405 : vector<1x256xi32>
        %cst_98 = arith.constant 0.000000e+00 : f32
        %407 = vector.broadcast %cst_98 : f32 to vector<1x256xf32>
        %408 = arith.select %406, %389, %407 : vector<1x256xi1>, vector<1x256xf32>
        %cst_99 = arith.constant dense<0.000000e+00> : vector<1xf32>
        %409 = vector.multi_reduction <add>, %408, %cst_99 [1] : vector<1x256xf32> to vector<1xf32>
        %410 = vector.shape_cast %409 : vector<1xf32> to vector<1x1xf32>
        %411 = vector.broadcast %398 : f32 to vector<1x256xf32>
        %412 = arith.minimumf %411, %3 : vector<1x256xf32>
        %413 = vector.broadcast %392 : f32 to vector<1x256xf32>
        %414 = arith.maximumf %413, %1 : vector<1x256xf32>
        %415 = arith.subf %412, %414 : vector<1x256xf32>
        %cst_100 = arith.constant 0.000000e+00 : f32
        %416 = vector.broadcast %cst_100 : f32 to vector<1x256xf32>
        %417 = arith.maximumf %415, %416 : vector<1x256xf32>
        %418 = vector.broadcast %401 : f32 to vector<1x256xf32>
        %419 = arith.minimumf %418, %4 : vector<1x256xf32>
        %420 = vector.broadcast %395 : f32 to vector<1x256xf32>
        %421 = arith.maximumf %420, %2 : vector<1x256xf32>
        %422 = arith.subf %419, %421 : vector<1x256xf32>
        %cst_101 = arith.constant 0.000000e+00 : f32
        %423 = vector.broadcast %cst_101 : f32 to vector<1x256xf32>
        %424 = arith.maximumf %422, %423 : vector<1x256xf32>
        %425 = arith.mulf %417, %424 : vector<1x256xf32>
        %426 = vector.broadcast %404 : f32 to vector<1x256xf32>
        %427 = arith.addf %426, %6 : vector<1x256xf32>
        %428 = arith.subf %427, %425 : vector<1x256xf32>
        %cst_102 = arith.constant 9.99999993E-9 : f32
        %429 = vector.broadcast %cst_102 : f32 to vector<1x256xf32>
        %430 = arith.maximumf %428, %429 : vector<1x256xf32>
        %431 = arith.divf %425, %430 : vector<1x256xf32>
        %cst_103 = arith.constant 0.699999988 : f32
        %432 = vector.broadcast %cst_103 : f32 to vector<1x256xf32>
        %433 = arith.cmpf ogt, %431, %432 : vector<1x256xf32>
        %434 = vector.broadcast %390 : i32 to vector<1x256xi32>
        %435 = arith.cmpi sgt, %7, %434 : vector<1x256xi32>
        %436 = arith.andi %433, %435 : vector<1x256xi1>
        %cst_104 = arith.constant 0.000000e+00 : f32
        %437 = vector.broadcast %cst_104 : f32 to vector<1x1xf32>
        %438 = arith.cmpf ogt, %410, %437 : vector<1x1xf32>
        %439 = vector.broadcast %438 : vector<1x1xi1> to vector<1x256xi1>
        %440 = arith.andi %436, %439 : vector<1x256xi1>
        %cst_105 = arith.constant 0.000000e+00 : f32
        %441 = vector.broadcast %cst_105 : f32 to vector<1x256xf32>
        %442 = arith.select %440, %441, %389 : vector<1x256xi1>, vector<1x256xf32>
        %c0_106 = arith.constant 0 : index
        %c0_107 = arith.constant 0 : index
        %443 = vector.load %arg3[%c0_106, %c0_107] : memref<1x256xf32, #tpu.memory_space<vmem>>, vector<1x256xf32>
        tpu.vector_store %arg3[%c0_106, %c0_107], %442 {strides = array<i32>} : memref<1x256xf32, #tpu.memory_space<vmem>>, vector<1x256xf32>,
        %c8_i32_108 = arith.constant 8 : i32
        %444 = arith.addi %17, %c8_i32_108 : i32
        %445 = vector.broadcast %444 : i32 to vector<1x256xi32>
        %446 = arith.cmpi slt, %7, %445 : vector<1x256xi32>
        %cst_109 = arith.constant 0.000000e+00 : f32
        %447 = vector.broadcast %cst_109 : f32 to vector<1x256xf32>
        %448 = arith.select %446, %442, %447 : vector<1x256xi1>, vector<1x256xf32>
        %cst_110 = arith.constant dense<0.000000e+00> : vector<1xf32>
        %449 = vector.multi_reduction <add>, %448, %cst_110 [1] : vector<1x256xf32> to vector<1xf32>
        %450 = vector.shape_cast %449 : vector<1xf32> to vector<1x1xf32>
        %c0_111 = arith.constant 0 : index
        %c0_112 = arith.constant 0 : index
        %451 = vector.load %arg4[%c0_111, %c0_112] : memref<1x1xf32, #tpu.memory_space<vmem>>, vector<1x1xf32>
        tpu.vector_store %arg4[%c0_111, %c0_112], %450 {strides = array<i32>} : memref<1x1xf32, #tpu.memory_space<vmem>>, vector<1x1xf32>,
      } else {
      }
    }
    %c32_i32_5 = arith.constant 32 : i32
    return
  }
  func.func @transform_0(%arg0: i32) -> (i32, i32) {
    %c0_i32 = arith.constant 0 : i32
    %c0_i32_0 = arith.constant 0 : i32
    %c0_i32_1 = arith.constant 0 : i32
    return %c0_i32, %c0_i32_0 : i32, i32
  }
  func.func @transform_1(%arg0: i32) -> i32 {
    %c0_i32 = arith.constant 0 : i32
    %c0_i32_0 = arith.constant 0 : i32
    return %c0_i32 : i32
  }
  func.func @transform_2(%arg0: i32) -> (i32, i32) {
    %c0_i32 = arith.constant 0 : i32
    %c0_i32_0 = arith.constant 0 : i32
    %c0_i32_1 = arith.constant 0 : i32
    return %c0_i32, %c0_i32_0 : i32, i32
  }
}

</mosaic_0001>

<llo_original>
// kernel: approx_top_k.19
$region0: #{approx_top_k.19}
  #allocation0 [shape = 's32[1]{0}', space=sflag, size = 0x4, scoped, tag = 'scoped memory for approx_top_k.19']
  %s0 = inlined_call_operand.vmem [shape: s32[768], index: 0, kind: output, shape index: {}]
  %v1 = vlaneseq
  %4 = vst [vmem:[%s0] sm:$0xff] %v1

// kernel: approx_top_k.20
$region0: #{approx_top_k.20}
  %s0 = inlined_call_operand.vmem [shape: f32[768], index: 0, kind: input, shape index: {}]
  %s1 = inlined_call_operand.vmem [shape: s32[768], index: 1, kind: input, shape index: {}]
  %s2 = inlined_call_operand.vmem [shape: f32[768], index: 2, kind: output, shape index: {0}]
  %s3 = inlined_call_operand.vmem [shape: s32[768], index: 3, kind: output, shape index: {1}]
  %4 = xla_tuple %s2, %s3
  $region1: #{approx_top_k.20} parent=0
    #allocation0 [shape = 'u8[4096]{0}', space=vmem, size = 0x1000, scoped, tag = 'operand span for operand 0']
    #allocation1 [shape = 'u8[4096]{0}', space=vmem, size = 0x1000, scoped, tag = 'operand span for operand 2']
    #allocation2 [shape = 'u8[4096]{0}', space=vmem, size = 0x1000, scoped, tag = 'operand span for operand 1']
    #allocation3 [shape = 'u8[4096]{0}', space=vmem, size = 0x1000, scoped, tag = 'operand span for operand 3']
    // Predicated region
    $region2: #{approx_top_k.20} parent=1 // pred_check
      _
    $region3: #{approx_top_k.20} parent=1 // pred_check_branch
      %6 = sbr.rel (0) target = $region5
    $region4: #{approx_top_k.20} parent=1 // pred_region
      // Predicated region
      $region6: #{approx_top_k.20} parent=4 // pred_check
        _
      $region7: #{approx_top_k.20} parent=4 // pred_check_branch
        %8 = sbr.rel (0) target = $region9
      $region8: #{approx_top_k.20} parent=4 // pred_region
        // Predicated region
        $region21: #{approx_top_k.20} parent=8 // pred_check
          _
        $region22: #{approx_top_k.20} parent=8 // pred_check_branch
          %24 = sbr.rel (0) target = $region24
        $region23: #{approx_top_k.20} parent=8 // pred_region
          loop: start=0, step=1, limit=1
          $region25: #{approx_top_k.20} parent=23 // loop_pre_header
            _
          $region26: #{approx_top_k.20} parent=23 // loop_header
            %s26 = sphi 0, %s30
            %p27 = scmp.ge.s32.totalorder %s26, 1
            %s31 = sphi %s0, %s0
            %s32 = sphi [#allocation0], [#allocation0]
          $region27: #{approx_top_k.20} parent=23 // loop_header_branch
            %29 = sbr.rel (%p27) target = $region31
          $region28: #{approx_top_k.20} parent=23 // loop_body
            %v33 = vld [vmem:[%s31] sm:$0xff]
            %34 = vst [vmem:[%s32] sm:$0xff] %v33
          $region29: #{approx_top_k.20} parent=23 // loop_footer
            %s30 = sadd.s32 1, %s26
          $region30: #{approx_top_k.20} parent=23 // loop_footer_branch
            %25 = sbr.rel target = $region26
          $region31: #{approx_top_k.20} parent=23 // loop_exit
            _
        $region24: #{approx_top_k.20} parent=8 // pred_fallthru
          _
        // Predicated region
        $region32: #{approx_top_k.20} parent=8 // pred_check
          _
        $region33: #{approx_top_k.20} parent=8 // pred_check_branch
          %36 = sbr.rel target = $region35
        $region34: #{approx_top_k.20} parent=8 // pred_region
          _
        $region35: #{approx_top_k.20} parent=8 // pred_fallthru
          _
      $region9: #{approx_top_k.20} parent=4 // pred_fallthru
        _
      // Predicated region
      $region10: #{approx_top_k.20} parent=4 // pred_check
        _
      $region11: #{approx_top_k.20} parent=4 // pred_check_branch
        %10 = sbr.rel target = $region13
      $region12: #{approx_top_k.20} parent=4 // pred_region
        %s12 = ssub.s32 256, 1
        loop: start=0, step=1, limit=1
        $region14: #{approx_top_k.20} parent=12 // loop_pre_header
          _
        $region15: #{approx_top_k.20} parent=12 // loop_header
          %s14 = sphi 0, %s18
          %p15 = scmp.ge.s32.totalorder %s14, 1
          %s19 = sphi %s0, %s0
          %s20 = sphi [#allocation0], [#allocation0]
        $region16: #{approx_top_k.20} parent=12 // loop_header_branch
          %17 = sbr.rel (%p15) target = $region20
        $region17: #{approx_top_k.20} parent=12 // loop_body
          %v21 = vld [vmem:[%s19] sm:%s12]
          %22 = vst [vmem:[%s20] sm:%s12] %v21
        $region18: #{approx_top_k.20} parent=12 // loop_footer
          %s18 = sadd.s32 1, %s14
        $region19: #{approx_top_k.20} parent=12 // loop_footer_branch
          %13 = sbr.rel target = $region15
        $region20: #{approx_top_k.20} parent=12 // loop_exit
          _
      $region13: #{approx_top_k.20} parent=4 // pred_fallthru
        _
    $region5: #{approx_top_k.20} parent=1 // pred_fallthru
      _
    %37 = vnop
    // Predicated region
    $region36: #{approx_top_k.20} parent=1 // pred_check
      _
    $region37: #{approx_top_k.20} parent=1 // pred_check_branch
      %39 = sbr.rel (0) target = $region39
    $region38: #{approx_top_k.20} parent=1 // pred_region
      // Predicated region
      $region40: #{approx_top_k.20} parent=38 // pred_check
        _
      $region41: #{approx_top_k.20} parent=38 // pred_check_branch
        %41 = sbr.rel (0) target = $region43
      $region42: #{approx_top_k.20} parent=38 // pred_region
        // Predicated region
        $region55: #{approx_top_k.20} parent=42 // pred_check
          _
        $region56: #{approx_top_k.20} parent=42 // pred_check_branch
          %57 = sbr.rel (0) target = $region58
        $region57: #{approx_top_k.20} parent=42 // pred_region
          loop: start=0, step=1, limit=1
          $region59: #{approx_top_k.20} parent=57 // loop_pre_header
            _
          $region60: #{approx_top_k.20} parent=57 // loop_header
            %s59 = sphi 0, %s63
            %p60 = scmp.ge.s32.totalorder %s59, 1
            %s64 = sphi %s1, %s1
            %s65 = sphi [#allocation2], [#allocation2]
          $region61: #{approx_top_k.20} parent=57 // loop_header_branch
            %62 = sbr.rel (%p60) target = $region65
          $region62: #{approx_top_k.20} parent=57 // loop_body
            %v66 = vld [vmem:[%s64] sm:$0xff]
            %67 = vst [vmem:[%s65] sm:$0xff] %v66
          $region63: #{approx_top_k.20} parent=57 // loop_footer
            %s63 = sadd.s32 1, %s59
          $region64: #{approx_top_k.20} parent=57 // loop_footer_branch
            %58 = sbr.rel target = $region60
          $region65: #{approx_top_k.20} parent=57 // loop_exit
            _
        $region58: #{approx_top_k.20} parent=42 // pred_fallthru
          _
        // Predicated region
        $region66: #{approx_top_k.20} parent=42 // pred_check
          _
        $region67: #{approx_top_k.20} parent=42 // pred_check_branch
          %69 = sbr.rel target = $region69
        $region68: #{approx_top_k.20} parent=42 // pred_region
          _
        $region69: #{approx_top_k.20} parent=42 // pred_fallthru
          _
      $region43: #{approx_top_k.20} parent=38 // pred_fallthru
        _
      // Predicated region
      $region44: #{approx_top_k.20} parent=38 // pred_check
        _
      $region45: #{approx_top_k.20} parent=38 // pred_check_branch
        %43 = sbr.rel target = $region47
      $region46: #{approx_top_k.20} parent=38 // pred_region
        %s45 = ssub.s32 256, 1
        loop: start=0, step=1, limit=1
        $region48: #{approx_top_k.20} parent=46 // loop_pre_header
          _
        $region49: #{approx_top_k.20} parent=46 // loop_header
          %s47 = sphi 0, %s51
          %p48 = scmp.ge.s32.totalorder %s47, 1
          %s52 = sphi %s1, %s1
          %s53 = sphi [#allocation2], [#allocation2]
        $region50: #{approx_top_k.20} parent=46 // loop_header_branch
          %50 = sbr.rel (%p48) target = $region54
        $region51: #{approx_top_k.20} parent=46 // loop_body
          %v54 = vld [vmem:[%s52] sm:%s45]
          %55 = vst [vmem:[%s53] sm:%s45] %v54
        $region52: #{approx_top_k.20} parent=46 // loop_footer
          %s51 = sadd.s32 1, %s47
        $region53: #{approx_top_k.20} parent=46 // loop_footer_branch
          %46 = sbr.rel target = $region49
        $region54: #{approx_top_k.20} parent=46 // loop_exit
          _
      $region47: #{approx_top_k.20} parent=38 // pred_fallthru
        _
    $region39: #{approx_top_k.20} parent=1 // pred_fallthru
      _
    %70 = vnop
    %v71 = vlaneseq
    %v72 = vand.u32 %v71, 127
    %v73 = vxor.u32 %v72, 1
    %74 = vset.pattern.permute.xlu0 %v73
    %v75 = vlaneseq
    %v76 = vand.u32 %v75, 127
    %v77 = vand.u32 %v76, 1
    %vm78 = vcmp.eq.s32.totalorder 0, %v77
    %v79 = vlaneseq
    %vm81 = vcmp.lt.s32.totalorder %v79, 768
    %v82 = vsel %vm81, 1, 0
    %v83 = vlaneseq
    %v84 = vxor.u32 %v83, 1
    %vm86 = vcmp.lt.s32.totalorder %v84, 768
    %v87 = vsel %vm86, 1, 0
    %vm88 = vcmp.eq.s32.totalorder %v82, %v87
    %v89 = vld [vmem:[#allocation0] sm:$0xff]
    %90 = vperm.xlu0 %74, %v89
    %v91 = vpop.permute.xlu0 %90
    %v92 = vld [vmem:[#allocation2] sm:$0xff]
    %93 = vperm.xlu0 %74, %v92
    %v94 = vpop.permute.xlu0 %93
    %95 = xla_tuple %v91, %v89
    %96 = xla_tuple %95
    %vm97 = vcmp.gt.f32.partialorder %v91, %v89
    %v98 = vsel %vm97, 1, 0
    %99 = xla_tuple %v98
    %100 = xla_tuple %v89, %v91
    %101 = xla_tuple %100
    %vm102 = vcmp.gt.f32.partialorder %v89, %v91
    %v103 = vsel %vm102, 1, 0
    %104 = xla_tuple %v103
    %v105 = vsel %vm88, %v98, 0
    %vm106 = vcmp.ne.s32.totalorder %v105, 0
    %v107 = vsel %vm88, %v103, 1
    %vm108 = vcmp.ne.s32.totalorder %v107, 0
    %v109 = vsel %vm106, %v91, %v89
    %v110 = vsel %vm108, %v91, %v89
    %v111 = vsel %vm78, %v109, %v110
    %112 = vst [vmem:[#allocation1] sm:$0xff] %v111
    %v113 = vsel %vm106, %v94, %v92
    %v114 = vsel %vm108, %v94, %v92
    %v115 = vsel %vm78, %v113, %v114
    %116 = vst [vmem:[#allocation3] sm:$0xff] %v115
    %v117 = vlaneseq
    %v118 = vand.u32 %v117, 127
    %v119 = vxor.u32 %v118, 3
    %120 = vset.pattern.permute.xlu0 %v119
    %v121 = vlaneseq
    %v122 = vand.u32 %v121, 127
    %v123 = vand.u32 %v122, 2
    %vm124 = vcmp.eq.s32.totalorder 0, %v123
    %v125 = vlaneseq
    %vm127 = vcmp.lt.s32.totalorder %v125, 768
    %v128 = vsel %vm127, 1, 0
    %v129 = vlaneseq
    %v130 = vxor.u32 %v129, 3
    %vm132 = vcmp.lt.s32.totalorder %v130, 768
    %v133 = vsel %vm132, 1, 0
    %vm134 = vcmp.eq.s32.totalorder %v128, %v133
    %v135 = vld [vmem:[#allocation1] sm:$0xff]
    %136 = vperm.xlu0 %120, %v135
    %v137 = vpop.permute.xlu0 %136
    %v138 = vld [vmem:[#allocation3] sm:$0xff]
    %139 = vperm.xlu0 %120, %v138
    %v140 = vpop.permute.xlu0 %139
    %141 = xla_tuple %v137, %v135
    %142 = xla_tuple %141
    %vm143 = vcmp.gt.f32.partialorder %v137, %v135
    %v144 = vsel %vm143, 1, 0
    %145 = xla_tuple %v144
    %146 = xla_tuple %v135, %v137
    %147 = xla_tuple %146
    %vm148 = vcmp.gt.f32.partialorder %v135, %v137
    %v149 = vsel %vm148, 1, 0
    %150 = xla_tuple %v149
    %v151 = vsel %vm134, %v144, 0
    %vm152 = vcmp.ne.s32.totalorder %v151, 0
    %v153 = vsel %vm134, %v149, 1
    %vm154 = vcmp.ne.s32.totalorder %v153, 0
    %v155 = vsel %vm152, %v137, %v135
    %v156 = vsel %vm154, %v137, %v135
    %v157 = vsel %vm124, %v155, %v156
    %158 = vst [vmem:[#allocation1] sm:$0xff] %v157
    %v159 = vsel %vm152, %v140, %v138
    %v160 = vsel %vm154, %v140, %v138
    %v161 = vsel %vm124, %v159, %v160
    %162 = vst [vmem:[#allocation3] sm:$0xff] %v161
    %v163 = vlaneseq
    %v164 = vand.u32 %v163, 127
    %v165 = vxor.u32 %v164, 1
    %166 = vset.pattern.permute.xlu0 %v165
    %v167 = vlaneseq
    %v168 = vand.u32 %v167, 127
    %v169 = vand.u32 %v168, 1
    %vm170 = vcmp.eq.s32.totalorder 0, %v169
    %v171 = vlaneseq
    %vm173 = vcmp.lt.s32.totalorder %v171, 768
    %v174 = vsel %vm173, 1, 0
    %v175 = vlaneseq
    %v176 = vxor.u32 %v175, 1
    %vm178 = vcmp.lt.s32.totalorder %v176, 768
    %v179 = vsel %vm178, 1, 0
    %vm180 = vcmp.eq.s32.totalorder %v174, %v179
    %v181 = vld [vmem:[#allocation1] sm:$0xff]
    %182 = vperm.xlu0 %166, %v181
    %v183 = vpop.permute.xlu0 %182
    %v184 = vld [vmem:[#allocation3] sm:$0xff]
    %185 = vperm.xlu0 %166, %v184
    %v186 = vpop.permute.xlu0 %185
    %187 = xla_tuple %v183, %v181
    %188 = xla_tuple %187
    %vm189 = vcmp.gt.f32.partialorder %v183, %v181
    %v190 = vsel %vm189, 1, 0
    %191 = xla_tuple %v190
    %192 = xla_tuple %v181, %v183
    %193 = xla_tuple %192
    %vm194 = vcmp.gt.f32.partialorder %v181, %v183
    %v195 = vsel %vm194, 1, 0
    %196 = xla_tuple %v195
    %v197 = vsel %vm180, %v190, 0
    %vm198 = vcmp.ne.s32.totalorder %v197, 0
    %v199 = vsel %vm180, %v195, 1
    %vm200 = vcmp.ne.s32.totalorder %v199, 0
    %v201 = vsel %vm198, %v183, %v181
    %v202 = vsel %vm200, %v183, %v181
    %v203 = vsel %vm170, %v201, %v202
    %204 = vst [vmem:[#allocation1] sm:$0xff] %v203
    %v205 = vsel %vm198, %v186, %v184
    %v206 = vsel %vm200, %v186, %v184
    %v207 = vsel %vm170, %v205, %v206
    %208 = vst [vmem:[#allocation3] sm:$0xff] %v207
    %v209 = vlaneseq
    %v210 = vand.u32 %v209, 127
    %v211 = vxor.u32 %v210, 7
    %212 = vset.pattern.permute.xlu0 %v211
    %v213 = vlaneseq
    %v214 = vand.u32 %v213, 127
    %v215 = vand.u32 %v214, 4
    %vm216 = vcmp.eq.s32.totalorder 0, %v215
    %v217 = vlaneseq
    %vm219 = vcmp.lt.s32.totalorder %v217, 768
    %v220 = vsel %vm219, 1, 0
    %v221 = vlaneseq
    %v222 = vxor.u32 %v221, 7
    %vm224 = vcmp.lt.s32.totalorder %v222, 768
    %v225 = vsel %vm224, 1, 0
    %vm226 = vcmp.eq.s32.totalorder %v220, %v225
    %v227 = vld [vmem:[#allocation1] sm:$0xff]
    %228 = vperm.xlu0 %212, %v227
    %v229 = vpop.permute.xlu0 %228
    %v230 = vld [vmem:[#allocation3] sm:$0xff]
    %231 = vperm.xlu0 %212, %v230
    %v232 = vpop.permute.xlu0 %231
    %233 = xla_tuple %v229, %v227
    %234 = xla_tuple %233
    %vm235 = vcmp.gt.f32.partialorder %v229, %v227
    %v236 = vsel %vm235, 1, 0
    %237 = xla_tuple %v236
    %238 = xla_tuple %v227, %v229
    %239 = xla_tuple %238
    %vm240 = vcmp.gt.f32.partialorder %v227, %v229
    %v241 = vsel %vm240, 1, 0
    %242 = xla_tuple %v241
    %v243 = vsel %vm226, %v236, 0
    %vm244 = vcmp.ne.s32.totalorder %v243, 0
    %v245 = vsel %vm226, %v241, 1
    %vm246 = vcmp.ne.s32.totalorder %v245, 0
    %v247 = vsel %vm244, %v229, %v227
    %v248 = vsel %vm246, %v229, %v227
    %v249 = vsel %vm216, %v247, %v248
    %250 = vst [vmem:[#allocation1] sm:$0xff] %v249
    %v251 = vsel %vm244, %v232, %v230
    %v252 = vsel %vm246, %v232, %v230
    %v253 = vsel %vm216, %v251, %v252
    %254 = vst [vmem:[#allocation3] sm:$0xff] %v253
    %v255 = vlaneseq
    %v256 = vand.u32 %v255, 127
    %v257 = vxor.u32 %v256, 2
    %258 = vset.pattern.permute.xlu0 %v257
    %v259 = vlaneseq
    %v260 = vand.u32 %v259, 127
    %v261 = vand.u32 %v260, 2
    %vm262 = vcmp.eq.s32.totalorder 0, %v261
    %v263 = vlaneseq
    %vm265 = vcmp.lt.s32.totalorder %v263, 768
    %v266 = vsel %vm265, 1, 0
    %v267 = vlaneseq
    %v268 = vxor.u32 %v267, 2
    %vm270 = vcmp.lt.s32.totalorder %v268, 768
    %v271 = vsel %vm270, 1, 0
    %vm272 = vcmp.eq.s32.totalorder %v266, %v271
    %v273 = vld [vmem:[#allocation1] sm:$0xff]
    %274 = vperm.xlu0 %258, %v273
    %v275 = vpop.permute.xlu0 %274
    %v276 = vld [vmem:[#allocation3] sm:$0xff]
    %277 = vperm.xlu0 %258, %v276
    %v278 = vpop.permute.xlu0 %277
    %279 = xla_tuple %v275, %v273
    %280 = xla_tuple %279
    %vm281 = vcmp.gt.f32.partialorder %v275, %v273
    %v282 = vsel %vm281, 1, 0
    %283 = xla_tuple %v282
    %284 = xla_tuple %v273, %v275
    %285 = xla_tuple %284
    %vm286 = vcmp.gt.f32.partialorder %v273, %v275
    %v287 = vsel %vm286, 1, 0
    %288 = xla_tuple %v287
    %v289 = vsel %vm272, %v282, 0
    %vm290 = vcmp.ne.s32.totalorder %v289, 0
    %v291 = vsel %vm272, %v287, 1
    %vm292 = vcmp.ne.s32.totalorder %v291, 0
    %v293 = vsel %vm290, %v275, %v273
    %v294 = vsel %vm292, %v275, %v273
    %v295 = vsel %vm262, %v293, %v294
    %296 = vst [vmem:[#allocation1] sm:$0xff] %v295
    %v297 = vsel %vm290, %v278, %v276
    %v298 = vsel %vm292, %v278, %v276
    %v299 = vsel %vm262, %v297, %v298
    %300 = vst [vmem:[#allocation3] sm:$0xff] %v299
    %v301 = vlaneseq
    %v302 = vand.u32 %v301, 127
    %v303 = vxor.u32 %v302, 1
    %304 = vset.pattern.permute.xlu0 %v303
    %v305 = vlaneseq
    %v306 = vand.u32 %v305, 127
    %v307 = vand.u32 %v306, 1
    %vm308 = vcmp.eq.s32.totalorder 0, %v307
    %v309 = vlaneseq
    %vm311 = vcmp.lt.s32.totalorder %v309, 768
    %v312 = vsel %vm311, 1, 0
    %v313 = vlaneseq
    %v314 = vxor.u32 %v313, 1
    %vm316 = vcmp.lt.s32.totalorder %v314, 768
    %v317 = vsel %vm316, 1, 0
    %vm318 = vcmp.eq.s32.totalorder %v312, %v317
    %v319 = vld [vmem:[#allocation1] sm:$0xff]
    %320 = vperm.xlu0 %304, %v319
    %v321 = vpop.permute.xlu0 %320
    %v322 = vld [vmem:[#allocation3] sm:$0xff]
    %323 = vperm.xlu0 %304, %v322
    %v324 = vpop.permute.xlu0 %323
    %325 = xla_tuple %v321, %v319
    %326 = xla_tuple %325
    %vm327 = vcmp.gt.f32.partialorder %v321, %v319
    %v328 = vsel %vm327, 1, 0
    %329 = xla_tuple %v328
    %330 = xla_tuple %v319, %v321
    %331 = xla_tuple %330
    %vm332 = vcmp.gt.f32.partialorder %v319, %v321
    %v333 = vsel %vm332, 1, 0
    %334 = xla_tuple %v333
    %v335 = vsel %vm318, %v328, 0
    %vm336 = vcmp.ne.s32.totalorder %v335, 0
    %v337 = vsel %vm318, %v333, 1
    %vm338 = vcmp.ne.s32.totalorder %v337, 0
    %v339 = vsel %vm336, %v321, %v319
    %v340 = vsel %vm338, %v321, %v319
    %v341 = vsel %vm308, %v339, %v340
    %342 = vst [vmem:[#allocation1] sm:$0xff] %v341
    %v343 = vsel %vm336, %v324, %v322
    %v344 = vsel %vm338, %v324, %v322
    %v345 = vsel %vm308, %v343, %v344
    %346 = vst [vmem:[#allocation3] sm:$0xff] %v345
    %v347 = vlaneseq
    %v348 = vand.u32 %v347, 127
    %v349 = vxor.u32 %v348, 15
    %350 = vset.pattern.permute.xlu0 %v349
    %v351 = vlaneseq
    %v352 = vand.u32 %v351, 127
    %v353 = vand.u32 %v352, 8
    %vm354 = vcmp.eq.s32.totalorder 0, %v353
    %v355 = vlaneseq
    %vm357 = vcmp.lt.s32.totalorder %v355, 768
    %v358 = vsel %vm357, 1, 0
    %v359 = vlaneseq
    %v360 = vxor.u32 %v359, 15
    %vm362 = vcmp.lt.s32.totalorder %v360, 768
    %v363 = vsel %vm362, 1, 0
    %vm364 = vcmp.eq.s32.totalorder %v358, %v363
    %v365 = vld [vmem:[#allocation1] sm:$0xff]
    %366 = vperm.xlu0 %350, %v365
    %v367 = vpop.permute.xlu0 %366
    %v368 = vld [vmem:[#allocation3] sm:$0xff]
    %369 = vperm.xlu0 %350, %v368
    %v370 = vpop.permute.xlu0 %369
    %371 = xla_tuple %v367, %v365
    %372 = xla_tuple %371
    %vm373 = vcmp.gt.f32.partialorder %v367, %v365
    %v374 = vsel %vm373, 1, 0
    %375 = xla_tuple %v374
    %376 = xla_tuple %v365, %v367
    %377 = xla_tuple %376
    %vm378 = vcmp.gt.f32.partialorder %v365, %v367
    %v379 = vsel %vm378, 1, 0
    %380 = xla_tuple %v379
    %v381 = vsel %vm364, %v374, 0
    %vm382 = vcmp.ne.s32.totalorder %v381, 0
    %v383 = vsel %vm364, %v379, 1
    %vm384 = vcmp.ne.s32.totalorder %v383, 0
    %v385 = vsel %vm382, %v367, %v365
    %v386 = vsel %vm384, %v367, %v365
    %v387 = vsel %vm354, %v385, %v386
    %388 = vst [vmem:[#allocation1] sm:$0xff] %v387
    %v389 = vsel %vm382, %v370, %v368
    %v390 = vsel %vm384, %v370, %v368
    %v391 = vsel %vm354, %v389, %v390
    %392 = vst [vmem:[#allocation3] sm:$0xff] %v391
    %v393 = vlaneseq
    %v394 = vand.u32 %v393, 127
    %v395 = vxor.u32 %v394, 4
    %396 = vset.pattern.permute.xlu0 %v395
    %v397 = vlaneseq
    %v398 = vand.u32 %v397, 127
    %v399 = vand.u32 %v398, 4
    %vm400 = vcmp.eq.s32.totalorder 0, %v399
    %v401 = vlaneseq
    %vm403 = vcmp.lt.s32.totalorder %v401, 768
    %v404 = vsel %vm403, 1, 0
    %v405 = vlaneseq
    %v406 = vxor.u32 %v405, 4
    %vm408 = vcmp.lt.s32.totalorder %v406, 768
    %v409 = vsel %vm408, 1, 0
    %vm410 = vcmp.eq.s32.totalorder %v404, %v409
    %v411 = vld [vmem:[#allocation1] sm:$0xff]
    %412 = vperm.xlu0 %396, %v411
    %v413 = vpop.permute.xlu0 %412
    %v414 = vld [vmem:[#allocation3] sm:$0xff]
    %415 = vperm.xlu0 %396, %v414
    %v416 = vpop.permute.xlu0 %415
    %417 = xla_tuple %v413, %v411
    %418 = xla_tuple %417
    %vm419 = vcmp.gt.f32.partialorder %v413, %v411
    %v420 = vsel %vm419, 1, 0
    %421 = xla_tuple %v420
    %422 = xla_tuple %v411, %v413
    %423 = xla_tuple %422
    %vm424 = vcmp.gt.f32.partialorder %v411, %v413
    %v425 = vsel %vm424, 1, 0
    %426 = xla_tuple %v425
    %v427 = vsel %vm410, %v420, 0
    %vm428 = vcmp.ne.s32.totalorder %v427, 0
    %v429 = vsel %vm410, %v425, 1
    %vm430 = vcmp.ne.s32.totalorder %v429, 0
    %v431 = vsel %vm428, %v413, %v411
    %v432 = vsel %vm430, %v413, %v411
    %v433 = vsel %vm400, %v431, %v432
    %434 = vst [vmem:[#allocation1] sm:$0xff] %v433
    %v435 = vsel %vm428, %v416, %v414
    %v436 = vsel %vm430, %v416, %v414
    %v437 = vsel %vm400, %v435, %v436
    %438 = vst [vmem:[#allocation3] sm:$0xff] %v437
    %v439 = vlaneseq
    %v440 = vand.u32 %v439, 127
    %v441 = vxor.u32 %v440, 2
    %442 = vset.pattern.permute.xlu0 %v441
    %v443 = vlaneseq
    %v444 = vand.u32 %v443, 127
    %v445 = vand.u32 %v444, 2
    %vm446 = vcmp.eq.s32.totalorder 0, %v445
    %v447 = vlaneseq
    %vm449 = vcmp.lt.s32.totalorder %v447, 768
    %v450 = vsel %vm449, 1, 0
    %v451 = vlaneseq
    %v452 = vxor.u32 %v451, 2
    %vm454 = vcmp.lt.s32.totalorder %v452, 768
    %v455 = vsel %vm454, 1, 0
    %vm456 = vcmp.eq.s32.totalorder %v450, %v455
    %v457 = vld [vmem:[#allocation1] sm:$0xff]
    %458 = vperm.xlu0 %442, %v457
    %v459 = vpop.permute.xlu0 %458
    %v460 = vld [vmem:[#allocation3] sm:$0xff]
    %461 = vperm.xlu0 %442, %v460
    %v462 = vpop.permute.xlu0 %461
    %463 = xla_tuple %v459, %v457
    %464 = xla_tuple %463
    %vm465 = vcmp.gt.f32.partialorder %v459, %v457
    %v466 = vsel %vm465, 1, 0
    %467 = xla_tuple %v466
    %468 = xla_tuple %v457, %v459
    %469 = xla_tuple %468
    %vm470 = vcmp.gt.f32.partialorder %v457, %v459
    %v471 = vsel %vm470, 1, 0
    %472 = xla_tuple %v471
    %v473 = vsel %vm456, %v466, 0
    %vm474 = vcmp.ne.s32.totalorder %v473, 0
    %v475 = vsel %vm456, %v471, 1
    %vm476 = vcmp.ne.s32.totalorder %v475, 0
    %v477 = vsel %vm474, %v459, %v457
    %v478 = vsel %vm476, %v459, %v457
    %v479 = vsel %vm446, %v477, %v478
    %480 = vst [vmem:[#allocation1] sm:$0xff] %v479
    %v481 = vsel %vm474, %v462, %v460
    %v482 = vsel %vm476, %v462, %v460
    %v483 = vsel %vm446, %v481, %v482
    %484 = vst [vmem:[#allocation3] sm:$0xff] %v483
    %v485 = vlaneseq
    %v486 = vand.u32 %v485, 127
    %v487 = vxor.u32 %v486, 1
    %488 = vset.pattern.permute.xlu0 %v487
    %v489 = vlaneseq
    %v490 = vand.u32 %v489, 127
    %v491 = vand.u32 %v490, 1
    %vm492 = vcmp.eq.s32.totalorder 0, %v491
    %v493 = vlaneseq
    %vm495 = vcmp.lt.s32.totalorder %v493, 768
    %v496 = vsel %vm495, 1, 0
    %v497 = vlaneseq
    %v498 = vxor.u32 %v497, 1
    %vm500 = vcmp.lt.s32.totalorder %v498, 768
    %v501 = vsel %vm500, 1, 0
    %vm502 = vcmp.eq.s32.totalorder %v496, %v501
    %v503 = vld [vmem:[#allocation1] sm:$0xff]
    %504 = vperm.xlu0 %488, %v503
    %v505 = vpop.permute.xlu0 %504
    %v506 = vld [vmem:[#allocation3] sm:$0xff]
    %507 = vperm.xlu0 %488, %v506
    %v508 = vpop.permute.xlu0 %507
    %509 = xla_tuple %v505, %v503
    %510 = xla_tuple %509
    %vm511 = vcmp.gt.f32.partialorder %v505, %v503
    %v512 = vsel %vm511, 1, 0
    %513 = xla_tuple %v512
    %514 = xla_tuple %v503, %v505
    %515 = xla_tuple %514
    %vm516 = vcmp.gt.f32.partialorder %v503, %v505
    %v517 = vsel %vm516, 1, 0
    %518 = xla_tuple %v517
    %v519 = vsel %vm502, %v512, 0
    %vm520 = vcmp.ne.s32.totalorder %v519, 0
    %v521 = vsel %vm502, %v517, 1
    %vm522 = vcmp.ne.s32.totalorder %v521, 0
    %v523 = vsel %vm520, %v505, %v503
    %v524 = vsel %vm522, %v505, %v503
    %v525 = vsel %vm492, %v523, %v524
    %526 = vst [vmem:[#allocation1] sm:$0xff] %v525
    %v527 = vsel %vm520, %v508, %v506
    %v528 = vsel %vm522, %v508, %v506
    %v529 = vsel %vm492, %v527, %v528
    %530 = vst [vmem:[#allocation3] sm:$0xff] %v529
    %v531 = vlaneseq
    %v532 = vand.u32 %v531, 127
    %v533 = vxor.u32 %v532, 31
    %534 = vset.pattern.permute.xlu0 %v533
    %v535 = vlaneseq
    %v536 = vand.u32 %v535, 127
    %v537 = vand.u32 %v536, 16
    %vm538 = vcmp.eq.s32.totalorder 0, %v537
    %v539 = vlaneseq
    %vm541 = vcmp.lt.s32.totalorder %v539, 768
    %v542 = vsel %vm541, 1, 0
    %v543 = vlaneseq
    %v544 = vxor.u32 %v543, 31
    %vm546 = vcmp.lt.s32.totalorder %v544, 768
    %v547 = vsel %vm546, 1, 0
    %vm548 = vcmp.eq.s32.totalorder %v542, %v547
    %v549 = vld [vmem:[#allocation1] sm:$0xff]
    %550 = vperm.xlu0 %534, %v549
    %v551 = vpop.permute.xlu0 %550
    %v552 = vld [vmem:[#allocation3] sm:$0xff]
    %553 = vperm.xlu0 %534, %v552
    %v554 = vpop.permute.xlu0 %553
    %555 = xla_tuple %v551, %v549
    %556 = xla_tuple %555
    %vm557 = vcmp.gt.f32.partialorder %v551, %v549
    %v558 = vsel %vm557, 1, 0
    %559 = xla_tuple %v558
    %560 = xla_tuple %v549, %v551
    %561 = xla_tuple %560
    %vm562 = vcmp.gt.f32.partialorder %v549, %v551
    %v563 = vsel %vm562, 1, 0
    %564 = xla_tuple %v563
    %v565 = vsel %vm548, %v558, 0
    %vm566 = vcmp.ne.s32.totalorder %v565, 0
    %v567 = vsel %vm548, %v563, 1
    %vm568 = vcmp.ne.s32.totalorder %v567, 0
    %v569 = vsel %vm566, %v551, %v549
    %v570 = vsel %vm568, %v551, %v549
    %v571 = vsel %vm538, %v569, %v570
    %572 = vst [vmem:[#allocation1] sm:$0xff] %v571
    %v573 = vsel %vm566, %v554, %v552
    %v574 = vsel %vm568, %v554, %v552
    %v575 = vsel %vm538, %v573, %v574
    %576 = vst [vmem:[#allocation3] sm:$0xff] %v575
    %v577 = vlaneseq
    %v578 = vand.u32 %v577, 127
    %v579 = vxor.u32 %v578, 8
    %580 = vset.pattern.permute.xlu0 %v579
    %v581 = vlaneseq
    %v582 = vand.u32 %v581, 127
    %v583 = vand.u32 %v582, 8
    %vm584 = vcmp.eq.s32.totalorder 0, %v583
    %v585 = vlaneseq
    %vm587 = vcmp.lt.s32.totalorder %v585, 768
    %v588 = vsel %vm587, 1, 0
    %v589 = vlaneseq
    %v590 = vxor.u32 %v589, 8
    %vm592 = vcmp.lt.s32.totalorder %v590, 768
    %v593 = vsel %vm592, 1, 0
    %vm594 = vcmp.eq.s32.totalorder %v588, %v593
    %v595 = vld [vmem:[#allocation1] sm:$0xff]
    %596 = vperm.xlu0 %580, %v595
    %v597 = vpop.permute.xlu0 %596
    %v598 = vld [vmem:[#allocation3] sm:$0xff]
    %599 = vperm.xlu0 %580, %v598
    %v600 = vpop.permute.xlu0 %599
    %601 = xla_tuple %v597, %v595
    %602 = xla_tuple %601
    %vm603 = vcmp.gt.f32.partialorder %v597, %v595
    %v604 = vsel %vm603, 1, 0
    %605 = xla_tuple %v604
    %606 = xla_tuple %v595, %v597
    %607 = xla_tuple %606
    %vm608 = vcmp.gt.f32.partialorder %v595, %v597
    %v609 = vsel %vm608, 1, 0
    %610 = xla_tuple %v609
    %v611 = vsel %vm594, %v604, 0
    %vm612 = vcmp.ne.s32.totalorder %v611, 0
    %v613 = vsel %vm594, %v609, 1
    %vm614 = vcmp.ne.s32.totalorder %v613, 0
    %v615 = vsel %vm612, %v597, %v595
    %v616 = vsel %vm614, %v597, %v595
    %v617 = vsel %vm584, %v615, %v616
    %618 = vst [vmem:[#allocation1] sm:$0xff] %v617
    %v619 = vsel %vm612, %v600, %v598
    %v620 = vsel %vm614, %v600, %v598
    %v621 = vsel %vm584, %v619, %v620
    %622 = vst [vmem:[#allocation3] sm:$0xff] %v621
    %v623 = vlaneseq
    %v624 = vand.u32 %v623, 127
    %v625 = vxor.u32 %v624, 4
    %626 = vset.pattern.permute.xlu0 %v625
    %v627 = vlaneseq
    %v628 = vand.u32 %v627, 127
    %v629 = vand.u32 %v628, 4
    %vm630 = vcmp.eq.s32.totalorder 0, %v629
    %v631 = vlaneseq
    %vm633 = vcmp.lt.s32.totalorder %v631, 768
    %v634 = vsel %vm633, 1, 0
    %v635 = vlaneseq
    %v636 = vxor.u32 %v635, 4
    %vm638 = vcmp.lt.s32.totalorder %v636, 768
    %v639 = vsel %vm638, 1, 0
    %vm640 = vcmp.eq.s32.totalorder %v634, %v639
    %v641 = vld [vmem:[#allocation1] sm:$0xff]
    %642 = vperm.xlu0 %626, %v641
    %v643 = vpop.permute.xlu0 %642
    %v644 = vld [vmem:[#allocation3] sm:$0xff]
    %645 = vperm.xlu0 %626, %v644
    %v646 = vpop.permute.xlu0 %645
    %647 = xla_tuple %v643, %v641
    %648 = xla_tuple %647
    %vm649 = vcmp.gt.f32.partialorder %v643, %v641
    %v650 = vsel %vm649, 1, 0
    %651 = xla_tuple %v650
    %652 = xla_tuple %v641, %v643
    %653 = xla_tuple %652
    %vm654 = vcmp.gt.f32.partialorder %v641, %v643
    %v655 = vsel %vm654, 1, 0
    %656 = xla_tuple %v655
    %v657 = vsel %vm640, %v650, 0
    %vm658 = vcmp.ne.s32.totalorder %v657, 0
    %v659 = vsel %vm640, %v655, 1
    %vm660 = vcmp.ne.s32.totalorder %v659, 0
    %v661 = vsel %vm658, %v643, %v641
    %v662 = vsel %vm660, %v643, %v641
    %v663 = vsel %vm630, %v661, %v662
    %664 = vst [vmem:[#allocation1] sm:$0xff] %v663
    %v665 = vsel %vm658, %v646, %v644
    %v666 = vsel %vm660, %v646, %v644
    %v667 = vsel %vm630, %v665, %v666
    %668 = vst [vmem:[#allocation3] sm:$0xff] %v667
    %v669 = vlaneseq
    %v670 = vand.u32 %v669, 127
    %v671 = vxor.u32 %v670, 2
    %672 = vset.pattern.permute.xlu0 %v671
    %v673 = vlaneseq
    %v674 = vand.u32 %v673, 127
    %v675 = vand.u32 %v674, 2
    %vm676 = vcmp.eq.s32.totalorder 0, %v675
    %v677 = vlaneseq
    %vm679 = vcmp.lt.s32.totalorder %v677, 768
    %v680 = vsel %vm679, 1, 0
    %v681 = vlaneseq
    %v682 = vxor.u32 %v681, 2
    %vm684 = vcmp.lt.s32.totalorder %v682, 768
    %v685 = vsel %vm684, 1, 0
    %vm686 = vcmp.eq.s32.totalorder %v680, %v685
    %v687 = vld [vmem:[#allocation1] sm:$0xff]
    %688 = vperm.xlu0 %672, %v687
    %v689 = vpop.permute.xlu0 %688
    %v690 = vld [vmem:[#allocation3] sm:$0xff]
    %691 = vperm.xlu0 %672, %v690
    %v692 = vpop.permute.xlu0 %691
    %693 = xla_tuple %v689, %v687
    %694 = xla_tuple %693
    %vm695 = vcmp.gt.f32.partialorder %v689, %v687
    %v696 = vsel %vm695, 1, 0
    %697 = xla_tuple %v696
    %698 = xla_tuple %v687, %v689
    %699 = xla_tuple %698
    %vm700 = vcmp.gt.f32.partialorder %v687, %v689
    %v701 = vsel %vm700, 1, 0
    %702 = xla_tuple %v701
    %v703 = vsel %vm686, %v696, 0
    %vm704 = vcmp.ne.s32.totalorder %v703, 0
    %v705 = vsel %vm686, %v701, 1
    %vm706 = vcmp.ne.s32.totalorder %v705, 0
    %v707 = vsel %vm704, %v689, %v687
    %v708 = vsel %vm706, %v689, %v687
    %v709 = vsel %vm676, %v707, %v708
    %710 = vst [vmem:[#allocation1] sm:$0xff] %v709
    %v711 = vsel %vm704, %v692, %v690
    %v712 = vsel %vm706, %v692, %v690
    %v713 = vsel %vm676, %v711, %v712
    %714 = vst [vmem:[#allocation3] sm:$0xff] %v713
    %v715 = vlaneseq
    %v716 = vand.u32 %v715, 127
    %v717 = vxor.u32 %v716, 1
    %718 = vset.pattern.permute.xlu0 %v717
    %v719 = vlaneseq
    %v720 = vand.u32 %v719, 127
    %v721 = vand.u32 %v720, 1
    %vm722 = vcmp.eq.s32.totalorder 0, %v721
    %v723 = vlaneseq
    %vm725 = vcmp.lt.s32.totalorder %v723, 768
    %v726 = vsel %vm725, 1, 0
    %v727 = vlaneseq
    %v728 = vxor.u32 %v727, 1
    %vm730 = vcmp.lt.s32.totalorder %v728, 768
    %v731 = vsel %vm730, 1, 0
    %vm732 = vcmp.eq.s32.totalorder %v726, %v731
    %v733 = vld [vmem:[#allocation1] sm:$0xff]
    %734 = vperm.xlu0 %718, %v733
    %v735 = vpop.permute.xlu0 %734
    %v736 = vld [vmem:[#allocation3] sm:$0xff]
    %737 = vperm.xlu0 %718, %v736
    %v738 = vpop.permute.xlu0 %737
    %739 = xla_tuple %v735, %v733
    %740 = xla_tuple %739
    %vm741 = vcmp.gt.f32.partialorder %v735, %v733
    %v742 = vsel %vm741, 1, 0
    %743 = xla_tuple %v742
    %744 = xla_tuple %v733, %v735
    %745 = xla_tuple %744
    %vm746 = vcmp.gt.f32.partialorder %v733, %v735
    %v747 = vsel %vm746, 1, 0
    %748 = xla_tuple %v747
    %v749 = vsel %vm732, %v742, 0
    %vm750 = vcmp.ne.s32.totalorder %v749, 0
    %v751 = vsel %vm732, %v747, 1
    %vm752 = vcmp.ne.s32.totalorder %v751, 0
    %v753 = vsel %vm750, %v735, %v733
    %v754 = vsel %vm752, %v735, %v733
    %v755 = vsel %vm722, %v753, %v754
    %756 = vst [vmem:[#allocation1] sm:$0xff] %v755
    %v757 = vsel %vm750, %v738, %v736
    %v758 = vsel %vm752, %v738, %v736
    %v759 = vsel %vm722, %v757, %v758
    %760 = vst [vmem:[#allocation3] sm:$0xff] %v759
    %v761 = vlaneseq
    %v762 = vand.u32 %v761, 127
    %v763 = vxor.u32 %v762, 63
    %764 = vset.pattern.permute.xlu0 %v763
    %v765 = vlaneseq
    %v766 = vand.u32 %v765, 127
    %v767 = vand.u32 %v766, 32
    %vm768 = vcmp.eq.s32.totalorder 0, %v767
    %v769 = vlaneseq
    %vm771 = vcmp.lt.s32.totalorder %v769, 768
    %v772 = vsel %vm771, 1, 0
    %v773 = vlaneseq
    %v774 = vxor.u32 %v773, 63
    %vm776 = vcmp.lt.s32.totalorder %v774, 768
    %v777 = vsel %vm776, 1, 0
    %vm778 = vcmp.eq.s32.totalorder %v772, %v777
    %v779 = vld [vmem:[#allocation1] sm:$0xff]
    %780 = vperm.xlu0 %764, %v779
    %v781 = vpop.permute.xlu0 %780
    %v782 = vld [vmem:[#allocation3] sm:$0xff]
    %783 = vperm.xlu0 %764, %v782
    %v784 = vpop.permute.xlu0 %783
    %785 = xla_tuple %v781, %v779
    %786 = xla_tuple %785
    %vm787 = vcmp.gt.f32.partialorder %v781, %v779
    %v788 = vsel %vm787, 1, 0
    %789 = xla_tuple %v788
    %790 = xla_tuple %v779, %v781
    %791 = xla_tuple %790
    %vm792 = vcmp.gt.f32.partialorder %v779, %v781
    %v793 = vsel %vm792, 1, 0
    %794 = xla_tuple %v793
    %v795 = vsel %vm778, %v788, 0
    %vm796 = vcmp.ne.s32.totalorder %v795, 0
    %v797 = vsel %vm778, %v793, 1
    %vm798 = vcmp.ne.s32.totalorder %v797, 0
    %v799 = vsel %vm796, %v781, %v779
    %v800 = vsel %vm798, %v781, %v779
    %v801 = vsel %vm768, %v799, %v800
    %802 = vst [vmem:[#allocation1] sm:$0xff] %v801
    %v803 = vsel %vm796, %v784, %v782
    %v804 = vsel %vm798, %v784, %v782
    %v805 = vsel %vm768, %v803, %v804
    %806 = vst [vmem:[#allocation3] sm:$0xff] %v805
    %v807 = vlaneseq
    %v808 = vand.u32 %v807, 127
    %v809 = vxor.u32 %v808, 16
    %810 = vset.pattern.permute.xlu0 %v809
    %v811 = vlaneseq
    %v812 = vand.u32 %v811, 127
    %v813 = vand.u32 %v812, 16
    %vm814 = vcmp.eq.s32.totalorder 0, %v813
    %v815 = vlaneseq
    %vm817 = vcmp.lt.s32.totalorder %v815, 768
    %v818 = vsel %vm817, 1, 0
    %v819 = vlaneseq
    %v820 = vxor.u32 %v819, 16
    %vm822 = vcmp.lt.s32.totalorder %v820, 768
    %v823 = vsel %vm822, 1, 0
    %vm824 = vcmp.eq.s32.totalorder %v818, %v823
    %v825 = vld [vmem:[#allocation1] sm:$0xff]
    %826 = vperm.xlu0 %810, %v825
    %v827 = vpop.permute.xlu0 %826
    %v828 = vld [vmem:[#allocation3] sm:$0xff]
    %829 = vperm.xlu0 %810, %v828
    %v830 = vpop.permute.xlu0 %829
    %831 = xla_tuple %v827, %v825
    %832 = xla_tuple %831
    %vm833 = vcmp.gt.f32.partialorder %v827, %v825
    %v834 = vsel %vm833, 1, 0
    %835 = xla_tuple %v834
    %836 = xla_tuple %v825, %v827
    %837 = xla_tuple %836
    %vm838 = vcmp.gt.f32.partialorder %v825, %v827
    %v839 = vsel %vm838, 1, 0
    %840 = xla_tuple %v839
    %v841 = vsel %vm824, %v834, 0
    %vm842 = vcmp.ne.s32.totalorder %v841, 0
    %v843 = vsel %vm824, %v839, 1
    %vm844 = vcmp.ne.s32.totalorder %v843, 0
    %v845 = vsel %vm842, %v827, %v825
    %v846 = vsel %vm844, %v827, %v825
    %v847 = vsel %vm814, %v845, %v846
    %848 = vst [vmem:[#allocation1] sm:$0xff] %v847
    %v849 = vsel %vm842, %v830, %v828
    %v850 = vsel %vm844, %v830, %v828
    %v851 = vsel %vm814, %v849, %v850
    %852 = vst [vmem:[#allocation3] sm:$0xff] %v851
    %v853 = vlaneseq
    %v854 = vand.u32 %v853, 127
    %v855 = vxor.u32 %v854, 8
    %856 = vset.pattern.permute.xlu0 %v855
    %v857 = vlaneseq
    %v858 = vand.u32 %v857, 127
    %v859 = vand.u32 %v858, 8
    %vm860 = vcmp.eq.s32.totalorder 0, %v859
    %v861 = vlaneseq
    %vm863 = vcmp.lt.s32.totalorder %v861, 768
    %v864 = vsel %vm863, 1, 0
    %v865 = vlaneseq
    %v866 = vxor.u32 %v865, 8
    %vm868 = vcmp.lt.s32.totalorder %v866, 768
    %v869 = vsel %vm868, 1, 0
    %vm870 = vcmp.eq.s32.totalorder %v864, %v869
    %v871 = vld [vmem:[#allocation1] sm:$0xff]
    %872 = vperm.xlu0 %856, %v871
    %v873 = vpop.permute.xlu0 %872
    %v874 = vld [vmem:[#allocation3] sm:$0xff]
    %875 = vperm.xlu0 %856, %v874
    %v876 = vpop.permute.xlu0 %875
    %877 = xla_tuple %v873, %v871
    %878 = xla_tuple %877
    %vm879 = vcmp.gt.f32.partialorder %v873, %v871
    %v880 = vsel %vm879, 1, 0
    %881 = xla_tuple %v880
    %882 = xla_tuple %v871, %v873
    %883 = xla_tuple %882
    %vm884 = vcmp.gt.f32.partialorder %v871, %v873
    %v885 = vsel %vm884, 1, 0
    %886 = xla_tuple %v885
    %v887 = vsel %vm870, %v880, 0
    %vm888 = vcmp.ne.s32.totalorder %v887, 0
    %v889 = vsel %vm870, %v885, 1
    %vm890 = vcmp.ne.s32.totalorder %v889, 0
    %v891 = vsel %vm888, %v873, %v871
    %v892 = vsel %vm890, %v873, %v871
    %v893 = vsel %vm860, %v891, %v892
    %894 = vst [vmem:[#allocation1] sm:$0xff] %v893
    %v895 = vsel %vm888, %v876, %v874
    %v896 = vsel %vm890, %v876, %v874
    %v897 = vsel %vm860, %v895, %v896
    %898 = vst [vmem:[#allocation3] sm:$0xff] %v897
    %v899 = vlaneseq
    %v900 = vand.u32 %v899, 127
    %v901 = vxor.u32 %v900, 4
    %902 = vset.pattern.permute.xlu0 %v901
    %v903 = vlaneseq
    %v904 = vand.u32 %v903, 127
    %v905 = vand.u32 %v904, 4
    %vm906 = vcmp.eq.s32.totalorder 0, %v905
    %v907 = vlaneseq
    %vm909 = vcmp.lt.s32.totalorder %v907, 768
    %v910 = vsel %vm909, 1, 0
    %v911 = vlaneseq
    %v912 = vxor.u32 %v911, 4
    %vm914 = vcmp.lt.s32.totalorder %v912, 768
    %v915 = vsel %vm914, 1, 0
    %vm916 = vcmp.eq.s32.totalorder %v910, %v915
    %v917 = vld [vmem:[#allocation1] sm:$0xff]
    %918 = vperm.xlu0 %902, %v917
    %v919 = vpop.permute.xlu0 %918
    %v920 = vld [vmem:[#allocation3] sm:$0xff]
    %921 = vperm.xlu0 %902, %v920
    %v922 = vpop.permute.xlu0 %921
    %923 = xla_tuple %v919, %v917
    %924 = xla_tuple %923
    %vm925 = vcmp.gt.f32.partialorder %v919, %v917
    %v926 = vsel %vm925, 1, 0
    %927 = xla_tuple %v926
    %928 = xla_tuple %v917, %v919
    %929 = xla_tuple %928
    %vm930 = vcmp.gt.f32.partialorder %v917, %v919
    %v931 = vsel %vm930, 1, 0
    %932 = xla_tuple %v931
    %v933 = vsel %vm916, %v926, 0
    %vm934 = vcmp.ne.s32.totalorder %v933, 0
    %v935 = vsel %vm916, %v931, 1
    %vm936 = vcmp.ne.s32.totalorder %v935, 0
    %v937 = vsel %vm934, %v919, %v917
    %v938 = vsel %vm936, %v919, %v917
    %v939 = vsel %vm906, %v937, %v938
    %940 = vst [vmem:[#allocation1] sm:$0xff] %v939
    %v941 = vsel %vm934, %v922, %v920
    %v942 = vsel %vm936, %v922, %v920
    %v943 = vsel %vm906, %v941, %v942
    %944 = vst [vmem:[#allocation3] sm:$0xff] %v943
    %v945 = vlaneseq
    %v946 = vand.u32 %v945, 127
    %v947 = vxor.u32 %v946, 2
    %948 = vset.pattern.permute.xlu0 %v947
    %v949 = vlaneseq
    %v950 = vand.u32 %v949, 127
    %v951 = vand.u32 %v950, 2
    %vm952 = vcmp.eq.s32.totalorder 0, %v951
    %v953 = vlaneseq
    %vm955 = vcmp.lt.s32.totalorder %v953, 768
    %v956 = vsel %vm955, 1, 0
    %v957 = vlaneseq
    %v958 = vxor.u32 %v957, 2
    %vm960 = vcmp.lt.s32.totalorder %v958, 768
    %v961 = vsel %vm960, 1, 0
    %vm962 = vcmp.eq.s32.totalorder %v956, %v961
    %v963 = vld [vmem:[#allocation1] sm:$0xff]
    %964 = vperm.xlu0 %948, %v963
    %v965 = vpop.permute.xlu0 %964
    %v966 = vld [vmem:[#allocation3] sm:$0xff]
    %967 = vperm.xlu0 %948, %v966
    %v968 = vpop.permute.xlu0 %967
    %969 = xla_tuple %v965, %v963
    %970 = xla_tuple %969
    %vm971 = vcmp.gt.f32.partialorder %v965, %v963
    %v972 = vsel %vm971, 1, 0
    %973 = xla_tuple %v972
    %974 = xla_tuple %v963, %v965
    %975 = xla_tuple %974
    %vm976 = vcmp.gt.f32.partialorder %v963, %v965
    %v977 = vsel %vm976, 1, 0
    %978 = xla_tuple %v977
    %v979 = vsel %vm962, %v972, 0
    %vm980 = vcmp.ne.s32.totalorder %v979, 0
    %v981 = vsel %vm962, %v977, 1
    %vm982 = vcmp.ne.s32.totalorder %v981, 0
    %v983 = vsel %vm980, %v965, %v963
    %v984 = vsel %vm982, %v965, %v963
    %v985 = vsel %vm952, %v983, %v984
    %986 = vst [vmem:[#allocation1] sm:$0xff] %v985
    %v987 = vsel %vm980, %v968, %v966
    %v988 = vsel %vm982, %v968, %v966
    %v989 = vsel %vm952, %v987, %v988
    %990 = vst [vmem:[#allocation3] sm:$0xff] %v989
    %v991 = vlaneseq
    %v992 = vand.u32 %v991, 127
    %v993 = vxor.u32 %v992, 1
    %994 = vset.pattern.permute.xlu0 %v993
    %v995 = vlaneseq
    %v996 = vand.u32 %v995, 127
    %v997 = vand.u32 %v996, 1
    %vm998 = vcmp.eq.s32.totalorder 0, %v997
    %v999 = vlaneseq
    %vm1001 = vcmp.lt.s32.totalorder %v999, 768
    %v1002 = vsel %vm1001, 1, 0
    %v1003 = vlaneseq
    %v1004 = vxor.u32 %v1003, 1
    %vm1006 = vcmp.lt.s32.totalorder %v1004, 768
    %v1007 = vsel %vm1006, 1, 0
    %vm1008 = vcmp.eq.s32.totalorder %v1002, %v1007
    %v1009 = vld [vmem:[#allocation1] sm:$0xff]
    %1010 = vperm.xlu0 %994, %v1009
    %v1011 = vpop.permute.xlu0 %1010
    %v1012 = vld [vmem:[#allocation3] sm:$0xff]
    %1013 = vperm.xlu0 %994, %v1012
    %v1014 = vpop.permute.xlu0 %1013
    %1015 = xla_tuple %v1011, %v1009
    %1016 = xla_tuple %1015
    %vm1017 = vcmp.gt.f32.partialorder %v1011, %v1009
    %v1018 = vsel %vm1017, 1, 0
    %1019 = xla_tuple %v1018
    %1020 = xla_tuple %v1009, %v1011
    %1021 = xla_tuple %1020
    %vm1022 = vcmp.gt.f32.partialorder %v1009, %v1011
    %v1023 = vsel %vm1022, 1, 0
    %1024 = xla_tuple %v1023
    %v1025 = vsel %vm1008, %v1018, 0
    %vm1026 = vcmp.ne.s32.totalorder %v1025, 0
    %v1027 = vsel %vm1008, %v1023, 1
    %vm1028 = vcmp.ne.s32.totalorder %v1027, 0
    %v1029 = vsel %vm1026, %v1011, %v1009
    %v1030 = vsel %vm1028, %v1011, %v1009
    %v1031 = vsel %vm998, %v1029, %v1030
    %1032 = vst [vmem:[#allocation1] sm:$0xff] %v1031
    %v1033 = vsel %vm1026, %v1014, %v1012
    %v1034 = vsel %vm1028, %v1014, %v1012
    %v1035 = vsel %vm998, %v1033, %v1034
    %1036 = vst [vmem:[#allocation3] sm:$0xff] %v1035
    %v1037 = vlaneseq
    %v1038 = vand.u32 %v1037, 127
    %v1039 = vxor.u32 %v1038, 127
    %1040 = vset.pattern.permute.xlu0 %v1039
    %v1041 = vlaneseq
    %v1042 = vand.u32 %v1041, 127
    %v1043 = vand.u32 %v1042, 64
    %vm1044 = vcmp.eq.s32.totalorder 0, %v1043
    %v1045 = vlaneseq
    %vm1047 = vcmp.lt.s32.totalorder %v1045, 768
    %v1048 = vsel %vm1047, 1, 0
    %v1049 = vlaneseq
    %v1050 = vxor.u32 %v1049, 127
    %vm1052 = vcmp.lt.s32.totalorder %v1050, 768
    %v1053 = vsel %vm1052, 1, 0
    %vm1054 = vcmp.eq.s32.totalorder %v1048, %v1053
    %v1055 = vld [vmem:[#allocation1] sm:$0xff]
    %1056 = vperm.xlu0 %1040, %v1055
    %v1057 = vpop.permute.xlu0 %1056
    %v1058 = vld [vmem:[#allocation3] sm:$0xff]
    %1059 = vperm.xlu0 %1040, %v1058
    %v1060 = vpop.permute.xlu0 %1059
    %1061 = xla_tuple %v1057, %v1055
    %1062 = xla_tuple %1061
    %vm1063 = vcmp.gt.f32.partialorder %v1057, %v1055
    %v1064 = vsel %vm1063, 1, 0
    %1065 = xla_tuple %v1064
    %1066 = xla_tuple %v1055, %v1057
    %1067 = xla_tuple %1066
    %vm1068 = vcmp.gt.f32.partialorder %v1055, %v1057
    %v1069 = vsel %vm1068, 1, 0
    %1070 = xla_tuple %v1069
    %v1071 = vsel %vm1054, %v1064, 0
    %vm1072 = vcmp.ne.s32.totalorder %v1071, 0
    %v1073 = vsel %vm1054, %v1069, 1
    %vm1074 = vcmp.ne.s32.totalorder %v1073, 0
    %v1075 = vsel %vm1072, %v1057, %v1055
    %v1076 = vsel %vm1074, %v1057, %v1055
    %v1077 = vsel %vm1044, %v1075, %v1076
    %1078 = vst [vmem:[#allocation1] sm:$0xff] %v1077
    %v1079 = vsel %vm1072, %v1060, %v1058
    %v1080 = vsel %vm1074, %v1060, %v1058
    %v1081 = vsel %vm1044, %v1079, %v1080
    %1082 = vst [vmem:[#allocation3] sm:$0xff] %v1081
    %v1083 = vlaneseq
    %v1084 = vand.u32 %v1083, 127
    %v1085 = vxor.u32 %v1084, 32
    %1086 = vset.pattern.permute.xlu0 %v1085
    %v1087 = vlaneseq
    %v1088 = vand.u32 %v1087, 127
    %v1089 = vand.u32 %v1088, 32
    %vm1090 = vcmp.eq.s32.totalorder 0, %v1089
    %v1091 = vlaneseq
    %vm1093 = vcmp.lt.s32.totalorder %v1091, 768
    %v1094 = vsel %vm1093, 1, 0
    %v1095 = vlaneseq
    %v1096 = vxor.u32 %v1095, 32
    %vm1098 = vcmp.lt.s32.totalorder %v1096, 768
    %v1099 = vsel %vm1098, 1, 0
    %vm1100 = vcmp.eq.s32.totalorder %v1094, %v1099
    %v1101 = vld [vmem:[#allocation1] sm:$0xff]
    %1102 = vperm.xlu0 %1086, %v1101
    %v1103 = vpop.permute.xlu0 %1102
    %v1104 = vld [vmem:[#allocation3] sm:$0xff]
    %1105 = vperm.xlu0 %1086, %v1104
    %v1106 = vpop.permute.xlu0 %1105
    %1107 = xla_tuple %v1103, %v1101
    %1108 = xla_tuple %1107
    %vm1109 = vcmp.gt.f32.partialorder %v1103, %v1101
    %v1110 = vsel %vm1109, 1, 0
    %1111 = xla_tuple %v1110
    %1112 = xla_tuple %v1101, %v1103
    %1113 = xla_tuple %1112
    %vm1114 = vcmp.gt.f32.partialorder %v1101, %v1103
    %v1115 = vsel %vm1114, 1, 0
    %1116 = xla_tuple %v1115
    %v1117 = vsel %vm1100, %v1110, 0
    %vm1118 = vcmp.ne.s32.totalorder %v1117, 0
    %v1119 = vsel %vm1100, %v1115, 1
    %vm1120 = vcmp.ne.s32.totalorder %v1119, 0
    %v1121 = vsel %vm1118, %v1103, %v1101
    %v1122 = vsel %vm1120, %v1103, %v1101
    %v1123 = vsel %vm1090, %v1121, %v1122
    %1124 = vst [vmem:[#allocation1] sm:$0xff] %v1123
    %v1125 = vsel %vm1118, %v1106, %v1104
    %v1126 = vsel %vm1120, %v1106, %v1104
    %v1127 = vsel %vm1090, %v1125, %v1126
    %1128 = vst [vmem:[#allocation3] sm:$0xff] %v1127
    %v1129 = vlaneseq
    %v1130 = vand.u32 %v1129, 127
    %v1131 = vxor.u32 %v1130, 16
    %1132 = vset.pattern.permute.xlu0 %v1131
    %v1133 = vlaneseq
    %v1134 = vand.u32 %v1133, 127
    %v1135 = vand.u32 %v1134, 16
    %vm1136 = vcmp.eq.s32.totalorder 0, %v1135
    %v1137 = vlaneseq
    %vm1139 = vcmp.lt.s32.totalorder %v1137, 768
    %v1140 = vsel %vm1139, 1, 0
    %v1141 = vlaneseq
    %v1142 = vxor.u32 %v1141, 16
    %vm1144 = vcmp.lt.s32.totalorder %v1142, 768
    %v1145 = vsel %vm1144, 1, 0
    %vm1146 = vcmp.eq.s32.totalorder %v1140, %v1145
    %v1147 = vld [vmem:[#allocation1] sm:$0xff]
    %1148 = vperm.xlu0 %1132, %v1147
    %v1149 = vpop.permute.xlu0 %1148
    %v1150 = vld [vmem:[#allocation3] sm:$0xff]
    %1151 = vperm.xlu0 %1132, %v1150
    %v1152 = vpop.permute.xlu0 %1151
    %1153 = xla_tuple %v1149, %v1147
    %1154 = xla_tuple %1153
    %vm1155 = vcmp.gt.f32.partialorder %v1149, %v1147
    %v1156 = vsel %vm1155, 1, 0
    %1157 = xla_tuple %v1156
    %1158 = xla_tuple %v1147, %v1149
    %1159 = xla_tuple %1158
    %vm1160 = vcmp.gt.f32.partialorder %v1147, %v1149
    %v1161 = vsel %vm1160, 1, 0
    %1162 = xla_tuple %v1161
    %v1163 = vsel %vm1146, %v1156, 0
    %vm1164 = vcmp.ne.s32.totalorder %v1163, 0
    %v1165 = vsel %vm1146, %v1161, 1
    %vm1166 = vcmp.ne.s32.totalorder %v1165, 0
    %v1167 = vsel %vm1164, %v1149, %v1147
    %v1168 = vsel %vm1166, %v1149, %v1147
    %v1169 = vsel %vm1136, %v1167, %v1168
    %1170 = vst [vmem:[#allocation1] sm:$0xff] %v1169
    %v1171 = vsel %vm1164, %v1152, %v1150
    %v1172 = vsel %vm1166, %v1152, %v1150
    %v1173 = vsel %vm1136, %v1171, %v1172
    %1174 = vst [vmem:[#allocation3] sm:$0xff] %v1173
    %v1175 = vlaneseq
    %v1176 = vand.u32 %v1175, 127
    %v1177 = vxor.u32 %v1176, 8
    %1178 = vset.pattern.permute.xlu0 %v1177
    %v1179 = vlaneseq
    %v1180 = vand.u32 %v1179, 127
    %v1181 = vand.u32 %v1180, 8
    %vm1182 = vcmp.eq.s32.totalorder 0, %v1181
    %v1183 = vlaneseq
    %vm1185 = vcmp.lt.s32.totalorder %v1183, 768
    %v1186 = vsel %vm1185, 1, 0
    %v1187 = vlaneseq
    %v1188 = vxor.u32 %v1187, 8
    %vm1190 = vcmp.lt.s32.totalorder %v1188, 768
    %v1191 = vsel %vm1190, 1, 0
    %vm1192 = vcmp.eq.s32.totalorder %v1186, %v1191
    %v1193 = vld [vmem:[#allocation1] sm:$0xff]
    %1194 = vperm.xlu0 %1178, %v1193
    %v1195 = vpop.permute.xlu0 %1194
    %v1196 = vld [vmem:[#allocation3] sm:$0xff]
    %1197 = vperm.xlu0 %1178, %v1196
    %v1198 = vpop.permute.xlu0 %1197
    %1199 = xla_tuple %v1195, %v1193
    %1200 = xla_tuple %1199
    %vm1201 = vcmp.gt.f32.partialorder %v1195, %v1193
    %v1202 = vsel %vm1201, 1, 0
    %1203 = xla_tuple %v1202
    %1204 = xla_tuple %v1193, %v1195
    %1205 = xla_tuple %1204
    %vm1206 = vcmp.gt.f32.partialorder %v1193, %v1195
    %v1207 = vsel %vm1206, 1, 0
    %1208 = xla_tuple %v1207
    %v1209 = vsel %vm1192, %v1202, 0
    %vm1210 = vcmp.ne.s32.totalorder %v1209, 0
    %v1211 = vsel %vm1192, %v1207, 1
    %vm1212 = vcmp.ne.s32.totalorder %v1211, 0
    %v1213 = vsel %vm1210, %v1195, %v1193
    %v1214 = vsel %vm1212, %v1195, %v1193
    %v1215 = vsel %vm1182, %v1213, %v1214
    %1216 = vst [vmem:[#allocation1] sm:$0xff] %v1215
    %v1217 = vsel %vm1210, %v1198, %v1196
    %v1218 = vsel %vm1212, %v1198, %v1196
    %v1219 = vsel %vm1182, %v1217, %v1218
    %1220 = vst [vmem:[#allocation3] sm:$0xff] %v1219
    %v1221 = vlaneseq
    %v1222 = vand.u32 %v1221, 127
    %v1223 = vxor.u32 %v1222, 4
    %1224 = vset.pattern.permute.xlu0 %v1223
    %v1225 = vlaneseq
    %v1226 = vand.u32 %v1225, 127
    %v1227 = vand.u32 %v1226, 4
    %vm1228 = vcmp.eq.s32.totalorder 0, %v1227
    %v1229 = vlaneseq
    %vm1231 = vcmp.lt.s32.totalorder %v1229, 768
    %v1232 = vsel %vm1231, 1, 0
    %v1233 = vlaneseq
    %v1234 = vxor.u32 %v1233, 4
    %vm1236 = vcmp.lt.s32.totalorder %v1234, 768
    %v1237 = vsel %vm1236, 1, 0
    %vm1238 = vcmp.eq.s32.totalorder %v1232, %v1237
    %v1239 = vld [vmem:[#allocation1] sm:$0xff]
    %1240 = vperm.xlu0 %1224, %v1239
    %v1241 = vpop.permute.xlu0 %1240
    %v1242 = vld [vmem:[#allocation3] sm:$0xff]
    %1243 = vperm.xlu0 %1224, %v1242
    %v1244 = vpop.permute.xlu0 %1243
    %1245 = xla_tuple %v1241, %v1239
    %1246 = xla_tuple %1245
    %vm1247 = vcmp.gt.f32.partialorder %v1241, %v1239
    %v1248 = vsel %vm1247, 1, 0
    %1249 = xla_tuple %v1248
    %1250 = xla_tuple %v1239, %v1241
    %1251 = xla_tuple %1250
    %vm1252 = vcmp.gt.f32.partialorder %v1239, %v1241
    %v1253 = vsel %vm1252, 1, 0
    %1254 = xla_tuple %v1253
    %v1255 = vsel %vm1238, %v1248, 0
    %vm1256 = vcmp.ne.s32.totalorder %v1255, 0
    %v1257 = vsel %vm1238, %v1253, 1
    %vm1258 = vcmp.ne.s32.totalorder %v1257, 0
    %v1259 = vsel %vm1256, %v1241, %v1239
    %v1260 = vsel %vm1258, %v1241, %v1239
    %v1261 = vsel %vm1228, %v1259, %v1260
    %1262 = vst [vmem:[#allocation1] sm:$0xff] %v1261
    %v1263 = vsel %vm1256, %v1244, %v1242
    %v1264 = vsel %vm1258, %v1244, %v1242
    %v1265 = vsel %vm1228, %v1263, %v1264
    %1266 = vst [vmem:[#allocation3] sm:$0xff] %v1265
    %v1267 = vlaneseq
    %v1268 = vand.u32 %v1267, 127
    %v1269 = vxor.u32 %v1268, 2
    %1270 = vset.pattern.permute.xlu0 %v1269
    %v1271 = vlaneseq
    %v1272 = vand.u32 %v1271, 127
    %v1273 = vand.u32 %v1272, 2
    %vm1274 = vcmp.eq.s32.totalorder 0, %v1273
    %v1275 = vlaneseq
    %vm1277 = vcmp.lt.s32.totalorder %v1275, 768
    %v1278 = vsel %vm1277, 1, 0
    %v1279 = vlaneseq
    %v1280 = vxor.u32 %v1279, 2
    %vm1282 = vcmp.lt.s32.totalorder %v1280, 768
    %v1283 = vsel %vm1282, 1, 0
    %vm1284 = vcmp.eq.s32.totalorder %v1278, %v1283
    %v1285 = vld [vmem:[#allocation1] sm:$0xff]
    %1286 = vperm.xlu0 %1270, %v1285
    %v1287 = vpop.permute.xlu0 %1286
    %v1288 = vld [vmem:[#allocation3] sm:$0xff]
    %1289 = vperm.xlu0 %1270, %v1288
    %v1290 = vpop.permute.xlu0 %1289
    %1291 = xla_tuple %v1287, %v1285
    %1292 = xla_tuple %1291
    %vm1293 = vcmp.gt.f32.partialorder %v1287, %v1285
    %v1294 = vsel %vm1293, 1, 0
    %1295 = xla_tuple %v1294
    %1296 = xla_tuple %v1285, %v1287
    %1297 = xla_tuple %1296
    %vm1298 = vcmp.gt.f32.partialorder %v1285, %v1287
    %v1299 = vsel %vm1298, 1, 0
    %1300 = xla_tuple %v1299
    %v1301 = vsel %vm1284, %v1294, 0
    %vm1302 = vcmp.ne.s32.totalorder %v1301, 0
    %v1303 = vsel %vm1284, %v1299, 1
    %vm1304 = vcmp.ne.s32.totalorder %v1303, 0
    %v1305 = vsel %vm1302, %v1287, %v1285
    %v1306 = vsel %vm1304, %v1287, %v1285
    %v1307 = vsel %vm1274, %v1305, %v1306
    %1308 = vst [vmem:[#allocation1] sm:$0xff] %v1307
    %v1309 = vsel %vm1302, %v1290, %v1288
    %v1310 = vsel %vm1304, %v1290, %v1288
    %v1311 = vsel %vm1274, %v1309, %v1310
    %1312 = vst [vmem:[#allocation3] sm:$0xff] %v1311
    %v1313 = vlaneseq
    %v1314 = vand.u32 %v1313, 127
    %v1315 = vxor.u32 %v1314, 1
    %1316 = vset.pattern.permute.xlu0 %v1315
    %v1317 = vlaneseq
    %v1318 = vand.u32 %v1317, 127
    %v1319 = vand.u32 %v1318, 1
    %vm1320 = vcmp.eq.s32.totalorder 0, %v1319
    %v1321 = vlaneseq
    %vm1323 = vcmp.lt.s32.totalorder %v1321, 768
    %v1324 = vsel %vm1323, 1, 0
    %v1325 = vlaneseq
    %v1326 = vxor.u32 %v1325, 1
    %vm1328 = vcmp.lt.s32.totalorder %v1326, 768
    %v1329 = vsel %vm1328, 1, 0
    %vm1330 = vcmp.eq.s32.totalorder %v1324, %v1329
    %v1331 = vld [vmem:[#allocation1] sm:$0xff]
    %1332 = vperm.xlu0 %1316, %v1331
    %v1333 = vpop.permute.xlu0 %1332
    %v1334 = vld [vmem:[#allocation3] sm:$0xff]
    %1335 = vperm.xlu0 %1316, %v1334
    %v1336 = vpop.permute.xlu0 %1335
    %1337 = xla_tuple %v1333, %v1331
    %1338 = xla_tuple %1337
    %vm1339 = vcmp.gt.f32.partialorder %v1333, %v1331
    %v1340 = vsel %vm1339, 1, 0
    %1341 = xla_tuple %v1340
    %1342 = xla_tuple %v1331, %v1333
    %1343 = xla_tuple %1342
    %vm1344 = vcmp.gt.f32.partialorder %v1331, %v1333
    %v1345 = vsel %vm1344, 1, 0
    %1346 = xla_tuple %v1345
    %v1347 = vsel %vm1330, %v1340, 0
    %vm1348 = vcmp.ne.s32.totalorder %v1347, 0
    %v1349 = vsel %vm1330, %v1345, 1
    %vm1350 = vcmp.ne.s32.totalorder %v1349, 0
    %v1351 = vsel %vm1348, %v1333, %v1331
    %v1352 = vsel %vm1350, %v1333, %v1331
    %v1353 = vsel %vm1320, %v1351, %v1352
    %1354 = vst [vmem:[#allocation1] sm:$0xff] %v1353
    %v1355 = vsel %vm1348, %v1336, %v1334
    %v1356 = vsel %vm1350, %v1336, %v1334
    %v1357 = vsel %vm1320, %v1355, %v1356
    %1358 = vst [vmem:[#allocation3] sm:$0xff] %v1357
    %v1359 = vlaneseq
    %v1360 = vshrl.u32 %v1359, 7
    %v1361 = vand.u32 %v1360, 1
    %vm1362 = vcmp.eq.s32.totalorder 0, %v1361
    %v1363 = vlaneseq
    %vm1365 = vcmp.lt.s32.totalorder %v1363, 768
    %v1366 = vsel %vm1365, 1, 0
    %v1367 = vlaneseq
    %v1368 = vxor.u32 %v1367, 255
    %vm1370 = vcmp.lt.s32.totalorder %v1368, 768
    %v1371 = vsel %vm1370, 1, 0
    %vm1372 = vcmp.eq.s32.totalorder %v1366, %v1371
    %v1373 = vld [vmem:[#allocation1] sm:$0xff]
    %v1374 = vld.sshfl [vmem:[#allocation1] sm:$0xff pattern:$0x67452301]
    %v1375 = vlaneseq
    %v1376 = vand.u32 %v1375, 127
    %v1377 = vsub.s32 %v1376, 127
    %v1378 = vsub.s32 0, %v1377
    %1379 = vset.pattern.permute.xlu0 %v1378
    %1380 = vperm.xlu0 %1379, %v1374
    %v1381 = vpop.permute.xlu0 %1380
    %v1382 = vld [vmem:[#allocation3] sm:$0xff]
    %v1383 = vld.sshfl [vmem:[#allocation3] sm:$0xff pattern:$0x67452301]
    %v1384 = vlaneseq
    %v1385 = vand.u32 %v1384, 127
    %v1386 = vsub.s32 %v1385, 127
    %v1387 = vsub.s32 0, %v1386
    %1388 = vset.pattern.permute.xlu0 %v1387
    %1389 = vperm.xlu0 %1388, %v1383
    %v1390 = vpop.permute.xlu0 %1389
    %1391 = xla_tuple %v1381, %v1373
    %1392 = xla_tuple %1391
    %vm1393 = vcmp.gt.f32.partialorder %v1381, %v1373
    %v1394 = vsel %vm1393, 1, 0
    %1395 = xla_tuple %v1394
    %1396 = xla_tuple %v1373, %v1381
    %1397 = xla_tuple %1396
    %vm1398 = vcmp.gt.f32.partialorder %v1373, %v1381
    %v1399 = vsel %vm1398, 1, 0
    %1400 = xla_tuple %v1399
    %v1401 = vsel %vm1372, %v1394, 0
    %vm1402 = vcmp.ne.s32.totalorder %v1401, 0
    %v1403 = vsel %vm1372, %v1399, 1
    %vm1404 = vcmp.ne.s32.totalorder %v1403, 0
    %v1405 = vsel %vm1402, %v1381, %v1373
    %v1406 = vsel %vm1404, %v1381, %v1373
    %v1407 = vsel %vm1362, %v1405, %v1406
    %1408 = vst [vmem:[#allocation1] sm:$0xff] %v1407
    %v1409 = vsel %vm1402, %v1390, %v1382
    %v1410 = vsel %vm1404, %v1390, %v1382
    %v1411 = vsel %vm1362, %v1409, %v1410
    %1412 = vst [vmem:[#allocation3] sm:$0xff] %v1411
    %v1413 = vlaneseq
    %v1414 = vand.u32 %v1413, 127
    %v1415 = vxor.u32 %v1414, 64
    %1416 = vset.pattern.permute.xlu0 %v1415
    %v1417 = vlaneseq
    %v1418 = vand.u32 %v1417, 127
    %v1419 = vand.u32 %v1418, 64
    %vm1420 = vcmp.eq.s32.totalorder 0, %v1419
    %v1421 = vlaneseq
    %vm1423 = vcmp.lt.s32.totalorder %v1421, 768
    %v1424 = vsel %vm1423, 1, 0
    %v1425 = vlaneseq
    %v1426 = vxor.u32 %v1425, 64
    %vm1428 = vcmp.lt.s32.totalorder %v1426, 768
    %v1429 = vsel %vm1428, 1, 0
    %vm1430 = vcmp.eq.s32.totalorder %v1424, %v1429
    %v1431 = vld [vmem:[#allocation1] sm:$0xff]
    %1432 = vperm.xlu0 %1416, %v1431
    %v1433 = vpop.permute.xlu0 %1432
    %v1434 = vld [vmem:[#allocation3] sm:$0xff]
    %1435 = vperm.xlu0 %1416, %v1434
    %v1436 = vpop.permute.xlu0 %1435
    %1437 = xla_tuple %v1433, %v1431
    %1438 = xla_tuple %1437
    %vm1439 = vcmp.gt.f32.partialorder %v1433, %v1431
    %v1440 = vsel %vm1439, 1, 0
    %1441 = xla_tuple %v1440
    %1442 = xla_tuple %v1431, %v1433
    %1443 = xla_tuple %1442
    %vm1444 = vcmp.gt.f32.partialorder %v1431, %v1433
    %v1445 = vsel %vm1444, 1, 0
    %1446 = xla_tuple %v1445
    %v1447 = vsel %vm1430, %v1440, 0
    %vm1448 = vcmp.ne.s32.totalorder %v1447, 0
    %v1449 = vsel %vm1430, %v1445, 1
    %vm1450 = vcmp.ne.s32.totalorder %v1449, 0
    %v1451 = vsel %vm1448, %v1433, %v1431
    %v1452 = vsel %vm1450, %v1433, %v1431
    %v1453 = vsel %vm1420, %v1451, %v1452
    %1454 = vst [vmem:[#allocation1] sm:$0xff] %v1453
    %v1455 = vsel %vm1448, %v1436, %v1434
    %v1456 = vsel %vm1450, %v1436, %v1434
    %v1457 = vsel %vm1420, %v1455, %v1456
    %1458 = vst [vmem:[#allocation3] sm:$0xff] %v1457
    %v1459 = vlaneseq
    %v1460 = vand.u32 %v1459, 127
    %v1461 = vxor.u32 %v1460, 32
    %1462 = vset.pattern.permute.xlu0 %v1461
    %v1463 = vlaneseq
    %v1464 = vand.u32 %v1463, 127
    %v1465 = vand.u32 %v1464, 32
    %vm1466 = vcmp.eq.s32.totalorder 0, %v1465
    %v1467 = vlaneseq
    %vm1469 = vcmp.lt.s32.totalorder %v1467, 768
    %v1470 = vsel %vm1469, 1, 0
    %v1471 = vlaneseq
    %v1472 = vxor.u32 %v1471, 32
    %vm1474 = vcmp.lt.s32.totalorder %v1472, 768
    %v1475 = vsel %vm1474, 1, 0
    %vm1476 = vcmp.eq.s32.totalorder %v1470, %v1475
    %v1477 = vld [vmem:[#allocation1] sm:$0xff]
    %1478 = vperm.xlu0 %1462, %v1477
    %v1479 = vpop.permute.xlu0 %1478
    %v1480 = vld [vmem:[#allocation3] sm:$0xff]
    %1481 = vperm.xlu0 %1462, %v1480
    %v1482 = vpop.permute.xlu0 %1481
    %1483 = xla_tuple %v1479, %v1477
    %1484 = xla_tuple %1483
    %vm1485 = vcmp.gt.f32.partialorder %v1479, %v1477
    %v1486 = vsel %vm1485, 1, 0
    %1487 = xla_tuple %v1486
    %1488 = xla_tuple %v1477, %v1479
    %1489 = xla_tuple %1488
    %vm1490 = vcmp.gt.f32.partialorder %v1477, %v1479
    %v1491 = vsel %vm1490, 1, 0
    %1492 = xla_tuple %v1491
    %v1493 = vsel %vm1476, %v1486, 0
    %vm1494 = vcmp.ne.s32.totalorder %v1493, 0
    %v1495 = vsel %vm1476, %v1491, 1
    %vm1496 = vcmp.ne.s32.totalorder %v1495, 0
    %v1497 = vsel %vm1494, %v1479, %v1477
    %v1498 = vsel %vm1496, %v1479, %v1477
    %v1499 = vsel %vm1466, %v1497, %v1498
    %1500 = vst [vmem:[#allocation1] sm:$0xff] %v1499
    %v1501 = vsel %vm1494, %v1482, %v1480
    %v1502 = vsel %vm1496, %v1482, %v1480
    %v1503 = vsel %vm1466, %v1501, %v1502
    %1504 = vst [vmem:[#allocation3] sm:$0xff] %v1503
    %v1505 = vlaneseq
    %v1506 = vand.u32 %v1505, 127
    %v1507 = vxor.u32 %v1506, 16
    %1508 = vset.pattern.permute.xlu0 %v1507
    %v1509 = vlaneseq
    %v1510 = vand.u32 %v1509, 127
    %v1511 = vand.u32 %v1510, 16
    %vm1512 = vcmp.eq.s32.totalorder 0, %v1511
    %v1513 = vlaneseq
    %vm1515 = vcmp.lt.s32.totalorder %v1513, 768
    %v1516 = vsel %vm1515, 1, 0
    %v1517 = vlaneseq
    %v1518 = vxor.u32 %v1517, 16
    %vm1520 = vcmp.lt.s32.totalorder %v1518, 768
    %v1521 = vsel %vm1520, 1, 0
    %vm1522 = vcmp.eq.s32.totalorder %v1516, %v1521
    %v1523 = vld [vmem:[#allocation1] sm:$0xff]
    %1524 = vperm.xlu0 %1508, %v1523
    %v1525 = vpop.permute.xlu0 %1524
    %v1526 = vld [vmem:[#allocation3] sm:$0xff]
    %1527 = vperm.xlu0 %1508, %v1526
    %v1528 = vpop.permute.xlu0 %1527
    %1529 = xla_tuple %v1525, %v1523
    %1530 = xla_tuple %1529
    %vm1531 = vcmp.gt.f32.partialorder %v1525, %v1523
    %v1532 = vsel %vm1531, 1, 0
    %1533 = xla_tuple %v1532
    %1534 = xla_tuple %v1523, %v1525
    %1535 = xla_tuple %1534
    %vm1536 = vcmp.gt.f32.partialorder %v1523, %v1525
    %v1537 = vsel %vm1536, 1, 0
    %1538 = xla_tuple %v1537
    %v1539 = vsel %vm1522, %v1532, 0
    %vm1540 = vcmp.ne.s32.totalorder %v1539, 0
    %v1541 = vsel %vm1522, %v1537, 1
    %vm1542 = vcmp.ne.s32.totalorder %v1541, 0
    %v1543 = vsel %vm1540, %v1525, %v1523
    %v1544 = vsel %vm1542, %v1525, %v1523
    %v1545 = vsel %vm1512, %v1543, %v1544
    %1546 = vst [vmem:[#allocation1] sm:$0xff] %v1545
    %v1547 = vsel %vm1540, %v1528, %v1526
    %v1548 = vsel %vm1542, %v1528, %v1526
    %v1549 = vsel %vm1512, %v1547, %v1548
    %1550 = vst [vmem:[#allocation3] sm:$0xff] %v1549
    %v1551 = vlaneseq
    %v1552 = vand.u32 %v1551, 127
    %v1553 = vxor.u32 %v1552, 8
    %1554 = vset.pattern.permute.xlu0 %v1553
    %v1555 = vlaneseq
    %v1556 = vand.u32 %v1555, 127
    %v1557 = vand.u32 %v1556, 8
    %vm1558 = vcmp.eq.s32.totalorder 0, %v1557
    %v1559 = vlaneseq
    %vm1561 = vcmp.lt.s32.totalorder %v1559, 768
    %v1562 = vsel %vm1561, 1, 0
    %v1563 = vlaneseq
    %v1564 = vxor.u32 %v1563, 8
    %vm1566 = vcmp.lt.s32.totalorder %v1564, 768
    %v1567 = vsel %vm1566, 1, 0
    %vm1568 = vcmp.eq.s32.totalorder %v1562, %v1567
    %v1569 = vld [vmem:[#allocation1] sm:$0xff]
    %1570 = vperm.xlu0 %1554, %v1569
    %v1571 = vpop.permute.xlu0 %1570
    %v1572 = vld [vmem:[#allocation3] sm:$0xff]
    %1573 = vperm.xlu0 %1554, %v1572
    %v1574 = vpop.permute.xlu0 %1573
    %1575 = xla_tuple %v1571, %v1569
    %1576 = xla_tuple %1575
    %vm1577 = vcmp.gt.f32.partialorder %v1571, %v1569
    %v1578 = vsel %vm1577, 1, 0
    %1579 = xla_tuple %v1578
    %1580 = xla_tuple %v1569, %v1571
    %1581 = xla_tuple %1580
    %vm1582 = vcmp.gt.f32.partialorder %v1569, %v1571
    %v1583 = vsel %vm1582, 1, 0
    %1584 = xla_tuple %v1583
    %v1585 = vsel %vm1568, %v1578, 0
    %vm1586 = vcmp.ne.s32.totalorder %v1585, 0
    %v1587 = vsel %vm1568, %v1583, 1
    %vm1588 = vcmp.ne.s32.totalorder %v1587, 0
    %v1589 = vsel %vm1586, %v1571, %v1569
    %v1590 = vsel %vm1588, %v1571, %v1569
    %v1591 = vsel %vm1558, %v1589, %v1590
    %1592 = vst [vmem:[#allocation1] sm:$0xff] %v1591
    %v1593 = vsel %vm1586, %v1574, %v1572
    %v1594 = vsel %vm1588, %v1574, %v1572
    %v1595 = vsel %vm1558, %v1593, %v1594
    %1596 = vst [vmem:[#allocation3] sm:$0xff] %v1595
    %v1597 = vlaneseq
    %v1598 = vand.u32 %v1597, 127
    %v1599 = vxor.u32 %v1598, 4
    %1600 = vset.pattern.permute.xlu0 %v1599
    %v1601 = vlaneseq
    %v1602 = vand.u32 %v1601, 127
    %v1603 = vand.u32 %v1602, 4
    %vm1604 = vcmp.eq.s32.totalorder 0, %v1603
    %v1605 = vlaneseq
    %vm1607 = vcmp.lt.s32.totalorder %v1605, 768
    %v1608 = vsel %vm1607, 1, 0
    %v1609 = vlaneseq
    %v1610 = vxor.u32 %v1609, 4
    %vm1612 = vcmp.lt.s32.totalorder %v1610, 768
    %v1613 = vsel %vm1612, 1, 0
    %vm1614 = vcmp.eq.s32.totalorder %v1608, %v1613
    %v1615 = vld [vmem:[#allocation1] sm:$0xff]
    %1616 = vperm.xlu0 %1600, %v1615
    %v1617 = vpop.permute.xlu0 %1616
    %v1618 = vld [vmem:[#allocation3] sm:$0xff]
    %1619 = vperm.xlu0 %1600, %v1618
    %v1620 = vpop.permute.xlu0 %1619
    %1621 = xla_tuple %v1617, %v1615
    %1622 = xla_tuple %1621
    %vm1623 = vcmp.gt.f32.partialorder %v1617, %v1615
    %v1624 = vsel %vm1623, 1, 0
    %1625 = xla_tuple %v1624
    %1626 = xla_tuple %v1615, %v1617
    %1627 = xla_tuple %1626
    %vm1628 = vcmp.gt.f32.partialorder %v1615, %v1617
    %v1629 = vsel %vm1628, 1, 0
    %1630 = xla_tuple %v1629
    %v1631 = vsel %vm1614, %v1624, 0
    %vm1632 = vcmp.ne.s32.totalorder %v1631, 0
    %v1633 = vsel %vm1614, %v1629, 1
    %vm1634 = vcmp.ne.s32.totalorder %v1633, 0
    %v1635 = vsel %vm1632, %v1617, %v1615
    %v1636 = vsel %vm1634, %v1617, %v1615
    %v1637 = vsel %vm1604, %v1635, %v1636
    %1638 = vst [vmem:[#allocation1] sm:$0xff] %v1637
    %v1639 = vsel %vm1632, %v1620, %v1618
    %v1640 = vsel %vm1634, %v1620, %v1618
    %v1641 = vsel %vm1604, %v1639, %v1640
    %1642 = vst [vmem:[#allocation3] sm:$0xff] %v1641
    %v1643 = vlaneseq
    %v1644 = vand.u32 %v1643, 127
    %v1645 = vxor.u32 %v1644, 2
    %1646 = vset.pattern.permute.xlu0 %v1645
    %v1647 = vlaneseq
    %v1648 = vand.u32 %v1647, 127
    %v1649 = vand.u32 %v1648, 2
    %vm1650 = vcmp.eq.s32.totalorder 0, %v1649
    %v1651 = vlaneseq
    %vm1653 = vcmp.lt.s32.totalorder %v1651, 768
    %v1654 = vsel %vm1653, 1, 0
    %v1655 = vlaneseq
    %v1656 = vxor.u32 %v1655, 2
    %vm1658 = vcmp.lt.s32.totalorder %v1656, 768
    %v1659 = vsel %vm1658, 1, 0
    %vm1660 = vcmp.eq.s32.totalorder %v1654, %v1659
    %v1661 = vld [vmem:[#allocation1] sm:$0xff]
    %1662 = vperm.xlu0 %1646, %v1661
    %v1663 = vpop.permute.xlu0 %1662
    %v1664 = vld [vmem:[#allocation3] sm:$0xff]
    %1665 = vperm.xlu0 %1646, %v1664
    %v1666 = vpop.permute.xlu0 %1665
    %1667 = xla_tuple %v1663, %v1661
    %1668 = xla_tuple %1667
    %vm1669 = vcmp.gt.f32.partialorder %v1663, %v1661
    %v1670 = vsel %vm1669, 1, 0
    %1671 = xla_tuple %v1670
    %1672 = xla_tuple %v1661, %v1663
    %1673 = xla_tuple %1672
    %vm1674 = vcmp.gt.f32.partialorder %v1661, %v1663
    %v1675 = vsel %vm1674, 1, 0
    %1676 = xla_tuple %v1675
    %v1677 = vsel %vm1660, %v1670, 0
    %vm1678 = vcmp.ne.s32.totalorder %v1677, 0
    %v1679 = vsel %vm1660, %v1675, 1
    %vm1680 = vcmp.ne.s32.totalorder %v1679, 0
    %v1681 = vsel %vm1678, %v1663, %v1661
    %v1682 = vsel %vm1680, %v1663, %v1661
    %v1683 = vsel %vm1650, %v1681, %v1682
    %1684 = vst [vmem:[#allocation1] sm:$0xff] %v1683
    %v1685 = vsel %vm1678, %v1666, %v1664
    %v1686 = vsel %vm1680, %v1666, %v1664
    %v1687 = vsel %vm1650, %v1685, %v1686
    %1688 = vst [vmem:[#allocation3] sm:$0xff] %v1687
    %v1689 = vlaneseq
    %v1690 = vand.u32 %v1689, 127
    %v1691 = vxor.u32 %v1690, 1
    %1692 = vset.pattern.permute.xlu0 %v1691
    %v1693 = vlaneseq
    %v1694 = vand.u32 %v1693, 127
    %v1695 = vand.u32 %v1694, 1
    %vm1696 = vcmp.eq.s32.totalorder 0, %v1695
    %v1697 = vlaneseq
    %vm1699 = vcmp.lt.s32.totalorder %v1697, 768
    %v1700 = vsel %vm1699, 1, 0
    %v1701 = vlaneseq
    %v1702 = vxor.u32 %v1701, 1
    %vm1704 = vcmp.lt.s32.totalorder %v1702, 768
    %v1705 = vsel %vm1704, 1, 0
    %vm1706 = vcmp.eq.s32.totalorder %v1700, %v1705
    %v1707 = vld [vmem:[#allocation1] sm:$0xff]
    %1708 = vperm.xlu0 %1692, %v1707
    %v1709 = vpop.permute.xlu0 %1708
    %v1710 = vld [vmem:[#allocation3] sm:$0xff]
    %1711 = vperm.xlu0 %1692, %v1710
    %v1712 = vpop.permute.xlu0 %1711
    %1713 = xla_tuple %v1709, %v1707
    %1714 = xla_tuple %1713
    %vm1715 = vcmp.gt.f32.partialorder %v1709, %v1707
    %v1716 = vsel %vm1715, 1, 0
    %1717 = xla_tuple %v1716
    %1718 = xla_tuple %v1707, %v1709
    %1719 = xla_tuple %1718
    %vm1720 = vcmp.gt.f32.partialorder %v1707, %v1709
    %v1721 = vsel %vm1720, 1, 0
    %1722 = xla_tuple %v1721
    %v1723 = vsel %vm1706, %v1716, 0
    %vm1724 = vcmp.ne.s32.totalorder %v1723, 0
    %v1725 = vsel %vm1706, %v1721, 1
    %vm1726 = vcmp.ne.s32.totalorder %v1725, 0
    %v1727 = vsel %vm1724, %v1709, %v1707
    %v1728 = vsel %vm1726, %v1709, %v1707
    %v1729 = vsel %vm1696, %v1727, %v1728
    %1730 = vst [vmem:[#allocation1] sm:$0xff] %v1729
    %v1731 = vsel %vm1724, %v1712, %v1710
    %v1732 = vsel %vm1726, %v1712, %v1710
    %v1733 = vsel %vm1696, %v1731, %v1732
    %1734 = vst [vmem:[#allocation3] sm:$0xff] %v1733
    %v1735 = vlaneseq
    %v1736 = vshrl.u32 %v1735, 7
    %v1737 = vand.u32 %v1736, 2
    %vm1738 = vcmp.eq.s32.totalorder 0, %v1737
    %v1739 = vlaneseq
    %vm1741 = vcmp.lt.s32.totalorder %v1739, 768
    %v1742 = vsel %vm1741, 1, 0
    %v1743 = vlaneseq
    %v1744 = vxor.u32 %v1743, 511
    %vm1746 = vcmp.lt.s32.totalorder %v1744, 768
    %v1747 = vsel %vm1746, 1, 0
    %vm1748 = vcmp.eq.s32.totalorder %v1742, %v1747
    %v1749 = vld [vmem:[#allocation1] sm:$0xff]
    %v1750 = vld.sshfl [vmem:[#allocation1] sm:$0xff pattern:$0x45670123]
    %v1751 = vlaneseq
    %v1752 = vand.u32 %v1751, 127
    %v1753 = vsub.s32 %v1752, 127
    %v1754 = vsub.s32 0, %v1753
    %1755 = vset.pattern.permute.xlu0 %v1754
    %1756 = vperm.xlu0 %1755, %v1750
    %v1757 = vpop.permute.xlu0 %1756
    %v1758 = vld [vmem:[#allocation3] sm:$0xff]
    %v1759 = vld.sshfl [vmem:[#allocation3] sm:$0xff pattern:$0x45670123]
    %v1760 = vlaneseq
    %v1761 = vand.u32 %v1760, 127
    %v1762 = vsub.s32 %v1761, 127
    %v1763 = vsub.s32 0, %v1762
    %1764 = vset.pattern.permute.xlu0 %v1763
    %1765 = vperm.xlu0 %1764, %v1759
    %v1766 = vpop.permute.xlu0 %1765
    %1767 = xla_tuple %v1757, %v1749
    %1768 = xla_tuple %1767
    %vm1769 = vcmp.gt.f32.partialorder %v1757, %v1749
    %v1770 = vsel %vm1769, 1, 0
    %1771 = xla_tuple %v1770
    %1772 = xla_tuple %v1749, %v1757
    %1773 = xla_tuple %1772
    %vm1774 = vcmp.gt.f32.partialorder %v1749, %v1757
    %v1775 = vsel %vm1774, 1, 0
    %1776 = xla_tuple %v1775
    %v1777 = vsel %vm1748, %v1770, 0
    %vm1778 = vcmp.ne.s32.totalorder %v1777, 0
    %v1779 = vsel %vm1748, %v1775, 1
    %vm1780 = vcmp.ne.s32.totalorder %v1779, 0
    %v1781 = vsel %vm1778, %v1757, %v1749
    %v1782 = vsel %vm1780, %v1757, %v1749
    %v1783 = vsel %vm1738, %v1781, %v1782
    %1784 = vst [vmem:[#allocation1] sm:$0xff] %v1783
    %v1785 = vsel %vm1778, %v1766, %v1758
    %v1786 = vsel %vm1780, %v1766, %v1758
    %v1787 = vsel %vm1738, %v1785, %v1786
    %1788 = vst [vmem:[#allocation3] sm:$0xff] %v1787
    %v1789 = vlaneseq
    %v1790 = vshrl.u32 %v1789, 7
    %v1791 = vand.u32 %v1790, 1
    %vm1792 = vcmp.eq.s32.totalorder 0, %v1791
    %v1793 = vlaneseq
    %vm1795 = vcmp.lt.s32.totalorder %v1793, 768
    %v1796 = vsel %vm1795, 1, 0
    %v1797 = vlaneseq
    %v1798 = vxor.u32 %v1797, 128
    %vm1800 = vcmp.lt.s32.totalorder %v1798, 768
    %v1801 = vsel %vm1800, 1, 0
    %vm1802 = vcmp.eq.s32.totalorder %v1796, %v1801
    %v1803 = vld [vmem:[#allocation1] sm:$0xff]
    %v1804 = vld.sshfl [vmem:[#allocation1] sm:$0xff pattern:$0x67452301]
    %v1805 = vld [vmem:[#allocation3] sm:$0xff]
    %v1806 = vld.sshfl [vmem:[#allocation3] sm:$0xff pattern:$0x67452301]
    %1807 = xla_tuple %v1804, %v1803
    %1808 = xla_tuple %1807
    %vm1809 = vcmp.gt.f32.partialorder %v1804, %v1803
    %v1810 = vsel %vm1809, 1, 0
    %1811 = xla_tuple %v1810
    %1812 = xla_tuple %v1803, %v1804
    %1813 = xla_tuple %1812
    %vm1814 = vcmp.gt.f32.partialorder %v1803, %v1804
    %v1815 = vsel %vm1814, 1, 0
    %1816 = xla_tuple %v1815
    %v1817 = vsel %vm1802, %v1810, 0
    %vm1818 = vcmp.ne.s32.totalorder %v1817, 0
    %v1819 = vsel %vm1802, %v1815, 1
    %vm1820 = vcmp.ne.s32.totalorder %v1819, 0
    %v1821 = vsel %vm1818, %v1804, %v1803
    %v1822 = vsel %vm1820, %v1804, %v1803
    %v1823 = vsel %vm1792, %v1821, %v1822
    %1824 = vst [vmem:[#allocation1] sm:$0xff] %v1823
    %v1825 = vsel %vm1818, %v1806, %v1805
    %v1826 = vsel %vm1820, %v1806, %v1805
    %v1827 = vsel %vm1792, %v1825, %v1826
    %1828 = vst [vmem:[#allocation3] sm:$0xff] %v1827
    %v1829 = vlaneseq
    %v1830 = vand.u32 %v1829, 127
    %v1831 = vxor.u32 %v1830, 64
    %1832 = vset.pattern.permute.xlu0 %v1831
    %v1833 = vlaneseq
    %v1834 = vand.u32 %v1833, 127
    %v1835 = vand.u32 %v1834, 64
    %vm1836 = vcmp.eq.s32.totalorder 0, %v1835
    %v1837 = vlaneseq
    %vm1839 = vcmp.lt.s32.totalorder %v1837, 768
    %v1840 = vsel %vm1839, 1, 0
    %v1841 = vlaneseq
    %v1842 = vxor.u32 %v1841, 64
    %vm1844 = vcmp.lt.s32.totalorder %v1842, 768
    %v1845 = vsel %vm1844, 1, 0
    %vm1846 = vcmp.eq.s32.totalorder %v1840, %v1845
    %v1847 = vld [vmem:[#allocation1] sm:$0xff]
    %1848 = vperm.xlu0 %1832, %v1847
    %v1849 = vpop.permute.xlu0 %1848
    %v1850 = vld [vmem:[#allocation3] sm:$0xff]
    %1851 = vperm.xlu0 %1832, %v1850
    %v1852 = vpop.permute.xlu0 %1851
    %1853 = xla_tuple %v1849, %v1847
    %1854 = xla_tuple %1853
    %vm1855 = vcmp.gt.f32.partialorder %v1849, %v1847
    %v1856 = vsel %vm1855, 1, 0
    %1857 = xla_tuple %v1856
    %1858 = xla_tuple %v1847, %v1849
    %1859 = xla_tuple %1858
    %vm1860 = vcmp.gt.f32.partialorder %v1847, %v1849
    %v1861 = vsel %vm1860, 1, 0
    %1862 = xla_tuple %v1861
    %v1863 = vsel %vm1846, %v1856, 0
    %vm1864 = vcmp.ne.s32.totalorder %v1863, 0
    %v1865 = vsel %vm1846, %v1861, 1
    %vm1866 = vcmp.ne.s32.totalorder %v1865, 0
    %v1867 = vsel %vm1864, %v1849, %v1847
    %v1868 = vsel %vm1866, %v1849, %v1847
    %v1869 = vsel %vm1836, %v1867, %v1868
    %1870 = vst [vmem:[#allocation1] sm:$0xff] %v1869
    %v1871 = vsel %vm1864, %v1852, %v1850
    %v1872 = vsel %vm1866, %v1852, %v1850
    %v1873 = vsel %vm1836, %v1871, %v1872
    %1874 = vst [vmem:[#allocation3] sm:$0xff] %v1873
    %v1875 = vlaneseq
    %v1876 = vand.u32 %v1875, 127
    %v1877 = vxor.u32 %v1876, 32
    %1878 = vset.pattern.permute.xlu0 %v1877
    %v1879 = vlaneseq
    %v1880 = vand.u32 %v1879, 127
    %v1881 = vand.u32 %v1880, 32
    %vm1882 = vcmp.eq.s32.totalorder 0, %v1881
    %v1883 = vlaneseq
    %vm1885 = vcmp.lt.s32.totalorder %v1883, 768
    %v1886 = vsel %vm1885, 1, 0
    %v1887 = vlaneseq
    %v1888 = vxor.u32 %v1887, 32
    %vm1890 = vcmp.lt.s32.totalorder %v1888, 768
    %v1891 = vsel %vm1890, 1, 0
    %vm1892 = vcmp.eq.s32.totalorder %v1886, %v1891
    %v1893 = vld [vmem:[#allocation1] sm:$0xff]
    %1894 = vperm.xlu0 %1878, %v1893
    %v1895 = vpop.permute.xlu0 %1894
    %v1896 = vld [vmem:[#allocation3] sm:$0xff]
    %1897 = vperm.xlu0 %1878, %v1896
    %v1898 = vpop.permute.xlu0 %1897
    %1899 = xla_tuple %v1895, %v1893
    %1900 = xla_tuple %1899
    %vm1901 = vcmp.gt.f32.partialorder %v1895, %v1893
    %v1902 = vsel %vm1901, 1, 0
    %1903 = xla_tuple %v1902
    %1904 = xla_tuple %v1893, %v1895
    %1905 = xla_tuple %1904
    %vm1906 = vcmp.gt.f32.partialorder %v1893, %v1895
    %v1907 = vsel %vm1906, 1, 0
    %1908 = xla_tuple %v1907
    %v1909 = vsel %vm1892, %v1902, 0
    %vm1910 = vcmp.ne.s32.totalorder %v1909, 0
    %v1911 = vsel %vm1892, %v1907, 1
    %vm1912 = vcmp.ne.s32.totalorder %v1911, 0
    %v1913 = vsel %vm1910, %v1895, %v1893
    %v1914 = vsel %vm1912, %v1895, %v1893
    %v1915 = vsel %vm1882, %v1913, %v1914
    %1916 = vst [vmem:[#allocation1] sm:$0xff] %v1915
    %v1917 = vsel %vm1910, %v1898, %v1896
    %v1918 = vsel %vm1912, %v1898, %v1896
    %v1919 = vsel %vm1882, %v1917, %v1918
    %1920 = vst [vmem:[#allocation3] sm:$0xff] %v1919
    %v1921 = vlaneseq
    %v1922 = vand.u32 %v1921, 127
    %v1923 = vxor.u32 %v1922, 16
    %1924 = vset.pattern.permute.xlu0 %v1923
    %v1925 = vlaneseq
    %v1926 = vand.u32 %v1925, 127
    %v1927 = vand.u32 %v1926, 16
    %vm1928 = vcmp.eq.s32.totalorder 0, %v1927
    %v1929 = vlaneseq
    %vm1931 = vcmp.lt.s32.totalorder %v1929, 768
    %v1932 = vsel %vm1931, 1, 0
    %v1933 = vlaneseq
    %v1934 = vxor.u32 %v1933, 16
    %vm1936 = vcmp.lt.s32.totalorder %v1934, 768
    %v1937 = vsel %vm1936, 1, 0
    %vm1938 = vcmp.eq.s32.totalorder %v1932, %v1937
    %v1939 = vld [vmem:[#allocation1] sm:$0xff]
    %1940 = vperm.xlu0 %1924, %v1939
    %v1941 = vpop.permute.xlu0 %1940
    %v1942 = vld [vmem:[#allocation3] sm:$0xff]
    %1943 = vperm.xlu0 %1924, %v1942
    %v1944 = vpop.permute.xlu0 %1943
    %1945 = xla_tuple %v1941, %v1939
    %1946 = xla_tuple %1945
    %vm1947 = vcmp.gt.f32.partialorder %v1941, %v1939
    %v1948 = vsel %vm1947, 1, 0
    %1949 = xla_tuple %v1948
    %1950 = xla_tuple %v1939, %v1941
    %1951 = xla_tuple %1950
    %vm1952 = vcmp.gt.f32.partialorder %v1939, %v1941
    %v1953 = vsel %vm1952, 1, 0
    %1954 = xla_tuple %v1953
    %v1955 = vsel %vm1938, %v1948, 0
    %vm1956 = vcmp.ne.s32.totalorder %v1955, 0
    %v1957 = vsel %vm1938, %v1953, 1
    %vm1958 = vcmp.ne.s32.totalorder %v1957, 0
    %v1959 = vsel %vm1956, %v1941, %v1939
    %v1960 = vsel %vm1958, %v1941, %v1939
    %v1961 = vsel %vm1928, %v1959, %v1960
    %1962 = vst [vmem:[#allocation1] sm:$0xff] %v1961
    %v1963 = vsel %vm1956, %v1944, %v1942
    %v1964 = vsel %vm1958, %v1944, %v1942
    %v1965 = vsel %vm1928, %v1963, %v1964
    %1966 = vst [vmem:[#allocation3] sm:$0xff] %v1965
    %v1967 = vlaneseq
    %v1968 = vand.u32 %v1967, 127
    %v1969 = vxor.u32 %v1968, 8
    %1970 = vset.pattern.permute.xlu0 %v1969
    %v1971 = vlaneseq
    %v1972 = vand.u32 %v1971, 127
    %v1973 = vand.u32 %v1972, 8
    %vm1974 = vcmp.eq.s32.totalorder 0, %v1973
    %v1975 = vlaneseq
    %vm1977 = vcmp.lt.s32.totalorder %v1975, 768
    %v1978 = vsel %vm1977, 1, 0
    %v1979 = vlaneseq
    %v1980 = vxor.u32 %v1979, 8
    %vm1982 = vcmp.lt.s32.totalorder %v1980, 768
    %v1983 = vsel %vm1982, 1, 0
    %vm1984 = vcmp.eq.s32.totalorder %v1978, %v1983
    %v1985 = vld [vmem:[#allocation1] sm:$0xff]
    %1986 = vperm.xlu0 %1970, %v1985
    %v1987 = vpop.permute.xlu0 %1986
    %v1988 = vld [vmem:[#allocation3] sm:$0xff]
    %1989 = vperm.xlu0 %1970, %v1988
    %v1990 = vpop.permute.xlu0 %1989
    %1991 = xla_tuple %v1987, %v1985
    %1992 = xla_tuple %1991
    %vm1993 = vcmp.gt.f32.partialorder %v1987, %v1985
    %v1994 = vsel %vm1993, 1, 0
    %1995 = xla_tuple %v1994
    %1996 = xla_tuple %v1985, %v1987
    %1997 = xla_tuple %1996
    %vm1998 = vcmp.gt.f32.partialorder %v1985, %v1987
    %v1999 = vsel %vm1998, 1, 0
    %2000 = xla_tuple %v1999
    %v2001 = vsel %vm1984, %v1994, 0
    %vm2002 = vcmp.ne.s32.totalorder %v2001, 0
    %v2003 = vsel %vm1984, %v1999, 1
    %vm2004 = vcmp.ne.s32.totalorder %v2003, 0
    %v2005 = vsel %vm2002, %v1987, %v1985
    %v2006 = vsel %vm2004, %v1987, %v1985
    %v2007 = vsel %vm1974, %v2005, %v2006
    %2008 = vst [vmem:[#allocation1] sm:$0xff] %v2007
    %v2009 = vsel %vm2002, %v1990, %v1988
    %v2010 = vsel %vm2004, %v1990, %v1988
    %v2011 = vsel %vm1974, %v2009, %v2010
    %2012 = vst [vmem:[#allocation3] sm:$0xff] %v2011
    %v2013 = vlaneseq
    %v2014 = vand.u32 %v2013, 127
    %v2015 = vxor.u32 %v2014, 4
    %2016 = vset.pattern.permute.xlu0 %v2015
    %v2017 = vlaneseq
    %v2018 = vand.u32 %v2017, 127
    %v2019 = vand.u32 %v2018, 4
    %vm2020 = vcmp.eq.s32.totalorder 0, %v2019
    %v2021 = vlaneseq
    %vm2023 = vcmp.lt.s32.totalorder %v2021, 768
    %v2024 = vsel %vm2023, 1, 0
    %v2025 = vlaneseq
    %v2026 = vxor.u32 %v2025, 4
    %vm2028 = vcmp.lt.s32.totalorder %v2026, 768
    %v2029 = vsel %vm2028, 1, 0
    %vm2030 = vcmp.eq.s32.totalorder %v2024, %v2029
    %v2031 = vld [vmem:[#allocation1] sm:$0xff]
    %2032 = vperm.xlu0 %2016, %v2031
    %v2033 = vpop.permute.xlu0 %2032
    %v2034 = vld [vmem:[#allocation3] sm:$0xff]
    %2035 = vperm.xlu0 %2016, %v2034
    %v2036 = vpop.permute.xlu0 %2035
    %2037 = xla_tuple %v2033, %v2031
    %2038 = xla_tuple %2037
    %vm2039 = vcmp.gt.f32.partialorder %v2033, %v2031
    %v2040 = vsel %vm2039, 1, 0
    %2041 = xla_tuple %v2040
    %2042 = xla_tuple %v2031, %v2033
    %2043 = xla_tuple %2042
    %vm2044 = vcmp.gt.f32.partialorder %v2031, %v2033
    %v2045 = vsel %vm2044, 1, 0
    %2046 = xla_tuple %v2045
    %v2047 = vsel %vm2030, %v2040, 0
    %vm2048 = vcmp.ne.s32.totalorder %v2047, 0
    %v2049 = vsel %vm2030, %v2045, 1
    %vm2050 = vcmp.ne.s32.totalorder %v2049, 0
    %v2051 = vsel %vm2048, %v2033, %v2031
    %v2052 = vsel %vm2050, %v2033, %v2031
    %v2053 = vsel %vm2020, %v2051, %v2052
    %2054 = vst [vmem:[#allocation1] sm:$0xff] %v2053
    %v2055 = vsel %vm2048, %v2036, %v2034
    %v2056 = vsel %vm2050, %v2036, %v2034
    %v2057 = vsel %vm2020, %v2055, %v2056
    %2058 = vst [vmem:[#allocation3] sm:$0xff] %v2057
    %v2059 = vlaneseq
    %v2060 = vand.u32 %v2059, 127
    %v2061 = vxor.u32 %v2060, 2
    %2062 = vset.pattern.permute.xlu0 %v2061
    %v2063 = vlaneseq
    %v2064 = vand.u32 %v2063, 127
    %v2065 = vand.u32 %v2064, 2
    %vm2066 = vcmp.eq.s32.totalorder 0, %v2065
    %v2067 = vlaneseq
    %vm2069 = vcmp.lt.s32.totalorder %v2067, 768
    %v2070 = vsel %vm2069, 1, 0
    %v2071 = vlaneseq
    %v2072 = vxor.u32 %v2071, 2
    %vm2074 = vcmp.lt.s32.totalorder %v2072, 768
    %v2075 = vsel %vm2074, 1, 0
    %vm2076 = vcmp.eq.s32.totalorder %v2070, %v2075
    %v2077 = vld [vmem:[#allocation1] sm:$0xff]
    %2078 = vperm.xlu0 %2062, %v2077
    %v2079 = vpop.permute.xlu0 %2078
    %v2080 = vld [vmem:[#allocation3] sm:$0xff]
    %2081 = vperm.xlu0 %2062, %v2080
    %v2082 = vpop.permute.xlu0 %2081
    %2083 = xla_tuple %v2079, %v2077
    %2084 = xla_tuple %2083
    %vm2085 = vcmp.gt.f32.partialorder %v2079, %v2077
    %v2086 = vsel %vm2085, 1, 0
    %2087 = xla_tuple %v2086
    %2088 = xla_tuple %v2077, %v2079
    %2089 = xla_tuple %2088
    %vm2090 = vcmp.gt.f32.partialorder %v2077, %v2079
    %v2091 = vsel %vm2090, 1, 0
    %2092 = xla_tuple %v2091
    %v2093 = vsel %vm2076, %v2086, 0
    %vm2094 = vcmp.ne.s32.totalorder %v2093, 0
    %v2095 = vsel %vm2076, %v2091, 1
    %vm2096 = vcmp.ne.s32.totalorder %v2095, 0
    %v2097 = vsel %vm2094, %v2079, %v2077
    %v2098 = vsel %vm2096, %v2079, %v2077
    %v2099 = vsel %vm2066, %v2097, %v2098
    %2100 = vst [vmem:[#allocation1] sm:$0xff] %v2099
    %v2101 = vsel %vm2094, %v2082, %v2080
    %v2102 = vsel %vm2096, %v2082, %v2080
    %v2103 = vsel %vm2066, %v2101, %v2102
    %2104 = vst [vmem:[#allocation3] sm:$0xff] %v2103
    %v2105 = vlaneseq
    %v2106 = vand.u32 %v2105, 127
    %v2107 = vxor.u32 %v2106, 1
    %2108 = vset.pattern.permute.xlu0 %v2107
    %v2109 = vlaneseq
    %v2110 = vand.u32 %v2109, 127
    %v2111 = vand.u32 %v2110, 1
    %vm2112 = vcmp.eq.s32.totalorder 0, %v2111
    %v2113 = vlaneseq
    %vm2115 = vcmp.lt.s32.totalorder %v2113, 768
    %v2116 = vsel %vm2115, 1, 0
    %v2117 = vlaneseq
    %v2118 = vxor.u32 %v2117, 1
    %vm2120 = vcmp.lt.s32.totalorder %v2118, 768
    %v2121 = vsel %vm2120, 1, 0
    %vm2122 = vcmp.eq.s32.totalorder %v2116, %v2121
    %v2123 = vld [vmem:[#allocation1] sm:$0xff]
    %2124 = vperm.xlu0 %2108, %v2123
    %v2125 = vpop.permute.xlu0 %2124
    %v2126 = vld [vmem:[#allocation3] sm:$0xff]
    %2127 = vperm.xlu0 %2108, %v2126
    %v2128 = vpop.permute.xlu0 %2127
    %2129 = xla_tuple %v2125, %v2123
    %2130 = xla_tuple %2129
    %vm2131 = vcmp.gt.f32.partialorder %v2125, %v2123
    %v2132 = vsel %vm2131, 1, 0
    %2133 = xla_tuple %v2132
    %2134 = xla_tuple %v2123, %v2125
    %2135 = xla_tuple %2134
    %vm2136 = vcmp.gt.f32.partialorder %v2123, %v2125
    %v2137 = vsel %vm2136, 1, 0
    %2138 = xla_tuple %v2137
    %v2139 = vsel %vm2122, %v2132, 0
    %vm2140 = vcmp.ne.s32.totalorder %v2139, 0
    %v2141 = vsel %vm2122, %v2137, 1
    %vm2142 = vcmp.ne.s32.totalorder %v2141, 0
    %v2143 = vsel %vm2140, %v2125, %v2123
    %v2144 = vsel %vm2142, %v2125, %v2123
    %v2145 = vsel %vm2112, %v2143, %v2144
    %2146 = vst [vmem:[#allocation1] sm:$0xff] %v2145
    %v2147 = vsel %vm2140, %v2128, %v2126
    %v2148 = vsel %vm2142, %v2128, %v2126
    %v2149 = vsel %vm2112, %v2147, %v2148
    %2150 = vst [vmem:[#allocation3] sm:$0xff] %v2149
    %v2151 = vlaneseq
    %v2152 = vshrl.u32 %v2151, 7
    %v2153 = vand.u32 %v2152, 4
    %vm2154 = vcmp.eq.s32.totalorder 0, %v2153
    %v2155 = vlaneseq
    %vm2157 = vcmp.lt.s32.totalorder %v2155, 768
    %v2158 = vsel %vm2157, 1, 0
    %v2159 = vlaneseq
    %v2160 = vxor.u32 %v2159, 1023
    %vm2162 = vcmp.lt.s32.totalorder %v2160, 768
    %v2163 = vsel %vm2162, 1, 0
    %vm2164 = vcmp.eq.s32.totalorder %v2158, %v2163
    %v2165 = vld [vmem:[#allocation1] sm:$0xff]
    %v2166 = vld.sshfl [vmem:[#allocation1] sm:$0xff pattern:$0x1234567]
    %v2167 = vlaneseq
    %v2168 = vand.u32 %v2167, 127
    %v2169 = vsub.s32 %v2168, 127
    %v2170 = vsub.s32 0, %v2169
    %2171 = vset.pattern.permute.xlu0 %v2170
    %2172 = vperm.xlu0 %2171, %v2166
    %v2173 = vpop.permute.xlu0 %2172
    %v2174 = vld [vmem:[#allocation3] sm:$0xff]
    %v2175 = vld.sshfl [vmem:[#allocation3] sm:$0xff pattern:$0x1234567]
    %v2176 = vlaneseq
    %v2177 = vand.u32 %v2176, 127
    %v2178 = vsub.s32 %v2177, 127
    %v2179 = vsub.s32 0, %v2178
    %2180 = vset.pattern.permute.xlu0 %v2179
    %2181 = vperm.xlu0 %2180, %v2175
    %v2182 = vpop.permute.xlu0 %2181
    %2183 = xla_tuple %v2173, %v2165
    %2184 = xla_tuple %2183
    %vm2185 = vcmp.gt.f32.partialorder %v2173, %v2165
    %v2186 = vsel %vm2185, 1, 0
    %2187 = xla_tuple %v2186
    %2188 = xla_tuple %v2165, %v2173
    %2189 = xla_tuple %2188
    %vm2190 = vcmp.gt.f32.partialorder %v2165, %v2173
    %v2191 = vsel %vm2190, 1, 0
    %2192 = xla_tuple %v2191
    %v2193 = vsel %vm2164, %v2186, 0
    %vm2194 = vcmp.ne.s32.totalorder %v2193, 0
    %v2195 = vsel %vm2164, %v2191, 1
    %vm2196 = vcmp.ne.s32.totalorder %v2195, 0
    %v2197 = vsel %vm2194, %v2173, %v2165
    %v2198 = vsel %vm2196, %v2173, %v2165
    %v2199 = vsel %vm2154, %v2197, %v2198
    %2200 = vst [vmem:[#allocation1] sm:$0xff] %v2199
    %v2201 = vsel %vm2194, %v2182, %v2174
    %v2202 = vsel %vm2196, %v2182, %v2174
    %v2203 = vsel %vm2154, %v2201, %v2202
    %2204 = vst [vmem:[#allocation3] sm:$0xff] %v2203
    %v2205 = vlaneseq
    %v2206 = vshrl.u32 %v2205, 7
    %v2207 = vand.u32 %v2206, 2
    %vm2208 = vcmp.eq.s32.totalorder 0, %v2207
    %v2209 = vlaneseq
    %vm2211 = vcmp.lt.s32.totalorder %v2209, 768
    %v2212 = vsel %vm2211, 1, 0
    %v2213 = vlaneseq
    %v2214 = vxor.u32 %v2213, 256
    %vm2216 = vcmp.lt.s32.totalorder %v2214, 768
    %v2217 = vsel %vm2216, 1, 0
    %vm2218 = vcmp.eq.s32.totalorder %v2212, %v2217
    %v2219 = vld [vmem:[#allocation1] sm:$0xff]
    %v2220 = vld.sshfl [vmem:[#allocation1] sm:$0xff pattern:$0x54761032]
    %v2221 = vld [vmem:[#allocation3] sm:$0xff]
    %v2222 = vld.sshfl [vmem:[#allocation3] sm:$0xff pattern:$0x54761032]
    %2223 = xla_tuple %v2220, %v2219
    %2224 = xla_tuple %2223
    %vm2225 = vcmp.gt.f32.partialorder %v2220, %v2219
    %v2226 = vsel %vm2225, 1, 0
    %2227 = xla_tuple %v2226
    %2228 = xla_tuple %v2219, %v2220
    %2229 = xla_tuple %2228
    %vm2230 = vcmp.gt.f32.partialorder %v2219, %v2220
    %v2231 = vsel %vm2230, 1, 0
    %2232 = xla_tuple %v2231
    %v2233 = vsel %vm2218, %v2226, 0
    %vm2234 = vcmp.ne.s32.totalorder %v2233, 0
    %v2235 = vsel %vm2218, %v2231, 1
    %vm2236 = vcmp.ne.s32.totalorder %v2235, 0
    %v2237 = vsel %vm2234, %v2220, %v2219
    %v2238 = vsel %vm2236, %v2220, %v2219
    %v2239 = vsel %vm2208, %v2237, %v2238
    %2240 = vst [vmem:[#allocation1] sm:$0xff] %v2239
    %v2241 = vsel %vm2234, %v2222, %v2221
    %v2242 = vsel %vm2236, %v2222, %v2221
    %v2243 = vsel %vm2208, %v2241, %v2242
    %2244 = vst [vmem:[#allocation3] sm:$0xff] %v2243
    %v2245 = vlaneseq
    %v2246 = vshrl.u32 %v2245, 7
    %v2247 = vand.u32 %v2246, 1
    %vm2248 = vcmp.eq.s32.totalorder 0, %v2247
    %v2249 = vlaneseq
    %vm2251 = vcmp.lt.s32.totalorder %v2249, 768
    %v2252 = vsel %vm2251, 1, 0
    %v2253 = vlaneseq
    %v2254 = vxor.u32 %v2253, 128
    %vm2256 = vcmp.lt.s32.totalorder %v2254, 768
    %v2257 = vsel %vm2256, 1, 0
    %vm2258 = vcmp.eq.s32.totalorder %v2252, %v2257
    %v2259 = vld [vmem:[#allocation1] sm:$0xff]
    %v2260 = vld.sshfl [vmem:[#allocation1] sm:$0xff pattern:$0x67452301]
    %v2261 = vld [vmem:[#allocation3] sm:$0xff]
    %v2262 = vld.sshfl [vmem:[#allocation3] sm:$0xff pattern:$0x67452301]
    %2263 = xla_tuple %v2260, %v2259
    %2264 = xla_tuple %2263
    %vm2265 = vcmp.gt.f32.partialorder %v2260, %v2259
    %v2266 = vsel %vm2265, 1, 0
    %2267 = xla_tuple %v2266
    %2268 = xla_tuple %v2259, %v2260
    %2269 = xla_tuple %2268
    %vm2270 = vcmp.gt.f32.partialorder %v2259, %v2260
    %v2271 = vsel %vm2270, 1, 0
    %2272 = xla_tuple %v2271
    %v2273 = vsel %vm2258, %v2266, 0
    %vm2274 = vcmp.ne.s32.totalorder %v2273, 0
    %v2275 = vsel %vm2258, %v2271, 1
    %vm2276 = vcmp.ne.s32.totalorder %v2275, 0
    %v2277 = vsel %vm2274, %v2260, %v2259
    %v2278 = vsel %vm2276, %v2260, %v2259
    %v2279 = vsel %vm2248, %v2277, %v2278
    %2280 = vst [vmem:[#allocation1] sm:$0xff] %v2279
    %v2281 = vsel %vm2274, %v2262, %v2261
    %v2282 = vsel %vm2276, %v2262, %v2261
    %v2283 = vsel %vm2248, %v2281, %v2282
    %2284 = vst [vmem:[#allocation3] sm:$0xff] %v2283
    %v2285 = vlaneseq
    %v2286 = vand.u32 %v2285, 127
    %v2287 = vxor.u32 %v2286, 64
    %2288 = vset.pattern.permute.xlu0 %v2287
    %v2289 = vlaneseq
    %v2290 = vand.u32 %v2289, 127
    %v2291 = vand.u32 %v2290, 64
    %vm2292 = vcmp.eq.s32.totalorder 0, %v2291
    %v2293 = vlaneseq
    %vm2295 = vcmp.lt.s32.totalorder %v2293, 768
    %v2296 = vsel %vm2295, 1, 0
    %v2297 = vlaneseq
    %v2298 = vxor.u32 %v2297, 64
    %vm2300 = vcmp.lt.s32.totalorder %v2298, 768
    %v2301 = vsel %vm2300, 1, 0
    %vm2302 = vcmp.eq.s32.totalorder %v2296, %v2301
    %v2303 = vld [vmem:[#allocation1] sm:$0xff]
    %2304 = vperm.xlu0 %2288, %v2303
    %v2305 = vpop.permute.xlu0 %2304
    %v2306 = vld [vmem:[#allocation3] sm:$0xff]
    %2307 = vperm.xlu0 %2288, %v2306
    %v2308 = vpop.permute.xlu0 %2307
    %2309 = xla_tuple %v2305, %v2303
    %2310 = xla_tuple %2309
    %vm2311 = vcmp.gt.f32.partialorder %v2305, %v2303
    %v2312 = vsel %vm2311, 1, 0
    %2313 = xla_tuple %v2312
    %2314 = xla_tuple %v2303, %v2305
    %2315 = xla_tuple %2314
    %vm2316 = vcmp.gt.f32.partialorder %v2303, %v2305
    %v2317 = vsel %vm2316, 1, 0
    %2318 = xla_tuple %v2317
    %v2319 = vsel %vm2302, %v2312, 0
    %vm2320 = vcmp.ne.s32.totalorder %v2319, 0
    %v2321 = vsel %vm2302, %v2317, 1
    %vm2322 = vcmp.ne.s32.totalorder %v2321, 0
    %v2323 = vsel %vm2320, %v2305, %v2303
    %v2324 = vsel %vm2322, %v2305, %v2303
    %v2325 = vsel %vm2292, %v2323, %v2324
    %2326 = vst [vmem:[#allocation1] sm:$0xff] %v2325
    %v2327 = vsel %vm2320, %v2308, %v2306
    %v2328 = vsel %vm2322, %v2308, %v2306
    %v2329 = vsel %vm2292, %v2327, %v2328
    %2330 = vst [vmem:[#allocation3] sm:$0xff] %v2329
    %v2331 = vlaneseq
    %v2332 = vand.u32 %v2331, 127
    %v2333 = vxor.u32 %v2332, 32
    %2334 = vset.pattern.permute.xlu0 %v2333
    %v2335 = vlaneseq
    %v2336 = vand.u32 %v2335, 127
    %v2337 = vand.u32 %v2336, 32
    %vm2338 = vcmp.eq.s32.totalorder 0, %v2337
    %v2339 = vlaneseq
    %vm2341 = vcmp.lt.s32.totalorder %v2339, 768
    %v2342 = vsel %vm2341, 1, 0
    %v2343 = vlaneseq
    %v2344 = vxor.u32 %v2343, 32
    %vm2346 = vcmp.lt.s32.totalorder %v2344, 768
    %v2347 = vsel %vm2346, 1, 0
    %vm2348 = vcmp.eq.s32.totalorder %v2342, %v2347
    %v2349 = vld [vmem:[#allocation1] sm:$0xff]
    %2350 = vperm.xlu0 %2334, %v2349
    %v2351 = vpop.permute.xlu0 %2350
    %v2352 = vld [vmem:[#allocation3] sm:$0xff]
    %2353 = vperm.xlu0 %2334, %v2352
    %v2354 = vpop.permute.xlu0 %2353
    %2355 = xla_tuple %v2351, %v2349
    %2356 = xla_tuple %2355
    %vm2357 = vcmp.gt.f32.partialorder %v2351, %v2349
    %v2358 = vsel %vm2357, 1, 0
    %2359 = xla_tuple %v2358
    %2360 = xla_tuple %v2349, %v2351
    %2361 = xla_tuple %2360
    %vm2362 = vcmp.gt.f32.partialorder %v2349, %v2351
    %v2363 = vsel %vm2362, 1, 0
    %2364 = xla_tuple %v2363
    %v2365 = vsel %vm2348, %v2358, 0
    %vm2366 = vcmp.ne.s32.totalorder %v2365, 0
    %v2367 = vsel %vm2348, %v2363, 1
    %vm2368 = vcmp.ne.s32.totalorder %v2367, 0
    %v2369 = vsel %vm2366, %v2351, %v2349
    %v2370 = vsel %vm2368, %v2351, %v2349
    %v2371 = vsel %vm2338, %v2369, %v2370
    %2372 = vst [vmem:[#allocation1] sm:$0xff] %v2371
    %v2373 = vsel %vm2366, %v2354, %v2352
    %v2374 = vsel %vm2368, %v2354, %v2352
    %v2375 = vsel %vm2338, %v2373, %v2374
    %2376 = vst [vmem:[#allocation3] sm:$0xff] %v2375
    %v2377 = vlaneseq
    %v2378 = vand.u32 %v2377, 127
    %v2379 = vxor.u32 %v2378, 16
    %2380 = vset.pattern.permute.xlu0 %v2379
    %v2381 = vlaneseq
    %v2382 = vand.u32 %v2381, 127
    %v2383 = vand.u32 %v2382, 16
    %vm2384 = vcmp.eq.s32.totalorder 0, %v2383
    %v2385 = vlaneseq
    %vm2387 = vcmp.lt.s32.totalorder %v2385, 768
    %v2388 = vsel %vm2387, 1, 0
    %v2389 = vlaneseq
    %v2390 = vxor.u32 %v2389, 16
    %vm2392 = vcmp.lt.s32.totalorder %v2390, 768
    %v2393 = vsel %vm2392, 1, 0
    %vm2394 = vcmp.eq.s32.totalorder %v2388, %v2393
    %v2395 = vld [vmem:[#allocation1] sm:$0xff]
    %2396 = vperm.xlu0 %2380, %v2395
    %v2397 = vpop.permute.xlu0 %2396
    %v2398 = vld [vmem:[#allocation3] sm:$0xff]
    %2399 = vperm.xlu0 %2380, %v2398
    %v2400 = vpop.permute.xlu0 %2399
    %2401 = xla_tuple %v2397, %v2395
    %2402 = xla_tuple %2401
    %vm2403 = vcmp.gt.f32.partialorder %v2397, %v2395
    %v2404 = vsel %vm2403, 1, 0
    %2405 = xla_tuple %v2404
    %2406 = xla_tuple %v2395, %v2397
    %2407 = xla_tuple %2406
    %vm2408 = vcmp.gt.f32.partialorder %v2395, %v2397
    %v2409 = vsel %vm2408, 1, 0
    %2410 = xla_tuple %v2409
    %v2411 = vsel %vm2394, %v2404, 0
    %vm2412 = vcmp.ne.s32.totalorder %v2411, 0
    %v2413 = vsel %vm2394, %v2409, 1
    %vm2414 = vcmp.ne.s32.totalorder %v2413, 0
    %v2415 = vsel %vm2412, %v2397, %v2395
    %v2416 = vsel %vm2414, %v2397, %v2395
    %v2417 = vsel %vm2384, %v2415, %v2416
    %2418 = vst [vmem:[#allocation1] sm:$0xff] %v2417
    %v2419 = vsel %vm2412, %v2400, %v2398
    %v2420 = vsel %vm2414, %v2400, %v2398
    %v2421 = vsel %vm2384, %v2419, %v2420
    %2422 = vst [vmem:[#allocation3] sm:$0xff] %v2421
    %v2423 = vlaneseq
    %v2424 = vand.u32 %v2423, 127
    %v2425 = vxor.u32 %v2424, 8
    %2426 = vset.pattern.permute.xlu0 %v2425
    %v2427 = vlaneseq
    %v2428 = vand.u32 %v2427, 127
    %v2429 = vand.u32 %v2428, 8
    %vm2430 = vcmp.eq.s32.totalorder 0, %v2429
    %v2431 = vlaneseq
    %vm2433 = vcmp.lt.s32.totalorder %v2431, 768
    %v2434 = vsel %vm2433, 1, 0
    %v2435 = vlaneseq
    %v2436 = vxor.u32 %v2435, 8
    %vm2438 = vcmp.lt.s32.totalorder %v2436, 768
    %v2439 = vsel %vm2438, 1, 0
    %vm2440 = vcmp.eq.s32.totalorder %v2434, %v2439
    %v2441 = vld [vmem:[#allocation1] sm:$0xff]
    %2442 = vperm.xlu0 %2426, %v2441
    %v2443 = vpop.permute.xlu0 %2442
    %v2444 = vld [vmem:[#allocation3] sm:$0xff]
    %2445 = vperm.xlu0 %2426, %v2444
    %v2446 = vpop.permute.xlu0 %2445
    %2447 = xla_tuple %v2443, %v2441
    %2448 = xla_tuple %2447
    %vm2449 = vcmp.gt.f32.partialorder %v2443, %v2441
    %v2450 = vsel %vm2449, 1, 0
    %2451 = xla_tuple %v2450
    %2452 = xla_tuple %v2441, %v2443
    %2453 = xla_tuple %2452
    %vm2454 = vcmp.gt.f32.partialorder %v2441, %v2443
    %v2455 = vsel %vm2454, 1, 0
    %2456 = xla_tuple %v2455
    %v2457 = vsel %vm2440, %v2450, 0
    %vm2458 = vcmp.ne.s32.totalorder %v2457, 0
    %v2459 = vsel %vm2440, %v2455, 1
    %vm2460 = vcmp.ne.s32.totalorder %v2459, 0
    %v2461 = vsel %vm2458, %v2443, %v2441
    %v2462 = vsel %vm2460, %v2443, %v2441
    %v2463 = vsel %vm2430, %v2461, %v2462
    %2464 = vst [vmem:[#allocation1] sm:$0xff] %v2463
    %v2465 = vsel %vm2458, %v2446, %v2444
    %v2466 = vsel %vm2460, %v2446, %v2444
    %v2467 = vsel %vm2430, %v2465, %v2466
    %2468 = vst [vmem:[#allocation3] sm:$0xff] %v2467
    %v2469 = vlaneseq
    %v2470 = vand.u32 %v2469, 127
    %v2471 = vxor.u32 %v2470, 4
    %2472 = vset.pattern.permute.xlu0 %v2471
    %v2473 = vlaneseq
    %v2474 = vand.u32 %v2473, 127
    %v2475 = vand.u32 %v2474, 4
    %vm2476 = vcmp.eq.s32.totalorder 0, %v2475
    %v2477 = vlaneseq
    %vm2479 = vcmp.lt.s32.totalorder %v2477, 768
    %v2480 = vsel %vm2479, 1, 0
    %v2481 = vlaneseq
    %v2482 = vxor.u32 %v2481, 4
    %vm2484 = vcmp.lt.s32.totalorder %v2482, 768
    %v2485 = vsel %vm2484, 1, 0
    %vm2486 = vcmp.eq.s32.totalorder %v2480, %v2485
    %v2487 = vld [vmem:[#allocation1] sm:$0xff]
    %2488 = vperm.xlu0 %2472, %v2487
    %v2489 = vpop.permute.xlu0 %2488
    %v2490 = vld [vmem:[#allocation3] sm:$0xff]
    %2491 = vperm.xlu0 %2472, %v2490
    %v2492 = vpop.permute.xlu0 %2491
    %2493 = xla_tuple %v2489, %v2487
    %2494 = xla_tuple %2493
    %vm2495 = vcmp.gt.f32.partialorder %v2489, %v2487
    %v2496 = vsel %vm2495, 1, 0
    %2497 = xla_tuple %v2496
    %2498 = xla_tuple %v2487, %v2489
    %2499 = xla_tuple %2498
    %vm2500 = vcmp.gt.f32.partialorder %v2487, %v2489
    %v2501 = vsel %vm2500, 1, 0
    %2502 = xla_tuple %v2501
    %v2503 = vsel %vm2486, %v2496, 0
    %vm2504 = vcmp.ne.s32.totalorder %v2503, 0
    %v2505 = vsel %vm2486, %v2501, 1
    %vm2506 = vcmp.ne.s32.totalorder %v2505, 0
    %v2507 = vsel %vm2504, %v2489, %v2487
    %v2508 = vsel %vm2506, %v2489, %v2487
    %v2509 = vsel %vm2476, %v2507, %v2508
    %2510 = vst [vmem:[#allocation1] sm:$0xff] %v2509
    %v2511 = vsel %vm2504, %v2492, %v2490
    %v2512 = vsel %vm2506, %v2492, %v2490
    %v2513 = vsel %vm2476, %v2511, %v2512
    %2514 = vst [vmem:[#allocation3] sm:$0xff] %v2513
    %v2515 = vlaneseq
    %v2516 = vand.u32 %v2515, 127
    %v2517 = vxor.u32 %v2516, 2
    %2518 = vset.pattern.permute.xlu0 %v2517
    %v2519 = vlaneseq
    %v2520 = vand.u32 %v2519, 127
    %v2521 = vand.u32 %v2520, 2
    %vm2522 = vcmp.eq.s32.totalorder 0, %v2521
    %v2523 = vlaneseq
    %vm2525 = vcmp.lt.s32.totalorder %v2523, 768
    %v2526 = vsel %vm2525, 1, 0
    %v2527 = vlaneseq
    %v2528 = vxor.u32 %v2527, 2
    %vm2530 = vcmp.lt.s32.totalorder %v2528, 768
    %v2531 = vsel %vm2530, 1, 0
    %vm2532 = vcmp.eq.s32.totalorder %v2526, %v2531
    %v2533 = vld [vmem:[#allocation1] sm:$0xff]
    %2534 = vperm.xlu0 %2518, %v2533
    %v2535 = vpop.permute.xlu0 %2534
    %v2536 = vld [vmem:[#allocation3] sm:$0xff]
    %2537 = vperm.xlu0 %2518, %v2536
    %v2538 = vpop.permute.xlu0 %2537
    %2539 = xla_tuple %v2535, %v2533
    %2540 = xla_tuple %2539
    %vm2541 = vcmp.gt.f32.partialorder %v2535, %v2533
    %v2542 = vsel %vm2541, 1, 0
    %2543 = xla_tuple %v2542
    %2544 = xla_tuple %v2533, %v2535
    %2545 = xla_tuple %2544
    %vm2546 = vcmp.gt.f32.partialorder %v2533, %v2535
    %v2547 = vsel %vm2546, 1, 0
    %2548 = xla_tuple %v2547
    %v2549 = vsel %vm2532, %v2542, 0
    %vm2550 = vcmp.ne.s32.totalorder %v2549, 0
    %v2551 = vsel %vm2532, %v2547, 1
    %vm2552 = vcmp.ne.s32.totalorder %v2551, 0
    %v2553 = vsel %vm2550, %v2535, %v2533
    %v2554 = vsel %vm2552, %v2535, %v2533
    %v2555 = vsel %vm2522, %v2553, %v2554
    %2556 = vst [vmem:[#allocation1] sm:$0xff] %v2555
    %v2557 = vsel %vm2550, %v2538, %v2536
    %v2558 = vsel %vm2552, %v2538, %v2536
    %v2559 = vsel %vm2522, %v2557, %v2558
    %2560 = vst [vmem:[#allocation3] sm:$0xff] %v2559
    %v2561 = vlaneseq
    %v2562 = vand.u32 %v2561, 127
    %v2563 = vxor.u32 %v2562, 1
    %2564 = vset.pattern.permute.xlu0 %v2563
    %v2565 = vlaneseq
    %v2566 = vand.u32 %v2565, 127
    %v2567 = vand.u32 %v2566, 1
    %vm2568 = vcmp.eq.s32.totalorder 0, %v2567
    %v2569 = vlaneseq
    %vm2571 = vcmp.lt.s32.totalorder %v2569, 768
    %v2572 = vsel %vm2571, 1, 0
    %v2573 = vlaneseq
    %v2574 = vxor.u32 %v2573, 1
    %vm2576 = vcmp.lt.s32.totalorder %v2574, 768
    %v2577 = vsel %vm2576, 1, 0
    %vm2578 = vcmp.eq.s32.totalorder %v2572, %v2577
    %v2579 = vld [vmem:[#allocation1] sm:$0xff]
    %2580 = vperm.xlu0 %2564, %v2579
    %v2581 = vpop.permute.xlu0 %2580
    %v2582 = vld [vmem:[#allocation3] sm:$0xff]
    %2583 = vperm.xlu0 %2564, %v2582
    %v2584 = vpop.permute.xlu0 %2583
    %2585 = xla_tuple %v2581, %v2579
    %2586 = xla_tuple %2585
    %vm2587 = vcmp.gt.f32.partialorder %v2581, %v2579
    %v2588 = vsel %vm2587, 1, 0
    %2589 = xla_tuple %v2588
    %2590 = xla_tuple %v2579, %v2581
    %2591 = xla_tuple %2590
    %vm2592 = vcmp.gt.f32.partialorder %v2579, %v2581
    %v2593 = vsel %vm2592, 1, 0
    %2594 = xla_tuple %v2593
    %v2595 = vsel %vm2578, %v2588, 0
    %vm2596 = vcmp.ne.s32.totalorder %v2595, 0
    %v2597 = vsel %vm2578, %v2593, 1
    %vm2598 = vcmp.ne.s32.totalorder %v2597, 0
    %v2599 = vsel %vm2596, %v2581, %v2579
    %v2600 = vsel %vm2598, %v2581, %v2579
    %v2601 = vsel %vm2568, %v2599, %v2600
    %2602 = vst [vmem:[#allocation1] sm:$0xff] %v2601
    %v2603 = vsel %vm2596, %v2584, %v2582
    %v2604 = vsel %vm2598, %v2584, %v2582
    %v2605 = vsel %vm2568, %v2603, %v2604
    %2606 = vst [vmem:[#allocation3] sm:$0xff] %v2605
    // Predicated region
    $region70: #{approx_top_k.20} parent=1 // pred_check
      _
    $region71: #{approx_top_k.20} parent=1 // pred_check_branch
      %2608 = sbr.rel (0) target = $region73
    $region72: #{approx_top_k.20} parent=1 // pred_region
      // Predicated region
      $region74: #{approx_top_k.20} parent=72 // pred_check
        _
      $region75: #{approx_top_k.20} parent=72 // pred_check_branch
        %2610 = sbr.rel (0) target = $region77
      $region76: #{approx_top_k.20} parent=72 // pred_region
        // Predicated region
        $region89: #{approx_top_k.20} parent=76 // pred_check
          _
        $region90: #{approx_top_k.20} parent=76 // pred_check_branch
          %2626 = sbr.rel (0) target = $region92
        $region91: #{approx_top_k.20} parent=76 // pred_region
          loop: start=0, step=1, limit=1
          $region93: #{approx_top_k.20} parent=91 // loop_pre_header
            _
          $region94: #{approx_top_k.20} parent=91 // loop_header
            %s2628 = sphi 0, %s2632
            %p2629 = scmp.ge.s32.totalorder %s2628, 1
            %s2633 = sphi [#allocation1], [#allocation1]
            %s2634 = sphi %s2, %s2
          $region95: #{approx_top_k.20} parent=91 // loop_header_branch
            %2631 = sbr.rel (%p2629) target = $region99
          $region96: #{approx_top_k.20} parent=91 // loop_body
            %v2635 = vld [vmem:[%s2633] sm:$0xff]
            %2636 = vst [vmem:[%s2634] sm:$0xff] %v2635
          $region97: #{approx_top_k.20} parent=91 // loop_footer
            %s2632 = sadd.s32 1, %s2628
          $region98: #{approx_top_k.20} parent=91 // loop_footer_branch
            %2627 = sbr.rel target = $region94
          $region99: #{approx_top_k.20} parent=91 // loop_exit
            _
        $region92: #{approx_top_k.20} parent=76 // pred_fallthru
          _
        // Predicated region
        $region100: #{approx_top_k.20} parent=76 // pred_check
          _
        $region101: #{approx_top_k.20} parent=76 // pred_check_branch
          %2638 = sbr.rel target = $region103
        $region102: #{approx_top_k.20} parent=76 // pred_region
          _
        $region103: #{approx_top_k.20} parent=76 // pred_fallthru
          _
      $region77: #{approx_top_k.20} parent=72 // pred_fallthru
        _
      // Predicated region
      $region78: #{approx_top_k.20} parent=72 // pred_check
        _
      $region79: #{approx_top_k.20} parent=72 // pred_check_branch
        %2612 = sbr.rel target = $region81
      $region80: #{approx_top_k.20} parent=72 // pred_region
        %s2614 = ssub.s32 256, 1
        loop: start=0, step=1, limit=1
        $region82: #{approx_top_k.20} parent=80 // loop_pre_header
          _
        $region83: #{approx_top_k.20} parent=80 // loop_header
          %s2616 = sphi 0, %s2620
          %p2617 = scmp.ge.s32.totalorder %s2616, 1
          %s2621 = sphi [#allocation1], [#allocation1]
          %s2622 = sphi %s2, %s2
        $region84: #{approx_top_k.20} parent=80 // loop_header_branch
          %2619 = sbr.rel (%p2617) target = $region88
        $region85: #{approx_top_k.20} parent=80 // loop_body
          %v2623 = vld [vmem:[%s2621] sm:%s2614]
          %2624 = vst [vmem:[%s2622] sm:%s2614] %v2623
        $region86: #{approx_top_k.20} parent=80 // loop_footer
          %s2620 = sadd.s32 1, %s2616
        $region87: #{approx_top_k.20} parent=80 // loop_footer_branch
          %2615 = sbr.rel target = $region83
        $region88: #{approx_top_k.20} parent=80 // loop_exit
          _
      $region81: #{approx_top_k.20} parent=72 // pred_fallthru
        _
    $region73: #{approx_top_k.20} parent=1 // pred_fallthru
      _
    %2639 = vnop
    // Predicated region
    $region104: #{approx_top_k.20} parent=1 // pred_check
      _
    $region105: #{approx_top_k.20} parent=1 // pred_check_branch
      %2641 = sbr.rel (0) target = $region107
    $region106: #{approx_top_k.20} parent=1 // pred_region
      // Predicated region
      $region108: #{approx_top_k.20} parent=106 // pred_check
        _
      $region109: #{approx_top_k.20} parent=106 // pred_check_branch
        %2643 = sbr.rel (0) target = $region111
      $region110: #{approx_top_k.20} parent=106 // pred_region
        // Predicated region
        $region123: #{approx_top_k.20} parent=110 // pred_check
          _
        $region124: #{approx_top_k.20} parent=110 // pred_check_branch
          %2659 = sbr.rel (0) target = $region126
        $region125: #{approx_top_k.20} parent=110 // pred_region
          loop: start=0, step=1, limit=1
          $region127: #{approx_top_k.20} parent=125 // loop_pre_header
            _
          $region128: #{approx_top_k.20} parent=125 // loop_header
            %s2661 = sphi 0, %s2665
            %p2662 = scmp.ge.s32.totalorder %s2661, 1
            %s2666 = sphi [#allocation3], [#allocation3]
            %s2667 = sphi %s3, %s3
          $region129: #{approx_top_k.20} parent=125 // loop_header_branch
            %2664 = sbr.rel (%p2662) target = $region133
          $region130: #{approx_top_k.20} parent=125 // loop_body
            %v2668 = vld [vmem:[%s2666] sm:$0xff]
            %2669 = vst [vmem:[%s2667] sm:$0xff] %v2668
          $region131: #{approx_top_k.20} parent=125 // loop_footer
            %s2665 = sadd.s32 1, %s2661
          $region132: #{approx_top_k.20} parent=125 // loop_footer_branch
            %2660 = sbr.rel target = $region128
          $region133: #{approx_top_k.20} parent=125 // loop_exit
            _
        $region126: #{approx_top_k.20} parent=110 // pred_fallthru
          _
        // Predicated region
        $region134: #{approx_top_k.20} parent=110 // pred_check
          _
        $region135: #{approx_top_k.20} parent=110 // pred_check_branch
          %2671 = sbr.rel target = $region137
        $region136: #{approx_top_k.20} parent=110 // pred_region
          _
        $region137: #{approx_top_k.20} parent=110 // pred_fallthru
          _
      $region111: #{approx_top_k.20} parent=106 // pred_fallthru
        _
      // Predicated region
      $region112: #{approx_top_k.20} parent=106 // pred_check
        _
      $region113: #{approx_top_k.20} parent=106 // pred_check_branch
        %2645 = sbr.rel target = $region115
      $region114: #{approx_top_k.20} parent=106 // pred_region
        %s2647 = ssub.s32 256, 1
        loop: start=0, step=1, limit=1
        $region116: #{approx_top_k.20} parent=114 // loop_pre_header
          _
        $region117: #{approx_top_k.20} parent=114 // loop_header
          %s2649 = sphi 0, %s2653
          %p2650 = scmp.ge.s32.totalorder %s2649, 1
          %s2654 = sphi [#allocation3], [#allocation3]
          %s2655 = sphi %s3, %s3
        $region118: #{approx_top_k.20} parent=114 // loop_header_branch
          %2652 = sbr.rel (%p2650) target = $region122
        $region119: #{approx_top_k.20} parent=114 // loop_body
          %v2656 = vld [vmem:[%s2654] sm:%s2647]
          %2657 = vst [vmem:[%s2655] sm:%s2647] %v2656
        $region120: #{approx_top_k.20} parent=114 // loop_footer
          %s2653 = sadd.s32 1, %s2649
        $region121: #{approx_top_k.20} parent=114 // loop_footer_branch
          %2648 = sbr.rel target = $region117
        $region122: #{approx_top_k.20} parent=114 // loop_exit
          _
      $region115: #{approx_top_k.20} parent=106 // pred_fallthru
        _
    $region107: #{approx_top_k.20} parent=1 // pred_fallthru
      _
    %2672 = vnop

// kernel: rpn_forward.3
$region0: #{rpn_forward.3}
  #allocation0 [shape = 'u32[]', space=smem, size = 0x4, offset = 0x4, fixed_abs, tag = 'smem constant byte address 0x4 - core index']
  #allocation1 [shape = 'u32[72,128]{1,0:T(1,128)}', space=vmem, size = 0x9000, scoped, tag = 'internal scratch']
  #allocation2 [shape = 'bf16[2,192,128]{2,1,0:T(8,128)(2,1)}', space=vmem, size = 0x18000, scoped, tag = 'scratch operand']
  #allocation3 [shape = 's32[2]{0}', space=sflag, size = 0x8, scoped, tag = 'scratch operand']
  #allocation4 [shape = 's32[]', space=sflag, size = 0x4, offset = 0, fixed_abs, tag = 'sflag constant byte address 0x0 - dummy sync flag']
  #allocation5 [shape = 's32[]', space=sflag, size = 0x4, offset = 0, fixed_abs, tag = 'sflag constant byte address 0x0 - dummy sync flag']
  %s0 = inlined_call_operand.vmem [shape: bf16[336,128], index: 0, kind: input, shape index: {}]
  %s1 = inlined_call_operand.vmem [shape: bf16[1152,128], index: 1, kind: input, shape index: {}]
  %s2 = inlined_call_operand.vmem [shape: f32[1,128], index: 2, kind: input, shape index: {}]
  %s3 = inlined_call_operand.vmem [shape: bf16[128,128], index: 3, kind: input, shape index: {}]
  %s4 = inlined_call_operand.vmem [shape: f32[1,128], index: 4, kind: input, shape index: {}]
  %s5 = inlined_call_operand.vmem [shape: bf16[288,128], index: 5, kind: output, shape index: {}]
  %s6 = sld [smem:[#allocation0]]
  $region95: #{rpn_forward.3} parent=0
    _
  %s8 = ssub.s32 1, %s6
  %s9 = scalar_select 0, %s8, %s6
  loop: start=0, step=1, limit=4
  $region2: #{rpn_forward.3} parent=0 // loop_pre_header
    _
  $region3: #{rpn_forward.3} parent=0 // loop_header
    %s11 = sphi 0, %s15
    %p12 = scmp.ge.s32.totalorder %s11, 4
    %s19 = sphi 0, %s19
    %s21 = sphi 0, %s19
    %s22 = sphi 0, %s21
    %s36 = sphi 0, %s22
    %s40 = sphi 0, %s40
    %s42 = sphi 0, %s40
    %s43 = sphi 0, %s42
    %s57 = sphi 0, %s43
    %s61 = sphi 0, %s61
    %s63 = sphi 0, %s61
    %s64 = sphi 0, %s63
    %s78 = sphi 0, %s64
    %s82 = sphi 0, %s82
    %s84 = sphi 0, %s82
    %s85 = sphi 0, %s84
    %s99 = sphi 0, %s85
    %s105 = sphi 0, %s107
    %s108 = sphi 0, %s105
    %s109 = sphi 0, %s108
    %s125 = sphi 0, %s109
  $region4: #{rpn_forward.3} parent=0 // loop_header_branch
    %14 = sbr.rel (%p12) target = $region8
  $region5: #{rpn_forward.3} parent=0 // loop_body
    %s16 = ssub.s32 %s11, 1
    %s17 = ssub.s32 %s11, 2
    %s18 = sadd.s32 %s11, 1
    %s20 = sadd.s32 %s19, 1
    %p23 = scmp.eq.s32.totalorder %s11, 1
    %p24 = scmp.ne.s32.totalorder %s19, %s21
    %p25 = scmp.eq.s32.totalorder %s11, 0
    %p26 = por %p24, %p25
    %p27 = scmp.ne.s32.totalorder %s19, %s21
    %p28 = scmp.eq.s32.totalorder %s16, 1
    %p29 = por %p27, %p28
    %p30 = scmp.ne.s32.totalorder %s21, %s22
    %p31 = scmp.eq.s32.totalorder %s16, 0
    %p32 = por %p30, %p31
    %p33 = scmp.ne.s32.totalorder %s21, %s22
    %p34 = scmp.eq.s32.totalorder %s17, 1
    %p35 = por %p33, %p34
    %p37 = scmp.ne.s32.totalorder %s22, %s36
    %p38 = scmp.eq.s32.totalorder %s17, 0
    %p39 = por %p37, %p38
    %s41 = sadd.s32 %s40, 1
    %p44 = scmp.eq.s32.totalorder %s11, 1
    %p45 = scmp.ne.s32.totalorder %s40, %s42
    %p46 = scmp.eq.s32.totalorder %s11, 0
    %p47 = por %p45, %p46
    %p48 = scmp.ne.s32.totalorder %s40, %s42
    %p49 = scmp.eq.s32.totalorder %s16, 1
    %p50 = por %p48, %p49
    %p51 = scmp.ne.s32.totalorder %s42, %s43
    %p52 = scmp.eq.s32.totalorder %s16, 0
    %p53 = por %p51, %p52
    %p54 = scmp.ne.s32.totalorder %s42, %s43
    %p55 = scmp.eq.s32.totalorder %s17, 1
    %p56 = por %p54, %p55
    %p58 = scmp.ne.s32.totalorder %s43, %s57
    %p59 = scmp.eq.s32.totalorder %s17, 0
    %p60 = por %p58, %p59
    %s62 = sadd.s32 %s61, 1
    %p65 = scmp.eq.s32.totalorder %s11, 1
    %p66 = scmp.ne.s32.totalorder %s61, %s63
    %p67 = scmp.eq.s32.totalorder %s11, 0
    %p68 = por %p66, %p67
    %p69 = scmp.ne.s32.totalorder %s61, %s63
    %p70 = scmp.eq.s32.totalorder %s16, 1
    %p71 = por %p69, %p70
    %p72 = scmp.ne.s32.totalorder %s63, %s64
    %p73 = scmp.eq.s32.totalorder %s16, 0
    %p74 = por %p72, %p73
    %p75 = scmp.ne.s32.totalorder %s63, %s64
    %p76 = scmp.eq.s32.totalorder %s17, 1
    %p77 = por %p75, %p76
    %p79 = scmp.ne.s32.totalorder %s64, %s78
    %p80 = scmp.eq.s32.totalorder %s17, 0
    %p81 = por %p79, %p80
    %s83 = sadd.s32 %s82, 1
    %p86 = scmp.eq.s32.totalorder %s11, 1
    %p87 = scmp.ne.s32.totalorder %s82, %s84
    %p88 = scmp.eq.s32.totalorder %s11, 0
    %p89 = por %p87, %p88
    %p90 = scmp.ne.s32.totalorder %s82, %s84
    %p91 = scmp.eq.s32.totalorder %s16, 1
    %p92 = por %p90, %p91
    %p93 = scmp.ne.s32.totalorder %s84, %s85
    %p94 = scmp.eq.s32.totalorder %s16, 0
    %p95 = por %p93, %p94
    %p96 = scmp.ne.s32.totalorder %s84, %s85
    %p97 = scmp.eq.s32.totalorder %s17, 1
    %p98 = por %p96, %p97
    %p100 = scmp.ne.s32.totalorder %s85, %s99
    %p101 = scmp.eq.s32.totalorder %s17, 0
    %p102 = por %p100, %p101
    %s103 = ssub.s32 %s11, %s18
    %p104 = scmp.eq.s32.totalorder %s103, 0
    %s106 = sadd.s32 %s105, 1
    %s107 = scalar_select %p104, %s105, %s106
    %p110 = pneg %p104
    %p111 = scmp.eq.s32.totalorder %s11, 1
    %p112 = por %p110, %p111
    %p113 = scmp.ne.s32.totalorder %s105, %s108
    %p114 = scmp.eq.s32.totalorder %s11, 0
    %p115 = por %p113, %p114
    %p116 = scmp.ne.s32.totalorder %s105, %s108
    %p117 = scmp.eq.s32.totalorder %s16, 1
    %p118 = por %p116, %p117
    %p119 = scmp.ne.s32.totalorder %s108, %s109
    %p120 = scmp.eq.s32.totalorder %s16, 0
    %p121 = por %p119, %p120
    %p122 = scmp.ne.s32.totalorder %s108, %s109
    %p123 = scmp.eq.s32.totalorder %s17, 1
    %p124 = por %p122, %p123
    %p126 = scmp.ne.s32.totalorder %s109, %s125
    %p127 = scmp.eq.s32.totalorder %s17, 0
    %p128 = por %p126, %p127
    %p129 = scmp.le.s32.totalorder 1, %s11
    %p130 = scmp.lt.s32.totalorder %s11, 3
    %p131 = pnand %p129, %p130
    %p132 = pneg %p131
    // Predicated region
    $region9: #{rpn_forward.3} parent=5 // pred_check
      _
    $region10: #{rpn_forward.3} parent=5 // pred_check_branch
      %134 = sbr.rel (%p131) target = $region12
    $region11: #{rpn_forward.3} parent=5 // pred_region
      %s135 = ssub.s32 %s11, 1
      // Predicated region
      $region13: #{rpn_forward.3} parent=11 // pred_check
        %p136 = pneg %p32
      $region14: #{rpn_forward.3} parent=11 // pred_check_branch
        %138 = sbr.rel (%p136) target = $region16
      $region15: #{rpn_forward.3} parent=11 // pred_region
        _
      $region16: #{rpn_forward.3} parent=11 // pred_fallthru
        _
      // Predicated region
      $region17: #{rpn_forward.3} parent=11 // pred_check
        %p139 = pneg %p53
      $region18: #{rpn_forward.3} parent=11 // pred_check_branch
        %141 = sbr.rel (%p139) target = $region20
      $region19: #{rpn_forward.3} parent=11 // pred_region
        _
      $region20: #{rpn_forward.3} parent=11 // pred_fallthru
        _
      // Predicated region
      $region21: #{rpn_forward.3} parent=11 // pred_check
        %p142 = pneg %p74
      $region22: #{rpn_forward.3} parent=11 // pred_check_branch
        %144 = sbr.rel (%p142) target = $region24
      $region23: #{rpn_forward.3} parent=11 // pred_region
        _
      $region24: #{rpn_forward.3} parent=11 // pred_fallthru
        _
      // Predicated region
      $region25: #{rpn_forward.3} parent=11 // pred_check
        %p145 = pneg %p95
      $region26: #{rpn_forward.3} parent=11 // pred_check_branch
        %147 = sbr.rel (%p145) target = $region28
      $region27: #{rpn_forward.3} parent=11 // pred_region
        _
      $region28: #{rpn_forward.3} parent=11 // pred_fallthru
        _
    $region12: #{rpn_forward.3} parent=5 // pred_fallthru
      _
    %p148 = scmp.lt.s32.totalorder %s11, 2
    // Predicated region
    $region29: #{rpn_forward.3} parent=5 // pred_check
      %p149 = pneg %p148
    $region30: #{rpn_forward.3} parent=5 // pred_check_branch
      %151 = sbr.rel (%p149) target = $region32
    $region31: #{rpn_forward.3} parent=5 // pred_region
      _
    $region32: #{rpn_forward.3} parent=5 // pred_fallthru
      _
    %p152 = scmp.le.s32.totalorder 1, %s11
    %p153 = scmp.lt.s32.totalorder %s11, 3
    %p154 = pnand %p152, %p153
    %p155 = pneg %p154
    // Predicated region
    $region33: #{rpn_forward.3} parent=5 // pred_check
      _
    $region34: #{rpn_forward.3} parent=5 // pred_check_branch
      %157 = sbr.rel (%p154) target = $region36
    $region35: #{rpn_forward.3} parent=5 // pred_region
      %s158 = ssub.s32 %s11, 1
      %p159 = pneg %p32
      %p160 = pneg %p29
      %p161 = pneg %p53
      %p162 = pneg %p50
      %p163 = pneg %p74
      %p164 = pneg %p71
      %p165 = pneg %p95
      %p166 = pneg %p92
      %p167 = pneg %p121
      %p168 = pneg %p118
      %s169 = smul.u32 18, %s16
      %p170 = scmp.lt.s32.totalorder %s169, 35
      %s171 = scalar_select %p170, %s169, 35
      %s172 = smul.addr %s171, 4
      %s173 = scalar_lea.vmem %s5, %s172
      %s174 = smul.u32 18, %s16
      %p175 = scmp.lt.s32.totalorder %s174, 35
      %s176 = scalar_select %p175, %s174, 35
      %s177 = smul.addr %s176, 4
      %s178 = scalar_lea.vmem %s5, %s177
      %s179 = smul.u32 18, %s16
      %p180 = scmp.eq.s32.totalorder %s16, 0
      // Predicated region
      $region37: #{rpn_forward.3} parent=35 // pred_check
        %p181 = pneg %p180
      $region38: #{rpn_forward.3} parent=35 // pred_check_branch
        %183 = sbr.rel (%p181) target = $region40
      $region39: #{rpn_forward.3} parent=35 // pred_region
        // Predicated region
        $region41: #{rpn_forward.3} parent=39 // pred_check
          _
        $region42: #{rpn_forward.3} parent=39 // pred_check_branch
          %185 = sbr.rel (0) target = $region44
        $region43: #{rpn_forward.3} parent=39 // pred_region
          loop: start=0, step=1, limit=1
          $region45: #{rpn_forward.3} parent=43 // loop_pre_header
            _
          $region46: #{rpn_forward.3} parent=43 // loop_header
            %s187 = sphi 0, %s191
            %p188 = scmp.ge.s32.totalorder %s187, 1
            %s192 = sphi %s0, %s0
            %s193 = sphi [#allocation2], [#allocation2]
          $region47: #{rpn_forward.3} parent=43 // loop_header_branch
            %190 = sbr.rel (%p188) target = $region51
          $region48: #{rpn_forward.3} parent=43 // loop_body
            %v194 = vld [vmem:[%s192] sm:$0xff]
            %195 = vst [vmem:[%s193] sm:$0xff] %v194
            %v196 = vld [vmem:[%s192 + $0x8] sm:$0xff]
            %197 = vst [vmem:[%s193 + $0x8] sm:$0xff] %v196
            %v198 = vld [vmem:[%s192 + $0x10] sm:$0xff]
            %199 = vst [vmem:[%s193 + $0x10] sm:$0xff] %v198
            %v200 = vld [vmem:[%s192 + $0x18] sm:$0xff]
            %201 = vst [vmem:[%s193 + $0x18] sm:$0xff] %v200
            %v202 = vld [vmem:[%s192 + $0x20] sm:$0xff]
            %203 = vst [vmem:[%s193 + $0x20] sm:$0xff] %v202
            %v204 = vld [vmem:[%s192 + $0x28] sm:$0xff]
            %205 = vst [vmem:[%s193 + $0x28] sm:$0xff] %v204
            %v206 = vld [vmem:[%s192 + $0x30] sm:$0xff]
            %207 = vst [vmem:[%s193 + $0x30] sm:$0xff] %v206
            %v208 = vld [vmem:[%s192 + $0x38] sm:$0xff]
            %209 = vst [vmem:[%s193 + $0x38] sm:$0xff] %v208
            %v210 = vld [vmem:[%s192 + $0x40] sm:$0xff]
            %211 = vst [vmem:[%s193 + $0x40] sm:$0xff] %v210
            %v212 = vld [vmem:[%s192 + $0x48] sm:$0xff]
            %213 = vst [vmem:[%s193 + $0x48] sm:$0xff] %v212
            %v214 = vld [vmem:[%s192 + $0x50] sm:$0xff]
            %215 = vst [vmem:[%s193 + $0x50] sm:$0xff] %v214
            %v216 = vld [vmem:[%s192 + $0x58] sm:$0xff]
            %217 = vst [vmem:[%s193 + $0x58] sm:$0xff] %v216
          $region49: #{rpn_forward.3} parent=43 // loop_footer
            %s191 = sadd.s32 1, %s187
          $region50: #{rpn_forward.3} parent=43 // loop_footer_branch
            %186 = sbr.rel target = $region46
          $region51: #{rpn_forward.3} parent=43 // loop_exit
            _
        $region44: #{rpn_forward.3} parent=39 // pred_fallthru
          _
        // Predicated region
        $region52: #{rpn_forward.3} parent=39 // pred_check
          _
        $region53: #{rpn_forward.3} parent=39 // pred_check_branch
          %219 = sbr.rel target = $region55
        $region54: #{rpn_forward.3} parent=39 // pred_region
          _
        $region55: #{rpn_forward.3} parent=39 // pred_fallthru
          _
        // Predicated region
        $region56: #{rpn_forward.3} parent=39 // pred_check
          _
        $region57: #{rpn_forward.3} parent=39 // pred_check_branch
          %222 = sbr.rel (0) target = $region59
        $region58: #{rpn_forward.3} parent=39 // pred_region
          %223 = vsyncadd [#allocation3], 1536
        $region59: #{rpn_forward.3} parent=39 // pred_fallthru
          _
      $region40: #{rpn_forward.3} parent=35 // pred_fallthru
        _
      %p224 = scmp.lt.s32.totalorder %s16, 0
      %s225 = ssub.s32 0, %s16
      %s226 = scalar_select %p224, %s225, %s16
      %s227 = sand.u32 %s226, 1
      %s228 = ssub.s32 0, %s227
      %s229 = scalar_select %p224, %s228, %s227
      %s230 = smul.u32 %s229, 24
      %s231 = smul.addr %s230, 4
      %s232 = scalar_lea.vmem [#allocation2], %s231
      %s233 = scalar_lea.sflag [#allocation3], %s229
      %s234 = smul.u32 4, 24
      %s235 = smul.u32 %s234, 1
      %s236 = sshll.u32 %s235, 4
      %237 = dma.done %s233, %s236
      %s238 = sadd.s32 %s16, 1
      %p239 = scmp.lt.s32.totalorder %s238, 2
      // Predicated region
      $region60: #{rpn_forward.3} parent=35 // pred_check
        %p240 = pneg %p239
      $region61: #{rpn_forward.3} parent=35 // pred_check_branch
        %242 = sbr.rel (%p240) target = $region63
      $region62: #{rpn_forward.3} parent=35 // pred_region
        %s243 = ssub.s32 1, %s229
        %s244 = smul.u32 %s238, 144
        %s245 = sshra.s32 %s244, 3
        %s246 = sand.u32 %s244, 7
        %s247 = smul.addr %s245, 4
        %s248 = scalar_lea.vmem %s0, %s247
        %s249 = smul.u32 %s243, 24
        %s250 = smul.addr %s249, 4
        %s251 = scalar_lea.vmem [#allocation2], %s250
        %s252 = scalar_lea.sflag [#allocation3], %s243
        // Predicated region
        $region64: #{rpn_forward.3} parent=62 // pred_check
          _
        $region65: #{rpn_forward.3} parent=62 // pred_check_branch
          %254 = sbr.rel (0) target = $region67
        $region66: #{rpn_forward.3} parent=62 // pred_region
          loop: start=0, step=1, limit=1
          $region68: #{rpn_forward.3} parent=66 // loop_pre_header
            _
          $region69: #{rpn_forward.3} parent=66 // loop_header
            %s256 = sphi 0, %s260
            %p257 = scmp.ge.s32.totalorder %s256, 1
            %s261 = sphi %s248, %s248
            %s262 = sphi %s251, %s251
          $region70: #{rpn_forward.3} parent=66 // loop_header_branch
            %259 = sbr.rel (%p257) target = $region74
          $region71: #{rpn_forward.3} parent=66 // loop_body
            %v263 = vld [vmem:[%s261] sm:$0xff]
            %264 = vst [vmem:[%s262] sm:$0xff] %v263
            %v265 = vld [vmem:[%s261 + $0x8] sm:$0xff]
            %266 = vst [vmem:[%s262 + $0x8] sm:$0xff] %v265
            %v267 = vld [vmem:[%s261 + $0x10] sm:$0xff]
            %268 = vst [vmem:[%s262 + $0x10] sm:$0xff] %v267
            %v269 = vld [vmem:[%s261 + $0x18] sm:$0xff]
            %270 = vst [vmem:[%s262 + $0x18] sm:$0xff] %v269
            %v271 = vld [vmem:[%s261 + $0x20] sm:$0xff]
            %272 = vst [vmem:[%s262 + $0x20] sm:$0xff] %v271
            %v273 = vld [vmem:[%s261 + $0x28] sm:$0xff]
            %274 = vst [vmem:[%s262 + $0x28] sm:$0xff] %v273
            %v275 = vld [vmem:[%s261 + $0x30] sm:$0xff]
            %276 = vst [vmem:[%s262 + $0x30] sm:$0xff] %v275
            %v277 = vld [vmem:[%s261 + $0x38] sm:$0xff]
            %278 = vst [vmem:[%s262 + $0x38] sm:$0xff] %v277
            %v279 = vld [vmem:[%s261 + $0x40] sm:$0xff]
            %280 = vst [vmem:[%s262 + $0x40] sm:$0xff] %v279
            %v281 = vld [vmem:[%s261 + $0x48] sm:$0xff]
            %282 = vst [vmem:[%s262 + $0x48] sm:$0xff] %v281
            %v283 = vld [vmem:[%s261 + $0x50] sm:$0xff]
            %284 = vst [vmem:[%s262 + $0x50] sm:$0xff] %v283
            %v285 = vld [vmem:[%s261 + $0x58] sm:$0xff]
            %286 = vst [vmem:[%s262 + $0x58] sm:$0xff] %v285
          $region72: #{rpn_forward.3} parent=66 // loop_footer
            %s260 = sadd.s32 1, %s256
          $region73: #{rpn_forward.3} parent=66 // loop_footer_branch
            %255 = sbr.rel target = $region69
          $region74: #{rpn_forward.3} parent=66 // loop_exit
            _
        $region67: #{rpn_forward.3} parent=62 // pred_fallthru
          _
        // Predicated region
        $region75: #{rpn_forward.3} parent=62 // pred_check
          _
        $region76: #{rpn_forward.3} parent=62 // pred_check_branch
          %288 = sbr.rel target = $region78
        $region77: #{rpn_forward.3} parent=62 // pred_region
          _
        $region78: #{rpn_forward.3} parent=62 // pred_fallthru
          _
        // Predicated region
        $region79: #{rpn_forward.3} parent=62 // pred_check
          _
        $region80: #{rpn_forward.3} parent=62 // pred_check_branch
          %291 = sbr.rel (0) target = $region82
        $region81: #{rpn_forward.3} parent=62 // pred_region
          %292 = vsyncadd %s252, 1536
        $region82: #{rpn_forward.3} parent=62 // pred_fallthru
          _
      $region63: #{rpn_forward.3} parent=35 // pred_fallthru
        _
      %v293 = vld [vmem:[%s232] sm:$0xf]
      %v294 = vld [vmem:[%s232 + $0x4] sm:$0xf]
      %v295 = vld [vmem:[%s232 + $0x8] sm:$0xf]
      %v296 = vld [vmem:[%s232 + $0xc] sm:$0xf]
      %v297 = vld [vmem:[%s232 + $0x10] sm:$0xf]
      %v298 = vld [vmem:[%s232 + $0x14] sm:$0xf]
      %v299 = vld [vmem:[%s232 + $0x18] sm:$0xf]
      %v300 = vld [vmem:[%s232 + $0x1c] sm:$0xf]
      %v301 = vld [vmem:[%s232 + $0x20] sm:$0xf]
      %v302 = vld [vmem:[%s232 + $0x24] sm:$0xf]
      %v303 = vld [vmem:[%s232 + $0x28] sm:$0xf]
      %v304 = vld [vmem:[%s232 + $0x2c] sm:$0xf]
      %v305 = vld [vmem:[%s232 + $0x30] sm:$0xf]
      %v306 = vld [vmem:[%s232 + $0x34] sm:$0xf]
      %v307 = vld [vmem:[%s232 + $0x38] sm:$0xf]
      %v308 = vld [vmem:[%s232 + $0x3c] sm:$0xf]
      %v309 = vld [vmem:[%s232 + $0x40] sm:$0xf]
      %v310 = vld [vmem:[%s232 + $0x44] sm:$0xf]
      %v311 = vld [vmem:[%s1] sm:$0xf]
      %v312 = vld [vmem:[%s1 + $0x4] sm:$0xf]
      %v313 = vld [vmem:[%s1 + $0x8] sm:$0xf]
      %v314 = vld [vmem:[%s1 + $0xc] sm:$0xf]
      %v315 = vld [vmem:[%s1 + $0x10] sm:$0xf]
      %v316 = vld [vmem:[%s1 + $0x14] sm:$0xf]
      %v317 = vld [vmem:[%s1 + $0x18] sm:$0xf]
      %v318 = vld [vmem:[%s1 + $0x1c] sm:$0xf]
      %v319 = vld [vmem:[%s1 + $0x20] sm:$0xf]
      %v320 = vld [vmem:[%s1 + $0x24] sm:$0xf]
      %v321 = vld [vmem:[%s1 + $0x28] sm:$0xf]
      %v322 = vld [vmem:[%s1 + $0x2c] sm:$0xf]
      %v323 = vld [vmem:[%s1 + $0x30] sm:$0xf]
      %v324 = vld [vmem:[%s1 + $0x34] sm:$0xf]
      %v325 = vld [vmem:[%s1 + $0x38] sm:$0xf]
      %v326 = vld [vmem:[%s1 + $0x3c] sm:$0xf]
      %v327 = vld [vmem:[%s232 + $0x48] sm:$0x1]
      %v328 = vld [vmem:[%s1 + $0x40] sm:$0xf]
      %v329 = vld [vmem:[%s1 + $0x44] sm:$0xf]
      %v330 = vld [vmem:[%s1 + $0x48] sm:$0xf]
      %v331 = vld [vmem:[%s1 + $0x4c] sm:$0xf]
      %v332 = vld [vmem:[%s1 + $0x50] sm:$0xf]
      %v333 = vld [vmem:[%s1 + $0x54] sm:$0xf]
      %v334 = vld [vmem:[%s1 + $0x58] sm:$0xf]
      %v335 = vld [vmem:[%s1 + $0x5c] sm:$0xf]
      %v336 = vld [vmem:[%s1 + $0x60] sm:$0xf]
      %v337 = vld [vmem:[%s1 + $0x64] sm:$0xf]
      %v338 = vld [vmem:[%s1 + $0x68] sm:$0xf]
      %v339 = vld [vmem:[%s1 + $0x6c] sm:$0xf]
      %v340 = vld [vmem:[%s1 + $0x70] sm:$0xf]
      %v341 = vld [vmem:[%s1 + $0x74] sm:$0xf]
      %v342 = vld [vmem:[%s1 + $0x78] sm:$0xf]
      %v343 = vld [vmem:[%s1 + $0x7c] sm:$0xf]
      %v363 = vunpack.c.l.b16 %v293
      %v364 = vunpack.c.l.b16 %v294
      %v365 = vunpack.c.l.b16 %v295
      %v366 = vunpack.c.l.b16 %v296
      %v367 = vunpack.c.l.b16 %v297
      %v368 = vunpack.c.l.b16 %v298
      %v369 = vunpack.c.l.b16 %v299
      %v370 = vunpack.c.l.b16 %v300
      %v371 = vunpack.c.l.b16 %v301
      %v372 = vunpack.c.l.b16 %v302
      %v373 = vunpack.c.l.b16 %v303
      %v374 = vunpack.c.l.b16 %v304
      %v375 = vunpack.c.l.b16 %v305
      %v376 = vunpack.c.l.b16 %v306
      %v377 = vunpack.c.l.b16 %v307
      %v378 = vunpack.c.l.b16 %v308
      %v379 = vunpack.c.l.b16 %v309
      %v380 = vunpack.c.l.b16 %v310
      %v381 = vunpack.c.l.b16 %v327
      %v382 = vpack.c.b16 %v364, %v363
      %v383 = vpack.c.b16 %v366, %v365
      %v384 = vpack.c.b16 %v368, %v367
      %v385 = vpack.c.b16 %v370, %v369
      %v386 = vpack.c.b16 %v372, %v371
      %v387 = vpack.c.b16 %v374, %v373
      %v388 = vpack.c.b16 %v376, %v375
      %v389 = vpack.c.b16 %v378, %v377
      %v390 = vpack.c.b16 %v380, %v379
      %v391 = vpack.c.b16 %v381, %v381
      %vm392 = vsmask.f32 7424
      %v394 = vshrl.u32 %v382, 16
      %v396 = vshll.u32 %v382, 16
      %v398 = vrot.slane %v396, 1
      %v399 = vor.u32 %v394, %v398
      %v401 = vshll.u32 %v383, 16
      %v403 = vrot.slane %v401, 1
      %v404 = vsel %vm392, %v399, %v403
      %v405 = vshrl.u32 %v383, 16
      %v407 = vor.u32 %v405, %v403
      %v409 = vshll.u32 %v384, 16
      %v411 = vrot.slane %v409, 1
      %v412 = vsel %vm392, %v407, %v411
      %v413 = vshrl.u32 %v384, 16
      %v415 = vor.u32 %v413, %v411
      %v417 = vshll.u32 %v385, 16
      %v419 = vrot.slane %v417, 1
      %v420 = vsel %vm392, %v415, %v419
      %v421 = vshrl.u32 %v385, 16
      %v423 = vor.u32 %v421, %v419
      %v425 = vshll.u32 %v386, 16
      %v427 = vrot.slane %v425, 1
      %v428 = vsel %vm392, %v423, %v427
      %v429 = vshrl.u32 %v386, 16
      %v431 = vor.u32 %v429, %v427
      %v433 = vshll.u32 %v387, 16
      %v435 = vrot.slane %v433, 1
      %v436 = vsel %vm392, %v431, %v435
      %v437 = vshrl.u32 %v387, 16
      %v439 = vor.u32 %v437, %v435
      %v441 = vshll.u32 %v388, 16
      %v443 = vrot.slane %v441, 1
      %v444 = vsel %vm392, %v439, %v443
      %v445 = vshrl.u32 %v388, 16
      %v447 = vor.u32 %v445, %v443
      %v449 = vshll.u32 %v389, 16
      %v451 = vrot.slane %v449, 1
      %v452 = vsel %vm392, %v447, %v451
      %v453 = vshrl.u32 %v389, 16
      %v455 = vor.u32 %v453, %v451
      %v457 = vshll.u32 %v390, 16
      %v459 = vrot.slane %v457, 1
      %v460 = vsel %vm392, %v455, %v459
      %v461 = vshrl.u32 %v390, 16
      %v463 = vor.u32 %v461, %v459
      %v465 = vshll.u32 %v391, 16
      %v467 = vrot.slane %v465, 1
      %v468 = vsel %vm392, %v463, %v467
      %v494 = vunpack.c.l.b16 %v328
      %v495 = vunpack.c.l.b16 %v329
      %v496 = vunpack.c.l.b16 %v330
      %v497 = vunpack.c.l.b16 %v331
      %v498 = vunpack.c.l.b16 %v332
      %v499 = vunpack.c.l.b16 %v333
      %v500 = vunpack.c.l.b16 %v334
      %v501 = vunpack.c.l.b16 %v335
      %v502 = vunpack.c.l.b16 %v336
      %v503 = vunpack.c.l.b16 %v337
      %v504 = vunpack.c.l.b16 %v338
      %v505 = vunpack.c.l.b16 %v339
      %v506 = vunpack.c.l.b16 %v340
      %v507 = vunpack.c.l.b16 %v341
      %v508 = vunpack.c.l.b16 %v342
      %v509 = vunpack.c.l.b16 %v343
      %v510 = vpack.c.b16 %v495, %v494
      %v511 = vpack.c.b16 %v497, %v496
      %v512 = vpack.c.b16 %v499, %v498
      %v513 = vpack.c.b16 %v501, %v500
      %v514 = vpack.c.b16 %v503, %v502
      %v515 = vpack.c.b16 %v505, %v504
      %v516 = vpack.c.b16 %v507, %v506
      %v517 = vpack.c.b16 %v509, %v508
      %526 = vmatpush.bf16.msra.mxu0 %v517
      %527 = vmatpush.bf16.msra.mxu0 %v516
      %528 = vmatpush.bf16.msra.mxu0 %v515
      %529 = vmatpush.bf16.msra.mxu0 %v514
      %530 = vmatpush.bf16.msra.mxu0 %v513
      %531 = vmatpush.bf16.msra.mxu0 %v512
      %532 = vmatpush.bf16.msra.mxu0 %v511
      %533 = vmatpush.bf16.msra.mxu0 %v510
      %534 = vmatmul.bf16.gmra.mxu0 %v404
      %v535 = vpop.f32.mrf.mxu0
      %v536 = vadd.f32 0.0, %v535
      %v537 = vpop.f32.mrf.mxu0
      %v538 = vadd.f32 0.0, %v537
      %539 = vmatmul.bf16.gmra.mxu0 %v412
      %v540 = vpop.f32.mrf.mxu0
      %v541 = vadd.f32 0.0, %v540
      %v542 = vpop.f32.mrf.mxu0
      %v543 = vadd.f32 0.0, %v542
      %544 = vmatmul.bf16.gmra.mxu0 %v420
      %v545 = vpop.f32.mrf.mxu0
      %v546 = vadd.f32 0.0, %v545
      %v547 = vpop.f32.mrf.mxu0
      %v548 = vadd.f32 0.0, %v547
      %549 = vmatmul.bf16.gmra.mxu0 %v428
      %v550 = vpop.f32.mrf.mxu0
      %v551 = vadd.f32 0.0, %v550
      %v552 = vpop.f32.mrf.mxu0
      %v553 = vadd.f32 0.0, %v552
      %554 = vmatmul.bf16.gmra.mxu0 %v436
      %v555 = vpop.f32.mrf.mxu0
      %v556 = vadd.f32 0.0, %v555
      %v557 = vpop.f32.mrf.mxu0
      %v558 = vadd.f32 0.0, %v557
      %559 = vmatmul.bf16.gmra.mxu0 %v444
      %v560 = vpop.f32.mrf.mxu0
      %v561 = vadd.f32 0.0, %v560
      %v562 = vpop.f32.mrf.mxu0
      %v563 = vadd.f32 0.0, %v562
      %564 = vmatmul.bf16.gmra.mxu0 %v452
      %v565 = vpop.f32.mrf.mxu0
      %v566 = vadd.f32 0.0, %v565
      %v567 = vpop.f32.mrf.mxu0
      %v568 = vadd.f32 0.0, %v567
      %569 = vmatmul.bf16.gmra.mxu0 %v460
      %v570 = vpop.f32.mrf.mxu0
      %v571 = vadd.f32 0.0, %v570
      %v572 = vpop.f32.mrf.mxu0
      %v573 = vadd.f32 0.0, %v572
      %574 = vmatmul.bf16.gmra.mxu0 %v468
      %v575 = vpop.f32.mrf.mxu0
      %v576 = vadd.f32 0.0, %v575
      %v577 = vpop.f32.mrf.mxu0
      %v578 = vadd.f32 0.0, %v577
      %579 = vdwg.mxu0
      %v605 = vunpack.c.l.b16 %v311
      %v606 = vunpack.c.l.b16 %v312
      %v607 = vunpack.c.l.b16 %v313
      %v608 = vunpack.c.l.b16 %v314
      %v609 = vunpack.c.l.b16 %v315
      %v610 = vunpack.c.l.b16 %v316
      %v611 = vunpack.c.l.b16 %v317
      %v612 = vunpack.c.l.b16 %v318
      %v613 = vunpack.c.l.b16 %v319
      %v614 = vunpack.c.l.b16 %v320
      %v615 = vunpack.c.l.b16 %v321
      %v616 = vunpack.c.l.b16 %v322
      %v617 = vunpack.c.l.b16 %v323
      %v618 = vunpack.c.l.b16 %v324
      %v619 = vunpack.c.l.b16 %v325
      %v620 = vunpack.c.l.b16 %v326
      %v621 = vpack.c.b16 %v606, %v605
      %v622 = vpack.c.b16 %v608, %v607
      %v623 = vpack.c.b16 %v610, %v609
      %v624 = vpack.c.b16 %v612, %v611
      %v625 = vpack.c.b16 %v614, %v613
      %v626 = vpack.c.b16 %v616, %v615
      %v627 = vpack.c.b16 %v618, %v617
      %v628 = vpack.c.b16 %v620, %v619
      %637 = vmatpush.bf16.msra.mxu0 %v628
      %638 = vmatpush.bf16.msra.mxu0 %v627
      %639 = vmatpush.bf16.msra.mxu0 %v626
      %640 = vmatpush.bf16.msra.mxu0 %v625
      %641 = vmatpush.bf16.msra.mxu0 %v624
      %642 = vmatpush.bf16.msra.mxu0 %v623
      %643 = vmatpush.bf16.msra.mxu0 %v622
      %644 = vmatpush.bf16.msra.mxu0 %v621
      %645 = vmatmul.bf16.gmra.mxu0 %v382
      %v646 = vpop.f32.mrf.mxu0
      %v647 = vadd.f32 %v536, %v646
      %v648 = vpop.f32.mrf.mxu0
      %v649 = vadd.f32 %v538, %v648
      %650 = vmatmul.bf16.gmra.mxu0 %v383
      %v651 = vpop.f32.mrf.mxu0
      %v652 = vadd.f32 %v541, %v651
      %v653 = vpop.f32.mrf.mxu0
      %v654 = vadd.f32 %v543, %v653
      %655 = vmatmul.bf16.gmra.mxu0 %v384
      %v656 = vpop.f32.mrf.mxu0
      %v657 = vadd.f32 %v546, %v656
      %v658 = vpop.f32.mrf.mxu0
      %v659 = vadd.f32 %v548, %v658
      %660 = vmatmul.bf16.gmra.mxu0 %v385
      %v661 = vpop.f32.mrf.mxu0
      %v662 = vadd.f32 %v551, %v661
      %v663 = vpop.f32.mrf.mxu0
      %v664 = vadd.f32 %v553, %v663
      %665 = vmatmul.bf16.gmra.mxu0 %v386
      %v666 = vpop.f32.mrf.mxu0
      %v667 = vadd.f32 %v556, %v666
      %v668 = vpop.f32.mrf.mxu0
      %v669 = vadd.f32 %v558, %v668
      %670 = vmatmul.bf16.gmra.mxu0 %v387
      %v671 = vpop.f32.mrf.mxu0
      %v672 = vadd.f32 %v561, %v671
      %v673 = vpop.f32.mrf.mxu0
      %v674 = vadd.f32 %v563, %v673
      %675 = vmatmul.bf16.gmra.mxu0 %v388
      %v676 = vpop.f32.mrf.mxu0
      %v677 = vadd.f32 %v566, %v676
      %v678 = vpop.f32.mrf.mxu0
      %v679 = vadd.f32 %v568, %v678
      %680 = vmatmul.bf16.gmra.mxu0 %v389
      %v681 = vpop.f32.mrf.mxu0
      %v682 = vadd.f32 %v571, %v681
      %v683 = vpop.f32.mrf.mxu0
      %v684 = vadd.f32 %v573, %v683
      %685 = vmatmul.bf16.gmra.mxu0 %v390
      %v686 = vpop.f32.mrf.mxu0
      %v687 = vadd.f32 %v576, %v686
      %v688 = vpop.f32.mrf.mxu0
      %v689 = vadd.f32 %v578, %v688
      %690 = vdwg.mxu0
      %v691 = vld [vmem:[%s232] sm:$0xe]
      %v692 = vld [vmem:[%s1 + $0x80] sm:$0xf]
      %v693 = vld [vmem:[%s1 + $0x84] sm:$0xf]
      %v694 = vld [vmem:[%s1 + $0x88] sm:$0xf]
      %v695 = vld [vmem:[%s1 + $0x8c] sm:$0xf]
      %v696 = vld [vmem:[%s1 + $0x90] sm:$0xf]
      %v697 = vld [vmem:[%s1 + $0x94] sm:$0xf]
      %v698 = vld [vmem:[%s1 + $0x98] sm:$0xf]
      %v699 = vld [vmem:[%s1 + $0x9c] sm:$0xf]
      %v700 = vld [vmem:[%s1 + $0xa0] sm:$0xf]
      %v701 = vld [vmem:[%s1 + $0xa4] sm:$0xf]
      %v702 = vld [vmem:[%s1 + $0xa8] sm:$0xf]
      %v703 = vld [vmem:[%s1 + $0xac] sm:$0xf]
      %v704 = vld [vmem:[%s1 + $0xb0] sm:$0xf]
      %v705 = vld [vmem:[%s1 + $0xb4] sm:$0xf]
      %v706 = vld [vmem:[%s1 + $0xb8] sm:$0xf]
      %v707 = vld [vmem:[%s1 + $0xbc] sm:$0xf]
      %v709 = vunpack.c.l.b16 %v691
      %v710 = vpack.c.b16 %v364, %v709
      %vm711 = vcmask 1046528
      %v712 = vrot.slane %v710, 1
      %v713 = vrot.slane %v383, 1
      %v714 = vsel %vm711, %v712, %v713
      %v715 = vrot.slane %v384, 1
      %v716 = vsel %vm711, %v713, %v715
      %v717 = vrot.slane %v385, 1
      %v718 = vsel %vm711, %v715, %v717
      %v719 = vrot.slane %v386, 1
      %v720 = vsel %vm711, %v717, %v719
      %v721 = vrot.slane %v387, 1
      %v722 = vsel %vm711, %v719, %v721
      %v723 = vrot.slane %v388, 1
      %v724 = vsel %vm711, %v721, %v723
      %v725 = vrot.slane %v389, 1
      %v726 = vsel %vm711, %v723, %v725
      %v727 = vrot.slane %v390, 1
      %v728 = vsel %vm711, %v725, %v727
      %v729 = vrot.slane %v391, 1
      %v730 = vsel %vm711, %v727, %v729
      %v756 = vunpack.c.l.b16 %v692
      %v757 = vunpack.c.l.b16 %v693
      %v758 = vunpack.c.l.b16 %v694
      %v759 = vunpack.c.l.b16 %v695
      %v760 = vunpack.c.l.b16 %v696
      %v761 = vunpack.c.l.b16 %v697
      %v762 = vunpack.c.l.b16 %v698
      %v763 = vunpack.c.l.b16 %v699
      %v764 = vunpack.c.l.b16 %v700
      %v765 = vunpack.c.l.b16 %v701
      %v766 = vunpack.c.l.b16 %v702
      %v767 = vunpack.c.l.b16 %v703
      %v768 = vunpack.c.l.b16 %v704
      %v769 = vunpack.c.l.b16 %v705
      %v770 = vunpack.c.l.b16 %v706
      %v771 = vunpack.c.l.b16 %v707
      %v772 = vpack.c.b16 %v757, %v756
      %v773 = vpack.c.b16 %v759, %v758
      %v774 = vpack.c.b16 %v761, %v760
      %v775 = vpack.c.b16 %v763, %v762
      %v776 = vpack.c.b16 %v765, %v764
      %v777 = vpack.c.b16 %v767, %v766
      %v778 = vpack.c.b16 %v769, %v768
      %v779 = vpack.c.b16 %v771, %v770
      %788 = vmatpush.bf16.msra.mxu0 %v779
      %789 = vmatpush.bf16.msra.mxu0 %v778
      %790 = vmatpush.bf16.msra.mxu0 %v777
      %791 = vmatpush.bf16.msra.mxu0 %v776
      %792 = vmatpush.bf16.msra.mxu0 %v775
      %793 = vmatpush.bf16.msra.mxu0 %v774
      %794 = vmatpush.bf16.msra.mxu0 %v773
      %795 = vmatpush.bf16.msra.mxu0 %v772
      %796 = vmatmul.bf16.gmra.mxu0 %v714
      %v797 = vpop.f32.mrf.mxu0
      %v798 = vadd.f32 0.0, %v797
      %v799 = vpop.f32.mrf.mxu0
      %v800 = vadd.f32 0.0, %v799
      %801 = vmatmul.bf16.gmra.mxu0 %v716
      %v802 = vpop.f32.mrf.mxu0
      %v803 = vadd.f32 0.0, %v802
      %v804 = vpop.f32.mrf.mxu0
      %v805 = vadd.f32 0.0, %v804
      %806 = vmatmul.bf16.gmra.mxu0 %v718
      %v807 = vpop.f32.mrf.mxu0
      %v808 = vadd.f32 0.0, %v807
      %v809 = vpop.f32.mrf.mxu0
      %v810 = vadd.f32 0.0, %v809
      %811 = vmatmul.bf16.gmra.mxu0 %v720
      %v812 = vpop.f32.mrf.mxu0
      %v813 = vadd.f32 0.0, %v812
      %v814 = vpop.f32.mrf.mxu0
      %v815 = vadd.f32 0.0, %v814
      %816 = vmatmul.bf16.gmra.mxu0 %v722
      %v817 = vpop.f32.mrf.mxu0
      %v818 = vadd.f32 0.0, %v817
      %v819 = vpop.f32.mrf.mxu0
      %v820 = vadd.f32 0.0, %v819
      %821 = vmatmul.bf16.gmra.mxu0 %v724
      %v822 = vpop.f32.mrf.mxu0
      %v823 = vadd.f32 0.0, %v822
      %v824 = vpop.f32.mrf.mxu0
      %v825 = vadd.f32 0.0, %v824
      %826 = vmatmul.bf16.gmra.mxu0 %v726
      %v827 = vpop.f32.mrf.mxu0
      %v828 = vadd.f32 0.0, %v827
      %v829 = vpop.f32.mrf.mxu0
      %v830 = vadd.f32 0.0, %v829
      %831 = vmatmul.bf16.gmra.mxu0 %v728
      %v832 = vpop.f32.mrf.mxu0
      %v833 = vadd.f32 0.0, %v832
      %v834 = vpop.f32.mrf.mxu0
      %v835 = vadd.f32 0.0, %v834
      %836 = vmatmul.bf16.gmra.mxu0 %v730
      %v837 = vpop.f32.mrf.mxu0
      %v838 = vadd.f32 0.0, %v837
      %v839 = vpop.f32.mrf.mxu0
      %v840 = vadd.f32 0.0, %v839
      %841 = vdwg.mxu0
      %v842 = vadd.f32 %v647, %v798
      %v843 = vadd.f32 %v649, %v800
      %v844 = vadd.f32 %v652, %v803
      %v845 = vadd.f32 %v654, %v805
      %v846 = vadd.f32 %v657, %v808
      %v847 = vadd.f32 %v659, %v810
      %v848 = vadd.f32 %v662, %v813
      %v849 = vadd.f32 %v664, %v815
      %v850 = vadd.f32 %v667, %v818
      %v851 = vadd.f32 %v669, %v820
      %v852 = vadd.f32 %v672, %v823
      %v853 = vadd.f32 %v674, %v825
      %v854 = vadd.f32 %v677, %v828
      %v855 = vadd.f32 %v679, %v830
      %v856 = vadd.f32 %v682, %v833
      %v857 = vadd.f32 %v684, %v835
      %v858 = vadd.f32 %v687, %v838
      %v859 = vadd.f32 %v689, %v840
      %v860 = vld [vmem:[%s232 + $0x8] sm:$0xe]
      %v861 = vld [vmem:[%s232 + $0xc] sm:$0xf]
      %v862 = vld [vmem:[%s232 + $0x10] sm:$0xf]
      %v863 = vld [vmem:[%s232 + $0x14] sm:$0xf]
      %v864 = vld [vmem:[%s232 + $0x18] sm:$0xf]
      %v865 = vld [vmem:[%s232 + $0x1c] sm:$0xf]
      %v866 = vld [vmem:[%s232 + $0x20] sm:$0xf]
      %v867 = vld [vmem:[%s232 + $0x24] sm:$0xf]
      %v868 = vld [vmem:[%s232 + $0x28] sm:$0xf]
      %v869 = vld [vmem:[%s232 + $0x2c] sm:$0xf]
      %v870 = vld [vmem:[%s232 + $0x30] sm:$0xf]
      %v871 = vld [vmem:[%s232 + $0x34] sm:$0xf]
      %v872 = vld [vmem:[%s232 + $0x38] sm:$0xf]
      %v873 = vld [vmem:[%s232 + $0x3c] sm:$0xf]
      %v874 = vld [vmem:[%s232 + $0x40] sm:$0xf]
      %v875 = vld [vmem:[%s232 + $0x44] sm:$0xf]
      %v876 = vld [vmem:[%s232 + $0x48] sm:$0xf]
      %v877 = vld [vmem:[%s232 + $0x4c] sm:$0xf]
      %v878 = vld [vmem:[%s232 + $0x50] sm:$0x1]
      %v879 = vld [vmem:[%s1 + $0xc0] sm:$0xf]
      %v880 = vld [vmem:[%s1 + $0xc4] sm:$0xf]
      %v881 = vld [vmem:[%s1 + $0xc8] sm:$0xf]
      %v882 = vld [vmem:[%s1 + $0xcc] sm:$0xf]
      %v883 = vld [vmem:[%s1 + $0xd0] sm:$0xf]
      %v884 = vld [vmem:[%s1 + $0xd4] sm:$0xf]
      %v885 = vld [vmem:[%s1 + $0xd8] sm:$0xf]
      %v886 = vld [vmem:[%s1 + $0xdc] sm:$0xf]
      %v887 = vld [vmem:[%s1 + $0xe0] sm:$0xf]
      %v888 = vld [vmem:[%s1 + $0xe4] sm:$0xf]
      %v889 = vld [vmem:[%s1 + $0xe8] sm:$0xf]
      %v890 = vld [vmem:[%s1 + $0xec] sm:$0xf]
      %v891 = vld [vmem:[%s1 + $0xf0] sm:$0xf]
      %v892 = vld [vmem:[%s1 + $0xf4] sm:$0xf]
      %v893 = vld [vmem:[%s1 + $0xf8] sm:$0xf]
      %v894 = vld [vmem:[%s1 + $0xfc] sm:$0xf]
      %v914 = vunpack.c.l.b16 %v860
      %v915 = vunpack.c.l.b16 %v861
      %v916 = vunpack.c.l.b16 %v862
      %v917 = vunpack.c.l.b16 %v863
      %v918 = vunpack.c.l.b16 %v864
      %v919 = vunpack.c.l.b16 %v865
      %v920 = vunpack.c.l.b16 %v866
      %v921 = vunpack.c.l.b16 %v867
      %v922 = vunpack.c.l.b16 %v868
      %v923 = vunpack.c.l.b16 %v869
      %v924 = vunpack.c.l.b16 %v870
      %v925 = vunpack.c.l.b16 %v871
      %v926 = vunpack.c.l.b16 %v872
      %v927 = vunpack.c.l.b16 %v873
      %v928 = vunpack.c.l.b16 %v874
      %v929 = vunpack.c.l.b16 %v875
      %v930 = vunpack.c.l.b16 %v876
      %v931 = vunpack.c.l.b16 %v877
      %v932 = vunpack.c.l.b16 %v878
      %v933 = vpack.c.b16 %v915, %v914
      %v934 = vpack.c.b16 %v917, %v916
      %v935 = vpack.c.b16 %v919, %v918
      %v936 = vpack.c.b16 %v921, %v920
      %v937 = vpack.c.b16 %v923, %v922
      %v938 = vpack.c.b16 %v925, %v924
      %v939 = vpack.c.b16 %v927, %v926
      %v940 = vpack.c.b16 %v929, %v928
      %v941 = vpack.c.b16 %v931, %v930
      %v942 = vpack.c.b16 %v932, %v932
      %v943 = vrot.slane %v933, 1
      %v944 = vrot.slane %v934, 1
      %v945 = vsel %vm711, %v943, %v944
      %v946 = vrot.slane %v935, 1
      %v947 = vsel %vm711, %v944, %v946
      %v948 = vrot.slane %v936, 1
      %v949 = vsel %vm711, %v946, %v948
      %v950 = vrot.slane %v937, 1
      %v951 = vsel %vm711, %v948, %v950
      %v952 = vrot.slane %v938, 1
      %v953 = vsel %vm711, %v950, %v952
      %v954 = vrot.slane %v939, 1
      %v955 = vsel %vm711, %v952, %v954
      %v956 = vrot.slane %v940, 1
      %v957 = vsel %vm711, %v954, %v956
      %v958 = vrot.slane %v941, 1
      %v959 = vsel %vm711, %v956, %v958
      %v960 = vrot.slane %v942, 1
      %v961 = vsel %vm711, %v958, %v960
      %v987 = vunpack.c.l.b16 %v879
      %v988 = vunpack.c.l.b16 %v880
      %v989 = vunpack.c.l.b16 %v881
      %v990 = vunpack.c.l.b16 %v882
      %v991 = vunpack.c.l.b16 %v883
      %v992 = vunpack.c.l.b16 %v884
      %v993 = vunpack.c.l.b16 %v885
      %v994 = vunpack.c.l.b16 %v886
      %v995 = vunpack.c.l.b16 %v887
      %v996 = vunpack.c.l.b16 %v888
      %v997 = vunpack.c.l.b16 %v889
      %v998 = vunpack.c.l.b16 %v890
      %v999 = vunpack.c.l.b16 %v891
      %v1000 = vunpack.c.l.b16 %v892
      %v1001 = vunpack.c.l.b16 %v893
      %v1002 = vunpack.c.l.b16 %v894
      %v1003 = vpack.c.b16 %v988, %v987
      %v1004 = vpack.c.b16 %v990, %v989
      %v1005 = vpack.c.b16 %v992, %v991
      %v1006 = vpack.c.b16 %v994, %v993
      %v1007 = vpack.c.b16 %v996, %v995
      %v1008 = vpack.c.b16 %v998, %v997
      %v1009 = vpack.c.b16 %v1000, %v999
      %v1010 = vpack.c.b16 %v1002, %v1001
      %1019 = vmatpush.bf16.msra.mxu0 %v1010
      %1020 = vmatpush.bf16.msra.mxu0 %v1009
      %1021 = vmatpush.bf16.msra.mxu0 %v1008
      %1022 = vmatpush.bf16.msra.mxu0 %v1007
      %1023 = vmatpush.bf16.msra.mxu0 %v1006
      %1024 = vmatpush.bf16.msra.mxu0 %v1005
      %1025 = vmatpush.bf16.msra.mxu0 %v1004
      %1026 = vmatpush.bf16.msra.mxu0 %v1003
      %1027 = vmatmul.bf16.gmra.mxu0 %v945
      %v1028 = vpop.f32.mrf.mxu0
      %v1029 = vadd.f32 0.0, %v1028
      %v1030 = vpop.f32.mrf.mxu0
      %v1031 = vadd.f32 0.0, %v1030
      %1032 = vmatmul.bf16.gmra.mxu0 %v947
      %v1033 = vpop.f32.mrf.mxu0
      %v1034 = vadd.f32 0.0, %v1033
      %v1035 = vpop.f32.mrf.mxu0
      %v1036 = vadd.f32 0.0, %v1035
      %1037 = vmatmul.bf16.gmra.mxu0 %v949
      %v1038 = vpop.f32.mrf.mxu0
      %v1039 = vadd.f32 0.0, %v1038
      %v1040 = vpop.f32.mrf.mxu0
      %v1041 = vadd.f32 0.0, %v1040
      %1042 = vmatmul.bf16.gmra.mxu0 %v951
      %v1043 = vpop.f32.mrf.mxu0
      %v1044 = vadd.f32 0.0, %v1043
      %v1045 = vpop.f32.mrf.mxu0
      %v1046 = vadd.f32 0.0, %v1045
      %1047 = vmatmul.bf16.gmra.mxu0 %v953
      %v1048 = vpop.f32.mrf.mxu0
      %v1049 = vadd.f32 0.0, %v1048
      %v1050 = vpop.f32.mrf.mxu0
      %v1051 = vadd.f32 0.0, %v1050
      %1052 = vmatmul.bf16.gmra.mxu0 %v955
      %v1053 = vpop.f32.mrf.mxu0
      %v1054 = vadd.f32 0.0, %v1053
      %v1055 = vpop.f32.mrf.mxu0
      %v1056 = vadd.f32 0.0, %v1055
      %1057 = vmatmul.bf16.gmra.mxu0 %v957
      %v1058 = vpop.f32.mrf.mxu0
      %v1059 = vadd.f32 0.0, %v1058
      %v1060 = vpop.f32.mrf.mxu0
      %v1061 = vadd.f32 0.0, %v1060
      %1062 = vmatmul.bf16.gmra.mxu0 %v959
      %v1063 = vpop.f32.mrf.mxu0
      %v1064 = vadd.f32 0.0, %v1063
      %v1065 = vpop.f32.mrf.mxu0
      %v1066 = vadd.f32 0.0, %v1065
      %1067 = vmatmul.bf16.gmra.mxu0 %v961
      %v1068 = vpop.f32.mrf.mxu0
      %v1069 = vadd.f32 0.0, %v1068
      %v1070 = vpop.f32.mrf.mxu0
      %v1071 = vadd.f32 0.0, %v1070
      %1072 = vdwg.mxu0
      %v1073 = vadd.f32 %v842, %v1029
      %v1074 = vadd.f32 %v843, %v1031
      %v1075 = vadd.f32 %v844, %v1034
      %v1076 = vadd.f32 %v845, %v1036
      %v1077 = vadd.f32 %v846, %v1039
      %v1078 = vadd.f32 %v847, %v1041
      %v1079 = vadd.f32 %v848, %v1044
      %v1080 = vadd.f32 %v849, %v1046
      %v1081 = vadd.f32 %v850, %v1049
      %v1082 = vadd.f32 %v851, %v1051
      %v1083 = vadd.f32 %v852, %v1054
      %v1084 = vadd.f32 %v853, %v1056
      %v1085 = vadd.f32 %v854, %v1059
      %v1086 = vadd.f32 %v855, %v1061
      %v1087 = vadd.f32 %v856, %v1064
      %v1088 = vadd.f32 %v857, %v1066
      %v1089 = vadd.f32 %v858, %v1069
      %v1090 = vadd.f32 %v859, %v1071
      %v1091 = vld [vmem:[%s232 + $0x50] sm:$0x3]
      %v1092 = vld [vmem:[%s1 + $0x100] sm:$0xf]
      %v1093 = vld [vmem:[%s1 + $0x104] sm:$0xf]
      %v1094 = vld [vmem:[%s1 + $0x108] sm:$0xf]
      %v1095 = vld [vmem:[%s1 + $0x10c] sm:$0xf]
      %v1096 = vld [vmem:[%s1 + $0x110] sm:$0xf]
      %v1097 = vld [vmem:[%s1 + $0x114] sm:$0xf]
      %v1098 = vld [vmem:[%s1 + $0x118] sm:$0xf]
      %v1099 = vld [vmem:[%s1 + $0x11c] sm:$0xf]
      %v1100 = vld [vmem:[%s1 + $0x120] sm:$0xf]
      %v1101 = vld [vmem:[%s1 + $0x124] sm:$0xf]
      %v1102 = vld [vmem:[%s1 + $0x128] sm:$0xf]
      %v1103 = vld [vmem:[%s1 + $0x12c] sm:$0xf]
      %v1104 = vld [vmem:[%s1 + $0x130] sm:$0xf]
      %v1105 = vld [vmem:[%s1 + $0x134] sm:$0xf]
      %v1106 = vld [vmem:[%s1 + $0x138] sm:$0xf]
      %v1107 = vld [vmem:[%s1 + $0x13c] sm:$0xf]
      %v1109 = vunpack.c.l.b16 %v1091
      %v1110 = vpack.c.b16 %v1109, %v1109
      %vm1111 = vsmask.f32 6400
      %v1113 = vshrl.u32 %v933, 16
      %v1115 = vrot.slane %v1113, 1
      %v1116 = vshll.u32 %v933, 16
      %v1118 = vrot.slane %v1116, 2
      %v1119 = vor.u32 %v1115, %v1118
      %v1121 = vshrl.u32 %v934, 16
      %v1123 = vrot.slane %v1121, 1
      %v1124 = vshll.u32 %v934, 16
      %v1126 = vrot.slane %v1124, 2
      %v1127 = vor.u32 %v1123, %v1126
      %v1128 = vsel %vm1111, %v1119, %v1127
      %v1130 = vshrl.u32 %v935, 16
      %v1132 = vrot.slane %v1130, 1
      %v1133 = vshll.u32 %v935, 16
      %v1135 = vrot.slane %v1133, 2
      %v1136 = vor.u32 %v1132, %v1135
      %v1137 = vsel %vm1111, %v1127, %v1136
      %v1139 = vshrl.u32 %v936, 16
      %v1141 = vrot.slane %v1139, 1
      %v1142 = vshll.u32 %v936, 16
      %v1144 = vrot.slane %v1142, 2
      %v1145 = vor.u32 %v1141, %v1144
      %v1146 = vsel %vm1111, %v1136, %v1145
      %v1148 = vshrl.u32 %v937, 16
      %v1150 = vrot.slane %v1148, 1
      %v1151 = vshll.u32 %v937, 16
      %v1153 = vrot.slane %v1151, 2
      %v1154 = vor.u32 %v1150, %v1153
      %v1155 = vsel %vm1111, %v1145, %v1154
      %v1157 = vshrl.u32 %v938, 16
      %v1159 = vrot.slane %v1157, 1
      %v1160 = vshll.u32 %v938, 16
      %v1162 = vrot.slane %v1160, 2
      %v1163 = vor.u32 %v1159, %v1162
      %v1164 = vsel %vm1111, %v1154, %v1163
      %v1166 = vshrl.u32 %v939, 16
      %v1168 = vrot.slane %v1166, 1
      %v1169 = vshll.u32 %v939, 16
      %v1171 = vrot.slane %v1169, 2
      %v1172 = vor.u32 %v1168, %v1171
      %v1173 = vsel %vm1111, %v1163, %v1172
      %v1175 = vshrl.u32 %v940, 16
      %v1177 = vrot.slane %v1175, 1
      %v1178 = vshll.u32 %v940, 16
      %v1180 = vrot.slane %v1178, 2
      %v1181 = vor.u32 %v1177, %v1180
      %v1182 = vsel %vm1111, %v1172, %v1181
      %v1184 = vshrl.u32 %v941, 16
      %v1186 = vrot.slane %v1184, 1
      %v1187 = vshll.u32 %v941, 16
      %v1189 = vrot.slane %v1187, 2
      %v1190 = vor.u32 %v1186, %v1189
      %v1191 = vsel %vm1111, %v1181, %v1190
      %v1193 = vshrl.u32 %v1110, 16
      %v1195 = vrot.slane %v1193, 1
      %v1196 = vshll.u32 %v1110, 16
      %v1198 = vrot.slane %v1196, 2
      %v1199 = vor.u32 %v1195, %v1198
      %v1200 = vsel %vm1111, %v1190, %v1199
      %v1226 = vunpack.c.l.b16 %v1092
      %v1227 = vunpack.c.l.b16 %v1093
      %v1228 = vunpack.c.l.b16 %v1094
      %v1229 = vunpack.c.l.b16 %v1095
      %v1230 = vunpack.c.l.b16 %v1096
      %v1231 = vunpack.c.l.b16 %v1097
      %v1232 = vunpack.c.l.b16 %v1098
      %v1233 = vunpack.c.l.b16 %v1099
      %v1234 = vunpack.c.l.b16 %v1100
      %v1235 = vunpack.c.l.b16 %v1101
      %v1236 = vunpack.c.l.b16 %v1102
      %v1237 = vunpack.c.l.b16 %v1103
      %v1238 = vunpack.c.l.b16 %v1104
      %v1239 = vunpack.c.l.b16 %v1105
      %v1240 = vunpack.c.l.b16 %v1106
      %v1241 = vunpack.c.l.b16 %v1107
      %v1242 = vpack.c.b16 %v1227, %v1226
      %v1243 = vpack.c.b16 %v1229, %v1228
      %v1244 = vpack.c.b16 %v1231, %v1230
      %v1245 = vpack.c.b16 %v1233, %v1232
      %v1246 = vpack.c.b16 %v1235, %v1234
      %v1247 = vpack.c.b16 %v1237, %v1236
      %v1248 = vpack.c.b16 %v1239, %v1238
      %v1249 = vpack.c.b16 %v1241, %v1240
      %1258 = vmatpush.bf16.msra.mxu0 %v1249
      %1259 = vmatpush.bf16.msra.mxu0 %v1248
      %1260 = vmatpush.bf16.msra.mxu0 %v1247
      %1261 = vmatpush.bf16.msra.mxu0 %v1246
      %1262 = vmatpush.bf16.msra.mxu0 %v1245
      %1263 = vmatpush.bf16.msra.mxu0 %v1244
      %1264 = vmatpush.bf16.msra.mxu0 %v1243
      %1265 = vmatpush.bf16.msra.mxu0 %v1242
      %1266 = vmatmul.bf16.gmra.mxu0 %v1128
      %v1267 = vpop.f32.mrf.mxu0
      %v1268 = vadd.f32 0.0, %v1267
      %v1269 = vpop.f32.mrf.mxu0
      %v1270 = vadd.f32 0.0, %v1269
      %1271 = vmatmul.bf16.gmra.mxu0 %v1137
      %v1272 = vpop.f32.mrf.mxu0
      %v1273 = vadd.f32 0.0, %v1272
      %v1274 = vpop.f32.mrf.mxu0
      %v1275 = vadd.f32 0.0, %v1274
      %1276 = vmatmul.bf16.gmra.mxu0 %v1146
      %v1277 = vpop.f32.mrf.mxu0
      %v1278 = vadd.f32 0.0, %v1277
      %v1279 = vpop.f32.mrf.mxu0
      %v1280 = vadd.f32 0.0, %v1279
      %1281 = vmatmul.bf16.gmra.mxu0 %v1155
      %v1282 = vpop.f32.mrf.mxu0
      %v1283 = vadd.f32 0.0, %v1282
      %v1284 = vpop.f32.mrf.mxu0
      %v1285 = vadd.f32 0.0, %v1284
      %1286 = vmatmul.bf16.gmra.mxu0 %v1164
      %v1287 = vpop.f32.mrf.mxu0
      %v1288 = vadd.f32 0.0, %v1287
      %v1289 = vpop.f32.mrf.mxu0
      %v1290 = vadd.f32 0.0, %v1289
      %1291 = vmatmul.bf16.gmra.mxu0 %v1173
      %v1292 = vpop.f32.mrf.mxu0
      %v1293 = vadd.f32 0.0, %v1292
      %v1294 = vpop.f32.mrf.mxu0
      %v1295 = vadd.f32 0.0, %v1294
      %1296 = vmatmul.bf16.gmra.mxu0 %v1182
      %v1297 = vpop.f32.mrf.mxu0
      %v1298 = vadd.f32 0.0, %v1297
      %v1299 = vpop.f32.mrf.mxu0
      %v1300 = vadd.f32 0.0, %v1299
      %1301 = vmatmul.bf16.gmra.mxu0 %v1191
      %v1302 = vpop.f32.mrf.mxu0
      %v1303 = vadd.f32 0.0, %v1302
      %v1304 = vpop.f32.mrf.mxu0
      %v1305 = vadd.f32 0.0, %v1304
      %1306 = vmatmul.bf16.gmra.mxu0 %v1200
      %v1307 = vpop.f32.mrf.mxu0
      %v1308 = vadd.f32 0.0, %v1307
      %v1309 = vpop.f32.mrf.mxu0
      %v1310 = vadd.f32 0.0, %v1309
      %1311 = vdwg.mxu0
      %v1312 = vadd.f32 %v1073, %v1268
      %v1313 = vadd.f32 %v1074, %v1270
      %v1314 = vadd.f32 %v1075, %v1273
      %v1315 = vadd.f32 %v1076, %v1275
      %v1316 = vadd.f32 %v1077, %v1278
      %v1317 = vadd.f32 %v1078, %v1280
      %v1318 = vadd.f32 %v1079, %v1283
      %v1319 = vadd.f32 %v1080, %v1285
      %v1320 = vadd.f32 %v1081, %v1288
      %v1321 = vadd.f32 %v1082, %v1290
      %v1322 = vadd.f32 %v1083, %v1293
      %v1323 = vadd.f32 %v1084, %v1295
      %v1324 = vadd.f32 %v1085, %v1298
      %v1325 = vadd.f32 %v1086, %v1300
      %v1326 = vadd.f32 %v1087, %v1303
      %v1327 = vadd.f32 %v1088, %v1305
      %v1328 = vadd.f32 %v1089, %v1308
      %v1329 = vadd.f32 %v1090, %v1310
      %v1330 = vld [vmem:[%s232 + $0x8] sm:$0xc]
      %v1331 = vld [vmem:[%s1 + $0x140] sm:$0xf]
      %v1332 = vld [vmem:[%s1 + $0x144] sm:$0xf]
      %v1333 = vld [vmem:[%s1 + $0x148] sm:$0xf]
      %v1334 = vld [vmem:[%s1 + $0x14c] sm:$0xf]
      %v1335 = vld [vmem:[%s1 + $0x150] sm:$0xf]
      %v1336 = vld [vmem:[%s1 + $0x154] sm:$0xf]
      %v1337 = vld [vmem:[%s1 + $0x158] sm:$0xf]
      %v1338 = vld [vmem:[%s1 + $0x15c] sm:$0xf]
      %v1339 = vld [vmem:[%s1 + $0x160] sm:$0xf]
      %v1340 = vld [vmem:[%s1 + $0x164] sm:$0xf]
      %v1341 = vld [vmem:[%s1 + $0x168] sm:$0xf]
      %v1342 = vld [vmem:[%s1 + $0x16c] sm:$0xf]
      %v1343 = vld [vmem:[%s1 + $0x170] sm:$0xf]
      %v1344 = vld [vmem:[%s1 + $0x174] sm:$0xf]
      %v1345 = vld [vmem:[%s1 + $0x178] sm:$0xf]
      %v1346 = vld [vmem:[%s1 + $0x17c] sm:$0xf]
      %v1348 = vunpack.c.l.b16 %v1330
      %v1349 = vpack.c.b16 %v915, %v1348
      %vm1350 = vcmask 1045504
      %v1351 = vrot.slane %v1349, 2
      %v1352 = vrot.slane %v934, 2
      %v1353 = vsel %vm1350, %v1351, %v1352
      %v1354 = vrot.slane %v935, 2
      %v1355 = vsel %vm1350, %v1352, %v1354
      %v1356 = vrot.slane %v936, 2
      %v1357 = vsel %vm1350, %v1354, %v1356
      %v1358 = vrot.slane %v937, 2
      %v1359 = vsel %vm1350, %v1356, %v1358
      %v1360 = vrot.slane %v938, 2
      %v1361 = vsel %vm1350, %v1358, %v1360
      %v1362 = vrot.slane %v939, 2
      %v1363 = vsel %vm1350, %v1360, %v1362
      %v1364 = vrot.slane %v940, 2
      %v1365 = vsel %vm1350, %v1362, %v1364
      %v1366 = vrot.slane %v941, 2
      %v1367 = vsel %vm1350, %v1364, %v1366
      %v1368 = vrot.slane %v1110, 2
      %v1369 = vsel %vm1350, %v1366, %v1368
      %v1395 = vunpack.c.l.b16 %v1331
      %v1396 = vunpack.c.l.b16 %v1332
      %v1397 = vunpack.c.l.b16 %v1333
      %v1398 = vunpack.c.l.b16 %v1334
      %v1399 = vunpack.c.l.b16 %v1335
      %v1400 = vunpack.c.l.b16 %v1336
      %v1401 = vunpack.c.l.b16 %v1337
      %v1402 = vunpack.c.l.b16 %v1338
      %v1403 = vunpack.c.l.b16 %v1339
      %v1404 = vunpack.c.l.b16 %v1340
      %v1405 = vunpack.c.l.b16 %v1341
      %v1406 = vunpack.c.l.b16 %v1342
      %v1407 = vunpack.c.l.b16 %v1343
      %v1408 = vunpack.c.l.b16 %v1344
      %v1409 = vunpack.c.l.b16 %v1345
      %v1410 = vunpack.c.l.b16 %v1346
      %v1411 = vpack.c.b16 %v1396, %v1395
      %v1412 = vpack.c.b16 %v1398, %v1397
      %v1413 = vpack.c.b16 %v1400, %v1399
      %v1414 = vpack.c.b16 %v1402, %v1401
      %v1415 = vpack.c.b16 %v1404, %v1403
      %v1416 = vpack.c.b16 %v1406, %v1405
      %v1417 = vpack.c.b16 %v1408, %v1407
      %v1418 = vpack.c.b16 %v1410, %v1409
      %1427 = vmatpush.bf16.msra.mxu0 %v1418
      %1428 = vmatpush.bf16.msra.mxu0 %v1417
      %1429 = vmatpush.bf16.msra.mxu0 %v1416
      %1430 = vmatpush.bf16.msra.mxu0 %v1415
      %1431 = vmatpush.bf16.msra.mxu0 %v1414
      %1432 = vmatpush.bf16.msra.mxu0 %v1413
      %1433 = vmatpush.bf16.msra.mxu0 %v1412
      %1434 = vmatpush.bf16.msra.mxu0 %v1411
      %1435 = vmatmul.bf16.gmra.mxu0 %v1353
      %v1436 = vpop.f32.mrf.mxu0
      %v1437 = vadd.f32 0.0, %v1436
      %v1438 = vpop.f32.mrf.mxu0
      %v1439 = vadd.f32 0.0, %v1438
      %1440 = vmatmul.bf16.gmra.mxu0 %v1355
      %v1441 = vpop.f32.mrf.mxu0
      %v1442 = vadd.f32 0.0, %v1441
      %v1443 = vpop.f32.mrf.mxu0
      %v1444 = vadd.f32 0.0, %v1443
      %1445 = vmatmul.bf16.gmra.mxu0 %v1357
      %v1446 = vpop.f32.mrf.mxu0
      %v1447 = vadd.f32 0.0, %v1446
      %v1448 = vpop.f32.mrf.mxu0
      %v1449 = vadd.f32 0.0, %v1448
      %1450 = vmatmul.bf16.gmra.mxu0 %v1359
      %v1451 = vpop.f32.mrf.mxu0
      %v1452 = vadd.f32 0.0, %v1451
      %v1453 = vpop.f32.mrf.mxu0
      %v1454 = vadd.f32 0.0, %v1453
      %1455 = vmatmul.bf16.gmra.mxu0 %v1361
      %v1456 = vpop.f32.mrf.mxu0
      %v1457 = vadd.f32 0.0, %v1456
      %v1458 = vpop.f32.mrf.mxu0
      %v1459 = vadd.f32 0.0, %v1458
      %1460 = vmatmul.bf16.gmra.mxu0 %v1363
      %v1461 = vpop.f32.mrf.mxu0
      %v1462 = vadd.f32 0.0, %v1461
      %v1463 = vpop.f32.mrf.mxu0
      %v1464 = vadd.f32 0.0, %v1463
      %1465 = vmatmul.bf16.gmra.mxu0 %v1365
      %v1466 = vpop.f32.mrf.mxu0
      %v1467 = vadd.f32 0.0, %v1466
      %v1468 = vpop.f32.mrf.mxu0
      %v1469 = vadd.f32 0.0, %v1468
      %1470 = vmatmul.bf16.gmra.mxu0 %v1367
      %v1471 = vpop.f32.mrf.mxu0
      %v1472 = vadd.f32 0.0, %v1471
      %v1473 = vpop.f32.mrf.mxu0
      %v1474 = vadd.f32 0.0, %v1473
      %1475 = vmatmul.bf16.gmra.mxu0 %v1369
      %v1476 = vpop.f32.mrf.mxu0
      %v1477 = vadd.f32 0.0, %v1476
      %v1478 = vpop.f32.mrf.mxu0
      %v1479 = vadd.f32 0.0, %v1478
      %1480 = vdwg.mxu0
      %v1481 = vadd.f32 %v1312, %v1437
      %v1482 = vadd.f32 %v1313, %v1439
      %v1483 = vadd.f32 %v1314, %v1442
      %v1484 = vadd.f32 %v1315, %v1444
      %v1485 = vadd.f32 %v1316, %v1447
      %v1486 = vadd.f32 %v1317, %v1449
      %v1487 = vadd.f32 %v1318, %v1452
      %v1488 = vadd.f32 %v1319, %v1454
      %v1489 = vadd.f32 %v1320, %v1457
      %v1490 = vadd.f32 %v1321, %v1459
      %v1491 = vadd.f32 %v1322, %v1462
      %v1492 = vadd.f32 %v1323, %v1464
      %v1493 = vadd.f32 %v1324, %v1467
      %v1494 = vadd.f32 %v1325, %v1469
      %v1495 = vadd.f32 %v1326, %v1472
      %v1496 = vadd.f32 %v1327, %v1474
      %v1497 = vadd.f32 %v1328, %v1477
      %v1498 = vadd.f32 %v1329, %v1479
      %v1499 = vld [vmem:[%s232 + $0x10] sm:$0xc]
      %v1500 = vld [vmem:[%s232 + $0x14] sm:$0xf]
      %v1501 = vld [vmem:[%s232 + $0x18] sm:$0xf]
      %v1502 = vld [vmem:[%s232 + $0x1c] sm:$0xf]
      %v1503 = vld [vmem:[%s232 + $0x20] sm:$0xf]
      %v1504 = vld [vmem:[%s232 + $0x24] sm:$0xf]
      %v1505 = vld [vmem:[%s232 + $0x28] sm:$0xf]
      %v1506 = vld [vmem:[%s232 + $0x2c] sm:$0xf]
      %v1507 = vld [vmem:[%s232 + $0x30] sm:$0xf]
      %v1508 = vld [vmem:[%s232 + $0x34] sm:$0xf]
      %v1509 = vld [vmem:[%s232 + $0x38] sm:$0xf]
      %v1510 = vld [vmem:[%s232 + $0x3c] sm:$0xf]
      %v1511 = vld [vmem:[%s232 + $0x40] sm:$0xf]
      %v1512 = vld [vmem:[%s232 + $0x44] sm:$0xf]
      %v1513 = vld [vmem:[%s232 + $0x48] sm:$0xf]
      %v1514 = vld [vmem:[%s232 + $0x4c] sm:$0xf]
      %v1515 = vld [vmem:[%s232 + $0x50] sm:$0xf]
      %v1516 = vld [vmem:[%s232 + $0x54] sm:$0xf]
      %v1517 = vld [vmem:[%s232 + $0x58] sm:$0x3]
      %v1518 = vld [vmem:[%s1 + $0x180] sm:$0xf]
      %v1519 = vld [vmem:[%s1 + $0x184] sm:$0xf]
      %v1520 = vld [vmem:[%s1 + $0x188] sm:$0xf]
      %v1521 = vld [vmem:[%s1 + $0x18c] sm:$0xf]
      %v1522 = vld [vmem:[%s1 + $0x190] sm:$0xf]
      %v1523 = vld [vmem:[%s1 + $0x194] sm:$0xf]
      %v1524 = vld [vmem:[%s1 + $0x198] sm:$0xf]
      %v1525 = vld [vmem:[%s1 + $0x19c] sm:$0xf]
      %v1526 = vld [vmem:[%s1 + $0x1a0] sm:$0xf]
      %v1527 = vld [vmem:[%s1 + $0x1a4] sm:$0xf]
      %v1528 = vld [vmem:[%s1 + $0x1a8] sm:$0xf]
      %v1529 = vld [vmem:[%s1 + $0x1ac] sm:$0xf]
      %v1530 = vld [vmem:[%s1 + $0x1b0] sm:$0xf]
      %v1531 = vld [vmem:[%s1 + $0x1b4] sm:$0xf]
      %v1532 = vld [vmem:[%s1 + $0x1b8] sm:$0xf]
      %v1533 = vld [vmem:[%s1 + $0x1bc] sm:$0xf]
      %v1553 = vunpack.c.l.b16 %v1499
      %v1554 = vunpack.c.l.b16 %v1500
      %v1555 = vunpack.c.l.b16 %v1501
      %v1556 = vunpack.c.l.b16 %v1502
      %v1557 = vunpack.c.l.b16 %v1503
      %v1558 = vunpack.c.l.b16 %v1504
      %v1559 = vunpack.c.l.b16 %v1505
      %v1560 = vunpack.c.l.b16 %v1506
      %v1561 = vunpack.c.l.b16 %v1507
      %v1562 = vunpack.c.l.b16 %v1508
      %v1563 = vunpack.c.l.b16 %v1509
      %v1564 = vunpack.c.l.b16 %v1510
      %v1565 = vunpack.c.l.b16 %v1511
      %v1566 = vunpack.c.l.b16 %v1512
      %v1567 = vunpack.c.l.b16 %v1513
      %v1568 = vunpack.c.l.b16 %v1514
      %v1569 = vunpack.c.l.b16 %v1515
      %v1570 = vunpack.c.l.b16 %v1516
      %v1571 = vunpack.c.l.b16 %v1517
      %v1572 = vpack.c.b16 %v1554, %v1553
      %v1573 = vpack.c.b16 %v1556, %v1555
      %v1574 = vpack.c.b16 %v1558, %v1557
      %v1575 = vpack.c.b16 %v1560, %v1559
      %v1576 = vpack.c.b16 %v1562, %v1561
      %v1577 = vpack.c.b16 %v1564, %v1563
      %v1578 = vpack.c.b16 %v1566, %v1565
      %v1579 = vpack.c.b16 %v1568, %v1567
      %v1580 = vpack.c.b16 %v1570, %v1569
      %v1581 = vpack.c.b16 %v1571, %v1571
      %v1582 = vrot.slane %v1572, 2
      %v1583 = vrot.slane %v1573, 2
      %v1584 = vsel %vm1350, %v1582, %v1583
      %v1585 = vrot.slane %v1574, 2
      %v1586 = vsel %vm1350, %v1583, %v1585
      %v1587 = vrot.slane %v1575, 2
      %v1588 = vsel %vm1350, %v1585, %v1587
      %v1589 = vrot.slane %v1576, 2
      %v1590 = vsel %vm1350, %v1587, %v1589
      %v1591 = vrot.slane %v1577, 2
      %v1592 = vsel %vm1350, %v1589, %v1591
      %v1593 = vrot.slane %v1578, 2
      %v1594 = vsel %vm1350, %v1591, %v1593
      %v1595 = vrot.slane %v1579, 2
      %v1596 = vsel %vm1350, %v1593, %v1595
      %v1597 = vrot.slane %v1580, 2
      %v1598 = vsel %vm1350, %v1595, %v1597
      %v1599 = vrot.slane %v1581, 2
      %v1600 = vsel %vm1350, %v1597, %v1599
      %v1626 = vunpack.c.l.b16 %v1518
      %v1627 = vunpack.c.l.b16 %v1519
      %v1628 = vunpack.c.l.b16 %v1520
      %v1629 = vunpack.c.l.b16 %v1521
      %v1630 = vunpack.c.l.b16 %v1522
      %v1631 = vunpack.c.l.b16 %v1523
      %v1632 = vunpack.c.l.b16 %v1524
      %v1633 = vunpack.c.l.b16 %v1525
      %v1634 = vunpack.c.l.b16 %v1526
      %v1635 = vunpack.c.l.b16 %v1527
      %v1636 = vunpack.c.l.b16 %v1528
      %v1637 = vunpack.c.l.b16 %v1529
      %v1638 = vunpack.c.l.b16 %v1530
      %v1639 = vunpack.c.l.b16 %v1531
      %v1640 = vunpack.c.l.b16 %v1532
      %v1641 = vunpack.c.l.b16 %v1533
      %v1642 = vpack.c.b16 %v1627, %v1626
      %v1643 = vpack.c.b16 %v1629, %v1628
      %v1644 = vpack.c.b16 %v1631, %v1630
      %v1645 = vpack.c.b16 %v1633, %v1632
      %v1646 = vpack.c.b16 %v1635, %v1634
      %v1647 = vpack.c.b16 %v1637, %v1636
      %v1648 = vpack.c.b16 %v1639, %v1638
      %v1649 = vpack.c.b16 %v1641, %v1640
      %1658 = vmatpush.bf16.msra.mxu0 %v1649
      %1659 = vmatpush.bf16.msra.mxu0 %v1648
      %1660 = vmatpush.bf16.msra.mxu0 %v1647
      %1661 = vmatpush.bf16.msra.mxu0 %v1646
      %1662 = vmatpush.bf16.msra.mxu0 %v1645
      %1663 = vmatpush.bf16.msra.mxu0 %v1644
      %1664 = vmatpush.bf16.msra.mxu0 %v1643
      %1665 = vmatpush.bf16.msra.mxu0 %v1642
      %1666 = vmatmul.bf16.gmra.mxu0 %v1584
      %v1667 = vpop.f32.mrf.mxu0
      %v1668 = vadd.f32 0.0, %v1667
      %v1669 = vpop.f32.mrf.mxu0
      %v1670 = vadd.f32 0.0, %v1669
      %1671 = vmatmul.bf16.gmra.mxu0 %v1586
      %v1672 = vpop.f32.mrf.mxu0
      %v1673 = vadd.f32 0.0, %v1672
      %v1674 = vpop.f32.mrf.mxu0
      %v1675 = vadd.f32 0.0, %v1674
      %1676 = vmatmul.bf16.gmra.mxu0 %v1588
      %v1677 = vpop.f32.mrf.mxu0
      %v1678 = vadd.f32 0.0, %v1677
      %v1679 = vpop.f32.mrf.mxu0
      %v1680 = vadd.f32 0.0, %v1679
      %1681 = vmatmul.bf16.gmra.mxu0 %v1590
      %v1682 = vpop.f32.mrf.mxu0
      %v1683 = vadd.f32 0.0, %v1682
      %v1684 = vpop.f32.mrf.mxu0
      %v1685 = vadd.f32 0.0, %v1684
      %1686 = vmatmul.bf16.gmra.mxu0 %v1592
      %v1687 = vpop.f32.mrf.mxu0
      %v1688 = vadd.f32 0.0, %v1687
      %v1689 = vpop.f32.mrf.mxu0
      %v1690 = vadd.f32 0.0, %v1689
      %1691 = vmatmul.bf16.gmra.mxu0 %v1594
      %v1692 = vpop.f32.mrf.mxu0
      %v1693 = vadd.f32 0.0, %v1692
      %v1694 = vpop.f32.mrf.mxu0
      %v1695 = vadd.f32 0.0, %v1694
      %1696 = vmatmul.bf16.gmra.mxu0 %v1596
      %v1697 = vpop.f32.mrf.mxu0
      %v1698 = vadd.f32 0.0, %v1697
      %v1699 = vpop.f32.mrf.mxu0
      %v1700 = vadd.f32 0.0, %v1699
      %1701 = vmatmul.bf16.gmra.mxu0 %v1598
      %v1702 = vpop.f32.mrf.mxu0
      %v1703 = vadd.f32 0.0, %v1702
      %v1704 = vpop.f32.mrf.mxu0
      %v1705 = vadd.f32 0.0, %v1704
      %1706 = vmatmul.bf16.gmra.mxu0 %v1600
      %v1707 = vpop.f32.mrf.mxu0
      %v1708 = vadd.f32 0.0, %v1707
      %v1709 = vpop.f32.mrf.mxu0
      %v1710 = vadd.f32 0.0, %v1709
      %1711 = vdwg.mxu0
      %v1712 = vadd.f32 %v1481, %v1668
      %v1713 = vadd.f32 %v1482, %v1670
      %v1714 = vadd.f32 %v1483, %v1673
      %v1715 = vadd.f32 %v1484, %v1675
      %v1716 = vadd.f32 %v1485, %v1678
      %v1717 = vadd.f32 %v1486, %v1680
      %v1718 = vadd.f32 %v1487, %v1683
      %v1719 = vadd.f32 %v1488, %v1685
      %v1720 = vadd.f32 %v1489, %v1688
      %v1721 = vadd.f32 %v1490, %v1690
      %v1722 = vadd.f32 %v1491, %v1693
      %v1723 = vadd.f32 %v1492, %v1695
      %v1724 = vadd.f32 %v1493, %v1698
      %v1725 = vadd.f32 %v1494, %v1700
      %v1726 = vadd.f32 %v1495, %v1703
      %v1727 = vadd.f32 %v1496, %v1705
      %v1728 = vadd.f32 %v1497, %v1708
      %v1729 = vadd.f32 %v1498, %v1710
      %v1730 = vld [vmem:[%s232 + $0x58] sm:$0x7]
      %v1731 = vld [vmem:[%s1 + $0x1c0] sm:$0xf]
      %v1732 = vld [vmem:[%s1 + $0x1c4] sm:$0xf]
      %v1733 = vld [vmem:[%s1 + $0x1c8] sm:$0xf]
      %v1734 = vld [vmem:[%s1 + $0x1cc] sm:$0xf]
      %v1735 = vld [vmem:[%s1 + $0x1d0] sm:$0xf]
      %v1736 = vld [vmem:[%s1 + $0x1d4] sm:$0xf]
      %v1737 = vld [vmem:[%s1 + $0x1d8] sm:$0xf]
      %v1738 = vld [vmem:[%s1 + $0x1dc] sm:$0xf]
      %v1739 = vld [vmem:[%s1 + $0x1e0] sm:$0xf]
      %v1740 = vld [vmem:[%s1 + $0x1e4] sm:$0xf]
      %v1741 = vld [vmem:[%s1 + $0x1e8] sm:$0xf]
      %v1742 = vld [vmem:[%s1 + $0x1ec] sm:$0xf]
      %v1743 = vld [vmem:[%s1 + $0x1f0] sm:$0xf]
      %v1744 = vld [vmem:[%s1 + $0x1f4] sm:$0xf]
      %v1745 = vld [vmem:[%s1 + $0x1f8] sm:$0xf]
      %v1746 = vld [vmem:[%s1 + $0x1fc] sm:$0xf]
      %v1748 = vunpack.c.l.b16 %v1730
      %v1749 = vpack.c.b16 %v1748, %v1748
      %vm1750 = vsmask.f32 5376
      %v1752 = vshrl.u32 %v1572, 16
      %v1754 = vrot.slane %v1752, 2
      %v1755 = vshll.u32 %v1572, 16
      %v1757 = vrot.slane %v1755, 3
      %v1758 = vor.u32 %v1754, %v1757
      %v1760 = vshrl.u32 %v1573, 16
      %v1762 = vrot.slane %v1760, 2
      %v1763 = vshll.u32 %v1573, 16
      %v1765 = vrot.slane %v1763, 3
      %v1766 = vor.u32 %v1762, %v1765
      %v1767 = vsel %vm1750, %v1758, %v1766
      %v1769 = vshrl.u32 %v1574, 16
      %v1771 = vrot.slane %v1769, 2
      %v1772 = vshll.u32 %v1574, 16
      %v1774 = vrot.slane %v1772, 3
      %v1775 = vor.u32 %v1771, %v1774
      %v1776 = vsel %vm1750, %v1766, %v1775
      %v1778 = vshrl.u32 %v1575, 16
      %v1780 = vrot.slane %v1778, 2
      %v1781 = vshll.u32 %v1575, 16
      %v1783 = vrot.slane %v1781, 3
      %v1784 = vor.u32 %v1780, %v1783
      %v1785 = vsel %vm1750, %v1775, %v1784
      %v1787 = vshrl.u32 %v1576, 16
      %v1789 = vrot.slane %v1787, 2
      %v1790 = vshll.u32 %v1576, 16
      %v1792 = vrot.slane %v1790, 3
      %v1793 = vor.u32 %v1789, %v1792
      %v1794 = vsel %vm1750, %v1784, %v1793
      %v1796 = vshrl.u32 %v1577, 16
      %v1798 = vrot.slane %v1796, 2
      %v1799 = vshll.u32 %v1577, 16
      %v1801 = vrot.slane %v1799, 3
      %v1802 = vor.u32 %v1798, %v1801
      %v1803 = vsel %vm1750, %v1793, %v1802
      %v1805 = vshrl.u32 %v1578, 16
      %v1807 = vrot.slane %v1805, 2
      %v1808 = vshll.u32 %v1578, 16
      %v1810 = vrot.slane %v1808, 3
      %v1811 = vor.u32 %v1807, %v1810
      %v1812 = vsel %vm1750, %v1802, %v1811
      %v1814 = vshrl.u32 %v1579, 16
      %v1816 = vrot.slane %v1814, 2
      %v1817 = vshll.u32 %v1579, 16
      %v1819 = vrot.slane %v1817, 3
      %v1820 = vor.u32 %v1816, %v1819
      %v1821 = vsel %vm1750, %v1811, %v1820
      %v1823 = vshrl.u32 %v1580, 16
      %v1825 = vrot.slane %v1823, 2
      %v1826 = vshll.u32 %v1580, 16
      %v1828 = vrot.slane %v1826, 3
      %v1829 = vor.u32 %v1825, %v1828
      %v1830 = vsel %vm1750, %v1820, %v1829
      %v1832 = vshrl.u32 %v1749, 16
      %v1834 = vrot.slane %v1832, 2
      %v1835 = vshll.u32 %v1749, 16
      %v1837 = vrot.slane %v1835, 3
      %v1838 = vor.u32 %v1834, %v1837
      %v1839 = vsel %vm1750, %v1829, %v1838
      %v1865 = vunpack.c.l.b16 %v1731
      %v1866 = vunpack.c.l.b16 %v1732
      %v1867 = vunpack.c.l.b16 %v1733
      %v1868 = vunpack.c.l.b16 %v1734
      %v1869 = vunpack.c.l.b16 %v1735
      %v1870 = vunpack.c.l.b16 %v1736
      %v1871 = vunpack.c.l.b16 %v1737
      %v1872 = vunpack.c.l.b16 %v1738
      %v1873 = vunpack.c.l.b16 %v1739
      %v1874 = vunpack.c.l.b16 %v1740
      %v1875 = vunpack.c.l.b16 %v1741
      %v1876 = vunpack.c.l.b16 %v1742
      %v1877 = vunpack.c.l.b16 %v1743
      %v1878 = vunpack.c.l.b16 %v1744
      %v1879 = vunpack.c.l.b16 %v1745
      %v1880 = vunpack.c.l.b16 %v1746
      %v1881 = vpack.c.b16 %v1866, %v1865
      %v1882 = vpack.c.b16 %v1868, %v1867
      %v1883 = vpack.c.b16 %v1870, %v1869
      %v1884 = vpack.c.b16 %v1872, %v1871
      %v1885 = vpack.c.b16 %v1874, %v1873
      %v1886 = vpack.c.b16 %v1876, %v1875
      %v1887 = vpack.c.b16 %v1878, %v1877
      %v1888 = vpack.c.b16 %v1880, %v1879
      %1897 = vmatpush.bf16.msra.mxu0 %v1888
      %1898 = vmatpush.bf16.msra.mxu0 %v1887
      %1899 = vmatpush.bf16.msra.mxu0 %v1886
      %1900 = vmatpush.bf16.msra.mxu0 %v1885
      %1901 = vmatpush.bf16.msra.mxu0 %v1884
      %1902 = vmatpush.bf16.msra.mxu0 %v1883
      %1903 = vmatpush.bf16.msra.mxu0 %v1882
      %1904 = vmatpush.bf16.msra.mxu0 %v1881
      %1905 = vmatmul.bf16.gmra.mxu0 %v1767
      %v1906 = vpop.f32.mrf.mxu0
      %v1907 = vadd.f32 0.0, %v1906
      %v1908 = vpop.f32.mrf.mxu0
      %v1909 = vadd.f32 0.0, %v1908
      %1910 = vmatmul.bf16.gmra.mxu0 %v1776
      %v1911 = vpop.f32.mrf.mxu0
      %v1912 = vadd.f32 0.0, %v1911
      %v1913 = vpop.f32.mrf.mxu0
      %v1914 = vadd.f32 0.0, %v1913
      %1915 = vmatmul.bf16.gmra.mxu0 %v1785
      %v1916 = vpop.f32.mrf.mxu0
      %v1917 = vadd.f32 0.0, %v1916
      %v1918 = vpop.f32.mrf.mxu0
      %v1919 = vadd.f32 0.0, %v1918
      %1920 = vmatmul.bf16.gmra.mxu0 %v1794
      %v1921 = vpop.f32.mrf.mxu0
      %v1922 = vadd.f32 0.0, %v1921
      %v1923 = vpop.f32.mrf.mxu0
      %v1924 = vadd.f32 0.0, %v1923
      %1925 = vmatmul.bf16.gmra.mxu0 %v1803
      %v1926 = vpop.f32.mrf.mxu0
      %v1927 = vadd.f32 0.0, %v1926
      %v1928 = vpop.f32.mrf.mxu0
      %v1929 = vadd.f32 0.0, %v1928
      %1930 = vmatmul.bf16.gmra.mxu0 %v1812
      %v1931 = vpop.f32.mrf.mxu0
      %v1932 = vadd.f32 0.0, %v1931
      %v1933 = vpop.f32.mrf.mxu0
      %v1934 = vadd.f32 0.0, %v1933
      %1935 = vmatmul.bf16.gmra.mxu0 %v1821
      %v1936 = vpop.f32.mrf.mxu0
      %v1937 = vadd.f32 0.0, %v1936
      %v1938 = vpop.f32.mrf.mxu0
      %v1939 = vadd.f32 0.0, %v1938
      %1940 = vmatmul.bf16.gmra.mxu0 %v1830
      %v1941 = vpop.f32.mrf.mxu0
      %v1942 = vadd.f32 0.0, %v1941
      %v1943 = vpop.f32.mrf.mxu0
      %v1944 = vadd.f32 0.0, %v1943
      %1945 = vmatmul.bf16.gmra.mxu0 %v1839
      %v1946 = vpop.f32.mrf.mxu0
      %v1947 = vadd.f32 0.0, %v1946
      %v1948 = vpop.f32.mrf.mxu0
      %v1949 = vadd.f32 0.0, %v1948
      %1950 = vdwg.mxu0
      %v1951 = vadd.f32 %v1712, %v1907
      %v1952 = vadd.f32 %v1713, %v1909
      %v1953 = vadd.f32 %v1714, %v1912
      %v1954 = vadd.f32 %v1715, %v1914
      %v1955 = vadd.f32 %v1716, %v1917
      %v1956 = vadd.f32 %v1717, %v1919
      %v1957 = vadd.f32 %v1718, %v1922
      %v1958 = vadd.f32 %v1719, %v1924
      %v1959 = vadd.f32 %v1720, %v1927
      %v1960 = vadd.f32 %v1721, %v1929
      %v1961 = vadd.f32 %v1722, %v1932
      %v1962 = vadd.f32 %v1723, %v1934
      %v1963 = vadd.f32 %v1724, %v1937
      %v1964 = vadd.f32 %v1725, %v1939
      %v1965 = vadd.f32 %v1726, %v1942
      %v1966 = vadd.f32 %v1727, %v1944
      %v1967 = vadd.f32 %v1728, %v1947
      %v1968 = vadd.f32 %v1729, %v1949
      %v1969 = vld [vmem:[%s232 + $0x10] sm:$0x8]
      %v1970 = vld [vmem:[%s1 + $0x200] sm:$0xf]
      %v1971 = vld [vmem:[%s1 + $0x204] sm:$0xf]
      %v1972 = vld [vmem:[%s1 + $0x208] sm:$0xf]
      %v1973 = vld [vmem:[%s1 + $0x20c] sm:$0xf]
      %v1974 = vld [vmem:[%s1 + $0x210] sm:$0xf]
      %v1975 = vld [vmem:[%s1 + $0x214] sm:$0xf]
      %v1976 = vld [vmem:[%s1 + $0x218] sm:$0xf]
      %v1977 = vld [vmem:[%s1 + $0x21c] sm:$0xf]
      %v1978 = vld [vmem:[%s1 + $0x220] sm:$0xf]
      %v1979 = vld [vmem:[%s1 + $0x224] sm:$0xf]
      %v1980 = vld [vmem:[%s1 + $0x228] sm:$0xf]
      %v1981 = vld [vmem:[%s1 + $0x22c] sm:$0xf]
      %v1982 = vld [vmem:[%s1 + $0x230] sm:$0xf]
      %v1983 = vld [vmem:[%s1 + $0x234] sm:$0xf]
      %v1984 = vld [vmem:[%s1 + $0x238] sm:$0xf]
      %v1985 = vld [vmem:[%s1 + $0x23c] sm:$0xf]
      %v1987 = vunpack.c.l.b16 %v1969
      %v1988 = vpack.c.b16 %v1554, %v1987
      %vm1989 = vcmask 1044480
      %v1990 = vrot.slane %v1988, 3
      %v1991 = vrot.slane %v1573, 3
      %v1992 = vsel %vm1989, %v1990, %v1991
      %v1993 = vrot.slane %v1574, 3
      %v1994 = vsel %vm1989, %v1991, %v1993
      %v1995 = vrot.slane %v1575, 3
      %v1996 = vsel %vm1989, %v1993, %v1995
      %v1997 = vrot.slane %v1576, 3
      %v1998 = vsel %vm1989, %v1995, %v1997
      %v1999 = vrot.slane %v1577, 3
      %v2000 = vsel %vm1989, %v1997, %v1999
      %v2001 = vrot.slane %v1578, 3
      %v2002 = vsel %vm1989, %v1999, %v2001
      %v2003 = vrot.slane %v1579, 3
      %v2004 = vsel %vm1989, %v2001, %v2003
      %v2005 = vrot.slane %v1580, 3
      %v2006 = vsel %vm1989, %v2003, %v2005
      %v2007 = vrot.slane %v1749, 3
      %v2008 = vsel %vm1989, %v2005, %v2007
      %v2034 = vunpack.c.l.b16 %v1970
      %v2035 = vunpack.c.l.b16 %v1971
      %v2036 = vunpack.c.l.b16 %v1972
      %v2037 = vunpack.c.l.b16 %v1973
      %v2038 = vunpack.c.l.b16 %v1974
      %v2039 = vunpack.c.l.b16 %v1975
      %v2040 = vunpack.c.l.b16 %v1976
      %v2041 = vunpack.c.l.b16 %v1977
      %v2042 = vunpack.c.l.b16 %v1978
      %v2043 = vunpack.c.l.b16 %v1979
      %v2044 = vunpack.c.l.b16 %v1980
      %v2045 = vunpack.c.l.b16 %v1981
      %v2046 = vunpack.c.l.b16 %v1982
      %v2047 = vunpack.c.l.b16 %v1983
      %v2048 = vunpack.c.l.b16 %v1984
      %v2049 = vunpack.c.l.b16 %v1985
      %v2050 = vpack.c.b16 %v2035, %v2034
      %v2051 = vpack.c.b16 %v2037, %v2036
      %v2052 = vpack.c.b16 %v2039, %v2038
      %v2053 = vpack.c.b16 %v2041, %v2040
      %v2054 = vpack.c.b16 %v2043, %v2042
      %v2055 = vpack.c.b16 %v2045, %v2044
      %v2056 = vpack.c.b16 %v2047, %v2046
      %v2057 = vpack.c.b16 %v2049, %v2048
      %2066 = vmatpush.bf16.msra.mxu0 %v2057
      %2067 = vmatpush.bf16.msra.mxu0 %v2056
      %2068 = vmatpush.bf16.msra.mxu0 %v2055
      %2069 = vmatpush.bf16.msra.mxu0 %v2054
      %2070 = vmatpush.bf16.msra.mxu0 %v2053
      %2071 = vmatpush.bf16.msra.mxu0 %v2052
      %2072 = vmatpush.bf16.msra.mxu0 %v2051
      %2073 = vmatpush.bf16.msra.mxu0 %v2050
      %2074 = vmatmul.bf16.gmra.mxu0 %v1992
      %v2075 = vpop.f32.mrf.mxu0
      %v2076 = vadd.f32 0.0, %v2075
      %v2077 = vpop.f32.mrf.mxu0
      %v2078 = vadd.f32 0.0, %v2077
      %2079 = vmatmul.bf16.gmra.mxu0 %v1994
      %v2080 = vpop.f32.mrf.mxu0
      %v2081 = vadd.f32 0.0, %v2080
      %v2082 = vpop.f32.mrf.mxu0
      %v2083 = vadd.f32 0.0, %v2082
      %2084 = vmatmul.bf16.gmra.mxu0 %v1996
      %v2085 = vpop.f32.mrf.mxu0
      %v2086 = vadd.f32 0.0, %v2085
      %v2087 = vpop.f32.mrf.mxu0
      %v2088 = vadd.f32 0.0, %v2087
      %2089 = vmatmul.bf16.gmra.mxu0 %v1998
      %v2090 = vpop.f32.mrf.mxu0
      %v2091 = vadd.f32 0.0, %v2090
      %v2092 = vpop.f32.mrf.mxu0
      %v2093 = vadd.f32 0.0, %v2092
      %2094 = vmatmul.bf16.gmra.mxu0 %v2000
      %v2095 = vpop.f32.mrf.mxu0
      %v2096 = vadd.f32 0.0, %v2095
      %v2097 = vpop.f32.mrf.mxu0
      %v2098 = vadd.f32 0.0, %v2097
      %2099 = vmatmul.bf16.gmra.mxu0 %v2002
      %v2100 = vpop.f32.mrf.mxu0
      %v2101 = vadd.f32 0.0, %v2100
      %v2102 = vpop.f32.mrf.mxu0
      %v2103 = vadd.f32 0.0, %v2102
      %2104 = vmatmul.bf16.gmra.mxu0 %v2004
      %v2105 = vpop.f32.mrf.mxu0
      %v2106 = vadd.f32 0.0, %v2105
      %v2107 = vpop.f32.mrf.mxu0
      %v2108 = vadd.f32 0.0, %v2107
      %2109 = vmatmul.bf16.gmra.mxu0 %v2006
      %v2110 = vpop.f32.mrf.mxu0
      %v2111 = vadd.f32 0.0, %v2110
      %v2112 = vpop.f32.mrf.mxu0
      %v2113 = vadd.f32 0.0, %v2112
      %2114 = vmatmul.bf16.gmra.mxu0 %v2008
      %v2115 = vpop.f32.mrf.mxu0
      %v2116 = vadd.f32 0.0, %v2115
      %v2117 = vpop.f32.mrf.mxu0
      %v2118 = vadd.f32 0.0, %v2117
      %2119 = vdwg.mxu0
      %v2120 = vadd.f32 %v1951, %v2076
      %v2121 = vadd.f32 %v1952, %v2078
      %v2122 = vadd.f32 %v1953, %v2081
      %v2123 = vadd.f32 %v1954, %v2083
      %v2124 = vadd.f32 %v1955, %v2086
      %v2125 = vadd.f32 %v1956, %v2088
      %v2126 = vadd.f32 %v1957, %v2091
      %v2127 = vadd.f32 %v1958, %v2093
      %v2128 = vadd.f32 %v1959, %v2096
      %v2129 = vadd.f32 %v1960, %v2098
      %v2130 = vadd.f32 %v1961, %v2101
      %v2131 = vadd.f32 %v1962, %v2103
      %v2132 = vadd.f32 %v1963, %v2106
      %v2133 = vadd.f32 %v1964, %v2108
      %v2134 = vadd.f32 %v1965, %v2111
      %v2135 = vadd.f32 %v1966, %v2113
      %v2136 = vadd.f32 %v1967, %v2116
      %v2137 = vadd.f32 %v1968, %v2118
      %v2138 = vld [vmem:[%s2] sm:$0x1]
      %v2140 = vperm.slane %v2138, 0
      %v2142 = vadd.f32 %v2120, %v2140
      %v2143 = vadd.f32 %v2121, %v2140
      %v2144 = vadd.f32 %v2122, %v2140
      %v2145 = vadd.f32 %v2123, %v2140
      %v2146 = vadd.f32 %v2124, %v2140
      %v2147 = vadd.f32 %v2125, %v2140
      %v2148 = vadd.f32 %v2126, %v2140
      %v2149 = vadd.f32 %v2127, %v2140
      %v2150 = vadd.f32 %v2128, %v2140
      %v2151 = vadd.f32 %v2129, %v2140
      %v2152 = vadd.f32 %v2130, %v2140
      %v2153 = vadd.f32 %v2131, %v2140
      %v2154 = vadd.f32 %v2132, %v2140
      %v2155 = vadd.f32 %v2133, %v2140
      %v2156 = vadd.f32 %v2134, %v2140
      %v2157 = vadd.f32 %v2135, %v2140
      %v2158 = vadd.f32 %v2136, %v2140
      %v2159 = vadd.f32 %v2137, %v2140
      %v2160 = vmax.f32 %v2142, 0.0
      %v2161 = vmax.f32 %v2143, 0.0
      %v2162 = vmax.f32 %v2144, 0.0
      %v2163 = vmax.f32 %v2145, 0.0
      %v2164 = vmax.f32 %v2146, 0.0
      %v2165 = vmax.f32 %v2147, 0.0
      %v2166 = vmax.f32 %v2148, 0.0
      %v2167 = vmax.f32 %v2149, 0.0
      %v2168 = vmax.f32 %v2150, 0.0
      %v2169 = vmax.f32 %v2151, 0.0
      %v2170 = vmax.f32 %v2152, 0.0
      %v2171 = vmax.f32 %v2153, 0.0
      %v2172 = vmax.f32 %v2154, 0.0
      %v2173 = vmax.f32 %v2155, 0.0
      %v2174 = vmax.f32 %v2156, 0.0
      %v2175 = vmax.f32 %v2157, 0.0
      %v2176 = vmax.f32 %v2158, 0.0
      %v2177 = vmax.f32 %v2159, 0.0
      %v2178 = vpack.c.bf16 %v2161, %v2160
      %v2179 = vpack.c.bf16 %v2163, %v2162
      %v2180 = vpack.c.bf16 %v2165, %v2164
      %v2181 = vpack.c.bf16 %v2167, %v2166
      %v2182 = vpack.c.bf16 %v2169, %v2168
      %v2183 = vpack.c.bf16 %v2171, %v2170
      %v2184 = vpack.c.bf16 %v2173, %v2172
      %v2185 = vpack.c.bf16 %v2175, %v2174
      %v2186 = vpack.c.bf16 %v2177, %v2176
      %v2187 = vld [vmem:[%s3] sm:$0xf]
      %v2188 = vld [vmem:[%s3 + $0x4] sm:$0xf]
      %v2189 = vld [vmem:[%s3 + $0x8] sm:$0xf]
      %v2190 = vld [vmem:[%s3 + $0xc] sm:$0xf]
      %v2191 = vld [vmem:[%s3 + $0x10] sm:$0xf]
      %v2192 = vld [vmem:[%s3 + $0x14] sm:$0xf]
      %v2193 = vld [vmem:[%s3 + $0x18] sm:$0xf]
      %v2194 = vld [vmem:[%s3 + $0x1c] sm:$0xf]
      %v2195 = vld [vmem:[%s3 + $0x20] sm:$0xf]
      %v2196 = vld [vmem:[%s3 + $0x24] sm:$0xf]
      %v2197 = vld [vmem:[%s3 + $0x28] sm:$0xf]
      %v2198 = vld [vmem:[%s3 + $0x2c] sm:$0xf]
      %v2199 = vld [vmem:[%s3 + $0x30] sm:$0xf]
      %v2200 = vld [vmem:[%s3 + $0x34] sm:$0xf]
      %v2201 = vld [vmem:[%s3 + $0x38] sm:$0xf]
      %v2202 = vld [vmem:[%s3 + $0x3c] sm:$0xf]
      %v2203 = vld [vmem:[%s4] sm:$0x1]
      %v2205 = vperm.slane %v2203, 0
      %v2223 = vunpack.c.l.b16 %v2187
      %v2224 = vunpack.c.l.b16 %v2188
      %v2225 = vunpack.c.l.b16 %v2189
      %v2226 = vunpack.c.l.b16 %v2190
      %v2227 = vunpack.c.l.b16 %v2191
      %v2228 = vunpack.c.l.b16 %v2192
      %v2229 = vunpack.c.l.b16 %v2193
      %v2230 = vunpack.c.l.b16 %v2194
      %v2231 = vunpack.c.l.b16 %v2195
      %v2232 = vunpack.c.l.b16 %v2196
      %v2233 = vunpack.c.l.b16 %v2197
      %v2234 = vunpack.c.l.b16 %v2198
      %v2235 = vunpack.c.l.b16 %v2199
      %v2236 = vunpack.c.l.b16 %v2200
      %v2237 = vunpack.c.l.b16 %v2201
      %v2238 = vunpack.c.l.b16 %v2202
      %v2239 = vpack.c.b16 %v2224, %v2223
      %v2240 = vpack.c.b16 %v2226, %v2225
      %v2241 = vpack.c.b16 %v2228, %v2227
      %v2242 = vpack.c.b16 %v2230, %v2229
      %v2243 = vpack.c.b16 %v2232, %v2231
      %v2244 = vpack.c.b16 %v2234, %v2233
      %v2245 = vpack.c.b16 %v2236, %v2235
      %v2246 = vpack.c.b16 %v2238, %v2237
      %2255 = vmatpush.bf16.msra.mxu0 %v2246
      %2256 = vmatpush.bf16.msra.mxu0 %v2245
      %2257 = vmatpush.bf16.msra.mxu0 %v2244
      %2258 = vmatpush.bf16.msra.mxu0 %v2243
      %2259 = vmatpush.bf16.msra.mxu0 %v2242
      %2260 = vmatpush.bf16.msra.mxu0 %v2241
      %2261 = vmatpush.bf16.msra.mxu0 %v2240
      %2262 = vmatpush.bf16.msra.mxu0 %v2239
      %2263 = vmatmul.bf16.gmra.mxu0 %v2178
      %v2264 = vpop.f32.mrf.mxu0
      %v2265 = vadd.f32 %v2205, %v2264
      %v2266 = vpop.f32.mrf.mxu0
      %v2267 = vadd.f32 %v2205, %v2266
      %2268 = vmatmul.bf16.gmra.mxu0 %v2179
      %v2269 = vpop.f32.mrf.mxu0
      %v2270 = vadd.f32 %v2205, %v2269
      %v2271 = vpop.f32.mrf.mxu0
      %v2272 = vadd.f32 %v2205, %v2271
      %2273 = vmatmul.bf16.gmra.mxu0 %v2180
      %v2274 = vpop.f32.mrf.mxu0
      %v2275 = vadd.f32 %v2205, %v2274
      %v2276 = vpop.f32.mrf.mxu0
      %v2277 = vadd.f32 %v2205, %v2276
      %2278 = vmatmul.bf16.gmra.mxu0 %v2181
      %v2279 = vpop.f32.mrf.mxu0
      %v2280 = vadd.f32 %v2205, %v2279
      %v2281 = vpop.f32.mrf.mxu0
      %v2282 = vadd.f32 %v2205, %v2281
      %2283 = vmatmul.bf16.gmra.mxu0 %v2182
      %v2284 = vpop.f32.mrf.mxu0
      %v2285 = vadd.f32 %v2205, %v2284
      %v2286 = vpop.f32.mrf.mxu0
      %v2287 = vadd.f32 %v2205, %v2286
      %2288 = vmatmul.bf16.gmra.mxu0 %v2183
      %v2289 = vpop.f32.mrf.mxu0
      %v2290 = vadd.f32 %v2205, %v2289
      %v2291 = vpop.f32.mrf.mxu0
      %v2292 = vadd.f32 %v2205, %v2291
      %2293 = vmatmul.bf16.gmra.mxu0 %v2184
      %v2294 = vpop.f32.mrf.mxu0
      %v2295 = vadd.f32 %v2205, %v2294
      %v2296 = vpop.f32.mrf.mxu0
      %v2297 = vadd.f32 %v2205, %v2296
      %2298 = vmatmul.bf16.gmra.mxu0 %v2185
      %v2299 = vpop.f32.mrf.mxu0
      %v2300 = vadd.f32 %v2205, %v2299
      %v2301 = vpop.f32.mrf.mxu0
      %v2302 = vadd.f32 %v2205, %v2301
      %2303 = vmatmul.bf16.gmra.mxu0 %v2186
      %v2304 = vpop.f32.mrf.mxu0
      %v2305 = vadd.f32 %v2205, %v2304
      %v2306 = vpop.f32.mrf.mxu0
      %v2307 = vadd.f32 %v2205, %v2306
      %2308 = vdwg.mxu0
      %v2309 = vpack.c.bf16 %v2265, %v2265
      %v2310 = vpack.c.bf16 %v2267, %v2267
      %v2311 = vpack.c.bf16 %v2270, %v2270
      %v2312 = vpack.c.bf16 %v2272, %v2272
      %v2313 = vpack.c.bf16 %v2275, %v2275
      %v2314 = vpack.c.bf16 %v2277, %v2277
      %v2315 = vpack.c.bf16 %v2280, %v2280
      %v2316 = vpack.c.bf16 %v2282, %v2282
      %v2317 = vpack.c.bf16 %v2285, %v2285
      %v2318 = vpack.c.bf16 %v2287, %v2287
      %v2319 = vpack.c.bf16 %v2290, %v2290
      %v2320 = vpack.c.bf16 %v2292, %v2292
      %v2321 = vpack.c.bf16 %v2295, %v2295
      %v2322 = vpack.c.bf16 %v2297, %v2297
      %v2323 = vpack.c.bf16 %v2300, %v2300
      %v2324 = vpack.c.bf16 %v2302, %v2302
      %v2325 = vpack.c.bf16 %v2305, %v2305
      %v2326 = vpack.c.bf16 %v2307, %v2307
      %2327 = vst [vmem:[%s178] sm:$0xf] %v2309
      %2328 = vst [vmem:[%s178 + $0x4] sm:$0xf] %v2310
      %2329 = vst [vmem:[%s178 + $0x8] sm:$0xf] %v2311
      %2330 = vst [vmem:[%s178 + $0xc] sm:$0xf] %v2312
      %2331 = vst [vmem:[%s178 + $0x10] sm:$0xf] %v2313
      %2332 = vst [vmem:[%s178 + $0x14] sm:$0xf] %v2314
      %2333 = vst [vmem:[%s178 + $0x18] sm:$0xf] %v2315
      %2334 = vst [vmem:[%s178 + $0x1c] sm:$0xf] %v2316
      %2335 = vst [vmem:[%s178 + $0x20] sm:$0xf] %v2317
      %2336 = vst [vmem:[%s178 + $0x24] sm:$0xf] %v2318
      %2337 = vst [vmem:[%s178 + $0x28] sm:$0xf] %v2319
      %2338 = vst [vmem:[%s178 + $0x2c] sm:$0xf] %v2320
      %2339 = vst [vmem:[%s178 + $0x30] sm:$0xf] %v2321
      %2340 = vst [vmem:[%s178 + $0x34] sm:$0xf] %v2322
      %2341 = vst [vmem:[%s178 + $0x38] sm:$0xf] %v2323
      %2342 = vst [vmem:[%s178 + $0x3c] sm:$0xf] %v2324
      %2343 = vst [vmem:[%s178 + $0x40] sm:$0xf] %v2325
      %2344 = vst [vmem:[%s178 + $0x44] sm:$0xf] %v2326
      %s2345 = smul.u32 18, %s16
      %p2346 = scmp.lt.s32.totalorder %s2345, 35
      %s2347 = scalar_select %p2346, %s2345, 35
      %s2348 = smul.addr %s2347, 4
      %s2349 = scalar_lea.vmem %s5, %s2348
      // Predicated region
      $region83: #{rpn_forward.3} parent=35 // pred_check
        %p2350 = pneg %p118
      $region84: #{rpn_forward.3} parent=35 // pred_check_branch
        %2352 = sbr.rel (%p2350) target = $region86
      $region85: #{rpn_forward.3} parent=35 // pred_region
        %s2353 = smul.u32 18, %s16
      $region86: #{rpn_forward.3} parent=35 // pred_fallthru
        _
    $region36: #{rpn_forward.3} parent=5 // pred_fallthru
      _
    %p2354 = scmp.le.s32.totalorder 2, %s11
    // Predicated region
    $region87: #{rpn_forward.3} parent=5 // pred_check
      %p2355 = pneg %p2354
    $region88: #{rpn_forward.3} parent=5 // pred_check_branch
      %2357 = sbr.rel (%p2355) target = $region90
    $region89: #{rpn_forward.3} parent=5 // pred_region
      %s2358 = ssub.s32 %s11, 2
      // Predicated region
      $region91: #{rpn_forward.3} parent=89 // pred_check
        %p2359 = pneg %p124
      $region92: #{rpn_forward.3} parent=89 // pred_check_branch
        %2361 = sbr.rel (%p2359) target = $region94
      $region93: #{rpn_forward.3} parent=89 // pred_region
        %s2362 = smul.u32 18, %s17
        %p2363 = scmp.lt.s32.totalorder %s2362, 35
        %s2364 = scalar_select %p2363, %s2362, 35
        %s2365 = smul.addr %s2364, 4
        %s2366 = scalar_lea.vmem %s5, %s2365
      $region94: #{rpn_forward.3} parent=89 // pred_fallthru
        _
    $region90: #{rpn_forward.3} parent=5 // pred_fallthru
      _
  $region6: #{rpn_forward.3} parent=0 // loop_footer
    %s15 = sadd.s32 1, %s11
  $region7: #{rpn_forward.3} parent=0 // loop_footer_branch
    %10 = sbr.rel target = $region3
  $region8: #{rpn_forward.3} parent=0 // loop_exit
    _
  %2367 = vsyncmov [#allocation3]
  %s2368 = vpop.sfrf %2367
  %p2369 = scmp.eq.s32.totalorder %s2368, 0
  %p2370 = pneg %p2369
  %2372 = shalt.err (%p2370)
  %s2373 = scalar_lea.sflag [#allocation3], 1
  %2374 = vsyncmov %s2373
  %s2375 = vpop.sfrf %2374
  %p2376 = scmp.eq.s32.totalorder %s2375, 0
  %p2377 = pneg %p2376
  %2379 = shalt.err (%p2377)

// kernel: approx_top_k.22
$region0: #{approx_top_k.22}
  #allocation0 [shape = 'u32[2048]{0}', space=vmem, size = 0x2000, scoped, tag = 'scoped memory for approx_top_k.22']
  #allocation1 [shape = 'u32[2048]{0}', space=vmem, size = 0x2000, scoped, tag = 'scoped memory for approx_top_k.22']
  #allocation2 [shape = 'u32[2048]{0}', space=vmem, size = 0x2000, scoped, tag = 'scoped memory for approx_top_k.22']
  #allocation3 [shape = 'u32[2048]{0}', space=vmem, size = 0x2000, scoped, tag = 'scoped memory for approx_top_k.22']
  #allocation4 [shape = 'u32[2048]{0}', space=vmem, size = 0x2000, scoped, tag = 'scoped memory for approx_top_k.22']
  #allocation5 [shape = 's32[1]{0}', space=sflag, size = 0x4, scoped, tag = 'scoped memory for approx_top_k.22']
  %s0 = inlined_call_operand.vmem [shape: f32[768], index: 0, kind: input, shape index: {}]
  %s1 = inlined_call_operand.vmem [shape: f32[256], index: 1, kind: output, shape index: {}]
  %v2 = vld [vmem:[%s0] sm:$0x3f]
  %3 = vst [vmem:[%s1] sm:$0x3] %v2

// kernel: custom-call
$region0: #{custom-call}
  %s0 = inlined_call_operand.vmem [shape: f32[1280], index: 0, kind: output, shape index: {}]

// kernel: rpn_forward.4
$region0: #{rpn_forward.4}
  #allocation0 [shape = 'u32[]', space=smem, size = 0x4, offset = 0x4, fixed_abs, tag = 'smem constant byte address 0x4 - core index']
  #allocation1 [shape = 'u32[72,128]{1,0:T(1,128)}', space=vmem, size = 0x9000, scoped, tag = 'internal scratch']
  %s0 = inlined_call_operand.vmem [shape: f32[4,256], index: 0, kind: input, shape index: {}]
  %s1 = inlined_call_operand.vmem [shape: f32[4,256], index: 1, kind: input, shape index: {}]
  %s2 = inlined_call_operand.vmem [shape: f32[1,256], index: 2, kind: input, shape index: {}]
  %s3 = inlined_call_operand.vmem [shape: f32[8,256], index: 3, kind: output, shape index: {}]
  %s4 = sld [smem:[#allocation0]]
  $region22: #{rpn_forward.4} parent=0
    _
  %s6 = ssub.s32 1, %s4
  %s7 = scalar_select 0, %s6, %s4
  // Predicated region
  $region2: #{rpn_forward.4} parent=0 // pred_check
    _
  $region3: #{rpn_forward.4} parent=0 // pred_check_branch
    %9 = sbr.rel (0) target = $region5
  $region4: #{rpn_forward.4} parent=0 // pred_region
    _
  $region5: #{rpn_forward.4} parent=0 // pred_fallthru
    _
  // Predicated region
  $region6: #{rpn_forward.4} parent=0 // pred_check
    _
  $region7: #{rpn_forward.4} parent=0 // pred_check_branch
    %11 = sbr.rel (0) target = $region9
  $region8: #{rpn_forward.4} parent=0 // pred_region
    _
  $region9: #{rpn_forward.4} parent=0 // pred_fallthru
    _
  // Predicated region
  $region10: #{rpn_forward.4} parent=0 // pred_check
    _
  $region11: #{rpn_forward.4} parent=0 // pred_check_branch
    %13 = sbr.rel (0) target = $region13
  $region12: #{rpn_forward.4} parent=0 // pred_region
    _
  $region13: #{rpn_forward.4} parent=0 // pred_fallthru
    _
  %v14 = vld [vmem:[%s0] sm:$0xff]
  %v15 = vld [vmem:[%s1] sm:$0xff]
  %v16 = vld [vmem:[%s2] sm:$0x3]
  %v17 = vmin.f32 %v14, 4.1351666
  %v19 = vrot.slane %v15, 6
  %v21 = vsub.f32 %v15, %v19
  %v22 = vmul.f32 %v21, 0.5
  %v24 = vrot.slane %v22, 6
  %v25 = vrot.slane %v24, 4
  %v27 = vadd.f32 %v15, %v25
  %v29 = vrot.slane %v21, 6
  %v30 = vrot.slane %v29, 4
  %v32 = vmul.f32 %v14, %v30
  %v33 = vadd.f32 %v32, %v27
  %v34 = vmul.f32 %v17, 1.442695
  %v35 = vpow.pop %v34
  %v36 = vmul.f32 %v35, %v21
  %v37 = vmul.f32 %v36, 0.5
  %v39 = vrot.slane %v37, 6
  %v40 = vrot.slane %v39, 4
  %v42 = vsub.f32 %v33, %v40
  %v43 = vmax.f32 %v42, 0.0
  %v44 = vmin.f32 %v43, 128.0
  %v45 = vadd.f32 %v33, %v40
  %v46 = vmax.f32 %v45, 0.0
  %v47 = vmin.f32 %v46, 128.0
  %v48 = vsub.f32 %v47, %v44
  %vm49 = vcmp.ge.f32.partialorder %v48, 1.0
  %v50 = vsel %vm49, 1, 0
  %v51 = vrot.slane %v50, 5
  %v52 = vrot.slane %v51, 4
  %vm53 = vcmp.ne.s32.totalorder %v52, 0
  %vm54 = vmand %vm49, %vm53
  %vm55 = vcmp.gt.f32.partialorder %v16, -inf
  %v56 = vsel %vm55, 1, 0
  %v58 = vunpack.c.l.s4 286326784
  %v59 = vunpack.c.0.s8 %v58
  %v60 = vperm.slane %v56, %v59
  %vm61 = vcmp.ne.s32.totalorder %v60, 0
  %vm62 = vmand %vm54, %vm61
  %v64 = vrot.slane %v48, 5
  %v65 = vrot.slane %v64, 4
  %v67 = vmul.f32 %v48, %v65
  %v68 = vsel %vm62, 1, 0
  %v69 = vcvt.s32.f32 %v68
  %v71 = vperm.slane %v44, 0
  %v72 = vperm.slane %v44, 4
  %v75 = vperm.slane %v44, 1
  %v76 = vperm.slane %v44, 5
  %v80 = vperm.slane %v47, 0
  %v81 = vperm.slane %v47, 4
  %v84 = vperm.slane %v47, 1
  %v85 = vperm.slane %v47, 5
  %v89 = vperm.slane %v69, 0
  %v90 = vperm.slane %v69, 4
  %v94 = vperm.slane %v67, 0
  %v95 = vperm.slane %v67, 4
  %vm98 = vcmask 1040384
  %v99 = vsel %vm98, %v71, %v75
  %v100 = vsel %vm98, %v72, %v76
  %vm101 = vcmask 1041408
  %v102 = vsel %vm101, %v99, %v80
  %v103 = vsel %vm101, %v100, %v81
  %vm104 = vcmask 1042432
  %v105 = vsel %vm104, %v102, %v84
  %v106 = vsel %vm104, %v103, %v85
  %vm107 = vcmask 1043456
  %v108 = vsel %vm107, %v105, %v89
  %v109 = vsel %vm107, %v106, %v90
  %vm110 = vcmask 1044480
  %v111 = vsel %vm110, %v108, %v94
  %v112 = vsel %vm110, %v109, %v95
  %vm113 = vcmask 1045504
  %v114 = vsel %vm113, %v111, 0.0
  %v115 = vsel %vm113, %v112, 0.0
  %116 = vst [vmem:[%s3] sm:$0xff] %v114
  %117 = vst [vmem:[%s3 + $0x8] sm:$0xff] %v115
  // Predicated region
  $region14: #{rpn_forward.4} parent=0 // pred_check
    _
  $region15: #{rpn_forward.4} parent=0 // pred_check_branch
    %119 = sbr.rel (0) target = $region17
  $region16: #{rpn_forward.4} parent=0 // pred_region
    _
  $region17: #{rpn_forward.4} parent=0 // pred_fallthru
    _
  // Predicated region
  $region18: #{rpn_forward.4} parent=0 // pred_check
    _
  $region19: #{rpn_forward.4} parent=0 // pred_check_branch
    %121 = sbr.rel (0) target = $region21
  $region20: #{rpn_forward.4} parent=0 // pred_region
    _
  $region21: #{rpn_forward.4} parent=0 // pred_fallthru
    _

// kernel: rpn_forward.5
$region0: #{rpn_forward.5}
  #allocation0 [shape = 'u32[]', space=smem, size = 0x4, offset = 0x4, fixed_abs, tag = 'smem constant byte address 0x4 - core index']
  #allocation1 [shape = 'u32[72,128]{1,0:T(1,128)}', space=vmem, size = 0x9000, scoped, tag = 'internal scratch']
  #allocation2 [shape = 'f32[1,1]{1,0:T(1,128)}', space=vmem, size = 0x200, scoped, tag = 'scratch operand']
  %s0 = inlined_call_operand.vmem [shape: f32[8,256], index: 0, kind: input, shape index: {}]
  %s1 = inlined_call_operand.vmem [shape: f32[1280], index: 1, kind: input, shape index: {}]
  %s2 = inlined_call_operand.vmem [shape: f32[1,256], index: 2, kind: output, shape index: {}]
  %s3 = sld [smem:[#allocation0]]
  $region33: #{rpn_forward.5} parent=0
    _
  %s5 = ssub.s32 1, %s3
  %s6 = scalar_select 0, %s5, %s3
  $region1: #{rpn_forward.5} parent=0
    #allocation3 [shape = 'u8[5120]{0}', space=smem, size = 0x1400, scoped, tag = 'input window, operand 1, single buffered']
    #allocation4 [shape = 's32[1]{0}', space=sflag, size = 0x4, scoped, tag = 'scoped memory for rpn_forward.5']
    %7 = vsyncpa [#allocation4], 0
    // Predicated region
    $region2: #{rpn_forward.5} parent=1 // pred_check
      _
    $region3: #{rpn_forward.5} parent=1 // pred_check_branch
      %9 = sbr.rel (0) target = $region5
    $region4: #{rpn_forward.5} parent=1 // pred_region
      _
    $region5: #{rpn_forward.5} parent=1 // pred_fallthru
      _
    // Predicated region
    $region6: #{rpn_forward.5} parent=1 // pred_check
      _
    $region7: #{rpn_forward.5} parent=1 // pred_check_branch
      %11 = sbr.rel (0) target = $region9
    $region8: #{rpn_forward.5} parent=1 // pred_region
      %13 = vsyncadd [#allocation4], 0
      %s15 = sshll.u32 %s1, 4
      %s16 = int_to_ptr.vmem [resolvable:$true] %s15
      %18 = dma.vmem_to_smem %s16, 160, [#allocation3], [#allocation4]
    $region9: #{rpn_forward.5} parent=1 // pred_fallthru
      _
    // Predicated region
    $region10: #{rpn_forward.5} parent=1 // pred_check
      _
    $region11: #{rpn_forward.5} parent=1 // pred_check_branch
      %20 = sbr.rel (0) target = $region13
    $region12: #{rpn_forward.5} parent=1 // pred_region
      %22 = dma.done [#allocation4], 160
    $region13: #{rpn_forward.5} parent=1 // pred_fallthru
      _
    %23 = sfence
    %v24 = vld [vmem:[%s0] sm:$0xff]
    %v25 = vld [vmem:[%s0 + $0x8] sm:$0xff]
    %v26 = vlaneseq
    %v27 = vand.u32 %v26, 127
    %v28 = vadd.s32 %v27, 128
    %31 = vst [vmem:[#allocation1] sm:$0xff] %v24
    %32 = vst [vmem:[#allocation1 + $0x9] sm:$0xff] %v25
    %s33 = scalar_lea.vmem [#allocation1], 4
    %v34 = vld [vmem:[%s33] ss:$9 sm:$0xff]
    %v36 = vlaneseq
    %vm37 = vcmp.ge.s32.totalorder %v36, 0
    %vm38 = vcmp.lt.s32.totalorder %v36, 256
    %vm39 = vmand %vm37, %vm38
    %40 = vst.msk [vmem:[%s2] sm:$0x3] %vm39, %v34
    %vm41 = vcmask 0
    %42 = vst.msk [vmem:[#allocation2] sm:$0x1] %vm41, 0.0
    loop: start=0, step=1, limit=32
    $region14: #{rpn_forward.5} parent=1 // loop_pre_header
      _
    $region15: #{rpn_forward.5} parent=1 // loop_header
      %s44 = sphi 0, %s48
      %p45 = scmp.ge.s32.totalorder %s44, 32
    $region16: #{rpn_forward.5} parent=1 // loop_header_branch
      %47 = sbr.rel (%p45) target = $region20
    $region17: #{rpn_forward.5} parent=1 // loop_body
      %v49 = vld [vmem:[#allocation2] sm:$0x1]
      %s50 = vtos %v49
      %p51 = scmp.lt.f32.partialorder %s50, 64.0
      // Predicated region
      $region21: #{rpn_forward.5} parent=17 // pred_check
        %p52 = pneg %p51
      $region22: #{rpn_forward.5} parent=17 // pred_check_branch
        %54 = sbr.rel (%p52) target = $region24
      $region23: #{rpn_forward.5} parent=17 // pred_region
        %s55 = smul.u32 %s44, 8
        %v56 = vld [vmem:[%s2] sm:$0x3]
        %s57 = sld [smem:[#allocation3 + %s55]]
        %s58 = sadd.s32 %s55, 256
        %s59 = sld [smem:[#allocation3 + %s58]]
        %s60 = sadd.s32 %s55, 512
        %s61 = sld [smem:[#allocation3 + %s60]]
        %s62 = sadd.s32 %s55, 768
        %s63 = sld [smem:[#allocation3 + %s62]]
        %s64 = sadd.s32 %s55, 1024
        %s65 = sld [smem:[#allocation3 + %s64]]
        %v66 = vstv %s55
        %vm67 = vcmp.eq.s32.totalorder %v27, %v66
        %vm68 = vcmp.eq.s32.totalorder %v28, %v66
        %v70 = vperm.slane %v56, 0
        %v71 = vperm.slane %v56, 1
        %v74 = vsel %vm67, %v70, 0.0
        %v75 = vsel %vm68, %v71, 0.0
        %vm76 = vcmask 1040384
        %v77 = vsel %vm76, %v74, 0.0
        %v78 = vsel %vm76, %v75, 0.0
        %v79 = vadd.f32 %v77, %v78
        %80 = vadd.xlane.f32.xlu0 %v79
        %v81 = vpop.xlane.xlu0 %80
        %v82 = vstv %s61
        %v83 = vmin.f32 %v82, %v24
        %v84 = vmin.f32 %v82, %v25
        %v85 = vstv %s57
        %v86 = vmax.f32 %v85, %v24
        %v87 = vmax.f32 %v85, %v25
        %v90 = vrot.slane %v86, 6
        %v91 = vrot.slane %v87, 6
        %v94 = vsub.f32 %v83, %v90
        %v95 = vsub.f32 %v84, %v91
        %v96 = vmax.f32 %v94, 0.0
        %v97 = vmax.f32 %v95, 0.0
        %v98 = vstv %s63
        %v99 = vmin.f32 %v98, %v24
        %v100 = vmin.f32 %v98, %v25
        %v101 = vstv %s59
        %v102 = vmax.f32 %v101, %v24
        %v103 = vmax.f32 %v101, %v25
        %v106 = vrot.slane %v102, 6
        %v107 = vrot.slane %v103, 6
        %v110 = vsub.f32 %v99, %v106
        %v111 = vsub.f32 %v100, %v107
        %v112 = vmax.f32 %v110, 0.0
        %v113 = vmax.f32 %v111, 0.0
        %v116 = vrot.slane %v112, 1
        %v117 = vrot.slane %v113, 1
        %v120 = vmul.f32 %v96, %v116
        %v121 = vmul.f32 %v97, %v117
        %v122 = vstv %s65
        %v123 = vadd.f32 %v122, %v24
        %v124 = vadd.f32 %v122, %v25
        %v127 = vrot.slane %v120, 5
        %v128 = vrot.slane %v121, 5
        %v131 = vsub.f32 %v123, %v127
        %v132 = vsub.f32 %v124, %v128
        %v133 = vmax.f32 %v131, 1e-08
        %v134 = vmax.f32 %v132, 1e-08
        %v137 = vrot.slane %v133, 3
        %v138 = vrot.slane %v134, 3
        %v141 = vrcp.pop %v137
        %v142 = vmul.f32 %v137, %v141
        %v143 = vsub.f32 1.0, %v142
        %v144 = vmul.f32 %v141, %v143
        %v145 = vadd.f32 %v141, %v144
        %vm146 = vweird.f32 %v137
        %vm147 = vweird.f32 %v141
        %vm148 = vmor %vm146, %vm147
        %v149 = vsel %vm148, %v141, %v145
        %v150 = vand.u32 2147483647, %v137
        %vm151 = vcmp.eq.f32.partialorder %v150, 8.507059e+37
        %v152 = vand.u32 %v137, 2147483648
        %v153 = vor.u32 1.1754944e-38, %v152
        %v154 = vsel %vm151, %v153, %v149
        %v155 = vmul.f32 %v120, %v154
        %v156 = vrcp.pop %v138
        %v157 = vmul.f32 %v138, %v156
        %v158 = vsub.f32 1.0, %v157
        %v159 = vmul.f32 %v156, %v158
        %v160 = vadd.f32 %v156, %v159
        %vm161 = vweird.f32 %v138
        %vm162 = vweird.f32 %v156
        %vm163 = vmor %vm161, %vm162
        %v164 = vsel %vm163, %v156, %v160
        %v165 = vand.u32 2147483647, %v138
        %vm166 = vcmp.eq.f32.partialorder %v165, 8.507059e+37
        %v167 = vand.u32 %v138, 2147483648
        %v168 = vor.u32 1.1754944e-38, %v167
        %v169 = vsel %vm166, %v168, %v164
        %v170 = vmul.f32 %v121, %v169
        %vm171 = vcmp.gt.f32.partialorder %v155, 0.7
        %vm172 = vcmp.gt.f32.partialorder %v170, 0.7
        %vm173 = vcmp.gt.s32.totalorder %v27, %v66
        %vm174 = vcmp.gt.s32.totalorder %v28, %v66
        %vm175 = vmand %vm171, %vm173
        %vm176 = vmand %vm172, %vm174
        %vm177 = vcmp.gt.f32.partialorder %v81, 0.0
        %v178 = vsel %vm177, 1, 0
        %vm179 = vcmp.eq.s32.totalorder %v178, 1
        %v180 = vsel %vm179, 1, 0
        %v181 = vrot.slane %v180, 6
        %vm182 = vcmp.ne.s32.totalorder %v181, 0
        %vm183 = vmand %vm175, %vm182
        %vm184 = vmand %vm176, %vm182
        %v185 = vsel %vm183, 0.0, %v70
        %v186 = vsel %vm184, 0.0, %v71
        %s187 = sadd.s32 %s55, 1
        %s188 = sld [smem:[#allocation3 + %s187]]
        %s189 = sadd.s32 %s55, 257
        %s190 = sld [smem:[#allocation3 + %s189]]
        %s191 = sadd.s32 %s55, 513
        %s192 = sld [smem:[#allocation3 + %s191]]
        %s193 = sadd.s32 %s55, 769
        %s194 = sld [smem:[#allocation3 + %s193]]
        %s195 = sadd.s32 %s55, 1025
        %s196 = sld [smem:[#allocation3 + %s195]]
        %v197 = vstv %s187
        %vm198 = vcmp.eq.s32.totalorder %v27, %v197
        %vm199 = vcmp.eq.s32.totalorder %v28, %v197
        %v200 = vsel %vm198, %v185, 0.0
        %v201 = vsel %vm199, %v186, 0.0
        %vm202 = vcmask 1042434
        %v203 = vsel %vm202, %v200, 0.0
        %v204 = vsel %vm202, %v201, 0.0
        %v205 = vadd.f32 %v203, %v204
        %206 = vadd.xlane.f32.xlu0 %v205
        %v207 = vpop.xlane.xlu0 %206
        %v208 = vstv %s192
        %v209 = vmin.f32 %v208, %v24
        %v210 = vmin.f32 %v208, %v25
        %v211 = vstv %s188
        %v212 = vmax.f32 %v211, %v24
        %v213 = vmax.f32 %v211, %v25
        %v216 = vrot.slane %v212, 6
        %v217 = vrot.slane %v213, 6
        %v220 = vsub.f32 %v209, %v216
        %v221 = vsub.f32 %v210, %v217
        %v222 = vmax.f32 %v220, 0.0
        %v223 = vmax.f32 %v221, 0.0
        %v224 = vstv %s194
        %v225 = vmin.f32 %v224, %v24
        %v226 = vmin.f32 %v224, %v25
        %v227 = vstv %s190
        %v228 = vmax.f32 %v227, %v24
        %v229 = vmax.f32 %v227, %v25
        %v232 = vrot.slane %v228, 6
        %v233 = vrot.slane %v229, 6
        %v236 = vsub.f32 %v225, %v232
        %v237 = vsub.f32 %v226, %v233
        %v238 = vmax.f32 %v236, 0.0
        %v239 = vmax.f32 %v237, 0.0
        %v242 = vrot.slane %v238, 1
        %v243 = vrot.slane %v239, 1
        %v246 = vmul.f32 %v222, %v242
        %v247 = vmul.f32 %v223, %v243
        %v248 = vstv %s196
        %v249 = vadd.f32 %v248, %v24
        %v250 = vadd.f32 %v248, %v25
        %v253 = vrot.slane %v246, 5
        %v254 = vrot.slane %v247, 5
        %v257 = vsub.f32 %v249, %v253
        %v258 = vsub.f32 %v250, %v254
        %v259 = vmax.f32 %v257, 1e-08
        %v260 = vmax.f32 %v258, 1e-08
        %v263 = vrot.slane %v259, 3
        %v264 = vrot.slane %v260, 3
        %v267 = vrcp.pop %v263
        %v268 = vmul.f32 %v263, %v267
        %v269 = vsub.f32 1.0, %v268
        %v270 = vmul.f32 %v267, %v269
        %v271 = vadd.f32 %v267, %v270
        %vm272 = vweird.f32 %v263
        %vm273 = vweird.f32 %v267
        %vm274 = vmor %vm272, %vm273
        %v275 = vsel %vm274, %v267, %v271
        %v276 = vand.u32 2147483647, %v263
        %vm277 = vcmp.eq.f32.partialorder %v276, 8.507059e+37
        %v278 = vand.u32 %v263, 2147483648
        %v279 = vor.u32 1.1754944e-38, %v278
        %v280 = vsel %vm277, %v279, %v275
        %v281 = vmul.f32 %v246, %v280
        %v282 = vrcp.pop %v264
        %v283 = vmul.f32 %v264, %v282
        %v284 = vsub.f32 1.0, %v283
        %v285 = vmul.f32 %v282, %v284
        %v286 = vadd.f32 %v282, %v285
        %vm287 = vweird.f32 %v264
        %vm288 = vweird.f32 %v282
        %vm289 = vmor %vm287, %vm288
        %v290 = vsel %vm289, %v282, %v286
        %v291 = vand.u32 2147483647, %v264
        %vm292 = vcmp.eq.f32.partialorder %v291, 8.507059e+37
        %v293 = vand.u32 %v264, 2147483648
        %v294 = vor.u32 1.1754944e-38, %v293
        %v295 = vsel %vm292, %v294, %v290
        %v296 = vmul.f32 %v247, %v295
        %vm297 = vcmp.gt.f32.partialorder %v281, 0.7
        %vm298 = vcmp.gt.f32.partialorder %v296, 0.7
        %vm299 = vcmp.gt.s32.totalorder %v27, %v197
        %vm300 = vcmp.gt.s32.totalorder %v28, %v197
        %vm301 = vmand %vm297, %vm299
        %vm302 = vmand %vm298, %vm300
        %vm303 = vcmp.gt.f32.partialorder %v207, 0.0
        %v304 = vsel %vm303, 1, 0
        %vm305 = vcmp.eq.s32.totalorder %v304, 1
        %vm306 = vmand %vm301, %vm305
        %vm307 = vmand %vm302, %vm305
        %v308 = vsel %vm306, 0.0, %v185
        %v309 = vsel %vm307, 0.0, %v186
        %s310 = sadd.s32 %s55, 2
        %s311 = sld [smem:[#allocation3 + %s310]]
        %s312 = sadd.s32 %s55, 258
        %s313 = sld [smem:[#allocation3 + %s312]]
        %s314 = sadd.s32 %s55, 514
        %s315 = sld [smem:[#allocation3 + %s314]]
        %s316 = sadd.s32 %s55, 770
        %s317 = sld [smem:[#allocation3 + %s316]]
        %s318 = sadd.s32 %s55, 1026
        %s319 = sld [smem:[#allocation3 + %s318]]
        %v320 = vstv %s310
        %vm321 = vcmp.eq.s32.totalorder %v27, %v320
        %vm322 = vcmp.eq.s32.totalorder %v28, %v320
        %v323 = vsel %vm321, %v308, 0.0
        %v324 = vsel %vm322, %v309, 0.0
        %v325 = vsel %vm202, %v323, 0.0
        %v326 = vsel %vm202, %v324, 0.0
        %v327 = vadd.f32 %v325, %v326
        %328 = vadd.xlane.f32.xlu0 %v327
        %v329 = vpop.xlane.xlu0 %328
        %v330 = vstv %s315
        %v331 = vmin.f32 %v330, %v24
        %v332 = vmin.f32 %v330, %v25
        %v333 = vstv %s311
        %v334 = vmax.f32 %v333, %v24
        %v335 = vmax.f32 %v333, %v25
        %v338 = vrot.slane %v334, 6
        %v339 = vrot.slane %v335, 6
        %v342 = vsub.f32 %v331, %v338
        %v343 = vsub.f32 %v332, %v339
        %v344 = vmax.f32 %v342, 0.0
        %v345 = vmax.f32 %v343, 0.0
        %v346 = vstv %s317
        %v347 = vmin.f32 %v346, %v24
        %v348 = vmin.f32 %v346, %v25
        %v349 = vstv %s313
        %v350 = vmax.f32 %v349, %v24
        %v351 = vmax.f32 %v349, %v25
        %v354 = vrot.slane %v350, 6
        %v355 = vrot.slane %v351, 6
        %v358 = vsub.f32 %v347, %v354
        %v359 = vsub.f32 %v348, %v355
        %v360 = vmax.f32 %v358, 0.0
        %v361 = vmax.f32 %v359, 0.0
        %v364 = vrot.slane %v360, 1
        %v365 = vrot.slane %v361, 1
        %v368 = vmul.f32 %v344, %v364
        %v369 = vmul.f32 %v345, %v365
        %v370 = vstv %s319
        %v371 = vadd.f32 %v370, %v24
        %v372 = vadd.f32 %v370, %v25
        %v375 = vrot.slane %v368, 5
        %v376 = vrot.slane %v369, 5
        %v379 = vsub.f32 %v371, %v375
        %v380 = vsub.f32 %v372, %v376
        %v381 = vmax.f32 %v379, 1e-08
        %v382 = vmax.f32 %v380, 1e-08
        %v385 = vrot.slane %v381, 3
        %v386 = vrot.slane %v382, 3
        %v389 = vrcp.pop %v385
        %v390 = vmul.f32 %v385, %v389
        %v391 = vsub.f32 1.0, %v390
        %v392 = vmul.f32 %v389, %v391
        %v393 = vadd.f32 %v389, %v392
        %vm394 = vweird.f32 %v385
        %vm395 = vweird.f32 %v389
        %vm396 = vmor %vm394, %vm395
        %v397 = vsel %vm396, %v389, %v393
        %v398 = vand.u32 2147483647, %v385
        %vm399 = vcmp.eq.f32.partialorder %v398, 8.507059e+37
        %v400 = vand.u32 %v385, 2147483648
        %v401 = vor.u32 1.1754944e-38, %v400
        %v402 = vsel %vm399, %v401, %v397
        %v403 = vmul.f32 %v368, %v402
        %v404 = vrcp.pop %v386
        %v405 = vmul.f32 %v386, %v404
        %v406 = vsub.f32 1.0, %v405
        %v407 = vmul.f32 %v404, %v406
        %v408 = vadd.f32 %v404, %v407
        %vm409 = vweird.f32 %v386
        %vm410 = vweird.f32 %v404
        %vm411 = vmor %vm409, %vm410
        %v412 = vsel %vm411, %v404, %v408
        %v413 = vand.u32 2147483647, %v386
        %vm414 = vcmp.eq.f32.partialorder %v413, 8.507059e+37
        %v415 = vand.u32 %v386, 2147483648
        %v416 = vor.u32 1.1754944e-38, %v415
        %v417 = vsel %vm414, %v416, %v412
        %v418 = vmul.f32 %v369, %v417
        %vm419 = vcmp.gt.f32.partialorder %v403, 0.7
        %vm420 = vcmp.gt.f32.partialorder %v418, 0.7
        %vm421 = vcmp.gt.s32.totalorder %v27, %v320
        %vm422 = vcmp.gt.s32.totalorder %v28, %v320
        %vm423 = vmand %vm419, %vm421
        %vm424 = vmand %vm420, %vm422
        %vm425 = vcmp.gt.f32.partialorder %v329, 0.0
        %v426 = vsel %vm425, 1, 0
        %vm427 = vcmp.eq.s32.totalorder %v426, 1
        %vm428 = vmand %vm423, %vm427
        %vm429 = vmand %vm424, %vm427
        %v430 = vsel %vm428, 0.0, %v308
        %v431 = vsel %vm429, 0.0, %v309
        %s432 = sadd.s32 %s55, 3
        %s433 = sld [smem:[#allocation3 + %s432]]
        %s434 = sadd.s32 %s55, 259
        %s435 = sld [smem:[#allocation3 + %s434]]
        %s436 = sadd.s32 %s55, 515
        %s437 = sld [smem:[#allocation3 + %s436]]
        %s438 = sadd.s32 %s55, 771
        %s439 = sld [smem:[#allocation3 + %s438]]
        %s440 = sadd.s32 %s55, 1027
        %s441 = sld [smem:[#allocation3 + %s440]]
        %v442 = vstv %s432
        %vm443 = vcmp.eq.s32.totalorder %v27, %v442
        %vm444 = vcmp.eq.s32.totalorder %v28, %v442
        %v445 = vsel %vm443, %v430, 0.0
        %v446 = vsel %vm444, %v431, 0.0
        %v447 = vsel %vm202, %v445, 0.0
        %v448 = vsel %vm202, %v446, 0.0
        %v449 = vadd.f32 %v447, %v448
        %450 = vadd.xlane.f32.xlu0 %v449
        %v451 = vpop.xlane.xlu0 %450
        %v452 = vstv %s437
        %v453 = vmin.f32 %v452, %v24
        %v454 = vmin.f32 %v452, %v25
        %v455 = vstv %s433
        %v456 = vmax.f32 %v455, %v24
        %v457 = vmax.f32 %v455, %v25
        %v460 = vrot.slane %v456, 6
        %v461 = vrot.slane %v457, 6
        %v464 = vsub.f32 %v453, %v460
        %v465 = vsub.f32 %v454, %v461
        %v466 = vmax.f32 %v464, 0.0
        %v467 = vmax.f32 %v465, 0.0
        %v468 = vstv %s439
        %v469 = vmin.f32 %v468, %v24
        %v470 = vmin.f32 %v468, %v25
        %v471 = vstv %s435
        %v472 = vmax.f32 %v471, %v24
        %v473 = vmax.f32 %v471, %v25
        %v476 = vrot.slane %v472, 6
        %v477 = vrot.slane %v473, 6
        %v480 = vsub.f32 %v469, %v476
        %v481 = vsub.f32 %v470, %v477
        %v482 = vmax.f32 %v480, 0.0
        %v483 = vmax.f32 %v481, 0.0
        %v486 = vrot.slane %v482, 1
        %v487 = vrot.slane %v483, 1
        %v490 = vmul.f32 %v466, %v486
        %v491 = vmul.f32 %v467, %v487
        %v492 = vstv %s441
        %v493 = vadd.f32 %v492, %v24
        %v494 = vadd.f32 %v492, %v25
        %v497 = vrot.slane %v490, 5
        %v498 = vrot.slane %v491, 5
        %v501 = vsub.f32 %v493, %v497
        %v502 = vsub.f32 %v494, %v498
        %v503 = vmax.f32 %v501, 1e-08
        %v504 = vmax.f32 %v502, 1e-08
        %v507 = vrot.slane %v503, 3
        %v508 = vrot.slane %v504, 3
        %v511 = vrcp.pop %v507
        %v512 = vmul.f32 %v507, %v511
        %v513 = vsub.f32 1.0, %v512
        %v514 = vmul.f32 %v511, %v513
        %v515 = vadd.f32 %v511, %v514
        %vm516 = vweird.f32 %v507
        %vm517 = vweird.f32 %v511
        %vm518 = vmor %vm516, %vm517
        %v519 = vsel %vm518, %v511, %v515
        %v520 = vand.u32 2147483647, %v507
        %vm521 = vcmp.eq.f32.partialorder %v520, 8.507059e+37
        %v522 = vand.u32 %v507, 2147483648
        %v523 = vor.u32 1.1754944e-38, %v522
        %v524 = vsel %vm521, %v523, %v519
        %v525 = vmul.f32 %v490, %v524
        %v526 = vrcp.pop %v508
        %v527 = vmul.f32 %v508, %v526
        %v528 = vsub.f32 1.0, %v527
        %v529 = vmul.f32 %v526, %v528
        %v530 = vadd.f32 %v526, %v529
        %vm531 = vweird.f32 %v508
        %vm532 = vweird.f32 %v526
        %vm533 = vmor %vm531, %vm532
        %v534 = vsel %vm533, %v526, %v530
        %v535 = vand.u32 2147483647, %v508
        %vm536 = vcmp.eq.f32.partialorder %v535, 8.507059e+37
        %v537 = vand.u32 %v508, 2147483648
        %v538 = vor.u32 1.1754944e-38, %v537
        %v539 = vsel %vm536, %v538, %v534
        %v540 = vmul.f32 %v491, %v539
        %vm541 = vcmp.gt.f32.partialorder %v525, 0.7
        %vm542 = vcmp.gt.f32.partialorder %v540, 0.7
        %vm543 = vcmp.gt.s32.totalorder %v27, %v442
        %vm544 = vcmp.gt.s32.totalorder %v28, %v442
        %vm545 = vmand %vm541, %vm543
        %vm546 = vmand %vm542, %vm544
        %vm547 = vcmp.gt.f32.partialorder %v451, 0.0
        %v548 = vsel %vm547, 1, 0
        %vm549 = vcmp.eq.s32.totalorder %v548, 1
        %vm550 = vmand %vm545, %vm549
        %vm551 = vmand %vm546, %vm549
        %v552 = vsel %vm550, 0.0, %v430
        %v553 = vsel %vm551, 0.0, %v431
        %s554 = sadd.s32 %s55, 4
        %s555 = sld [smem:[#allocation3 + %s554]]
        %s556 = sadd.s32 %s55, 260
        %s557 = sld [smem:[#allocation3 + %s556]]
        %s558 = sadd.s32 %s55, 516
        %s559 = sld [smem:[#allocation3 + %s558]]
        %s560 = sadd.s32 %s55, 772
        %s561 = sld [smem:[#allocation3 + %s560]]
        %s562 = sadd.s32 %s55, 1028
        %s563 = sld [smem:[#allocation3 + %s562]]
        %v564 = vstv %s554
        %vm565 = vcmp.eq.s32.totalorder %v27, %v564
        %vm566 = vcmp.eq.s32.totalorder %v28, %v564
        %v567 = vsel %vm565, %v552, 0.0
        %v568 = vsel %vm566, %v553, 0.0
        %v569 = vsel %vm202, %v567, 0.0
        %v570 = vsel %vm202, %v568, 0.0
        %v571 = vadd.f32 %v569, %v570
        %572 = vadd.xlane.f32.xlu0 %v571
        %v573 = vpop.xlane.xlu0 %572
        %v574 = vstv %s559
        %v575 = vmin.f32 %v574, %v24
        %v576 = vmin.f32 %v574, %v25
        %v577 = vstv %s555
        %v578 = vmax.f32 %v577, %v24
        %v579 = vmax.f32 %v577, %v25
        %v582 = vrot.slane %v578, 6
        %v583 = vrot.slane %v579, 6
        %v586 = vsub.f32 %v575, %v582
        %v587 = vsub.f32 %v576, %v583
        %v588 = vmax.f32 %v586, 0.0
        %v589 = vmax.f32 %v587, 0.0
        %v590 = vstv %s561
        %v591 = vmin.f32 %v590, %v24
        %v592 = vmin.f32 %v590, %v25
        %v593 = vstv %s557
        %v594 = vmax.f32 %v593, %v24
        %v595 = vmax.f32 %v593, %v25
        %v598 = vrot.slane %v594, 6
        %v599 = vrot.slane %v595, 6
        %v602 = vsub.f32 %v591, %v598
        %v603 = vsub.f32 %v592, %v599
        %v604 = vmax.f32 %v602, 0.0
        %v605 = vmax.f32 %v603, 0.0
        %v608 = vrot.slane %v604, 1
        %v609 = vrot.slane %v605, 1
        %v612 = vmul.f32 %v588, %v608
        %v613 = vmul.f32 %v589, %v609
        %v614 = vstv %s563
        %v615 = vadd.f32 %v614, %v24
        %v616 = vadd.f32 %v614, %v25
        %v619 = vrot.slane %v612, 5
        %v620 = vrot.slane %v613, 5
        %v623 = vsub.f32 %v615, %v619
        %v624 = vsub.f32 %v616, %v620
        %v625 = vmax.f32 %v623, 1e-08
        %v626 = vmax.f32 %v624, 1e-08
        %v629 = vrot.slane %v625, 3
        %v630 = vrot.slane %v626, 3
        %v633 = vrcp.pop %v629
        %v634 = vmul.f32 %v629, %v633
        %v635 = vsub.f32 1.0, %v634
        %v636 = vmul.f32 %v633, %v635
        %v637 = vadd.f32 %v633, %v636
        %vm638 = vweird.f32 %v629
        %vm639 = vweird.f32 %v633
        %vm640 = vmor %vm638, %vm639
        %v641 = vsel %vm640, %v633, %v637
        %v642 = vand.u32 2147483647, %v629
        %vm643 = vcmp.eq.f32.partialorder %v642, 8.507059e+37
        %v644 = vand.u32 %v629, 2147483648
        %v645 = vor.u32 1.1754944e-38, %v644
        %v646 = vsel %vm643, %v645, %v641
        %v647 = vmul.f32 %v612, %v646
        %v648 = vrcp.pop %v630
        %v649 = vmul.f32 %v630, %v648
        %v650 = vsub.f32 1.0, %v649
        %v651 = vmul.f32 %v648, %v650
        %v652 = vadd.f32 %v648, %v651
        %vm653 = vweird.f32 %v630
        %vm654 = vweird.f32 %v648
        %vm655 = vmor %vm653, %vm654
        %v656 = vsel %vm655, %v648, %v652
        %v657 = vand.u32 2147483647, %v630
        %vm658 = vcmp.eq.f32.partialorder %v657, 8.507059e+37
        %v659 = vand.u32 %v630, 2147483648
        %v660 = vor.u32 1.1754944e-38, %v659
        %v661 = vsel %vm658, %v660, %v656
        %v662 = vmul.f32 %v613, %v661
        %vm663 = vcmp.gt.f32.partialorder %v647, 0.7
        %vm664 = vcmp.gt.f32.partialorder %v662, 0.7
        %vm665 = vcmp.gt.s32.totalorder %v27, %v564
        %vm666 = vcmp.gt.s32.totalorder %v28, %v564
        %vm667 = vmand %vm663, %vm665
        %vm668 = vmand %vm664, %vm666
        %vm669 = vcmp.gt.f32.partialorder %v573, 0.0
        %v670 = vsel %vm669, 1, 0
        %vm671 = vcmp.eq.s32.totalorder %v670, 1
        %vm672 = vmand %vm667, %vm671
        %vm673 = vmand %vm668, %vm671
        %v674 = vsel %vm672, 0.0, %v552
        %v675 = vsel %vm673, 0.0, %v553
        %s676 = sadd.s32 %s55, 5
        %s677 = sld [smem:[#allocation3 + %s676]]
        %s678 = sadd.s32 %s55, 261
        %s679 = sld [smem:[#allocation3 + %s678]]
        %s680 = sadd.s32 %s55, 517
        %s681 = sld [smem:[#allocation3 + %s680]]
        %s682 = sadd.s32 %s55, 773
        %s683 = sld [smem:[#allocation3 + %s682]]
        %s684 = sadd.s32 %s55, 1029
        %s685 = sld [smem:[#allocation3 + %s684]]
        %v686 = vstv %s676
        %vm687 = vcmp.eq.s32.totalorder %v27, %v686
        %vm688 = vcmp.eq.s32.totalorder %v28, %v686
        %v689 = vsel %vm687, %v674, 0.0
        %v690 = vsel %vm688, %v675, 0.0
        %v691 = vsel %vm202, %v689, 0.0
        %v692 = vsel %vm202, %v690, 0.0
        %v693 = vadd.f32 %v691, %v692
        %694 = vadd.xlane.f32.xlu0 %v693
        %v695 = vpop.xlane.xlu0 %694
        %v696 = vstv %s681
        %v697 = vmin.f32 %v696, %v24
        %v698 = vmin.f32 %v696, %v25
        %v699 = vstv %s677
        %v700 = vmax.f32 %v699, %v24
        %v701 = vmax.f32 %v699, %v25
        %v704 = vrot.slane %v700, 6
        %v705 = vrot.slane %v701, 6
        %v708 = vsub.f32 %v697, %v704
        %v709 = vsub.f32 %v698, %v705
        %v710 = vmax.f32 %v708, 0.0
        %v711 = vmax.f32 %v709, 0.0
        %v712 = vstv %s683
        %v713 = vmin.f32 %v712, %v24
        %v714 = vmin.f32 %v712, %v25
        %v715 = vstv %s679
        %v716 = vmax.f32 %v715, %v24
        %v717 = vmax.f32 %v715, %v25
        %v720 = vrot.slane %v716, 6
        %v721 = vrot.slane %v717, 6
        %v724 = vsub.f32 %v713, %v720
        %v725 = vsub.f32 %v714, %v721
        %v726 = vmax.f32 %v724, 0.0
        %v727 = vmax.f32 %v725, 0.0
        %v730 = vrot.slane %v726, 1
        %v731 = vrot.slane %v727, 1
        %v734 = vmul.f32 %v710, %v730
        %v735 = vmul.f32 %v711, %v731
        %v736 = vstv %s685
        %v737 = vadd.f32 %v736, %v24
        %v738 = vadd.f32 %v736, %v25
        %v741 = vrot.slane %v734, 5
        %v742 = vrot.slane %v735, 5
        %v745 = vsub.f32 %v737, %v741
        %v746 = vsub.f32 %v738, %v742
        %v747 = vmax.f32 %v745, 1e-08
        %v748 = vmax.f32 %v746, 1e-08
        %v751 = vrot.slane %v747, 3
        %v752 = vrot.slane %v748, 3
        %v755 = vrcp.pop %v751
        %v756 = vmul.f32 %v751, %v755
        %v757 = vsub.f32 1.0, %v756
        %v758 = vmul.f32 %v755, %v757
        %v759 = vadd.f32 %v755, %v758
        %vm760 = vweird.f32 %v751
        %vm761 = vweird.f32 %v755
        %vm762 = vmor %vm760, %vm761
        %v763 = vsel %vm762, %v755, %v759
        %v764 = vand.u32 2147483647, %v751
        %vm765 = vcmp.eq.f32.partialorder %v764, 8.507059e+37
        %v766 = vand.u32 %v751, 2147483648
        %v767 = vor.u32 1.1754944e-38, %v766
        %v768 = vsel %vm765, %v767, %v763
        %v769 = vmul.f32 %v734, %v768
        %v770 = vrcp.pop %v752
        %v771 = vmul.f32 %v752, %v770
        %v772 = vsub.f32 1.0, %v771
        %v773 = vmul.f32 %v770, %v772
        %v774 = vadd.f32 %v770, %v773
        %vm775 = vweird.f32 %v752
        %vm776 = vweird.f32 %v770
        %vm777 = vmor %vm775, %vm776
        %v778 = vsel %vm777, %v770, %v774
        %v779 = vand.u32 2147483647, %v752
        %vm780 = vcmp.eq.f32.partialorder %v779, 8.507059e+37
        %v781 = vand.u32 %v752, 2147483648
        %v782 = vor.u32 1.1754944e-38, %v781
        %v783 = vsel %vm780, %v782, %v778
        %v784 = vmul.f32 %v735, %v783
        %vm785 = vcmp.gt.f32.partialorder %v769, 0.7
        %vm786 = vcmp.gt.f32.partialorder %v784, 0.7
        %vm787 = vcmp.gt.s32.totalorder %v27, %v686
        %vm788 = vcmp.gt.s32.totalorder %v28, %v686
        %vm789 = vmand %vm785, %vm787
        %vm790 = vmand %vm786, %vm788
        %vm791 = vcmp.gt.f32.partialorder %v695, 0.0
        %v792 = vsel %vm791, 1, 0
        %vm793 = vcmp.eq.s32.totalorder %v792, 1
        %vm794 = vmand %vm789, %vm793
        %vm795 = vmand %vm790, %vm793
        %v796 = vsel %vm794, 0.0, %v674
        %v797 = vsel %vm795, 0.0, %v675
        %s798 = sadd.s32 %s55, 6
        %s799 = sld [smem:[#allocation3 + %s798]]
        %s800 = sadd.s32 %s55, 262
        %s801 = sld [smem:[#allocation3 + %s800]]
        %s802 = sadd.s32 %s55, 518
        %s803 = sld [smem:[#allocation3 + %s802]]
        %s804 = sadd.s32 %s55, 774
        %s805 = sld [smem:[#allocation3 + %s804]]
        %s806 = sadd.s32 %s55, 1030
        %s807 = sld [smem:[#allocation3 + %s806]]
        %v808 = vstv %s798
        %vm809 = vcmp.eq.s32.totalorder %v27, %v808
        %vm810 = vcmp.eq.s32.totalorder %v28, %v808
        %v811 = vsel %vm809, %v796, 0.0
        %v812 = vsel %vm810, %v797, 0.0
        %v813 = vsel %vm202, %v811, 0.0
        %v814 = vsel %vm202, %v812, 0.0
        %v815 = vadd.f32 %v813, %v814
        %816 = vadd.xlane.f32.xlu0 %v815
        %v817 = vpop.xlane.xlu0 %816
        %v818 = vstv %s803
        %v819 = vmin.f32 %v818, %v24
        %v820 = vmin.f32 %v818, %v25
        %v821 = vstv %s799
        %v822 = vmax.f32 %v821, %v24
        %v823 = vmax.f32 %v821, %v25
        %v826 = vrot.slane %v822, 6
        %v827 = vrot.slane %v823, 6
        %v830 = vsub.f32 %v819, %v826
        %v831 = vsub.f32 %v820, %v827
        %v832 = vmax.f32 %v830, 0.0
        %v833 = vmax.f32 %v831, 0.0
        %v834 = vstv %s805
        %v835 = vmin.f32 %v834, %v24
        %v836 = vmin.f32 %v834, %v25
        %v837 = vstv %s801
        %v838 = vmax.f32 %v837, %v24
        %v839 = vmax.f32 %v837, %v25
        %v842 = vrot.slane %v838, 6
        %v843 = vrot.slane %v839, 6
        %v846 = vsub.f32 %v835, %v842
        %v847 = vsub.f32 %v836, %v843
        %v848 = vmax.f32 %v846, 0.0
        %v849 = vmax.f32 %v847, 0.0
        %v852 = vrot.slane %v848, 1
        %v853 = vrot.slane %v849, 1
        %v856 = vmul.f32 %v832, %v852
        %v857 = vmul.f32 %v833, %v853
        %v858 = vstv %s807
        %v859 = vadd.f32 %v858, %v24
        %v860 = vadd.f32 %v858, %v25
        %v863 = vrot.slane %v856, 5
        %v864 = vrot.slane %v857, 5
        %v867 = vsub.f32 %v859, %v863
        %v868 = vsub.f32 %v860, %v864
        %v869 = vmax.f32 %v867, 1e-08
        %v870 = vmax.f32 %v868, 1e-08
        %v873 = vrot.slane %v869, 3
        %v874 = vrot.slane %v870, 3
        %v877 = vrcp.pop %v873
        %v878 = vmul.f32 %v873, %v877
        %v879 = vsub.f32 1.0, %v878
        %v880 = vmul.f32 %v877, %v879
        %v881 = vadd.f32 %v877, %v880
        %vm882 = vweird.f32 %v873
        %vm883 = vweird.f32 %v877
        %vm884 = vmor %vm882, %vm883
        %v885 = vsel %vm884, %v877, %v881
        %v886 = vand.u32 2147483647, %v873
        %vm887 = vcmp.eq.f32.partialorder %v886, 8.507059e+37
        %v888 = vand.u32 %v873, 2147483648
        %v889 = vor.u32 1.1754944e-38, %v888
        %v890 = vsel %vm887, %v889, %v885
        %v891 = vmul.f32 %v856, %v890
        %v892 = vrcp.pop %v874
        %v893 = vmul.f32 %v874, %v892
        %v894 = vsub.f32 1.0, %v893
        %v895 = vmul.f32 %v892, %v894
        %v896 = vadd.f32 %v892, %v895
        %vm897 = vweird.f32 %v874
        %vm898 = vweird.f32 %v892
        %vm899 = vmor %vm897, %vm898
        %v900 = vsel %vm899, %v892, %v896
        %v901 = vand.u32 2147483647, %v874
        %vm902 = vcmp.eq.f32.partialorder %v901, 8.507059e+37
        %v903 = vand.u32 %v874, 2147483648
        %v904 = vor.u32 1.1754944e-38, %v903
        %v905 = vsel %vm902, %v904, %v900
        %v906 = vmul.f32 %v857, %v905
        %vm907 = vcmp.gt.f32.partialorder %v891, 0.7
        %vm908 = vcmp.gt.f32.partialorder %v906, 0.7
        %vm909 = vcmp.gt.s32.totalorder %v27, %v808
        %vm910 = vcmp.gt.s32.totalorder %v28, %v808
        %vm911 = vmand %vm907, %vm909
        %vm912 = vmand %vm908, %vm910
        %vm913 = vcmp.gt.f32.partialorder %v817, 0.0
        %v914 = vsel %vm913, 1, 0
        %vm915 = vcmp.eq.s32.totalorder %v914, 1
        %vm916 = vmand %vm911, %vm915
        %vm917 = vmand %vm912, %vm915
        %v918 = vsel %vm916, 0.0, %v796
        %v919 = vsel %vm917, 0.0, %v797
        %s920 = sadd.s32 %s55, 7
        %s921 = sld [smem:[#allocation3 + %s920]]
        %s922 = sadd.s32 %s55, 263
        %s923 = sld [smem:[#allocation3 + %s922]]
        %s924 = sadd.s32 %s55, 519
        %s925 = sld [smem:[#allocation3 + %s924]]
        %s926 = sadd.s32 %s55, 775
        %s927 = sld [smem:[#allocation3 + %s926]]
        %s928 = sadd.s32 %s55, 1031
        %s929 = sld [smem:[#allocation3 + %s928]]
        %v930 = vstv %s920
        %vm931 = vcmp.eq.s32.totalorder %v27, %v930
        %vm932 = vcmp.eq.s32.totalorder %v28, %v930
        %v933 = vsel %vm931, %v918, 0.0
        %v934 = vsel %vm932, %v919, 0.0
        %v935 = vsel %vm202, %v933, 0.0
        %v936 = vsel %vm202, %v934, 0.0
        %v937 = vadd.f32 %v935, %v936
        %938 = vadd.xlane.f32.xlu0 %v937
        %v939 = vpop.xlane.xlu0 %938
        %v940 = vstv %s925
        %v941 = vmin.f32 %v940, %v24
        %v942 = vmin.f32 %v940, %v25
        %v943 = vstv %s921
        %v944 = vmax.f32 %v943, %v24
        %v945 = vmax.f32 %v943, %v25
        %v948 = vrot.slane %v944, 6
        %v949 = vrot.slane %v945, 6
        %v952 = vsub.f32 %v941, %v948
        %v953 = vsub.f32 %v942, %v949
        %v954 = vmax.f32 %v952, 0.0
        %v955 = vmax.f32 %v953, 0.0
        %v956 = vstv %s927
        %v957 = vmin.f32 %v956, %v24
        %v958 = vmin.f32 %v956, %v25
        %v959 = vstv %s923
        %v960 = vmax.f32 %v959, %v24
        %v961 = vmax.f32 %v959, %v25
        %v964 = vrot.slane %v960, 6
        %v965 = vrot.slane %v961, 6
        %v968 = vsub.f32 %v957, %v964
        %v969 = vsub.f32 %v958, %v965
        %v970 = vmax.f32 %v968, 0.0
        %v971 = vmax.f32 %v969, 0.0
        %v974 = vrot.slane %v970, 1
        %v975 = vrot.slane %v971, 1
        %v978 = vmul.f32 %v954, %v974
        %v979 = vmul.f32 %v955, %v975
        %v980 = vstv %s929
        %v981 = vadd.f32 %v980, %v24
        %v982 = vadd.f32 %v980, %v25
        %v985 = vrot.slane %v978, 5
        %v986 = vrot.slane %v979, 5
        %v989 = vsub.f32 %v981, %v985
        %v990 = vsub.f32 %v982, %v986
        %v991 = vmax.f32 %v989, 1e-08
        %v992 = vmax.f32 %v990, 1e-08
        %v995 = vrot.slane %v991, 3
        %v996 = vrot.slane %v992, 3
        %v999 = vrcp.pop %v995
        %v1000 = vmul.f32 %v995, %v999
        %v1001 = vsub.f32 1.0, %v1000
        %v1002 = vmul.f32 %v999, %v1001
        %v1003 = vadd.f32 %v999, %v1002
        %vm1004 = vweird.f32 %v995
        %vm1005 = vweird.f32 %v999
        %vm1006 = vmor %vm1004, %vm1005
        %v1007 = vsel %vm1006, %v999, %v1003
        %v1008 = vand.u32 2147483647, %v995
        %vm1009 = vcmp.eq.f32.partialorder %v1008, 8.507059e+37
        %v1010 = vand.u32 %v995, 2147483648
        %v1011 = vor.u32 1.1754944e-38, %v1010
        %v1012 = vsel %vm1009, %v1011, %v1007
        %v1013 = vmul.f32 %v978, %v1012
        %v1014 = vrcp.pop %v996
        %v1015 = vmul.f32 %v996, %v1014
        %v1016 = vsub.f32 1.0, %v1015
        %v1017 = vmul.f32 %v1014, %v1016
        %v1018 = vadd.f32 %v1014, %v1017
        %vm1019 = vweird.f32 %v996
        %vm1020 = vweird.f32 %v1014
        %vm1021 = vmor %vm1019, %vm1020
        %v1022 = vsel %vm1021, %v1014, %v1018
        %v1023 = vand.u32 2147483647, %v996
        %vm1024 = vcmp.eq.f32.partialorder %v1023, 8.507059e+37
        %v1025 = vand.u32 %v996, 2147483648
        %v1026 = vor.u32 1.1754944e-38, %v1025
        %v1027 = vsel %vm1024, %v1026, %v1022
        %v1028 = vmul.f32 %v979, %v1027
        %vm1029 = vcmp.gt.f32.partialorder %v1013, 0.7
        %vm1030 = vcmp.gt.f32.partialorder %v1028, 0.7
        %vm1031 = vcmp.gt.s32.totalorder %v27, %v930
        %vm1032 = vcmp.gt.s32.totalorder %v28, %v930
        %vm1033 = vmand %vm1029, %vm1031
        %vm1034 = vmand %vm1030, %vm1032
        %vm1035 = vcmp.gt.f32.partialorder %v939, 0.0
        %v1036 = vsel %vm1035, 1, 0
        %vm1037 = vcmp.eq.s32.totalorder %v1036, 1
        %vm1038 = vmand %vm1033, %vm1037
        %vm1039 = vmand %vm1034, %vm1037
        %v1040 = vsel %vm1038, 0.0, %v918
        %v1041 = vsel %vm1039, 0.0, %v919
        %1044 = vst [vmem:[#allocation1] sm:$0xff] %v1040
        %1045 = vst [vmem:[#allocation1 + $0x9] sm:$0xff] %v1041
        %s1046 = scalar_lea.vmem [#allocation1], 2
        %v1047 = vld [vmem:[%s1046] ss:$9 sm:$0xff]
        %1049 = vst.msk [vmem:[%s2] sm:$0x3] %vm39, %v1047
        %s1050 = sadd.s32 %s55, 8
        %v1051 = vstv %s1050
        %vm1052 = vcmp.lt.s32.totalorder %v27, %v1051
        %vm1053 = vcmp.lt.s32.totalorder %v28, %v1051
        %v1054 = vsel %vm1052, %v1040, 0.0
        %v1055 = vsel %vm1053, %v1041, 0.0
        %v1056 = vsel %vm202, %v1054, 0.0
        %v1057 = vsel %vm202, %v1055, 0.0
        %v1058 = vadd.f32 %v1056, %v1057
        %1059 = vadd.xlane.f32.xlu0 %v1058
        %v1060 = vpop.xlane.xlu0 %1059
        %vm1061 = vcmask 2050
        %1062 = vst.msk [vmem:[#allocation2 - $0x2] sm:$0x4] %vm1061, %v1060
      $region24: #{rpn_forward.5} parent=17 // pred_fallthru
        _
    $region18: #{rpn_forward.5} parent=1 // loop_footer
      %s48 = sadd.s32 1, %s44
    $region19: #{rpn_forward.5} parent=1 // loop_footer_branch
      %43 = sbr.rel target = $region15
    $region20: #{rpn_forward.5} parent=1 // loop_exit
      _
    // Predicated region
    $region25: #{rpn_forward.5} parent=1 // pred_check
      _
    $region26: #{rpn_forward.5} parent=1 // pred_check_branch
      %1064 = sbr.rel (0) target = $region28
    $region27: #{rpn_forward.5} parent=1 // pred_region
      _
    $region28: #{rpn_forward.5} parent=1 // pred_fallthru
      _
    // Predicated region
    $region29: #{rpn_forward.5} parent=1 // pred_check
      _
    $region30: #{rpn_forward.5} parent=1 // pred_check_branch
      %1066 = sbr.rel (0) target = $region32
    $region31: #{rpn_forward.5} parent=1 // pred_region
      _
    $region32: #{rpn_forward.5} parent=1 // pred_fallthru
      _
    %1067 = vsyncpa [#allocation4], 1

</llo_original>
